<compile_context>
chip_gen: v5e
topology: v5e:2x2
jax: 0.10.0
libtpu: 0.0.40
codegen_flags: <defaults>
</compile_context>

<pallas_src>
import math

import jax
import jax.numpy as jnp
from jax.experimental import pallas as pl
from jax.experimental.pallas import tpu as pltpu

NEG_INF = -1000000000.0  # exact constant used by the torch module


def _controller_kernel(x_ref, net_ref, flag_ref,
                       wqkv_ref, bqkv_ref, wdq_ref, wdk_ref, wdv_ref, wg_ref,
                       scores_ref, hc_ref,
                       qkv_sc, enc_sc):
    """One grid step = one local-agent index `a` x one batch block of S samples.

    Layout: S (samples) on lanes, A (neighbors) / D (features) on sublanes.
    """
    a = pl.program_id(1)                   # local agent index for this step
    A, OBS, S = x_ref.shape                # neighbors, obs_dim, samples-per-block
    D = wdq_ref.shape[0]
    scale = 1.0 / math.sqrt(D)

    net = net_ref[...]                     # (A, S) neighbor_masks row of agent `a`
    tok = net != 0.0                       # (A, S) src_mask_tokens
    tok_f = tok.astype(jnp.float32)
    gate = flag_ref[...] != 0.0            # (1, S) local_padding_flags

    # ---- fused src_embed + encoder QKV projection (one matmul per neighbor) ----
    wqkv = wqkv_ref[...]                   # (3D, OBS)  (W_embed @ W_qkv)^T
    bqkv = bqkv_ref[...]                   # (3D, 1)
    for n in range(A):
        qkv_sc[n, :, :] = jnp.dot(wqkv, x_ref[n],
                                  preferred_element_type=jnp.float32) + bqkv

    # ---- encoder: masked single-head self-attention (VPU broadcast-reduce) ----
    for nq in range(A):
        q_nq = qkv_sc[nq, 0:D, :]                                       # (D, S)
        tq = tok[nq:nq + 1, :]                                          # (1, S)
        s_rows = []
        for nk in range(A):
            s_nk = jnp.sum(q_nq * qkv_sc[nk, D:2 * D, :],
                           axis=0, keepdims=True) * scale               # (1, S)
            s_rows.append(jnp.where(tq & tok[nk:nk + 1, :], s_nk, NEG_INF))
        m = s_rows[0]
        for nk in range(1, A):
            m = jnp.maximum(m, s_rows[nk])
        p_rows = [jnp.exp(s - m) for s in s_rows]
        denom = p_rows[0]
        for nk in range(1, A):
            denom = denom + p_rows[nk]
        inv = 1.0 / denom                                                # exact
        acc = jnp.zeros((D, S), jnp.float32)
        for nk in range(A):
            acc = acc + (p_rows[nk] * inv) * qkv_sc[nk, 2 * D:3 * D, :]
        enc_sc[nq, :, :] = acc

    # ---- get_context_vector: masked mean over non-padded neighbors ----
    cnt = jnp.maximum(jnp.sum(tok_f, axis=0, keepdims=True), 1.0)        # (1, S)
    # TODO(synk): torch raises ValueError when a non-padded sample has zero
    # non-padded neighbors (debug path via is_from_my_env); a data-dependent
    # raise is not expressible in a kernel, so cnt is clamped to 1 instead.
    hc = jnp.zeros((D, S), jnp.float32)
    for n in range(A):
        hc = hc + tok_f[n:n + 1, :] * enc_sc[n, :, :]
    hc = hc * (1.0 / cnt)                                                # (D, S)

    # ---- decoder: single-head cross-attention, query = h_c ----
    q2 = jnp.dot(wdq_ref[...], hc, preferred_element_type=jnp.float32)   # (D, S)
    wdk = wdk_ref[...]
    wdv = wdv_ref[...]
    s2_rows = []
    for n in range(A):
        k2_n = jnp.dot(wdk, enc_sc[n, :, :], preferred_element_type=jnp.float32)
        s_n = jnp.sum(q2 * k2_n, axis=0, keepdims=True) * scale          # (1, S)
        s2_rows.append(jnp.where(tok[n:n + 1, :], s_n, NEG_INF))         # src_tgt_mask
    m2 = s2_rows[0]
    for n in range(1, A):
        m2 = jnp.maximum(m2, s2_rows[n])
    p2_rows = [jnp.exp(s - m2) for s in s2_rows]
    denom2 = p2_rows[0]
    for n in range(1, A):
        denom2 = denom2 + p2_rows[n]
    inv2 = 1.0 / denom2                                                   # exact
    dec = jnp.zeros((D, S), jnp.float32)
    for n in range(A):
        v2_n = jnp.dot(wdv, enc_sc[n, :, :], preferred_element_type=jnp.float32)
        dec = dec + (p2_rows[n] * inv2) * v2_n                            # (D, S)

    # ---- generator: pointer score vs this agent's own encoder embedding ----
    emb = enc_sc[a]                               # dynamic slice (no one-hot select)
    g = jnp.dot(wg_ref[...], dec, preferred_element_type=jnp.float32)     # (D, S)
    logit = 10.0 * jnp.tanh(jnp.sum(g * emb, axis=0, keepdims=True) * scale)  # (1, S)
    # TODO(synk): the injected torch generator is realized as a pointer head that
    # emits one score per (sample, local agent), broadcast over neighbor columns
    # and masked by src_tgt_mask (same synthetic realization as before).
    scores = jnp.where(tok, logit, NEG_INF)                                # (A, S)

    # ---- local_padding_flags gate (replaces torch boolean-mask scatter) ----
    scores_ref[...] = jnp.where(gate, scores, NEG_INF)                     # lane-dense store
    hc_gated = jnp.where(gate, hc, 0.0)

    # h_c_N accumulated across the innermost ("arbitrary") agent grid axis; the
    # output block index is constant in `a`, so the block stays VMEM-resident.
    @pl.when(a == 0)
    def _init():
        hc_ref[...] = jnp.zeros_like(hc_ref)
    hc_ref[...] += hc_gated


def init_params(key, obs_dim, d_embed):
    ks = jax.random.split(key, 4)

    def w(k, shape, fan_in):
        return jax.random.normal(k, shape, jnp.float32) / math.sqrt(fan_in)

    return dict(
        we=w(ks[0], (obs_dim, d_embed), obs_dim),
        be=jnp.zeros((1, d_embed), jnp.float32),
        w_enc_qkv=w(ks[1], (3, d_embed, d_embed), d_embed),
        w_dec_qkv=w(ks[2], (3, d_embed, d_embed), d_embed),
        w_gen_qk=w(ks[3], (2, d_embed, d_embed), d_embed),
    )


def lazy_controller_forward(params, agent_infos, network, padding_mask,
                            is_from_my_env, *, sample_block=512):
    """Matches LazyControllerTorch.forward.

    agent_infos: (B, A, A, obs_dim)   network: (B, A, A)
    padding_mask: (B, A)              is_from_my_env: (B,)
    returns (att_scores (B, A, A), average_h_c_N (B, 1, d_embed_context))
    """
    B, A, A2, OBS = agent_infos.shape
    assert A2 == A
    assert sample_block % 128 == 0
    D = params["we"].shape[1]
    # TODO(synk): is_from_my_env only drives a torch-side debug assertion; it has
    # no effect on returned values, so it is not consumed by the kernel.
    del is_from_my_env

    # ---- sample-block size (lane axis): one block for tiny batches, otherwise a
    # multiple of 128 chosen so the parallel batch axis splits into >=2 blocks
    # (keeps a second TensorCore busy on megacore parts), capped at sample_block.
    if B <= 128:
        S = B
    else:
        S = min(sample_block, 128 * (-(-B // 256)))
    Bb = -(-B // S)
    B_pad = Bb * S
    if B_pad != B:
        pad = B_pad - B
        agent_infos_p = jnp.pad(agent_infos, ((0, pad), (0, 0), (0, 0), (0, 0)))
        network_p = jnp.pad(network, ((0, pad), (0, 0), (0, 0)))
        padding_mask_p = jnp.pad(padding_mask, ((0, pad), (0, 0)))
    else:
        agent_infos_p, network_p, padding_mask_p = agent_infos, network, padding_mask

    # ---- batch-last ("S on lanes") layouts: every in-kernel element-wise /
    # softmax op and every store is lane-dense, and each per-step DMA reads
    # S*4-byte runs instead of 256-byte strided rows.
    x_t = jnp.transpose(agent_infos_p.astype(jnp.float32), (1, 2, 3, 0))      # (A, A, OBS, B_pad)
    net_t = jnp.transpose(network_p.astype(jnp.float32), (1, 2, 0))           # (A, A, B_pad)
    flags_t = jnp.transpose(padding_mask_p.astype(jnp.float32), (1, 0))[:, None, :]  # (A, 1, B_pad)

    # ---- host-side weight fusion (no nonlinearity between src_embed and the
    # encoder QKV projection, nor between the two generator projections) ----
    we, be = params["we"], params["be"]
    wenc = jnp.concatenate([params["w_enc_qkv"][0],
                            params["w_enc_qkv"][1],
                            params["w_enc_qkv"][2]], axis=1)                   # (D, 3D)
    wqkv_t = (we @ wenc).T                                                     # (3D, OBS)
    bqkv_t = (be @ wenc).T                                                     # (3D, 1)
    wdq_t = params["w_dec_qkv"][0].T                                           # (D, D)
    wdk_t = params["w_dec_qkv"][1].T                                           # (D, D)
    wdv_t = params["w_dec_qkv"][2].T                                           # (D, D)
    wg_t = params["w_gen_qk"][1] @ params["w_gen_qk"][0].T                     # (Wq @ Wk^T)^T

    grid = (Bb, A)  # batch blocks (parallel) x local agent index (arbitrary, innermost)

    scores_t, hc_sum = pl.pallas_call(
        _controller_kernel,
        grid=grid,
        in_specs=[
            pl.BlockSpec((None, A, OBS, S), lambda b, a: (a, 0, 0, b)),        # agent_infos
            pl.BlockSpec((None, A, S), lambda b, a: (a, 0, b)),                # neighbor_masks
            pl.BlockSpec((None, 1, S), lambda b, a: (a, 0, b)),                # local padding flags
            pl.BlockSpec((3 * D, OBS), lambda b, a: (0, 0)),                   # fused embed+QKV W
            pl.BlockSpec((3 * D, 1), lambda b, a: (0, 0)),                     # fused bias
            pl.BlockSpec((D, D), lambda b, a: (0, 0)),                         # decoder Wq^T
            pl.BlockSpec((D, D), lambda b, a: (0, 0)),                         # decoder Wk^T
            pl.BlockSpec((D, D), lambda b, a: (0, 0)),                         # decoder Wv^T
            pl.BlockSpec((D, D), lambda b, a: (0, 0)),                         # generator fused W
        ],
        out_specs=[
            pl.BlockSpec((None, A, S), lambda b, a: (a, 0, b)),                # scores, lane-dense
            pl.BlockSpec((D, S), lambda b, a: (0, b)),                          # resident h_c accumulator
        ],
        out_shape=(
            jax.ShapeDtypeStruct((A, A, B_pad), jnp.float32),
            jax.ShapeDtypeStruct((D, B_pad), jnp.float32),
        ),
        scratch_shapes=[
            pltpu.VMEM((A, 3 * D, S), jnp.float32),    # per-neighbor q/k/v
            pltpu.VMEM((A, D, S), jnp.float32),        # per-neighbor encoder outputs
        ],
        # Total VMEM use (blocks + scratch) is ~2 MiB even at S=512, well inside
        # the default scoped limit on every generation (incl. v7x's 64 MiB).
        compiler_params=pltpu.CompilerParams(
            dimension_semantics=("parallel", "arbitrary"),
        ),
    )(x_t, net_t, flags_t, wqkv_t, bqkv_t, wdq_t, wdk_t, wdv_t, wg_t)

    # ---- un-flatten exactly as the torch code does (tiny output tensors) ----
    att_scores = jnp.transpose(scores_t[:, :, :B], (2, 0, 1))                  # (B, A, A)
    num_agents = jnp.sum(padding_mask, axis=1).astype(jnp.float32)             # (B,)
    denom = jnp.maximum(num_agents, 1.0)
    # TODO(synk): torch divides by the unclamped count (nan / debug raise if a
    # sample is fully padded); clamped to 1 here to keep outputs finite.
    average_h_c_N = (hc_sum[:, :B].T / denom[:, None])[:, None, :]             # (B, 1, D)
    return att_scores, average_h_c_N


if __name__ == "__main__":
    B, A, OBS, D = 2, 8, 8, 32   # batch, num_agents_max, obs_dim, d_embed_context

    key = jax.random.PRNGKey(0)
    k_par, k_x, k_net = jax.random.split(key, 3)
    params = init_params(k_par, OBS, D)

    agent_infos = jax.random.normal(k_x, (B, A, A, OBS), jnp.float32)
    # sample 0: all 8 agents live; sample 1: last 2 agents padded.
    padding_mask = jnp.array([[1.0] * A, [1.0] * 6 + [0.0] * 2], jnp.float32)
    rand_net = (jax.random.uniform(k_net, (B, A, A)) > 0.4).astype(jnp.float32)
    network = jnp.maximum(rand_net, jnp.eye(A, dtype=jnp.float32))             # self-edge
    network = network * padding_mask[:, None, :] * padding_mask[:, :, None]    # zero padded rows/cols
    is_from_my_env = jnp.ones((B,), jnp.bool_)

    att_scores, average_h_c_N = lazy_controller_forward(
        params, agent_infos, network, padding_mask, is_from_my_env)
    jax.block_until_ready((att_scores, average_h_c_N))

    assert att_scores.shape == (B, A, A)
    assert average_h_c_N.shape == (B, 1, D)
    assert bool(jnp.isfinite(average_h_c_N).all())
    print("KERNEL_OK")
</pallas_src>

<mosaic_0001>
module attributes {stable_mosaic.version = 11 : i64} {
  func.func @_controller_kernel(%arg0: i32, %arg1: i32, %arg2: memref<1x8x8x2xf32, #tpu.memory_space<vmem>>, %arg3: memref<1x8x2xf32, #tpu.memory_space<vmem>>, %arg4: memref<1x1x2xf32, #tpu.memory_space<vmem>>, %arg5: memref<96x8xf32, #tpu.memory_space<vmem>>, %arg6: memref<96x1xf32, #tpu.memory_space<vmem>>, %arg7: memref<32x32xf32, #tpu.memory_space<vmem>>, %arg8: memref<32x32xf32, #tpu.memory_space<vmem>>, %arg9: memref<32x32xf32, #tpu.memory_space<vmem>>, %arg10: memref<32x32xf32, #tpu.memory_space<vmem>>, %arg11: memref<1x8x2xf32, #tpu.memory_space<vmem>>, %arg12: memref<32x2xf32, #tpu.memory_space<vmem>>, %arg13: memref<8x96x2xf32, #tpu.memory_space<vmem>>, %arg14: memref<8x32x2xf32, #tpu.memory_space<vmem>>) attributes {dimension_semantics = [#tpu.dimension_semantics<parallel>, #tpu.dimension_semantics<arbitrary>], iteration_bounds = array<i64: 1, 8>, scalar_prefetch = 0 : i64, scratch_operands = 2 : i64, tpu.core_type = #tpu.core_type<tc>, window_params = [{transform_indices = @transform_0, window_bounds = array<i64: 1, 8, 8, 2>}, {transform_indices = @transform_1, window_bounds = array<i64: 1, 8, 2>}, {transform_indices = @transform_2, window_bounds = array<i64: 1, 1, 2>}, {pipeline_mode = #tpu.pipeline_mode<synchronous>, transform_indices = @transform_3, window_bounds = array<i64: 96, 8>}, {pipeline_mode = #tpu.pipeline_mode<synchronous>, transform_indices = @transform_4, window_bounds = array<i64: 96, 1>}, {pipeline_mode = #tpu.pipeline_mode<synchronous>, transform_indices = @transform_5, window_bounds = array<i64: 32, 32>}, {pipeline_mode = #tpu.pipeline_mode<synchronous>, transform_indices = @transform_6, window_bounds = array<i64: 32, 32>}, {pipeline_mode = #tpu.pipeline_mode<synchronous>, transform_indices = @transform_7, window_bounds = array<i64: 32, 32>}, {pipeline_mode = #tpu.pipeline_mode<synchronous>, transform_indices = @transform_8, window_bounds = array<i64: 32, 32>}, {transform_indices = @transform_9, window_bounds = array<i64: 1, 8, 2>}, {transform_indices = @transform_10, window_bounds = array<i64: 32, 2>}]} {
    %c0 = arith.constant 0 : index
    %c0_0 = arith.constant 0 : index
    %c0_1 = arith.constant 0 : index
    %0 = vector.load %arg3[%c0, %c0_0, %c0_1] : memref<1x8x2xf32, #tpu.memory_space<vmem>>, vector<1x8x2xf32>
    %1 = vector.shape_cast %0 : vector<1x8x2xf32> to vector<8x2xf32>
    %cst = arith.constant 0.000000e+00 : f32
    %2 = vector.broadcast %cst : f32 to vector<8x2xf32>
    %3 = arith.cmpf one, %1, %2 : vector<8x2xf32>
    %4 = arith.extui %3 : vector<8x2xi1> to vector<8x2xi32>
    %5 = arith.sitofp %4 : vector<8x2xi32> to vector<8x2xf32>
    %c0_2 = arith.constant 0 : index
    %c0_3 = arith.constant 0 : index
    %c0_4 = arith.constant 0 : index
    %6 = vector.load %arg4[%c0_2, %c0_3, %c0_4] : memref<1x1x2xf32, #tpu.memory_space<vmem>>, vector<1x1x2xf32>
    %7 = vector.shape_cast %6 : vector<1x1x2xf32> to vector<1x2xf32>
    %cst_5 = arith.constant 0.000000e+00 : f32
    %8 = vector.broadcast %cst_5 : f32 to vector<1x2xf32>
    %9 = arith.cmpf one, %7, %8 : vector<1x2xf32>
    %c0_6 = arith.constant 0 : index
    %c0_7 = arith.constant 0 : index
    %10 = vector.load %arg5[%c0_6, %c0_7] : memref<96x8xf32, #tpu.memory_space<vmem>>, vector<96x8xf32>
    %c0_8 = arith.constant 0 : index
    %c0_9 = arith.constant 0 : index
    %11 = vector.load %arg6[%c0_8, %c0_9] : memref<96x1xf32, #tpu.memory_space<vmem>>, vector<96x1xf32>
    %c0_10 = arith.constant 0 : index
    %c0_11 = arith.constant 0 : index
    %c0_12 = arith.constant 0 : index
    %c0_13 = arith.constant 0 : index
    %12 = vector.load %arg2[%c0_10, %c0_11, %c0_12, %c0_13] : memref<1x8x8x2xf32, #tpu.memory_space<vmem>>, vector<1x1x8x2xf32>
    %13 = vector.shape_cast %12 : vector<1x1x8x2xf32> to vector<8x2xf32>
    %cst_14 = arith.constant dense<0.000000e+00> : vector<96x2xf32>
    %14 = tpu.matmul %10, %13, %cst_14 {dimension_numbers = #tpu.dot_dimension_numbers<[1], [0], [0], [1], [0, 0, 1, 1], [], []>} : vector<96x8xf32>, vector<8x2xf32>, vector<96x2xf32> -> vector<96x2xf32>
    %15 = vector.broadcast %11 : vector<96x1xf32> to vector<96x2xf32>
    %16 = arith.addf %14, %15 : vector<96x2xf32>
    %c0_15 = arith.constant 0 : index
    %c0_16 = arith.constant 0 : index
    %c0_17 = arith.constant 0 : index
    %17 = vector.load %arg13[%c0_15, %c0_16, %c0_17] : memref<8x96x2xf32, #tpu.memory_space<vmem>>, vector<1x96x2xf32>
    %18 = vector.shape_cast %17 : vector<1x96x2xf32> to vector<96x2xf32>
    %19 = vector.shape_cast %16 : vector<96x2xf32> to vector<1x96x2xf32>
    tpu.vector_store %arg13[%c0_15, %c0_16, %c0_17], %19 {strides = array<i32>} : memref<8x96x2xf32, #tpu.memory_space<vmem>>, vector<1x96x2xf32>,
    %c0_18 = arith.constant 0 : index
    %c1 = arith.constant 1 : index
    %c0_19 = arith.constant 0 : index
    %c0_20 = arith.constant 0 : index
    %20 = vector.load %arg2[%c0_18, %c1, %c0_19, %c0_20] : memref<1x8x8x2xf32, #tpu.memory_space<vmem>>, vector<1x1x8x2xf32>
    %21 = vector.shape_cast %20 : vector<1x1x8x2xf32> to vector<8x2xf32>
    %cst_21 = arith.constant dense<0.000000e+00> : vector<96x2xf32>
    %22 = tpu.matmul %10, %21, %cst_21 {dimension_numbers = #tpu.dot_dimension_numbers<[1], [0], [0], [1], [0, 0, 1, 1], [], []>} : vector<96x8xf32>, vector<8x2xf32>, vector<96x2xf32> -> vector<96x2xf32>
    %23 = vector.broadcast %11 : vector<96x1xf32> to vector<96x2xf32>
    %24 = arith.addf %22, %23 : vector<96x2xf32>
    %c1_22 = arith.constant 1 : index
    %c0_23 = arith.constant 0 : index
    %c0_24 = arith.constant 0 : index
    %25 = vector.load %arg13[%c1_22, %c0_23, %c0_24] : memref<8x96x2xf32, #tpu.memory_space<vmem>>, vector<1x96x2xf32>
    %26 = vector.shape_cast %25 : vector<1x96x2xf32> to vector<96x2xf32>
    %27 = vector.shape_cast %24 : vector<96x2xf32> to vector<1x96x2xf32>
    tpu.vector_store %arg13[%c1_22, %c0_23, %c0_24], %27 {strides = array<i32>} : memref<8x96x2xf32, #tpu.memory_space<vmem>>, vector<1x96x2xf32>,
    %c0_25 = arith.constant 0 : index
    %c2 = arith.constant 2 : index
    %c0_26 = arith.constant 0 : index
    %c0_27 = arith.constant 0 : index
    %28 = vector.load %arg2[%c0_25, %c2, %c0_26, %c0_27] : memref<1x8x8x2xf32, #tpu.memory_space<vmem>>, vector<1x1x8x2xf32>
    %29 = vector.shape_cast %28 : vector<1x1x8x2xf32> to vector<8x2xf32>
    %cst_28 = arith.constant dense<0.000000e+00> : vector<96x2xf32>
    %30 = tpu.matmul %10, %29, %cst_28 {dimension_numbers = #tpu.dot_dimension_numbers<[1], [0], [0], [1], [0, 0, 1, 1], [], []>} : vector<96x8xf32>, vector<8x2xf32>, vector<96x2xf32> -> vector<96x2xf32>
    %31 = vector.broadcast %11 : vector<96x1xf32> to vector<96x2xf32>
    %32 = arith.addf %30, %31 : vector<96x2xf32>
    %c2_29 = arith.constant 2 : index
    %c0_30 = arith.constant 0 : index
    %c0_31 = arith.constant 0 : index
    %33 = vector.load %arg13[%c2_29, %c0_30, %c0_31] : memref<8x96x2xf32, #tpu.memory_space<vmem>>, vector<1x96x2xf32>
    %34 = vector.shape_cast %33 : vector<1x96x2xf32> to vector<96x2xf32>
    %35 = vector.shape_cast %32 : vector<96x2xf32> to vector<1x96x2xf32>
    tpu.vector_store %arg13[%c2_29, %c0_30, %c0_31], %35 {strides = array<i32>} : memref<8x96x2xf32, #tpu.memory_space<vmem>>, vector<1x96x2xf32>,
    %c0_32 = arith.constant 0 : index
    %c3 = arith.constant 3 : index
    %c0_33 = arith.constant 0 : index
    %c0_34 = arith.constant 0 : index
    %36 = vector.load %arg2[%c0_32, %c3, %c0_33, %c0_34] : memref<1x8x8x2xf32, #tpu.memory_space<vmem>>, vector<1x1x8x2xf32>
    %37 = vector.shape_cast %36 : vector<1x1x8x2xf32> to vector<8x2xf32>
    %cst_35 = arith.constant dense<0.000000e+00> : vector<96x2xf32>
    %38 = tpu.matmul %10, %37, %cst_35 {dimension_numbers = #tpu.dot_dimension_numbers<[1], [0], [0], [1], [0, 0, 1, 1], [], []>} : vector<96x8xf32>, vector<8x2xf32>, vector<96x2xf32> -> vector<96x2xf32>
    %39 = vector.broadcast %11 : vector<96x1xf32> to vector<96x2xf32>
    %40 = arith.addf %38, %39 : vector<96x2xf32>
    %c3_36 = arith.constant 3 : index
    %c0_37 = arith.constant 0 : index
    %c0_38 = arith.constant 0 : index
    %41 = vector.load %arg13[%c3_36, %c0_37, %c0_38] : memref<8x96x2xf32, #tpu.memory_space<vmem>>, vector<1x96x2xf32>
    %42 = vector.shape_cast %41 : vector<1x96x2xf32> to vector<96x2xf32>
    %43 = vector.shape_cast %40 : vector<96x2xf32> to vector<1x96x2xf32>
    tpu.vector_store %arg13[%c3_36, %c0_37, %c0_38], %43 {strides = array<i32>} : memref<8x96x2xf32, #tpu.memory_space<vmem>>, vector<1x96x2xf32>,
    %c0_39 = arith.constant 0 : index
    %c4 = arith.constant 4 : index
    %c0_40 = arith.constant 0 : index
    %c0_41 = arith.constant 0 : index
    %44 = vector.load %arg2[%c0_39, %c4, %c0_40, %c0_41] : memref<1x8x8x2xf32, #tpu.memory_space<vmem>>, vector<1x1x8x2xf32>
    %45 = vector.shape_cast %44 : vector<1x1x8x2xf32> to vector<8x2xf32>
    %cst_42 = arith.constant dense<0.000000e+00> : vector<96x2xf32>
    %46 = tpu.matmul %10, %45, %cst_42 {dimension_numbers = #tpu.dot_dimension_numbers<[1], [0], [0], [1], [0, 0, 1, 1], [], []>} : vector<96x8xf32>, vector<8x2xf32>, vector<96x2xf32> -> vector<96x2xf32>
    %47 = vector.broadcast %11 : vector<96x1xf32> to vector<96x2xf32>
    %48 = arith.addf %46, %47 : vector<96x2xf32>
    %c4_43 = arith.constant 4 : index
    %c0_44 = arith.constant 0 : index
    %c0_45 = arith.constant 0 : index
    %49 = vector.load %arg13[%c4_43, %c0_44, %c0_45] : memref<8x96x2xf32, #tpu.memory_space<vmem>>, vector<1x96x2xf32>
    %50 = vector.shape_cast %49 : vector<1x96x2xf32> to vector<96x2xf32>
    %51 = vector.shape_cast %48 : vector<96x2xf32> to vector<1x96x2xf32>
    tpu.vector_store %arg13[%c4_43, %c0_44, %c0_45], %51 {strides = array<i32>} : memref<8x96x2xf32, #tpu.memory_space<vmem>>, vector<1x96x2xf32>,
    %c0_46 = arith.constant 0 : index
    %c5 = arith.constant 5 : index
    %c0_47 = arith.constant 0 : index
    %c0_48 = arith.constant 0 : index
    %52 = vector.load %arg2[%c0_46, %c5, %c0_47, %c0_48] : memref<1x8x8x2xf32, #tpu.memory_space<vmem>>, vector<1x1x8x2xf32>
    %53 = vector.shape_cast %52 : vector<1x1x8x2xf32> to vector<8x2xf32>
    %cst_49 = arith.constant dense<0.000000e+00> : vector<96x2xf32>
    %54 = tpu.matmul %10, %53, %cst_49 {dimension_numbers = #tpu.dot_dimension_numbers<[1], [0], [0], [1], [0, 0, 1, 1], [], []>} : vector<96x8xf32>, vector<8x2xf32>, vector<96x2xf32> -> vector<96x2xf32>
    %55 = vector.broadcast %11 : vector<96x1xf32> to vector<96x2xf32>
    %56 = arith.addf %54, %55 : vector<96x2xf32>
    %c5_50 = arith.constant 5 : index
    %c0_51 = arith.constant 0 : index
    %c0_52 = arith.constant 0 : index
    %57 = vector.load %arg13[%c5_50, %c0_51, %c0_52] : memref<8x96x2xf32, #tpu.memory_space<vmem>>, vector<1x96x2xf32>
    %58 = vector.shape_cast %57 : vector<1x96x2xf32> to vector<96x2xf32>
    %59 = vector.shape_cast %56 : vector<96x2xf32> to vector<1x96x2xf32>
    tpu.vector_store %arg13[%c5_50, %c0_51, %c0_52], %59 {strides = array<i32>} : memref<8x96x2xf32, #tpu.memory_space<vmem>>, vector<1x96x2xf32>,
    %c0_53 = arith.constant 0 : index
    %c6 = arith.constant 6 : index
    %c0_54 = arith.constant 0 : index
    %c0_55 = arith.constant 0 : index
    %60 = vector.load %arg2[%c0_53, %c6, %c0_54, %c0_55] : memref<1x8x8x2xf32, #tpu.memory_space<vmem>>, vector<1x1x8x2xf32>
    %61 = vector.shape_cast %60 : vector<1x1x8x2xf32> to vector<8x2xf32>
    %cst_56 = arith.constant dense<0.000000e+00> : vector<96x2xf32>
    %62 = tpu.matmul %10, %61, %cst_56 {dimension_numbers = #tpu.dot_dimension_numbers<[1], [0], [0], [1], [0, 0, 1, 1], [], []>} : vector<96x8xf32>, vector<8x2xf32>, vector<96x2xf32> -> vector<96x2xf32>
    %63 = vector.broadcast %11 : vector<96x1xf32> to vector<96x2xf32>
    %64 = arith.addf %62, %63 : vector<96x2xf32>
    %c6_57 = arith.constant 6 : index
    %c0_58 = arith.constant 0 : index
    %c0_59 = arith.constant 0 : index
    %65 = vector.load %arg13[%c6_57, %c0_58, %c0_59] : memref<8x96x2xf32, #tpu.memory_space<vmem>>, vector<1x96x2xf32>
    %66 = vector.shape_cast %65 : vector<1x96x2xf32> to vector<96x2xf32>
    %67 = vector.shape_cast %64 : vector<96x2xf32> to vector<1x96x2xf32>
    tpu.vector_store %arg13[%c6_57, %c0_58, %c0_59], %67 {strides = array<i32>} : memref<8x96x2xf32, #tpu.memory_space<vmem>>, vector<1x96x2xf32>,
    %c0_60 = arith.constant 0 : index
    %c7 = arith.constant 7 : index
    %c0_61 = arith.constant 0 : index
    %c0_62 = arith.constant 0 : index
    %68 = vector.load %arg2[%c0_60, %c7, %c0_61, %c0_62] : memref<1x8x8x2xf32, #tpu.memory_space<vmem>>, vector<1x1x8x2xf32>
    %69 = vector.shape_cast %68 : vector<1x1x8x2xf32> to vector<8x2xf32>
    %cst_63 = arith.constant dense<0.000000e+00> : vector<96x2xf32>
    %70 = tpu.matmul %10, %69, %cst_63 {dimension_numbers = #tpu.dot_dimension_numbers<[1], [0], [0], [1], [0, 0, 1, 1], [], []>} : vector<96x8xf32>, vector<8x2xf32>, vector<96x2xf32> -> vector<96x2xf32>
    %71 = vector.broadcast %11 : vector<96x1xf32> to vector<96x2xf32>
    %72 = arith.addf %70, %71 : vector<96x2xf32>
    %c7_64 = arith.constant 7 : index
    %c0_65 = arith.constant 0 : index
    %c0_66 = arith.constant 0 : index
    %73 = vector.load %arg13[%c7_64, %c0_65, %c0_66] : memref<8x96x2xf32, #tpu.memory_space<vmem>>, vector<1x96x2xf32>
    %74 = vector.shape_cast %73 : vector<1x96x2xf32> to vector<96x2xf32>
    %75 = vector.shape_cast %72 : vector<96x2xf32> to vector<1x96x2xf32>
    tpu.vector_store %arg13[%c7_64, %c0_65, %c0_66], %75 {strides = array<i32>} : memref<8x96x2xf32, #tpu.memory_space<vmem>>, vector<1x96x2xf32>,
    %c0_67 = arith.constant 0 : index
    %c0_68 = arith.constant 0 : index
    %c0_69 = arith.constant 0 : index
    %76 = vector.load %arg13[%c0_67, %c0_68, %c0_69] : memref<8x96x2xf32, #tpu.memory_space<vmem>>, vector<1x32x2xf32>
    %77 = vector.shape_cast %76 : vector<1x32x2xf32> to vector<32x2xf32>
    %78 = vector.extract_strided_slice %3 {offsets = [0, 0], sizes = [1, 2], strides = [1, 1]} : vector<8x2xi1> to vector<1x2xi1>
    %c0_70 = arith.constant 0 : index
    %c32 = arith.constant 32 : index
    %c0_71 = arith.constant 0 : index
    %79 = vector.load %arg13[%c0_70, %c32, %c0_71] : memref<8x96x2xf32, #tpu.memory_space<vmem>>, vector<1x32x2xf32>
    %80 = vector.shape_cast %79 : vector<1x32x2xf32> to vector<32x2xf32>
    %81 = arith.mulf %77, %80 : vector<32x2xf32>
    %cst_72 = arith.constant dense<0.000000e+00> : vector<2xf32>
    %82 = vector.multi_reduction <add>, %81, %cst_72 [0] : vector<32x2xf32> to vector<2xf32>
    %83 = vector.shape_cast %82 : vector<2xf32> to vector<1x2xf32>
    %cst_73 = arith.constant 0.176776692 : f32
    %84 = vector.broadcast %cst_73 : f32 to vector<1x2xf32>
    %85 = arith.mulf %83, %84 : vector<1x2xf32>
    %86 = vector.extract_strided_slice %3 {offsets = [0, 0], sizes = [1, 2], strides = [1, 1]} : vector<8x2xi1> to vector<1x2xi1>
    %87 = arith.andi %78, %86 : vector<1x2xi1>
    %cst_74 = arith.constant -1.000000e+09 : f32
    %88 = vector.broadcast %cst_74 : f32 to vector<1x2xf32>
    %89 = arith.select %87, %85, %88 : vector<1x2xi1>, vector<1x2xf32>
    %c1_75 = arith.constant 1 : index
    %c32_76 = arith.constant 32 : index
    %c0_77 = arith.constant 0 : index
    %90 = vector.load %arg13[%c1_75, %c32_76, %c0_77] : memref<8x96x2xf32, #tpu.memory_space<vmem>>, vector<1x32x2xf32>
    %91 = vector.shape_cast %90 : vector<1x32x2xf32> to vector<32x2xf32>
    %92 = arith.mulf %77, %91 : vector<32x2xf32>
    %cst_78 = arith.constant dense<0.000000e+00> : vector<2xf32>
    %93 = vector.multi_reduction <add>, %92, %cst_78 [0] : vector<32x2xf32> to vector<2xf32>
    %94 = vector.shape_cast %93 : vector<2xf32> to vector<1x2xf32>
    %cst_79 = arith.constant 0.176776692 : f32
    %95 = vector.broadcast %cst_79 : f32 to vector<1x2xf32>
    %96 = arith.mulf %94, %95 : vector<1x2xf32>
    %97 = vector.extract_strided_slice %3 {offsets = [1, 0], sizes = [1, 2], strides = [1, 1]} : vector<8x2xi1> to vector<1x2xi1>
    %98 = arith.andi %78, %97 : vector<1x2xi1>
    %cst_80 = arith.constant -1.000000e+09 : f32
    %99 = vector.broadcast %cst_80 : f32 to vector<1x2xf32>
    %100 = arith.select %98, %96, %99 : vector<1x2xi1>, vector<1x2xf32>
    %c2_81 = arith.constant 2 : index
    %c32_82 = arith.constant 32 : index
    %c0_83 = arith.constant 0 : index
    %101 = vector.load %arg13[%c2_81, %c32_82, %c0_83] : memref<8x96x2xf32, #tpu.memory_space<vmem>>, vector<1x32x2xf32>
    %102 = vector.shape_cast %101 : vector<1x32x2xf32> to vector<32x2xf32>
    %103 = arith.mulf %77, %102 : vector<32x2xf32>
    %cst_84 = arith.constant dense<0.000000e+00> : vector<2xf32>
    %104 = vector.multi_reduction <add>, %103, %cst_84 [0] : vector<32x2xf32> to vector<2xf32>
    %105 = vector.shape_cast %104 : vector<2xf32> to vector<1x2xf32>
    %cst_85 = arith.constant 0.176776692 : f32
    %106 = vector.broadcast %cst_85 : f32 to vector<1x2xf32>
    %107 = arith.mulf %105, %106 : vector<1x2xf32>
    %108 = vector.extract_strided_slice %3 {offsets = [2, 0], sizes = [1, 2], strides = [1, 1]} : vector<8x2xi1> to vector<1x2xi1>
    %109 = arith.andi %78, %108 : vector<1x2xi1>
    %cst_86 = arith.constant -1.000000e+09 : f32
    %110 = vector.broadcast %cst_86 : f32 to vector<1x2xf32>
    %111 = arith.select %109, %107, %110 : vector<1x2xi1>, vector<1x2xf32>
    %c3_87 = arith.constant 3 : index
    %c32_88 = arith.constant 32 : index
    %c0_89 = arith.constant 0 : index
    %112 = vector.load %arg13[%c3_87, %c32_88, %c0_89] : memref<8x96x2xf32, #tpu.memory_space<vmem>>, vector<1x32x2xf32>
    %113 = vector.shape_cast %112 : vector<1x32x2xf32> to vector<32x2xf32>
    %114 = arith.mulf %77, %113 : vector<32x2xf32>
    %cst_90 = arith.constant dense<0.000000e+00> : vector<2xf32>
    %115 = vector.multi_reduction <add>, %114, %cst_90 [0] : vector<32x2xf32> to vector<2xf32>
    %116 = vector.shape_cast %115 : vector<2xf32> to vector<1x2xf32>
    %cst_91 = arith.constant 0.176776692 : f32
    %117 = vector.broadcast %cst_91 : f32 to vector<1x2xf32>
    %118 = arith.mulf %116, %117 : vector<1x2xf32>
    %119 = vector.extract_strided_slice %3 {offsets = [3, 0], sizes = [1, 2], strides = [1, 1]} : vector<8x2xi1> to vector<1x2xi1>
    %120 = arith.andi %78, %119 : vector<1x2xi1>
    %cst_92 = arith.constant -1.000000e+09 : f32
    %121 = vector.broadcast %cst_92 : f32 to vector<1x2xf32>
    %122 = arith.select %120, %118, %121 : vector<1x2xi1>, vector<1x2xf32>
    %c4_93 = arith.constant 4 : index
    %c32_94 = arith.constant 32 : index
    %c0_95 = arith.constant 0 : index
    %123 = vector.load %arg13[%c4_93, %c32_94, %c0_95] : memref<8x96x2xf32, #tpu.memory_space<vmem>>, vector<1x32x2xf32>
    %124 = vector.shape_cast %123 : vector<1x32x2xf32> to vector<32x2xf32>
    %125 = arith.mulf %77, %124 : vector<32x2xf32>
    %cst_96 = arith.constant dense<0.000000e+00> : vector<2xf32>
    %126 = vector.multi_reduction <add>, %125, %cst_96 [0] : vector<32x2xf32> to vector<2xf32>
    %127 = vector.shape_cast %126 : vector<2xf32> to vector<1x2xf32>
    %cst_97 = arith.constant 0.176776692 : f32
    %128 = vector.broadcast %cst_97 : f32 to vector<1x2xf32>
    %129 = arith.mulf %127, %128 : vector<1x2xf32>
    %130 = vector.extract_strided_slice %3 {offsets = [4, 0], sizes = [1, 2], strides = [1, 1]} : vector<8x2xi1> to vector<1x2xi1>
    %131 = arith.andi %78, %130 : vector<1x2xi1>
    %cst_98 = arith.constant -1.000000e+09 : f32
    %132 = vector.broadcast %cst_98 : f32 to vector<1x2xf32>
    %133 = arith.select %131, %129, %132 : vector<1x2xi1>, vector<1x2xf32>
    %c5_99 = arith.constant 5 : index
    %c32_100 = arith.constant 32 : index
    %c0_101 = arith.constant 0 : index
    %134 = vector.load %arg13[%c5_99, %c32_100, %c0_101] : memref<8x96x2xf32, #tpu.memory_space<vmem>>, vector<1x32x2xf32>
    %135 = vector.shape_cast %134 : vector<1x32x2xf32> to vector<32x2xf32>
    %136 = arith.mulf %77, %135 : vector<32x2xf32>
    %cst_102 = arith.constant dense<0.000000e+00> : vector<2xf32>
    %137 = vector.multi_reduction <add>, %136, %cst_102 [0] : vector<32x2xf32> to vector<2xf32>
    %138 = vector.shape_cast %137 : vector<2xf32> to vector<1x2xf32>
    %cst_103 = arith.constant 0.176776692 : f32
    %139 = vector.broadcast %cst_103 : f32 to vector<1x2xf32>
    %140 = arith.mulf %138, %139 : vector<1x2xf32>
    %141 = vector.extract_strided_slice %3 {offsets = [5, 0], sizes = [1, 2], strides = [1, 1]} : vector<8x2xi1> to vector<1x2xi1>
    %142 = arith.andi %78, %141 : vector<1x2xi1>
    %cst_104 = arith.constant -1.000000e+09 : f32
    %143 = vector.broadcast %cst_104 : f32 to vector<1x2xf32>
    %144 = arith.select %142, %140, %143 : vector<1x2xi1>, vector<1x2xf32>
    %c6_105 = arith.constant 6 : index
    %c32_106 = arith.constant 32 : index
    %c0_107 = arith.constant 0 : index
    %145 = vector.load %arg13[%c6_105, %c32_106, %c0_107] : memref<8x96x2xf32, #tpu.memory_space<vmem>>, vector<1x32x2xf32>
    %146 = vector.shape_cast %145 : vector<1x32x2xf32> to vector<32x2xf32>
    %147 = arith.mulf %77, %146 : vector<32x2xf32>
    %cst_108 = arith.constant dense<0.000000e+00> : vector<2xf32>
    %148 = vector.multi_reduction <add>, %147, %cst_108 [0] : vector<32x2xf32> to vector<2xf32>
    %149 = vector.shape_cast %148 : vector<2xf32> to vector<1x2xf32>
    %cst_109 = arith.constant 0.176776692 : f32
    %150 = vector.broadcast %cst_109 : f32 to vector<1x2xf32>
    %151 = arith.mulf %149, %150 : vector<1x2xf32>
    %152 = vector.extract_strided_slice %3 {offsets = [6, 0], sizes = [1, 2], strides = [1, 1]} : vector<8x2xi1> to vector<1x2xi1>
    %153 = arith.andi %78, %152 : vector<1x2xi1>
    %cst_110 = arith.constant -1.000000e+09 : f32
    %154 = vector.broadcast %cst_110 : f32 to vector<1x2xf32>
    %155 = arith.select %153, %151, %154 : vector<1x2xi1>, vector<1x2xf32>
    %c7_111 = arith.constant 7 : index
    %c32_112 = arith.constant 32 : index
    %c0_113 = arith.constant 0 : index
    %156 = vector.load %arg13[%c7_111, %c32_112, %c0_113] : memref<8x96x2xf32, #tpu.memory_space<vmem>>, vector<1x32x2xf32>
    %157 = vector.shape_cast %156 : vector<1x32x2xf32> to vector<32x2xf32>
    %158 = arith.mulf %77, %157 : vector<32x2xf32>
    %cst_114 = arith.constant dense<0.000000e+00> : vector<2xf32>
    %159 = vector.multi_reduction <add>, %158, %cst_114 [0] : vector<32x2xf32> to vector<2xf32>
    %160 = vector.shape_cast %159 : vector<2xf32> to vector<1x2xf32>
    %cst_115 = arith.constant 0.176776692 : f32
    %161 = vector.broadcast %cst_115 : f32 to vector<1x2xf32>
    %162 = arith.mulf %160, %161 : vector<1x2xf32>
    %163 = vector.extract_strided_slice %3 {offsets = [7, 0], sizes = [1, 2], strides = [1, 1]} : vector<8x2xi1> to vector<1x2xi1>
    %164 = arith.andi %78, %163 : vector<1x2xi1>
    %cst_116 = arith.constant -1.000000e+09 : f32
    %165 = vector.broadcast %cst_116 : f32 to vector<1x2xf32>
    %166 = arith.select %164, %162, %165 : vector<1x2xi1>, vector<1x2xf32>
    %167 = arith.maximumf %89, %100 : vector<1x2xf32>
    %168 = arith.maximumf %167, %111 : vector<1x2xf32>
    %169 = arith.maximumf %168, %122 : vector<1x2xf32>
    %170 = arith.maximumf %169, %133 : vector<1x2xf32>
    %171 = arith.maximumf %170, %144 : vector<1x2xf32>
    %172 = arith.maximumf %171, %155 : vector<1x2xf32>
    %173 = arith.maximumf %172, %166 : vector<1x2xf32>
    %174 = arith.subf %89, %173 : vector<1x2xf32>
    %175 = math.exp %174 : vector<1x2xf32>
    %176 = arith.subf %100, %173 : vector<1x2xf32>
    %177 = math.exp %176 : vector<1x2xf32>
    %178 = arith.subf %111, %173 : vector<1x2xf32>
    %179 = math.exp %178 : vector<1x2xf32>
    %180 = arith.subf %122, %173 : vector<1x2xf32>
    %181 = math.exp %180 : vector<1x2xf32>
    %182 = arith.subf %133, %173 : vector<1x2xf32>
    %183 = math.exp %182 : vector<1x2xf32>
    %184 = arith.subf %144, %173 : vector<1x2xf32>
    %185 = math.exp %184 : vector<1x2xf32>
    %186 = arith.subf %155, %173 : vector<1x2xf32>
    %187 = math.exp %186 : vector<1x2xf32>
    %188 = arith.subf %166, %173 : vector<1x2xf32>
    %189 = math.exp %188 : vector<1x2xf32>
    %190 = arith.addf %175, %177 : vector<1x2xf32>
    %191 = arith.addf %190, %179 : vector<1x2xf32>
    %192 = arith.addf %191, %181 : vector<1x2xf32>
    %193 = arith.addf %192, %183 : vector<1x2xf32>
    %194 = arith.addf %193, %185 : vector<1x2xf32>
    %195 = arith.addf %194, %187 : vector<1x2xf32>
    %196 = arith.addf %195, %189 : vector<1x2xf32>
    %cst_117 = arith.constant 1.000000e+00 : f32
    %197 = vector.broadcast %cst_117 : f32 to vector<1x2xf32>
    %198 = arith.divf %197, %196 : vector<1x2xf32>
    %cst_118 = arith.constant 0.000000e+00 : f32
    %199 = vector.broadcast %cst_118 : f32 to vector<32x2xf32>
    %200 = arith.mulf %175, %198 : vector<1x2xf32>
    %c0_119 = arith.constant 0 : index
    %c64 = arith.constant 64 : index
    %c0_120 = arith.constant 0 : index
    %201 = vector.load %arg13[%c0_119, %c64, %c0_120] : memref<8x96x2xf32, #tpu.memory_space<vmem>>, vector<1x32x2xf32>
    %202 = vector.shape_cast %201 : vector<1x32x2xf32> to vector<32x2xf32>
    %203 = vector.broadcast %200 : vector<1x2xf32> to vector<32x2xf32>
    %204 = arith.mulf %203, %202 : vector<32x2xf32>
    %205 = arith.addf %199, %204 : vector<32x2xf32>
    %206 = arith.mulf %177, %198 : vector<1x2xf32>
    %c1_121 = arith.constant 1 : index
    %c64_122 = arith.constant 64 : index
    %c0_123 = arith.constant 0 : index
    %207 = vector.load %arg13[%c1_121, %c64_122, %c0_123] : memref<8x96x2xf32, #tpu.memory_space<vmem>>, vector<1x32x2xf32>
    %208 = vector.shape_cast %207 : vector<1x32x2xf32> to vector<32x2xf32>
    %209 = vector.broadcast %206 : vector<1x2xf32> to vector<32x2xf32>
    %210 = arith.mulf %209, %208 : vector<32x2xf32>
    %211 = arith.addf %205, %210 : vector<32x2xf32>
    %212 = arith.mulf %179, %198 : vector<1x2xf32>
    %c2_124 = arith.constant 2 : index
    %c64_125 = arith.constant 64 : index
    %c0_126 = arith.constant 0 : index
    %213 = vector.load %arg13[%c2_124, %c64_125, %c0_126] : memref<8x96x2xf32, #tpu.memory_space<vmem>>, vector<1x32x2xf32>
    %214 = vector.shape_cast %213 : vector<1x32x2xf32> to vector<32x2xf32>
    %215 = vector.broadcast %212 : vector<1x2xf32> to vector<32x2xf32>
    %216 = arith.mulf %215, %214 : vector<32x2xf32>
    %217 = arith.addf %211, %216 : vector<32x2xf32>
    %218 = arith.mulf %181, %198 : vector<1x2xf32>
    %c3_127 = arith.constant 3 : index
    %c64_128 = arith.constant 64 : index
    %c0_129 = arith.constant 0 : index
    %219 = vector.load %arg13[%c3_127, %c64_128, %c0_129] : memref<8x96x2xf32, #tpu.memory_space<vmem>>, vector<1x32x2xf32>
    %220 = vector.shape_cast %219 : vector<1x32x2xf32> to vector<32x2xf32>
    %221 = vector.broadcast %218 : vector<1x2xf32> to vector<32x2xf32>
    %222 = arith.mulf %221, %220 : vector<32x2xf32>
    %223 = arith.addf %217, %222 : vector<32x2xf32>
    %224 = arith.mulf %183, %198 : vector<1x2xf32>
    %c4_130 = arith.constant 4 : index
    %c64_131 = arith.constant 64 : index
    %c0_132 = arith.constant 0 : index
    %225 = vector.load %arg13[%c4_130, %c64_131, %c0_132] : memref<8x96x2xf32, #tpu.memory_space<vmem>>, vector<1x32x2xf32>
    %226 = vector.shape_cast %225 : vector<1x32x2xf32> to vector<32x2xf32>
    %227 = vector.broadcast %224 : vector<1x2xf32> to vector<32x2xf32>
    %228 = arith.mulf %227, %226 : vector<32x2xf32>
    %229 = arith.addf %223, %228 : vector<32x2xf32>
    %230 = arith.mulf %185, %198 : vector<1x2xf32>
    %c5_133 = arith.constant 5 : index
    %c64_134 = arith.constant 64 : index
    %c0_135 = arith.constant 0 : index
    %231 = vector.load %arg13[%c5_133, %c64_134, %c0_135] : memref<8x96x2xf32, #tpu.memory_space<vmem>>, vector<1x32x2xf32>
    %232 = vector.shape_cast %231 : vector<1x32x2xf32> to vector<32x2xf32>
    %233 = vector.broadcast %230 : vector<1x2xf32> to vector<32x2xf32>
    %234 = arith.mulf %233, %232 : vector<32x2xf32>
    %235 = arith.addf %229, %234 : vector<32x2xf32>
    %236 = arith.mulf %187, %198 : vector<1x2xf32>
    %c6_136 = arith.constant 6 : index
    %c64_137 = arith.constant 64 : index
    %c0_138 = arith.constant 0 : index
    %237 = vector.load %arg13[%c6_136, %c64_137, %c0_138] : memref<8x96x2xf32, #tpu.memory_space<vmem>>, vector<1x32x2xf32>
    %238 = vector.shape_cast %237 : vector<1x32x2xf32> to vector<32x2xf32>
    %239 = vector.broadcast %236 : vector<1x2xf32> to vector<32x2xf32>
    %240 = arith.mulf %239, %238 : vector<32x2xf32>
    %241 = arith.addf %235, %240 : vector<32x2xf32>
    %242 = arith.mulf %189, %198 : vector<1x2xf32>
    %c7_139 = arith.constant 7 : index
    %c64_140 = arith.constant 64 : index
    %c0_141 = arith.constant 0 : index
    %243 = vector.load %arg13[%c7_139, %c64_140, %c0_141] : memref<8x96x2xf32, #tpu.memory_space<vmem>>, vector<1x32x2xf32>
    %244 = vector.shape_cast %243 : vector<1x32x2xf32> to vector<32x2xf32>
    %245 = vector.broadcast %242 : vector<1x2xf32> to vector<32x2xf32>
    %246 = arith.mulf %245, %244 : vector<32x2xf32>
    %247 = arith.addf %241, %246 : vector<32x2xf32>
    %c0_142 = arith.constant 0 : index
    %c0_143 = arith.constant 0 : index
    %c0_144 = arith.constant 0 : index
    %248 = vector.load %arg14[%c0_142, %c0_143, %c0_144] : memref<8x32x2xf32, #tpu.memory_space<vmem>>, vector<1x32x2xf32>
    %249 = vector.shape_cast %248 : vector<1x32x2xf32> to vector<32x2xf32>
    %250 = vector.shape_cast %247 : vector<32x2xf32> to vector<1x32x2xf32>
    tpu.vector_store %arg14[%c0_142, %c0_143, %c0_144], %250 {strides = array<i32>} : memref<8x32x2xf32, #tpu.memory_space<vmem>>, vector<1x32x2xf32>,
    %c1_145 = arith.constant 1 : index
    %c0_146 = arith.constant 0 : index
    %c0_147 = arith.constant 0 : index
    %251 = vector.load %arg13[%c1_145, %c0_146, %c0_147] : memref<8x96x2xf32, #tpu.memory_space<vmem>>, vector<1x32x2xf32>
    %252 = vector.shape_cast %251 : vector<1x32x2xf32> to vector<32x2xf32>
    %253 = vector.extract_strided_slice %3 {offsets = [1, 0], sizes = [1, 2], strides = [1, 1]} : vector<8x2xi1> to vector<1x2xi1>
    %c0_148 = arith.constant 0 : index
    %c32_149 = arith.constant 32 : index
    %c0_150 = arith.constant 0 : index
    %254 = vector.load %arg13[%c0_148, %c32_149, %c0_150] : memref<8x96x2xf32, #tpu.memory_space<vmem>>, vector<1x32x2xf32>
    %255 = vector.shape_cast %254 : vector<1x32x2xf32> to vector<32x2xf32>
    %256 = arith.mulf %252, %255 : vector<32x2xf32>
    %cst_151 = arith.constant dense<0.000000e+00> : vector<2xf32>
    %257 = vector.multi_reduction <add>, %256, %cst_151 [0] : vector<32x2xf32> to vector<2xf32>
    %258 = vector.shape_cast %257 : vector<2xf32> to vector<1x2xf32>
    %cst_152 = arith.constant 0.176776692 : f32
    %259 = vector.broadcast %cst_152 : f32 to vector<1x2xf32>
    %260 = arith.mulf %258, %259 : vector<1x2xf32>
    %261 = vector.extract_strided_slice %3 {offsets = [0, 0], sizes = [1, 2], strides = [1, 1]} : vector<8x2xi1> to vector<1x2xi1>
    %262 = arith.andi %253, %261 : vector<1x2xi1>
    %cst_153 = arith.constant -1.000000e+09 : f32
    %263 = vector.broadcast %cst_153 : f32 to vector<1x2xf32>
    %264 = arith.select %262, %260, %263 : vector<1x2xi1>, vector<1x2xf32>
    %c1_154 = arith.constant 1 : index
    %c32_155 = arith.constant 32 : index
    %c0_156 = arith.constant 0 : index
    %265 = vector.load %arg13[%c1_154, %c32_155, %c0_156] : memref<8x96x2xf32, #tpu.memory_space<vmem>>, vector<1x32x2xf32>
    %266 = vector.shape_cast %265 : vector<1x32x2xf32> to vector<32x2xf32>
    %267 = arith.mulf %252, %266 : vector<32x2xf32>
    %cst_157 = arith.constant dense<0.000000e+00> : vector<2xf32>
    %268 = vector.multi_reduction <add>, %267, %cst_157 [0] : vector<32x2xf32> to vector<2xf32>
    %269 = vector.shape_cast %268 : vector<2xf32> to vector<1x2xf32>
    %cst_158 = arith.constant 0.176776692 : f32
    %270 = vector.broadcast %cst_158 : f32 to vector<1x2xf32>
    %271 = arith.mulf %269, %270 : vector<1x2xf32>
    %272 = vector.extract_strided_slice %3 {offsets = [1, 0], sizes = [1, 2], strides = [1, 1]} : vector<8x2xi1> to vector<1x2xi1>
    %273 = arith.andi %253, %272 : vector<1x2xi1>
    %cst_159 = arith.constant -1.000000e+09 : f32
    %274 = vector.broadcast %cst_159 : f32 to vector<1x2xf32>
    %275 = arith.select %273, %271, %274 : vector<1x2xi1>, vector<1x2xf32>
    %c2_160 = arith.constant 2 : index
    %c32_161 = arith.constant 32 : index
    %c0_162 = arith.constant 0 : index
    %276 = vector.load %arg13[%c2_160, %c32_161, %c0_162] : memref<8x96x2xf32, #tpu.memory_space<vmem>>, vector<1x32x2xf32>
    %277 = vector.shape_cast %276 : vector<1x32x2xf32> to vector<32x2xf32>
    %278 = arith.mulf %252, %277 : vector<32x2xf32>
    %cst_163 = arith.constant dense<0.000000e+00> : vector<2xf32>
    %279 = vector.multi_reduction <add>, %278, %cst_163 [0] : vector<32x2xf32> to vector<2xf32>
    %280 = vector.shape_cast %279 : vector<2xf32> to vector<1x2xf32>
    %cst_164 = arith.constant 0.176776692 : f32
    %281 = vector.broadcast %cst_164 : f32 to vector<1x2xf32>
    %282 = arith.mulf %280, %281 : vector<1x2xf32>
    %283 = vector.extract_strided_slice %3 {offsets = [2, 0], sizes = [1, 2], strides = [1, 1]} : vector<8x2xi1> to vector<1x2xi1>
    %284 = arith.andi %253, %283 : vector<1x2xi1>
    %cst_165 = arith.constant -1.000000e+09 : f32
    %285 = vector.broadcast %cst_165 : f32 to vector<1x2xf32>
    %286 = arith.select %284, %282, %285 : vector<1x2xi1>, vector<1x2xf32>
    %c3_166 = arith.constant 3 : index
    %c32_167 = arith.constant 32 : index
    %c0_168 = arith.constant 0 : index
    %287 = vector.load %arg13[%c3_166, %c32_167, %c0_168] : memref<8x96x2xf32, #tpu.memory_space<vmem>>, vector<1x32x2xf32>
    %288 = vector.shape_cast %287 : vector<1x32x2xf32> to vector<32x2xf32>
    %289 = arith.mulf %252, %288 : vector<32x2xf32>
    %cst_169 = arith.constant dense<0.000000e+00> : vector<2xf32>
    %290 = vector.multi_reduction <add>, %289, %cst_169 [0] : vector<32x2xf32> to vector<2xf32>
    %291 = vector.shape_cast %290 : vector<2xf32> to vector<1x2xf32>
    %cst_170 = arith.constant 0.176776692 : f32
    %292 = vector.broadcast %cst_170 : f32 to vector<1x2xf32>
    %293 = arith.mulf %291, %292 : vector<1x2xf32>
    %294 = vector.extract_strided_slice %3 {offsets = [3, 0], sizes = [1, 2], strides = [1, 1]} : vector<8x2xi1> to vector<1x2xi1>
    %295 = arith.andi %253, %294 : vector<1x2xi1>
    %cst_171 = arith.constant -1.000000e+09 : f32
    %296 = vector.broadcast %cst_171 : f32 to vector<1x2xf32>
    %297 = arith.select %295, %293, %296 : vector<1x2xi1>, vector<1x2xf32>
    %c4_172 = arith.constant 4 : index
    %c32_173 = arith.constant 32 : index
    %c0_174 = arith.constant 0 : index
    %298 = vector.load %arg13[%c4_172, %c32_173, %c0_174] : memref<8x96x2xf32, #tpu.memory_space<vmem>>, vector<1x32x2xf32>
    %299 = vector.shape_cast %298 : vector<1x32x2xf32> to vector<32x2xf32>
    %300 = arith.mulf %252, %299 : vector<32x2xf32>
    %cst_175 = arith.constant dense<0.000000e+00> : vector<2xf32>
    %301 = vector.multi_reduction <add>, %300, %cst_175 [0] : vector<32x2xf32> to vector<2xf32>
    %302 = vector.shape_cast %301 : vector<2xf32> to vector<1x2xf32>
    %cst_176 = arith.constant 0.176776692 : f32
    %303 = vector.broadcast %cst_176 : f32 to vector<1x2xf32>
    %304 = arith.mulf %302, %303 : vector<1x2xf32>
    %305 = vector.extract_strided_slice %3 {offsets = [4, 0], sizes = [1, 2], strides = [1, 1]} : vector<8x2xi1> to vector<1x2xi1>
    %306 = arith.andi %253, %305 : vector<1x2xi1>
    %cst_177 = arith.constant -1.000000e+09 : f32
    %307 = vector.broadcast %cst_177 : f32 to vector<1x2xf32>
    %308 = arith.select %306, %304, %307 : vector<1x2xi1>, vector<1x2xf32>
    %c5_178 = arith.constant 5 : index
    %c32_179 = arith.constant 32 : index
    %c0_180 = arith.constant 0 : index
    %309 = vector.load %arg13[%c5_178, %c32_179, %c0_180] : memref<8x96x2xf32, #tpu.memory_space<vmem>>, vector<1x32x2xf32>
    %310 = vector.shape_cast %309 : vector<1x32x2xf32> to vector<32x2xf32>
    %311 = arith.mulf %252, %310 : vector<32x2xf32>
    %cst_181 = arith.constant dense<0.000000e+00> : vector<2xf32>
    %312 = vector.multi_reduction <add>, %311, %cst_181 [0] : vector<32x2xf32> to vector<2xf32>
    %313 = vector.shape_cast %312 : vector<2xf32> to vector<1x2xf32>
    %cst_182 = arith.constant 0.176776692 : f32
    %314 = vector.broadcast %cst_182 : f32 to vector<1x2xf32>
    %315 = arith.mulf %313, %314 : vector<1x2xf32>
    %316 = vector.extract_strided_slice %3 {offsets = [5, 0], sizes = [1, 2], strides = [1, 1]} : vector<8x2xi1> to vector<1x2xi1>
    %317 = arith.andi %253, %316 : vector<1x2xi1>
    %cst_183 = arith.constant -1.000000e+09 : f32
    %318 = vector.broadcast %cst_183 : f32 to vector<1x2xf32>
    %319 = arith.select %317, %315, %318 : vector<1x2xi1>, vector<1x2xf32>
    %c6_184 = arith.constant 6 : index
    %c32_185 = arith.constant 32 : index
    %c0_186 = arith.constant 0 : index
    %320 = vector.load %arg13[%c6_184, %c32_185, %c0_186] : memref<8x96x2xf32, #tpu.memory_space<vmem>>, vector<1x32x2xf32>
    %321 = vector.shape_cast %320 : vector<1x32x2xf32> to vector<32x2xf32>
    %322 = arith.mulf %252, %321 : vector<32x2xf32>
    %cst_187 = arith.constant dense<0.000000e+00> : vector<2xf32>
    %323 = vector.multi_reduction <add>, %322, %cst_187 [0] : vector<32x2xf32> to vector<2xf32>
    %324 = vector.shape_cast %323 : vector<2xf32> to vector<1x2xf32>
    %cst_188 = arith.constant 0.176776692 : f32
    %325 = vector.broadcast %cst_188 : f32 to vector<1x2xf32>
    %326 = arith.mulf %324, %325 : vector<1x2xf32>
    %327 = vector.extract_strided_slice %3 {offsets = [6, 0], sizes = [1, 2], strides = [1, 1]} : vector<8x2xi1> to vector<1x2xi1>
    %328 = arith.andi %253, %327 : vector<1x2xi1>
    %cst_189 = arith.constant -1.000000e+09 : f32
    %329 = vector.broadcast %cst_189 : f32 to vector<1x2xf32>
    %330 = arith.select %328, %326, %329 : vector<1x2xi1>, vector<1x2xf32>
    %c7_190 = arith.constant 7 : index
    %c32_191 = arith.constant 32 : index
    %c0_192 = arith.constant 0 : index
    %331 = vector.load %arg13[%c7_190, %c32_191, %c0_192] : memref<8x96x2xf32, #tpu.memory_space<vmem>>, vector<1x32x2xf32>
    %332 = vector.shape_cast %331 : vector<1x32x2xf32> to vector<32x2xf32>
    %333 = arith.mulf %252, %332 : vector<32x2xf32>
    %cst_193 = arith.constant dense<0.000000e+00> : vector<2xf32>
    %334 = vector.multi_reduction <add>, %333, %cst_193 [0] : vector<32x2xf32> to vector<2xf32>
    %335 = vector.shape_cast %334 : vector<2xf32> to vector<1x2xf32>
    %cst_194 = arith.constant 0.176776692 : f32
    %336 = vector.broadcast %cst_194 : f32 to vector<1x2xf32>
    %337 = arith.mulf %335, %336 : vector<1x2xf32>
    %338 = vector.extract_strided_slice %3 {offsets = [7, 0], sizes = [1, 2], strides = [1, 1]} : vector<8x2xi1> to vector<1x2xi1>
    %339 = arith.andi %253, %338 : vector<1x2xi1>
    %cst_195 = arith.constant -1.000000e+09 : f32
    %340 = vector.broadcast %cst_195 : f32 to vector<1x2xf32>
    %341 = arith.select %339, %337, %340 : vector<1x2xi1>, vector<1x2xf32>
    %342 = arith.maximumf %264, %275 : vector<1x2xf32>
    %343 = arith.maximumf %342, %286 : vector<1x2xf32>
    %344 = arith.maximumf %343, %297 : vector<1x2xf32>
    %345 = arith.maximumf %344, %308 : vector<1x2xf32>
    %346 = arith.maximumf %345, %319 : vector<1x2xf32>
    %347 = arith.maximumf %346, %330 : vector<1x2xf32>
    %348 = arith.maximumf %347, %341 : vector<1x2xf32>
    %349 = arith.subf %264, %348 : vector<1x2xf32>
    %350 = math.exp %349 : vector<1x2xf32>
    %351 = arith.subf %275, %348 : vector<1x2xf32>
    %352 = math.exp %351 : vector<1x2xf32>
    %353 = arith.subf %286, %348 : vector<1x2xf32>
    %354 = math.exp %353 : vector<1x2xf32>
    %355 = arith.subf %297, %348 : vector<1x2xf32>
    %356 = math.exp %355 : vector<1x2xf32>
    %357 = arith.subf %308, %348 : vector<1x2xf32>
    %358 = math.exp %357 : vector<1x2xf32>
    %359 = arith.subf %319, %348 : vector<1x2xf32>
    %360 = math.exp %359 : vector<1x2xf32>
    %361 = arith.subf %330, %348 : vector<1x2xf32>
    %362 = math.exp %361 : vector<1x2xf32>
    %363 = arith.subf %341, %348 : vector<1x2xf32>
    %364 = math.exp %363 : vector<1x2xf32>
    %365 = arith.addf %350, %352 : vector<1x2xf32>
    %366 = arith.addf %365, %354 : vector<1x2xf32>
    %367 = arith.addf %366, %356 : vector<1x2xf32>
    %368 = arith.addf %367, %358 : vector<1x2xf32>
    %369 = arith.addf %368, %360 : vector<1x2xf32>
    %370 = arith.addf %369, %362 : vector<1x2xf32>
    %371 = arith.addf %370, %364 : vector<1x2xf32>
    %cst_196 = arith.constant 1.000000e+00 : f32
    %372 = vector.broadcast %cst_196 : f32 to vector<1x2xf32>
    %373 = arith.divf %372, %371 : vector<1x2xf32>
    %cst_197 = arith.constant 0.000000e+00 : f32
    %374 = vector.broadcast %cst_197 : f32 to vector<32x2xf32>
    %375 = arith.mulf %350, %373 : vector<1x2xf32>
    %c0_198 = arith.constant 0 : index
    %c64_199 = arith.constant 64 : index
    %c0_200 = arith.constant 0 : index
    %376 = vector.load %arg13[%c0_198, %c64_199, %c0_200] : memref<8x96x2xf32, #tpu.memory_space<vmem>>, vector<1x32x2xf32>
    %377 = vector.shape_cast %376 : vector<1x32x2xf32> to vector<32x2xf32>
    %378 = vector.broadcast %375 : vector<1x2xf32> to vector<32x2xf32>
    %379 = arith.mulf %378, %377 : vector<32x2xf32>
    %380 = arith.addf %374, %379 : vector<32x2xf32>
    %381 = arith.mulf %352, %373 : vector<1x2xf32>
    %c1_201 = arith.constant 1 : index
    %c64_202 = arith.constant 64 : index
    %c0_203 = arith.constant 0 : index
    %382 = vector.load %arg13[%c1_201, %c64_202, %c0_203] : memref<8x96x2xf32, #tpu.memory_space<vmem>>, vector<1x32x2xf32>
    %383 = vector.shape_cast %382 : vector<1x32x2xf32> to vector<32x2xf32>
    %384 = vector.broadcast %381 : vector<1x2xf32> to vector<32x2xf32>
    %385 = arith.mulf %384, %383 : vector<32x2xf32>
    %386 = arith.addf %380, %385 : vector<32x2xf32>
    %387 = arith.mulf %354, %373 : vector<1x2xf32>
    %c2_204 = arith.constant 2 : index
    %c64_205 = arith.constant 64 : index
    %c0_206 = arith.constant 0 : index
    %388 = vector.load %arg13[%c2_204, %c64_205, %c0_206] : memref<8x96x2xf32, #tpu.memory_space<vmem>>, vector<1x32x2xf32>
    %389 = vector.shape_cast %388 : vector<1x32x2xf32> to vector<32x2xf32>
    %390 = vector.broadcast %387 : vector<1x2xf32> to vector<32x2xf32>
    %391 = arith.mulf %390, %389 : vector<32x2xf32>
    %392 = arith.addf %386, %391 : vector<32x2xf32>
    %393 = arith.mulf %356, %373 : vector<1x2xf32>
    %c3_207 = arith.constant 3 : index
    %c64_208 = arith.constant 64 : index
    %c0_209 = arith.constant 0 : index
    %394 = vector.load %arg13[%c3_207, %c64_208, %c0_209] : memref<8x96x2xf32, #tpu.memory_space<vmem>>, vector<1x32x2xf32>
    %395 = vector.shape_cast %394 : vector<1x32x2xf32> to vector<32x2xf32>
    %396 = vector.broadcast %393 : vector<1x2xf32> to vector<32x2xf32>
    %397 = arith.mulf %396, %395 : vector<32x2xf32>
    %398 = arith.addf %392, %397 : vector<32x2xf32>
    %399 = arith.mulf %358, %373 : vector<1x2xf32>
    %c4_210 = arith.constant 4 : index
    %c64_211 = arith.constant 64 : index
    %c0_212 = arith.constant 0 : index
    %400 = vector.load %arg13[%c4_210, %c64_211, %c0_212] : memref<8x96x2xf32, #tpu.memory_space<vmem>>, vector<1x32x2xf32>
    %401 = vector.shape_cast %400 : vector<1x32x2xf32> to vector<32x2xf32>
    %402 = vector.broadcast %399 : vector<1x2xf32> to vector<32x2xf32>
    %403 = arith.mulf %402, %401 : vector<32x2xf32>
    %404 = arith.addf %398, %403 : vector<32x2xf32>
    %405 = arith.mulf %360, %373 : vector<1x2xf32>
    %c5_213 = arith.constant 5 : index
    %c64_214 = arith.constant 64 : index
    %c0_215 = arith.constant 0 : index
    %406 = vector.load %arg13[%c5_213, %c64_214, %c0_215] : memref<8x96x2xf32, #tpu.memory_space<vmem>>, vector<1x32x2xf32>
    %407 = vector.shape_cast %406 : vector<1x32x2xf32> to vector<32x2xf32>
    %408 = vector.broadcast %405 : vector<1x2xf32> to vector<32x2xf32>
    %409 = arith.mulf %408, %407 : vector<32x2xf32>
    %410 = arith.addf %404, %409 : vector<32x2xf32>
    %411 = arith.mulf %362, %373 : vector<1x2xf32>
    %c6_216 = arith.constant 6 : index
    %c64_217 = arith.constant 64 : index
    %c0_218 = arith.constant 0 : index
    %412 = vector.load %arg13[%c6_216, %c64_217, %c0_218] : memref<8x96x2xf32, #tpu.memory_space<vmem>>, vector<1x32x2xf32>
    %413 = vector.shape_cast %412 : vector<1x32x2xf32> to vector<32x2xf32>
    %414 = vector.broadcast %411 : vector<1x2xf32> to vector<32x2xf32>
    %415 = arith.mulf %414, %413 : vector<32x2xf32>
    %416 = arith.addf %410, %415 : vector<32x2xf32>
    %417 = arith.mulf %364, %373 : vector<1x2xf32>
    %c7_219 = arith.constant 7 : index
    %c64_220 = arith.constant 64 : index
    %c0_221 = arith.constant 0 : index
    %418 = vector.load %arg13[%c7_219, %c64_220, %c0_221] : memref<8x96x2xf32, #tpu.memory_space<vmem>>, vector<1x32x2xf32>
    %419 = vector.shape_cast %418 : vector<1x32x2xf32> to vector<32x2xf32>
    %420 = vector.broadcast %417 : vector<1x2xf32> to vector<32x2xf32>
    %421 = arith.mulf %420, %419 : vector<32x2xf32>
    %422 = arith.addf %416, %421 : vector<32x2xf32>
    %c1_222 = arith.constant 1 : index
    %c0_223 = arith.constant 0 : index
    %c0_224 = arith.constant 0 : index
    %423 = vector.load %arg14[%c1_222, %c0_223, %c0_224] : memref<8x32x2xf32, #tpu.memory_space<vmem>>, vector<1x32x2xf32>
    %424 = vector.shape_cast %423 : vector<1x32x2xf32> to vector<32x2xf32>
    %425 = vector.shape_cast %422 : vector<32x2xf32> to vector<1x32x2xf32>
    tpu.vector_store %arg14[%c1_222, %c0_223, %c0_224], %425 {strides = array<i32>} : memref<8x32x2xf32, #tpu.memory_space<vmem>>, vector<1x32x2xf32>,
    %c2_225 = arith.constant 2 : index
    %c0_226 = arith.constant 0 : index
    %c0_227 = arith.constant 0 : index
    %426 = vector.load %arg13[%c2_225, %c0_226, %c0_227] : memref<8x96x2xf32, #tpu.memory_space<vmem>>, vector<1x32x2xf32>
    %427 = vector.shape_cast %426 : vector<1x32x2xf32> to vector<32x2xf32>
    %428 = vector.extract_strided_slice %3 {offsets = [2, 0], sizes = [1, 2], strides = [1, 1]} : vector<8x2xi1> to vector<1x2xi1>
    %c0_228 = arith.constant 0 : index
    %c32_229 = arith.constant 32 : index
    %c0_230 = arith.constant 0 : index
    %429 = vector.load %arg13[%c0_228, %c32_229, %c0_230] : memref<8x96x2xf32, #tpu.memory_space<vmem>>, vector<1x32x2xf32>
    %430 = vector.shape_cast %429 : vector<1x32x2xf32> to vector<32x2xf32>
    %431 = arith.mulf %427, %430 : vector<32x2xf32>
    %cst_231 = arith.constant dense<0.000000e+00> : vector<2xf32>
    %432 = vector.multi_reduction <add>, %431, %cst_231 [0] : vector<32x2xf32> to vector<2xf32>
    %433 = vector.shape_cast %432 : vector<2xf32> to vector<1x2xf32>
    %cst_232 = arith.constant 0.176776692 : f32
    %434 = vector.broadcast %cst_232 : f32 to vector<1x2xf32>
    %435 = arith.mulf %433, %434 : vector<1x2xf32>
    %436 = vector.extract_strided_slice %3 {offsets = [0, 0], sizes = [1, 2], strides = [1, 1]} : vector<8x2xi1> to vector<1x2xi1>
    %437 = arith.andi %428, %436 : vector<1x2xi1>
    %cst_233 = arith.constant -1.000000e+09 : f32
    %438 = vector.broadcast %cst_233 : f32 to vector<1x2xf32>
    %439 = arith.select %437, %435, %438 : vector<1x2xi1>, vector<1x2xf32>
    %c1_234 = arith.constant 1 : index
    %c32_235 = arith.constant 32 : index
    %c0_236 = arith.constant 0 : index
    %440 = vector.load %arg13[%c1_234, %c32_235, %c0_236] : memref<8x96x2xf32, #tpu.memory_space<vmem>>, vector<1x32x2xf32>
    %441 = vector.shape_cast %440 : vector<1x32x2xf32> to vector<32x2xf32>
    %442 = arith.mulf %427, %441 : vector<32x2xf32>
    %cst_237 = arith.constant dense<0.000000e+00> : vector<2xf32>
    %443 = vector.multi_reduction <add>, %442, %cst_237 [0] : vector<32x2xf32> to vector<2xf32>
    %444 = vector.shape_cast %443 : vector<2xf32> to vector<1x2xf32>
    %cst_238 = arith.constant 0.176776692 : f32
    %445 = vector.broadcast %cst_238 : f32 to vector<1x2xf32>
    %446 = arith.mulf %444, %445 : vector<1x2xf32>
    %447 = vector.extract_strided_slice %3 {offsets = [1, 0], sizes = [1, 2], strides = [1, 1]} : vector<8x2xi1> to vector<1x2xi1>
    %448 = arith.andi %428, %447 : vector<1x2xi1>
    %cst_239 = arith.constant -1.000000e+09 : f32
    %449 = vector.broadcast %cst_239 : f32 to vector<1x2xf32>
    %450 = arith.select %448, %446, %449 : vector<1x2xi1>, vector<1x2xf32>
    %c2_240 = arith.constant 2 : index
    %c32_241 = arith.constant 32 : index
    %c0_242 = arith.constant 0 : index
    %451 = vector.load %arg13[%c2_240, %c32_241, %c0_242] : memref<8x96x2xf32, #tpu.memory_space<vmem>>, vector<1x32x2xf32>
    %452 = vector.shape_cast %451 : vector<1x32x2xf32> to vector<32x2xf32>
    %453 = arith.mulf %427, %452 : vector<32x2xf32>
    %cst_243 = arith.constant dense<0.000000e+00> : vector<2xf32>
    %454 = vector.multi_reduction <add>, %453, %cst_243 [0] : vector<32x2xf32> to vector<2xf32>
    %455 = vector.shape_cast %454 : vector<2xf32> to vector<1x2xf32>
    %cst_244 = arith.constant 0.176776692 : f32
    %456 = vector.broadcast %cst_244 : f32 to vector<1x2xf32>
    %457 = arith.mulf %455, %456 : vector<1x2xf32>
    %458 = vector.extract_strided_slice %3 {offsets = [2, 0], sizes = [1, 2], strides = [1, 1]} : vector<8x2xi1> to vector<1x2xi1>
    %459 = arith.andi %428, %458 : vector<1x2xi1>
    %cst_245 = arith.constant -1.000000e+09 : f32
    %460 = vector.broadcast %cst_245 : f32 to vector<1x2xf32>
    %461 = arith.select %459, %457, %460 : vector<1x2xi1>, vector<1x2xf32>
    %c3_246 = arith.constant 3 : index
    %c32_247 = arith.constant 32 : index
    %c0_248 = arith.constant 0 : index
    %462 = vector.load %arg13[%c3_246, %c32_247, %c0_248] : memref<8x96x2xf32, #tpu.memory_space<vmem>>, vector<1x32x2xf32>
    %463 = vector.shape_cast %462 : vector<1x32x2xf32> to vector<32x2xf32>
    %464 = arith.mulf %427, %463 : vector<32x2xf32>
    %cst_249 = arith.constant dense<0.000000e+00> : vector<2xf32>
    %465 = vector.multi_reduction <add>, %464, %cst_249 [0] : vector<32x2xf32> to vector<2xf32>
    %466 = vector.shape_cast %465 : vector<2xf32> to vector<1x2xf32>
    %cst_250 = arith.constant 0.176776692 : f32
    %467 = vector.broadcast %cst_250 : f32 to vector<1x2xf32>
    %468 = arith.mulf %466, %467 : vector<1x2xf32>
    %469 = vector.extract_strided_slice %3 {offsets = [3, 0], sizes = [1, 2], strides = [1, 1]} : vector<8x2xi1> to vector<1x2xi1>
    %470 = arith.andi %428, %469 : vector<1x2xi1>
    %cst_251 = arith.constant -1.000000e+09 : f32
    %471 = vector.broadcast %cst_251 : f32 to vector<1x2xf32>
    %472 = arith.select %470, %468, %471 : vector<1x2xi1>, vector<1x2xf32>
    %c4_252 = arith.constant 4 : index
    %c32_253 = arith.constant 32 : index
    %c0_254 = arith.constant 0 : index
    %473 = vector.load %arg13[%c4_252, %c32_253, %c0_254] : memref<8x96x2xf32, #tpu.memory_space<vmem>>, vector<1x32x2xf32>
    %474 = vector.shape_cast %473 : vector<1x32x2xf32> to vector<32x2xf32>
    %475 = arith.mulf %427, %474 : vector<32x2xf32>
    %cst_255 = arith.constant dense<0.000000e+00> : vector<2xf32>
    %476 = vector.multi_reduction <add>, %475, %cst_255 [0] : vector<32x2xf32> to vector<2xf32>
    %477 = vector.shape_cast %476 : vector<2xf32> to vector<1x2xf32>
    %cst_256 = arith.constant 0.176776692 : f32
    %478 = vector.broadcast %cst_256 : f32 to vector<1x2xf32>
    %479 = arith.mulf %477, %478 : vector<1x2xf32>
    %480 = vector.extract_strided_slice %3 {offsets = [4, 0], sizes = [1, 2], strides = [1, 1]} : vector<8x2xi1> to vector<1x2xi1>
    %481 = arith.andi %428, %480 : vector<1x2xi1>
    %cst_257 = arith.constant -1.000000e+09 : f32
    %482 = vector.broadcast %cst_257 : f32 to vector<1x2xf32>
    %483 = arith.select %481, %479, %482 : vector<1x2xi1>, vector<1x2xf32>
    %c5_258 = arith.constant 5 : index
    %c32_259 = arith.constant 32 : index
    %c0_260 = arith.constant 0 : index
    %484 = vector.load %arg13[%c5_258, %c32_259, %c0_260] : memref<8x96x2xf32, #tpu.memory_space<vmem>>, vector<1x32x2xf32>
    %485 = vector.shape_cast %484 : vector<1x32x2xf32> to vector<32x2xf32>
    %486 = arith.mulf %427, %485 : vector<32x2xf32>
    %cst_261 = arith.constant dense<0.000000e+00> : vector<2xf32>
    %487 = vector.multi_reduction <add>, %486, %cst_261 [0] : vector<32x2xf32> to vector<2xf32>
    %488 = vector.shape_cast %487 : vector<2xf32> to vector<1x2xf32>
    %cst_262 = arith.constant 0.176776692 : f32
    %489 = vector.broadcast %cst_262 : f32 to vector<1x2xf32>
    %490 = arith.mulf %488, %489 : vector<1x2xf32>
    %491 = vector.extract_strided_slice %3 {offsets = [5, 0], sizes = [1, 2], strides = [1, 1]} : vector<8x2xi1> to vector<1x2xi1>
    %492 = arith.andi %428, %491 : vector<1x2xi1>
    %cst_263 = arith.constant -1.000000e+09 : f32
    %493 = vector.broadcast %cst_263 : f32 to vector<1x2xf32>
    %494 = arith.select %492, %490, %493 : vector<1x2xi1>, vector<1x2xf32>
    %c6_264 = arith.constant 6 : index
    %c32_265 = arith.constant 32 : index
    %c0_266 = arith.constant 0 : index
    %495 = vector.load %arg13[%c6_264, %c32_265, %c0_266] : memref<8x96x2xf32, #tpu.memory_space<vmem>>, vector<1x32x2xf32>
    %496 = vector.shape_cast %495 : vector<1x32x2xf32> to vector<32x2xf32>
    %497 = arith.mulf %427, %496 : vector<32x2xf32>
    %cst_267 = arith.constant dense<0.000000e+00> : vector<2xf32>
    %498 = vector.multi_reduction <add>, %497, %cst_267 [0] : vector<32x2xf32> to vector<2xf32>
    %499 = vector.shape_cast %498 : vector<2xf32> to vector<1x2xf32>
    %cst_268 = arith.constant 0.176776692 : f32
    %500 = vector.broadcast %cst_268 : f32 to vector<1x2xf32>
    %501 = arith.mulf %499, %500 : vector<1x2xf32>
    %502 = vector.extract_strided_slice %3 {offsets = [6, 0], sizes = [1, 2], strides = [1, 1]} : vector<8x2xi1> to vector<1x2xi1>
    %503 = arith.andi %428, %502 : vector<1x2xi1>
    %cst_269 = arith.constant -1.000000e+09 : f32
    %504 = vector.broadcast %cst_269 : f32 to vector<1x2xf32>
    %505 = arith.select %503, %501, %504 : vector<1x2xi1>, vector<1x2xf32>
    %c7_270 = arith.constant 7 : index
    %c32_271 = arith.constant 32 : index
    %c0_272 = arith.constant 0 : index
    %506 = vector.load %arg13[%c7_270, %c32_271, %c0_272] : memref<8x96x2xf32, #tpu.memory_space<vmem>>, vector<1x32x2xf32>
    %507 = vector.shape_cast %506 : vector<1x32x2xf32> to vector<32x2xf32>
    %508 = arith.mulf %427, %507 : vector<32x2xf32>
    %cst_273 = arith.constant dense<0.000000e+00> : vector<2xf32>
    %509 = vector.multi_reduction <add>, %508, %cst_273 [0] : vector<32x2xf32> to vector<2xf32>
    %510 = vector.shape_cast %509 : vector<2xf32> to vector<1x2xf32>
    %cst_274 = arith.constant 0.176776692 : f32
    %511 = vector.broadcast %cst_274 : f32 to vector<1x2xf32>
    %512 = arith.mulf %510, %511 : vector<1x2xf32>
    %513 = vector.extract_strided_slice %3 {offsets = [7, 0], sizes = [1, 2], strides = [1, 1]} : vector<8x2xi1> to vector<1x2xi1>
    %514 = arith.andi %428, %513 : vector<1x2xi1>
    %cst_275 = arith.constant -1.000000e+09 : f32
    %515 = vector.broadcast %cst_275 : f32 to vector<1x2xf32>
    %516 = arith.select %514, %512, %515 : vector<1x2xi1>, vector<1x2xf32>
    %517 = arith.maximumf %439, %450 : vector<1x2xf32>
    %518 = arith.maximumf %517, %461 : vector<1x2xf32>
    %519 = arith.maximumf %518, %472 : vector<1x2xf32>
    %520 = arith.maximumf %519, %483 : vector<1x2xf32>
    %521 = arith.maximumf %520, %494 : vector<1x2xf32>
    %522 = arith.maximumf %521, %505 : vector<1x2xf32>
    %523 = arith.maximumf %522, %516 : vector<1x2xf32>
    %524 = arith.subf %439, %523 : vector<1x2xf32>
    %525 = math.exp %524 : vector<1x2xf32>
    %526 = arith.subf %450, %523 : vector<1x2xf32>
    %527 = math.exp %526 : vector<1x2xf32>
    %528 = arith.subf %461, %523 : vector<1x2xf32>
    %529 = math.exp %528 : vector<1x2xf32>
    %530 = arith.subf %472, %523 : vector<1x2xf32>
    %531 = math.exp %530 : vector<1x2xf32>
    %532 = arith.subf %483, %523 : vector<1x2xf32>
    %533 = math.exp %532 : vector<1x2xf32>
    %534 = arith.subf %494, %523 : vector<1x2xf32>
    %535 = math.exp %534 : vector<1x2xf32>
    %536 = arith.subf %505, %523 : vector<1x2xf32>
    %537 = math.exp %536 : vector<1x2xf32>
    %538 = arith.subf %516, %523 : vector<1x2xf32>
    %539 = math.exp %538 : vector<1x2xf32>
    %540 = arith.addf %525, %527 : vector<1x2xf32>
    %541 = arith.addf %540, %529 : vector<1x2xf32>
    %542 = arith.addf %541, %531 : vector<1x2xf32>
    %543 = arith.addf %542, %533 : vector<1x2xf32>
    %544 = arith.addf %543, %535 : vector<1x2xf32>
    %545 = arith.addf %544, %537 : vector<1x2xf32>
    %546 = arith.addf %545, %539 : vector<1x2xf32>
    %cst_276 = arith.constant 1.000000e+00 : f32
    %547 = vector.broadcast %cst_276 : f32 to vector<1x2xf32>
    %548 = arith.divf %547, %546 : vector<1x2xf32>
    %cst_277 = arith.constant 0.000000e+00 : f32
    %549 = vector.broadcast %cst_277 : f32 to vector<32x2xf32>
    %550 = arith.mulf %525, %548 : vector<1x2xf32>
    %c0_278 = arith.constant 0 : index
    %c64_279 = arith.constant 64 : index
    %c0_280 = arith.constant 0 : index
    %551 = vector.load %arg13[%c0_278, %c64_279, %c0_280] : memref<8x96x2xf32, #tpu.memory_space<vmem>>, vector<1x32x2xf32>
    %552 = vector.shape_cast %551 : vector<1x32x2xf32> to vector<32x2xf32>
    %553 = vector.broadcast %550 : vector<1x2xf32> to vector<32x2xf32>
    %554 = arith.mulf %553, %552 : vector<32x2xf32>
    %555 = arith.addf %549, %554 : vector<32x2xf32>
    %556 = arith.mulf %527, %548 : vector<1x2xf32>
    %c1_281 = arith.constant 1 : index
    %c64_282 = arith.constant 64 : index
    %c0_283 = arith.constant 0 : index
    %557 = vector.load %arg13[%c1_281, %c64_282, %c0_283] : memref<8x96x2xf32, #tpu.memory_space<vmem>>, vector<1x32x2xf32>
    %558 = vector.shape_cast %557 : vector<1x32x2xf32> to vector<32x2xf32>
    %559 = vector.broadcast %556 : vector<1x2xf32> to vector<32x2xf32>
    %560 = arith.mulf %559, %558 : vector<32x2xf32>
    %561 = arith.addf %555, %560 : vector<32x2xf32>
    %562 = arith.mulf %529, %548 : vector<1x2xf32>
    %c2_284 = arith.constant 2 : index
    %c64_285 = arith.constant 64 : index
    %c0_286 = arith.constant 0 : index
    %563 = vector.load %arg13[%c2_284, %c64_285, %c0_286] : memref<8x96x2xf32, #tpu.memory_space<vmem>>, vector<1x32x2xf32>
    %564 = vector.shape_cast %563 : vector<1x32x2xf32> to vector<32x2xf32>
    %565 = vector.broadcast %562 : vector<1x2xf32> to vector<32x2xf32>
    %566 = arith.mulf %565, %564 : vector<32x2xf32>
    %567 = arith.addf %561, %566 : vector<32x2xf32>
    %568 = arith.mulf %531, %548 : vector<1x2xf32>
    %c3_287 = arith.constant 3 : index
    %c64_288 = arith.constant 64 : index
    %c0_289 = arith.constant 0 : index
    %569 = vector.load %arg13[%c3_287, %c64_288, %c0_289] : memref<8x96x2xf32, #tpu.memory_space<vmem>>, vector<1x32x2xf32>
    %570 = vector.shape_cast %569 : vector<1x32x2xf32> to vector<32x2xf32>
    %571 = vector.broadcast %568 : vector<1x2xf32> to vector<32x2xf32>
    %572 = arith.mulf %571, %570 : vector<32x2xf32>
    %573 = arith.addf %567, %572 : vector<32x2xf32>
    %574 = arith.mulf %533, %548 : vector<1x2xf32>
    %c4_290 = arith.constant 4 : index
    %c64_291 = arith.constant 64 : index
    %c0_292 = arith.constant 0 : index
    %575 = vector.load %arg13[%c4_290, %c64_291, %c0_292] : memref<8x96x2xf32, #tpu.memory_space<vmem>>, vector<1x32x2xf32>
    %576 = vector.shape_cast %575 : vector<1x32x2xf32> to vector<32x2xf32>
    %577 = vector.broadcast %574 : vector<1x2xf32> to vector<32x2xf32>
    %578 = arith.mulf %577, %576 : vector<32x2xf32>
    %579 = arith.addf %573, %578 : vector<32x2xf32>
    %580 = arith.mulf %535, %548 : vector<1x2xf32>
    %c5_293 = arith.constant 5 : index
    %c64_294 = arith.constant 64 : index
    %c0_295 = arith.constant 0 : index
    %581 = vector.load %arg13[%c5_293, %c64_294, %c0_295] : memref<8x96x2xf32, #tpu.memory_space<vmem>>, vector<1x32x2xf32>
    %582 = vector.shape_cast %581 : vector<1x32x2xf32> to vector<32x2xf32>
    %583 = vector.broadcast %580 : vector<1x2xf32> to vector<32x2xf32>
    %584 = arith.mulf %583, %582 : vector<32x2xf32>
    %585 = arith.addf %579, %584 : vector<32x2xf32>
    %586 = arith.mulf %537, %548 : vector<1x2xf32>
    %c6_296 = arith.constant 6 : index
    %c64_297 = arith.constant 64 : index
    %c0_298 = arith.constant 0 : index
    %587 = vector.load %arg13[%c6_296, %c64_297, %c0_298] : memref<8x96x2xf32, #tpu.memory_space<vmem>>, vector<1x32x2xf32>
    %588 = vector.shape_cast %587 : vector<1x32x2xf32> to vector<32x2xf32>
    %589 = vector.broadcast %586 : vector<1x2xf32> to vector<32x2xf32>
    %590 = arith.mulf %589, %588 : vector<32x2xf32>
    %591 = arith.addf %585, %590 : vector<32x2xf32>
    %592 = arith.mulf %539, %548 : vector<1x2xf32>
    %c7_299 = arith.constant 7 : index
    %c64_300 = arith.constant 64 : index
    %c0_301 = arith.constant 0 : index
    %593 = vector.load %arg13[%c7_299, %c64_300, %c0_301] : memref<8x96x2xf32, #tpu.memory_space<vmem>>, vector<1x32x2xf32>
    %594 = vector.shape_cast %593 : vector<1x32x2xf32> to vector<32x2xf32>
    %595 = vector.broadcast %592 : vector<1x2xf32> to vector<32x2xf32>
    %596 = arith.mulf %595, %594 : vector<32x2xf32>
    %597 = arith.addf %591, %596 : vector<32x2xf32>
    %c2_302 = arith.constant 2 : index
    %c0_303 = arith.constant 0 : index
    %c0_304 = arith.constant 0 : index
    %598 = vector.load %arg14[%c2_302, %c0_303, %c0_304] : memref<8x32x2xf32, #tpu.memory_space<vmem>>, vector<1x32x2xf32>
    %599 = vector.shape_cast %598 : vector<1x32x2xf32> to vector<32x2xf32>
    %600 = vector.shape_cast %597 : vector<32x2xf32> to vector<1x32x2xf32>
    tpu.vector_store %arg14[%c2_302, %c0_303, %c0_304], %600 {strides = array<i32>} : memref<8x32x2xf32, #tpu.memory_space<vmem>>, vector<1x32x2xf32>,
    %c3_305 = arith.constant 3 : index
    %c0_306 = arith.constant 0 : index
    %c0_307 = arith.constant 0 : index
    %601 = vector.load %arg13[%c3_305, %c0_306, %c0_307] : memref<8x96x2xf32, #tpu.memory_space<vmem>>, vector<1x32x2xf32>
    %602 = vector.shape_cast %601 : vector<1x32x2xf32> to vector<32x2xf32>
    %603 = vector.extract_strided_slice %3 {offsets = [3, 0], sizes = [1, 2], strides = [1, 1]} : vector<8x2xi1> to vector<1x2xi1>
    %c0_308 = arith.constant 0 : index
    %c32_309 = arith.constant 32 : index
    %c0_310 = arith.constant 0 : index
    %604 = vector.load %arg13[%c0_308, %c32_309, %c0_310] : memref<8x96x2xf32, #tpu.memory_space<vmem>>, vector<1x32x2xf32>
    %605 = vector.shape_cast %604 : vector<1x32x2xf32> to vector<32x2xf32>
    %606 = arith.mulf %602, %605 : vector<32x2xf32>
    %cst_311 = arith.constant dense<0.000000e+00> : vector<2xf32>
    %607 = vector.multi_reduction <add>, %606, %cst_311 [0] : vector<32x2xf32> to vector<2xf32>
    %608 = vector.shape_cast %607 : vector<2xf32> to vector<1x2xf32>
    %cst_312 = arith.constant 0.176776692 : f32
    %609 = vector.broadcast %cst_312 : f32 to vector<1x2xf32>
    %610 = arith.mulf %608, %609 : vector<1x2xf32>
    %611 = vector.extract_strided_slice %3 {offsets = [0, 0], sizes = [1, 2], strides = [1, 1]} : vector<8x2xi1> to vector<1x2xi1>
    %612 = arith.andi %603, %611 : vector<1x2xi1>
    %cst_313 = arith.constant -1.000000e+09 : f32
    %613 = vector.broadcast %cst_313 : f32 to vector<1x2xf32>
    %614 = arith.select %612, %610, %613 : vector<1x2xi1>, vector<1x2xf32>
    %c1_314 = arith.constant 1 : index
    %c32_315 = arith.constant 32 : index
    %c0_316 = arith.constant 0 : index
    %615 = vector.load %arg13[%c1_314, %c32_315, %c0_316] : memref<8x96x2xf32, #tpu.memory_space<vmem>>, vector<1x32x2xf32>
    %616 = vector.shape_cast %615 : vector<1x32x2xf32> to vector<32x2xf32>
    %617 = arith.mulf %602, %616 : vector<32x2xf32>
    %cst_317 = arith.constant dense<0.000000e+00> : vector<2xf32>
    %618 = vector.multi_reduction <add>, %617, %cst_317 [0] : vector<32x2xf32> to vector<2xf32>
    %619 = vector.shape_cast %618 : vector<2xf32> to vector<1x2xf32>
    %cst_318 = arith.constant 0.176776692 : f32
    %620 = vector.broadcast %cst_318 : f32 to vector<1x2xf32>
    %621 = arith.mulf %619, %620 : vector<1x2xf32>
    %622 = vector.extract_strided_slice %3 {offsets = [1, 0], sizes = [1, 2], strides = [1, 1]} : vector<8x2xi1> to vector<1x2xi1>
    %623 = arith.andi %603, %622 : vector<1x2xi1>
    %cst_319 = arith.constant -1.000000e+09 : f32
    %624 = vector.broadcast %cst_319 : f32 to vector<1x2xf32>
    %625 = arith.select %623, %621, %624 : vector<1x2xi1>, vector<1x2xf32>
    %c2_320 = arith.constant 2 : index
    %c32_321 = arith.constant 32 : index
    %c0_322 = arith.constant 0 : index
    %626 = vector.load %arg13[%c2_320, %c32_321, %c0_322] : memref<8x96x2xf32, #tpu.memory_space<vmem>>, vector<1x32x2xf32>
    %627 = vector.shape_cast %626 : vector<1x32x2xf32> to vector<32x2xf32>
    %628 = arith.mulf %602, %627 : vector<32x2xf32>
    %cst_323 = arith.constant dense<0.000000e+00> : vector<2xf32>
    %629 = vector.multi_reduction <add>, %628, %cst_323 [0] : vector<32x2xf32> to vector<2xf32>
    %630 = vector.shape_cast %629 : vector<2xf32> to vector<1x2xf32>
    %cst_324 = arith.constant 0.176776692 : f32
    %631 = vector.broadcast %cst_324 : f32 to vector<1x2xf32>
    %632 = arith.mulf %630, %631 : vector<1x2xf32>
    %633 = vector.extract_strided_slice %3 {offsets = [2, 0], sizes = [1, 2], strides = [1, 1]} : vector<8x2xi1> to vector<1x2xi1>
    %634 = arith.andi %603, %633 : vector<1x2xi1>
    %cst_325 = arith.constant -1.000000e+09 : f32
    %635 = vector.broadcast %cst_325 : f32 to vector<1x2xf32>
    %636 = arith.select %634, %632, %635 : vector<1x2xi1>, vector<1x2xf32>
    %c3_326 = arith.constant 3 : index
    %c32_327 = arith.constant 32 : index
    %c0_328 = arith.constant 0 : index
    %637 = vector.load %arg13[%c3_326, %c32_327, %c0_328] : memref<8x96x2xf32, #tpu.memory_space<vmem>>, vector<1x32x2xf32>
    %638 = vector.shape_cast %637 : vector<1x32x2xf32> to vector<32x2xf32>
    %639 = arith.mulf %602, %638 : vector<32x2xf32>
    %cst_329 = arith.constant dense<0.000000e+00> : vector<2xf32>
    %640 = vector.multi_reduction <add>, %639, %cst_329 [0] : vector<32x2xf32> to vector<2xf32>
    %641 = vector.shape_cast %640 : vector<2xf32> to vector<1x2xf32>
    %cst_330 = arith.constant 0.176776692 : f32
    %642 = vector.broadcast %cst_330 : f32 to vector<1x2xf32>
    %643 = arith.mulf %641, %642 : vector<1x2xf32>
    %644 = vector.extract_strided_slice %3 {offsets = [3, 0], sizes = [1, 2], strides = [1, 1]} : vector<8x2xi1> to vector<1x2xi1>
    %645 = arith.andi %603, %644 : vector<1x2xi1>
    %cst_331 = arith.constant -1.000000e+09 : f32
    %646 = vector.broadcast %cst_331 : f32 to vector<1x2xf32>
    %647 = arith.select %645, %643, %646 : vector<1x2xi1>, vector<1x2xf32>
    %c4_332 = arith.constant 4 : index
    %c32_333 = arith.constant 32 : index
    %c0_334 = arith.constant 0 : index
    %648 = vector.load %arg13[%c4_332, %c32_333, %c0_334] : memref<8x96x2xf32, #tpu.memory_space<vmem>>, vector<1x32x2xf32>
    %649 = vector.shape_cast %648 : vector<1x32x2xf32> to vector<32x2xf32>
    %650 = arith.mulf %602, %649 : vector<32x2xf32>
    %cst_335 = arith.constant dense<0.000000e+00> : vector<2xf32>
    %651 = vector.multi_reduction <add>, %650, %cst_335 [0] : vector<32x2xf32> to vector<2xf32>
    %652 = vector.shape_cast %651 : vector<2xf32> to vector<1x2xf32>
    %cst_336 = arith.constant 0.176776692 : f32
    %653 = vector.broadcast %cst_336 : f32 to vector<1x2xf32>
    %654 = arith.mulf %652, %653 : vector<1x2xf32>
    %655 = vector.extract_strided_slice %3 {offsets = [4, 0], sizes = [1, 2], strides = [1, 1]} : vector<8x2xi1> to vector<1x2xi1>
    %656 = arith.andi %603, %655 : vector<1x2xi1>
    %cst_337 = arith.constant -1.000000e+09 : f32
    %657 = vector.broadcast %cst_337 : f32 to vector<1x2xf32>
    %658 = arith.select %656, %654, %657 : vector<1x2xi1>, vector<1x2xf32>
    %c5_338 = arith.constant 5 : index
    %c32_339 = arith.constant 32 : index
    %c0_340 = arith.constant 0 : index
    %659 = vector.load %arg13[%c5_338, %c32_339, %c0_340] : memref<8x96x2xf32, #tpu.memory_space<vmem>>, vector<1x32x2xf32>
    %660 = vector.shape_cast %659 : vector<1x32x2xf32> to vector<32x2xf32>
    %661 = arith.mulf %602, %660 : vector<32x2xf32>
    %cst_341 = arith.constant dense<0.000000e+00> : vector<2xf32>
    %662 = vector.multi_reduction <add>, %661, %cst_341 [0] : vector<32x2xf32> to vector<2xf32>
    %663 = vector.shape_cast %662 : vector<2xf32> to vector<1x2xf32>
    %cst_342 = arith.constant 0.176776692 : f32
    %664 = vector.broadcast %cst_342 : f32 to vector<1x2xf32>
    %665 = arith.mulf %663, %664 : vector<1x2xf32>
    %666 = vector.extract_strided_slice %3 {offsets = [5, 0], sizes = [1, 2], strides = [1, 1]} : vector<8x2xi1> to vector<1x2xi1>
    %667 = arith.andi %603, %666 : vector<1x2xi1>
    %cst_343 = arith.constant -1.000000e+09 : f32
    %668 = vector.broadcast %cst_343 : f32 to vector<1x2xf32>
    %669 = arith.select %667, %665, %668 : vector<1x2xi1>, vector<1x2xf32>
    %c6_344 = arith.constant 6 : index
    %c32_345 = arith.constant 32 : index
    %c0_346 = arith.constant 0 : index
    %670 = vector.load %arg13[%c6_344, %c32_345, %c0_346] : memref<8x96x2xf32, #tpu.memory_space<vmem>>, vector<1x32x2xf32>
    %671 = vector.shape_cast %670 : vector<1x32x2xf32> to vector<32x2xf32>
    %672 = arith.mulf %602, %671 : vector<32x2xf32>
    %cst_347 = arith.constant dense<0.000000e+00> : vector<2xf32>
    %673 = vector.multi_reduction <add>, %672, %cst_347 [0] : vector<32x2xf32> to vector<2xf32>
    %674 = vector.shape_cast %673 : vector<2xf32> to vector<1x2xf32>
    %cst_348 = arith.constant 0.176776692 : f32
    %675 = vector.broadcast %cst_348 : f32 to vector<1x2xf32>
    %676 = arith.mulf %674, %675 : vector<1x2xf32>
    %677 = vector.extract_strided_slice %3 {offsets = [6, 0], sizes = [1, 2], strides = [1, 1]} : vector<8x2xi1> to vector<1x2xi1>
    %678 = arith.andi %603, %677 : vector<1x2xi1>
    %cst_349 = arith.constant -1.000000e+09 : f32
    %679 = vector.broadcast %cst_349 : f32 to vector<1x2xf32>
    %680 = arith.select %678, %676, %679 : vector<1x2xi1>, vector<1x2xf32>
    %c7_350 = arith.constant 7 : index
    %c32_351 = arith.constant 32 : index
    %c0_352 = arith.constant 0 : index
    %681 = vector.load %arg13[%c7_350, %c32_351, %c0_352] : memref<8x96x2xf32, #tpu.memory_space<vmem>>, vector<1x32x2xf32>
    %682 = vector.shape_cast %681 : vector<1x32x2xf32> to vector<32x2xf32>
    %683 = arith.mulf %602, %682 : vector<32x2xf32>
    %cst_353 = arith.constant dense<0.000000e+00> : vector<2xf32>
    %684 = vector.multi_reduction <add>, %683, %cst_353 [0] : vector<32x2xf32> to vector<2xf32>
    %685 = vector.shape_cast %684 : vector<2xf32> to vector<1x2xf32>
    %cst_354 = arith.constant 0.176776692 : f32
    %686 = vector.broadcast %cst_354 : f32 to vector<1x2xf32>
    %687 = arith.mulf %685, %686 : vector<1x2xf32>
    %688 = vector.extract_strided_slice %3 {offsets = [7, 0], sizes = [1, 2], strides = [1, 1]} : vector<8x2xi1> to vector<1x2xi1>
    %689 = arith.andi %603, %688 : vector<1x2xi1>
    %cst_355 = arith.constant -1.000000e+09 : f32
    %690 = vector.broadcast %cst_355 : f32 to vector<1x2xf32>
    %691 = arith.select %689, %687, %690 : vector<1x2xi1>, vector<1x2xf32>
    %692 = arith.maximumf %614, %625 : vector<1x2xf32>
    %693 = arith.maximumf %692, %636 : vector<1x2xf32>
    %694 = arith.maximumf %693, %647 : vector<1x2xf32>
    %695 = arith.maximumf %694, %658 : vector<1x2xf32>
    %696 = arith.maximumf %695, %669 : vector<1x2xf32>
    %697 = arith.maximumf %696, %680 : vector<1x2xf32>
    %698 = arith.maximumf %697, %691 : vector<1x2xf32>
    %699 = arith.subf %614, %698 : vector<1x2xf32>
    %700 = math.exp %699 : vector<1x2xf32>
    %701 = arith.subf %625, %698 : vector<1x2xf32>
    %702 = math.exp %701 : vector<1x2xf32>
    %703 = arith.subf %636, %698 : vector<1x2xf32>
    %704 = math.exp %703 : vector<1x2xf32>
    %705 = arith.subf %647, %698 : vector<1x2xf32>
    %706 = math.exp %705 : vector<1x2xf32>
    %707 = arith.subf %658, %698 : vector<1x2xf32>
    %708 = math.exp %707 : vector<1x2xf32>
    %709 = arith.subf %669, %698 : vector<1x2xf32>
    %710 = math.exp %709 : vector<1x2xf32>
    %711 = arith.subf %680, %698 : vector<1x2xf32>
    %712 = math.exp %711 : vector<1x2xf32>
    %713 = arith.subf %691, %698 : vector<1x2xf32>
    %714 = math.exp %713 : vector<1x2xf32>
    %715 = arith.addf %700, %702 : vector<1x2xf32>
    %716 = arith.addf %715, %704 : vector<1x2xf32>
    %717 = arith.addf %716, %706 : vector<1x2xf32>
    %718 = arith.addf %717, %708 : vector<1x2xf32>
    %719 = arith.addf %718, %710 : vector<1x2xf32>
    %720 = arith.addf %719, %712 : vector<1x2xf32>
    %721 = arith.addf %720, %714 : vector<1x2xf32>
    %cst_356 = arith.constant 1.000000e+00 : f32
    %722 = vector.broadcast %cst_356 : f32 to vector<1x2xf32>
    %723 = arith.divf %722, %721 : vector<1x2xf32>
    %cst_357 = arith.constant 0.000000e+00 : f32
    %724 = vector.broadcast %cst_357 : f32 to vector<32x2xf32>
    %725 = arith.mulf %700, %723 : vector<1x2xf32>
    %c0_358 = arith.constant 0 : index
    %c64_359 = arith.constant 64 : index
    %c0_360 = arith.constant 0 : index
    %726 = vector.load %arg13[%c0_358, %c64_359, %c0_360] : memref<8x96x2xf32, #tpu.memory_space<vmem>>, vector<1x32x2xf32>
    %727 = vector.shape_cast %726 : vector<1x32x2xf32> to vector<32x2xf32>
    %728 = vector.broadcast %725 : vector<1x2xf32> to vector<32x2xf32>
    %729 = arith.mulf %728, %727 : vector<32x2xf32>
    %730 = arith.addf %724, %729 : vector<32x2xf32>
    %731 = arith.mulf %702, %723 : vector<1x2xf32>
    %c1_361 = arith.constant 1 : index
    %c64_362 = arith.constant 64 : index
    %c0_363 = arith.constant 0 : index
    %732 = vector.load %arg13[%c1_361, %c64_362, %c0_363] : memref<8x96x2xf32, #tpu.memory_space<vmem>>, vector<1x32x2xf32>
    %733 = vector.shape_cast %732 : vector<1x32x2xf32> to vector<32x2xf32>
    %734 = vector.broadcast %731 : vector<1x2xf32> to vector<32x2xf32>
    %735 = arith.mulf %734, %733 : vector<32x2xf32>
    %736 = arith.addf %730, %735 : vector<32x2xf32>
    %737 = arith.mulf %704, %723 : vector<1x2xf32>
    %c2_364 = arith.constant 2 : index
    %c64_365 = arith.constant 64 : index
    %c0_366 = arith.constant 0 : index
    %738 = vector.load %arg13[%c2_364, %c64_365, %c0_366] : memref<8x96x2xf32, #tpu.memory_space<vmem>>, vector<1x32x2xf32>
    %739 = vector.shape_cast %738 : vector<1x32x2xf32> to vector<32x2xf32>
    %740 = vector.broadcast %737 : vector<1x2xf32> to vector<32x2xf32>
    %741 = arith.mulf %740, %739 : vector<32x2xf32>
    %742 = arith.addf %736, %741 : vector<32x2xf32>
    %743 = arith.mulf %706, %723 : vector<1x2xf32>
    %c3_367 = arith.constant 3 : index
    %c64_368 = arith.constant 64 : index
    %c0_369 = arith.constant 0 : index
    %744 = vector.load %arg13[%c3_367, %c64_368, %c0_369] : memref<8x96x2xf32, #tpu.memory_space<vmem>>, vector<1x32x2xf32>
    %745 = vector.shape_cast %744 : vector<1x32x2xf32> to vector<32x2xf32>
    %746 = vector.broadcast %743 : vector<1x2xf32> to vector<32x2xf32>
    %747 = arith.mulf %746, %745 : vector<32x2xf32>
    %748 = arith.addf %742, %747 : vector<32x2xf32>
    %749 = arith.mulf %708, %723 : vector<1x2xf32>
    %c4_370 = arith.constant 4 : index
    %c64_371 = arith.constant 64 : index
    %c0_372 = arith.constant 0 : index
    %750 = vector.load %arg13[%c4_370, %c64_371, %c0_372] : memref<8x96x2xf32, #tpu.memory_space<vmem>>, vector<1x32x2xf32>
    %751 = vector.shape_cast %750 : vector<1x32x2xf32> to vector<32x2xf32>
    %752 = vector.broadcast %749 : vector<1x2xf32> to vector<32x2xf32>
    %753 = arith.mulf %752, %751 : vector<32x2xf32>
    %754 = arith.addf %748, %753 : vector<32x2xf32>
    %755 = arith.mulf %710, %723 : vector<1x2xf32>
    %c5_373 = arith.constant 5 : index
    %c64_374 = arith.constant 64 : index
    %c0_375 = arith.constant 0 : index
    %756 = vector.load %arg13[%c5_373, %c64_374, %c0_375] : memref<8x96x2xf32, #tpu.memory_space<vmem>>, vector<1x32x2xf32>
    %757 = vector.shape_cast %756 : vector<1x32x2xf32> to vector<32x2xf32>
    %758 = vector.broadcast %755 : vector<1x2xf32> to vector<32x2xf32>
    %759 = arith.mulf %758, %757 : vector<32x2xf32>
    %760 = arith.addf %754, %759 : vector<32x2xf32>
    %761 = arith.mulf %712, %723 : vector<1x2xf32>
    %c6_376 = arith.constant 6 : index
    %c64_377 = arith.constant 64 : index
    %c0_378 = arith.constant 0 : index
    %762 = vector.load %arg13[%c6_376, %c64_377, %c0_378] : memref<8x96x2xf32, #tpu.memory_space<vmem>>, vector<1x32x2xf32>
    %763 = vector.shape_cast %762 : vector<1x32x2xf32> to vector<32x2xf32>
    %764 = vector.broadcast %761 : vector<1x2xf32> to vector<32x2xf32>
    %765 = arith.mulf %764, %763 : vector<32x2xf32>
    %766 = arith.addf %760, %765 : vector<32x2xf32>
    %767 = arith.mulf %714, %723 : vector<1x2xf32>
    %c7_379 = arith.constant 7 : index
    %c64_380 = arith.constant 64 : index
    %c0_381 = arith.constant 0 : index
    %768 = vector.load %arg13[%c7_379, %c64_380, %c0_381] : memref<8x96x2xf32, #tpu.memory_space<vmem>>, vector<1x32x2xf32>
    %769 = vector.shape_cast %768 : vector<1x32x2xf32> to vector<32x2xf32>
    %770 = vector.broadcast %767 : vector<1x2xf32> to vector<32x2xf32>
    %771 = arith.mulf %770, %769 : vector<32x2xf32>
    %772 = arith.addf %766, %771 : vector<32x2xf32>
    %c3_382 = arith.constant 3 : index
    %c0_383 = arith.constant 0 : index
    %c0_384 = arith.constant 0 : index
    %773 = vector.load %arg14[%c3_382, %c0_383, %c0_384] : memref<8x32x2xf32, #tpu.memory_space<vmem>>, vector<1x32x2xf32>
    %774 = vector.shape_cast %773 : vector<1x32x2xf32> to vector<32x2xf32>
    %775 = vector.shape_cast %772 : vector<32x2xf32> to vector<1x32x2xf32>
    tpu.vector_store %arg14[%c3_382, %c0_383, %c0_384], %775 {strides = array<i32>} : memref<8x32x2xf32, #tpu.memory_space<vmem>>, vector<1x32x2xf32>,
    %c4_385 = arith.constant 4 : index
    %c0_386 = arith.constant 0 : index
    %c0_387 = arith.constant 0 : index
    %776 = vector.load %arg13[%c4_385, %c0_386, %c0_387] : memref<8x96x2xf32, #tpu.memory_space<vmem>>, vector<1x32x2xf32>
    %777 = vector.shape_cast %776 : vector<1x32x2xf32> to vector<32x2xf32>
    %778 = vector.extract_strided_slice %3 {offsets = [4, 0], sizes = [1, 2], strides = [1, 1]} : vector<8x2xi1> to vector<1x2xi1>
    %c0_388 = arith.constant 0 : index
    %c32_389 = arith.constant 32 : index
    %c0_390 = arith.constant 0 : index
    %779 = vector.load %arg13[%c0_388, %c32_389, %c0_390] : memref<8x96x2xf32, #tpu.memory_space<vmem>>, vector<1x32x2xf32>
    %780 = vector.shape_cast %779 : vector<1x32x2xf32> to vector<32x2xf32>
    %781 = arith.mulf %777, %780 : vector<32x2xf32>
    %cst_391 = arith.constant dense<0.000000e+00> : vector<2xf32>
    %782 = vector.multi_reduction <add>, %781, %cst_391 [0] : vector<32x2xf32> to vector<2xf32>
    %783 = vector.shape_cast %782 : vector<2xf32> to vector<1x2xf32>
    %cst_392 = arith.constant 0.176776692 : f32
    %784 = vector.broadcast %cst_392 : f32 to vector<1x2xf32>
    %785 = arith.mulf %783, %784 : vector<1x2xf32>
    %786 = vector.extract_strided_slice %3 {offsets = [0, 0], sizes = [1, 2], strides = [1, 1]} : vector<8x2xi1> to vector<1x2xi1>
    %787 = arith.andi %778, %786 : vector<1x2xi1>
    %cst_393 = arith.constant -1.000000e+09 : f32
    %788 = vector.broadcast %cst_393 : f32 to vector<1x2xf32>
    %789 = arith.select %787, %785, %788 : vector<1x2xi1>, vector<1x2xf32>
    %c1_394 = arith.constant 1 : index
    %c32_395 = arith.constant 32 : index
    %c0_396 = arith.constant 0 : index
    %790 = vector.load %arg13[%c1_394, %c32_395, %c0_396] : memref<8x96x2xf32, #tpu.memory_space<vmem>>, vector<1x32x2xf32>
    %791 = vector.shape_cast %790 : vector<1x32x2xf32> to vector<32x2xf32>
    %792 = arith.mulf %777, %791 : vector<32x2xf32>
    %cst_397 = arith.constant dense<0.000000e+00> : vector<2xf32>
    %793 = vector.multi_reduction <add>, %792, %cst_397 [0] : vector<32x2xf32> to vector<2xf32>
    %794 = vector.shape_cast %793 : vector<2xf32> to vector<1x2xf32>
    %cst_398 = arith.constant 0.176776692 : f32
    %795 = vector.broadcast %cst_398 : f32 to vector<1x2xf32>
    %796 = arith.mulf %794, %795 : vector<1x2xf32>
    %797 = vector.extract_strided_slice %3 {offsets = [1, 0], sizes = [1, 2], strides = [1, 1]} : vector<8x2xi1> to vector<1x2xi1>
    %798 = arith.andi %778, %797 : vector<1x2xi1>
    %cst_399 = arith.constant -1.000000e+09 : f32
    %799 = vector.broadcast %cst_399 : f32 to vector<1x2xf32>
    %800 = arith.select %798, %796, %799 : vector<1x2xi1>, vector<1x2xf32>
    %c2_400 = arith.constant 2 : index
    %c32_401 = arith.constant 32 : index
    %c0_402 = arith.constant 0 : index
    %801 = vector.load %arg13[%c2_400, %c32_401, %c0_402] : memref<8x96x2xf32, #tpu.memory_space<vmem>>, vector<1x32x2xf32>
    %802 = vector.shape_cast %801 : vector<1x32x2xf32> to vector<32x2xf32>
    %803 = arith.mulf %777, %802 : vector<32x2xf32>
    %cst_403 = arith.constant dense<0.000000e+00> : vector<2xf32>
    %804 = vector.multi_reduction <add>, %803, %cst_403 [0] : vector<32x2xf32> to vector<2xf32>
    %805 = vector.shape_cast %804 : vector<2xf32> to vector<1x2xf32>
    %cst_404 = arith.constant 0.176776692 : f32
    %806 = vector.broadcast %cst_404 : f32 to vector<1x2xf32>
    %807 = arith.mulf %805, %806 : vector<1x2xf32>
    %808 = vector.extract_strided_slice %3 {offsets = [2, 0], sizes = [1, 2], strides = [1, 1]} : vector<8x2xi1> to vector<1x2xi1>
    %809 = arith.andi %778, %808 : vector<1x2xi1>
    %cst_405 = arith.constant -1.000000e+09 : f32
    %810 = vector.broadcast %cst_405 : f32 to vector<1x2xf32>
    %811 = arith.select %809, %807, %810 : vector<1x2xi1>, vector<1x2xf32>
    %c3_406 = arith.constant 3 : index
    %c32_407 = arith.constant 32 : index
    %c0_408 = arith.constant 0 : index
    %812 = vector.load %arg13[%c3_406, %c32_407, %c0_408] : memref<8x96x2xf32, #tpu.memory_space<vmem>>, vector<1x32x2xf32>
    %813 = vector.shape_cast %812 : vector<1x32x2xf32> to vector<32x2xf32>
    %814 = arith.mulf %777, %813 : vector<32x2xf32>
    %cst_409 = arith.constant dense<0.000000e+00> : vector<2xf32>
    %815 = vector.multi_reduction <add>, %814, %cst_409 [0] : vector<32x2xf32> to vector<2xf32>
    %816 = vector.shape_cast %815 : vector<2xf32> to vector<1x2xf32>
    %cst_410 = arith.constant 0.176776692 : f32
    %817 = vector.broadcast %cst_410 : f32 to vector<1x2xf32>
    %818 = arith.mulf %816, %817 : vector<1x2xf32>
    %819 = vector.extract_strided_slice %3 {offsets = [3, 0], sizes = [1, 2], strides = [1, 1]} : vector<8x2xi1> to vector<1x2xi1>
    %820 = arith.andi %778, %819 : vector<1x2xi1>
    %cst_411 = arith.constant -1.000000e+09 : f32
    %821 = vector.broadcast %cst_411 : f32 to vector<1x2xf32>
    %822 = arith.select %820, %818, %821 : vector<1x2xi1>, vector<1x2xf32>
    %c4_412 = arith.constant 4 : index
    %c32_413 = arith.constant 32 : index
    %c0_414 = arith.constant 0 : index
    %823 = vector.load %arg13[%c4_412, %c32_413, %c0_414] : memref<8x96x2xf32, #tpu.memory_space<vmem>>, vector<1x32x2xf32>
    %824 = vector.shape_cast %823 : vector<1x32x2xf32> to vector<32x2xf32>
    %825 = arith.mulf %777, %824 : vector<32x2xf32>
    %cst_415 = arith.constant dense<0.000000e+00> : vector<2xf32>
    %826 = vector.multi_reduction <add>, %825, %cst_415 [0] : vector<32x2xf32> to vector<2xf32>
    %827 = vector.shape_cast %826 : vector<2xf32> to vector<1x2xf32>
    %cst_416 = arith.constant 0.176776692 : f32
    %828 = vector.broadcast %cst_416 : f32 to vector<1x2xf32>
    %829 = arith.mulf %827, %828 : vector<1x2xf32>
    %830 = vector.extract_strided_slice %3 {offsets = [4, 0], sizes = [1, 2], strides = [1, 1]} : vector<8x2xi1> to vector<1x2xi1>
    %831 = arith.andi %778, %830 : vector<1x2xi1>
    %cst_417 = arith.constant -1.000000e+09 : f32
    %832 = vector.broadcast %cst_417 : f32 to vector<1x2xf32>
    %833 = arith.select %831, %829, %832 : vector<1x2xi1>, vector<1x2xf32>
    %c5_418 = arith.constant 5 : index
    %c32_419 = arith.constant 32 : index
    %c0_420 = arith.constant 0 : index
    %834 = vector.load %arg13[%c5_418, %c32_419, %c0_420] : memref<8x96x2xf32, #tpu.memory_space<vmem>>, vector<1x32x2xf32>
    %835 = vector.shape_cast %834 : vector<1x32x2xf32> to vector<32x2xf32>
    %836 = arith.mulf %777, %835 : vector<32x2xf32>
    %cst_421 = arith.constant dense<0.000000e+00> : vector<2xf32>
    %837 = vector.multi_reduction <add>, %836, %cst_421 [0] : vector<32x2xf32> to vector<2xf32>
    %838 = vector.shape_cast %837 : vector<2xf32> to vector<1x2xf32>
    %cst_422 = arith.constant 0.176776692 : f32
    %839 = vector.broadcast %cst_422 : f32 to vector<1x2xf32>
    %840 = arith.mulf %838, %839 : vector<1x2xf32>
    %841 = vector.extract_strided_slice %3 {offsets = [5, 0], sizes = [1, 2], strides = [1, 1]} : vector<8x2xi1> to vector<1x2xi1>
    %842 = arith.andi %778, %841 : vector<1x2xi1>
    %cst_423 = arith.constant -1.000000e+09 : f32
    %843 = vector.broadcast %cst_423 : f32 to vector<1x2xf32>
    %844 = arith.select %842, %840, %843 : vector<1x2xi1>, vector<1x2xf32>
    %c6_424 = arith.constant 6 : index
    %c32_425 = arith.constant 32 : index
    %c0_426 = arith.constant 0 : index
    %845 = vector.load %arg13[%c6_424, %c32_425, %c0_426] : memref<8x96x2xf32, #tpu.memory_space<vmem>>, vector<1x32x2xf32>
    %846 = vector.shape_cast %845 : vector<1x32x2xf32> to vector<32x2xf32>
    %847 = arith.mulf %777, %846 : vector<32x2xf32>
    %cst_427 = arith.constant dense<0.000000e+00> : vector<2xf32>
    %848 = vector.multi_reduction <add>, %847, %cst_427 [0] : vector<32x2xf32> to vector<2xf32>
    %849 = vector.shape_cast %848 : vector<2xf32> to vector<1x2xf32>
    %cst_428 = arith.constant 0.176776692 : f32
    %850 = vector.broadcast %cst_428 : f32 to vector<1x2xf32>
    %851 = arith.mulf %849, %850 : vector<1x2xf32>
    %852 = vector.extract_strided_slice %3 {offsets = [6, 0], sizes = [1, 2], strides = [1, 1]} : vector<8x2xi1> to vector<1x2xi1>
    %853 = arith.andi %778, %852 : vector<1x2xi1>
    %cst_429 = arith.constant -1.000000e+09 : f32
    %854 = vector.broadcast %cst_429 : f32 to vector<1x2xf32>
    %855 = arith.select %853, %851, %854 : vector<1x2xi1>, vector<1x2xf32>
    %c7_430 = arith.constant 7 : index
    %c32_431 = arith.constant 32 : index
    %c0_432 = arith.constant 0 : index
    %856 = vector.load %arg13[%c7_430, %c32_431, %c0_432] : memref<8x96x2xf32, #tpu.memory_space<vmem>>, vector<1x32x2xf32>
    %857 = vector.shape_cast %856 : vector<1x32x2xf32> to vector<32x2xf32>
    %858 = arith.mulf %777, %857 : vector<32x2xf32>
    %cst_433 = arith.constant dense<0.000000e+00> : vector<2xf32>
    %859 = vector.multi_reduction <add>, %858, %cst_433 [0] : vector<32x2xf32> to vector<2xf32>
    %860 = vector.shape_cast %859 : vector<2xf32> to vector<1x2xf32>
    %cst_434 = arith.constant 0.176776692 : f32
    %861 = vector.broadcast %cst_434 : f32 to vector<1x2xf32>
    %862 = arith.mulf %860, %861 : vector<1x2xf32>
    %863 = vector.extract_strided_slice %3 {offsets = [7, 0], sizes = [1, 2], strides = [1, 1]} : vector<8x2xi1> to vector<1x2xi1>
    %864 = arith.andi %778, %863 : vector<1x2xi1>
    %cst_435 = arith.constant -1.000000e+09 : f32
    %865 = vector.broadcast %cst_435 : f32 to vector<1x2xf32>
    %866 = arith.select %864, %862, %865 : vector<1x2xi1>, vector<1x2xf32>
    %867 = arith.maximumf %789, %800 : vector<1x2xf32>
    %868 = arith.maximumf %867, %811 : vector<1x2xf32>
    %869 = arith.maximumf %868, %822 : vector<1x2xf32>
    %870 = arith.maximumf %869, %833 : vector<1x2xf32>
    %871 = arith.maximumf %870, %844 : vector<1x2xf32>
    %872 = arith.maximumf %871, %855 : vector<1x2xf32>
    %873 = arith.maximumf %872, %866 : vector<1x2xf32>
    %874 = arith.subf %789, %873 : vector<1x2xf32>
    %875 = math.exp %874 : vector<1x2xf32>
    %876 = arith.subf %800, %873 : vector<1x2xf32>
    %877 = math.exp %876 : vector<1x2xf32>
    %878 = arith.subf %811, %873 : vector<1x2xf32>
    %879 = math.exp %878 : vector<1x2xf32>
    %880 = arith.subf %822, %873 : vector<1x2xf32>
    %881 = math.exp %880 : vector<1x2xf32>
    %882 = arith.subf %833, %873 : vector<1x2xf32>
    %883 = math.exp %882 : vector<1x2xf32>
    %884 = arith.subf %844, %873 : vector<1x2xf32>
    %885 = math.exp %884 : vector<1x2xf32>
    %886 = arith.subf %855, %873 : vector<1x2xf32>
    %887 = math.exp %886 : vector<1x2xf32>
    %888 = arith.subf %866, %873 : vector<1x2xf32>
    %889 = math.exp %888 : vector<1x2xf32>
    %890 = arith.addf %875, %877 : vector<1x2xf32>
    %891 = arith.addf %890, %879 : vector<1x2xf32>
    %892 = arith.addf %891, %881 : vector<1x2xf32>
    %893 = arith.addf %892, %883 : vector<1x2xf32>
    %894 = arith.addf %893, %885 : vector<1x2xf32>
    %895 = arith.addf %894, %887 : vector<1x2xf32>
    %896 = arith.addf %895, %889 : vector<1x2xf32>
    %cst_436 = arith.constant 1.000000e+00 : f32
    %897 = vector.broadcast %cst_436 : f32 to vector<1x2xf32>
    %898 = arith.divf %897, %896 : vector<1x2xf32>
    %cst_437 = arith.constant 0.000000e+00 : f32
    %899 = vector.broadcast %cst_437 : f32 to vector<32x2xf32>
    %900 = arith.mulf %875, %898 : vector<1x2xf32>
    %c0_438 = arith.constant 0 : index
    %c64_439 = arith.constant 64 : index
    %c0_440 = arith.constant 0 : index
    %901 = vector.load %arg13[%c0_438, %c64_439, %c0_440] : memref<8x96x2xf32, #tpu.memory_space<vmem>>, vector<1x32x2xf32>
    %902 = vector.shape_cast %901 : vector<1x32x2xf32> to vector<32x2xf32>
    %903 = vector.broadcast %900 : vector<1x2xf32> to vector<32x2xf32>
    %904 = arith.mulf %903, %902 : vector<32x2xf32>
    %905 = arith.addf %899, %904 : vector<32x2xf32>
    %906 = arith.mulf %877, %898 : vector<1x2xf32>
    %c1_441 = arith.constant 1 : index
    %c64_442 = arith.constant 64 : index
    %c0_443 = arith.constant 0 : index
    %907 = vector.load %arg13[%c1_441, %c64_442, %c0_443] : memref<8x96x2xf32, #tpu.memory_space<vmem>>, vector<1x32x2xf32>
    %908 = vector.shape_cast %907 : vector<1x32x2xf32> to vector<32x2xf32>
    %909 = vector.broadcast %906 : vector<1x2xf32> to vector<32x2xf32>
    %910 = arith.mulf %909, %908 : vector<32x2xf32>
    %911 = arith.addf %905, %910 : vector<32x2xf32>
    %912 = arith.mulf %879, %898 : vector<1x2xf32>
    %c2_444 = arith.constant 2 : index
    %c64_445 = arith.constant 64 : index
    %c0_446 = arith.constant 0 : index
    %913 = vector.load %arg13[%c2_444, %c64_445, %c0_446] : memref<8x96x2xf32, #tpu.memory_space<vmem>>, vector<1x32x2xf32>
    %914 = vector.shape_cast %913 : vector<1x32x2xf32> to vector<32x2xf32>
    %915 = vector.broadcast %912 : vector<1x2xf32> to vector<32x2xf32>
    %916 = arith.mulf %915, %914 : vector<32x2xf32>
    %917 = arith.addf %911, %916 : vector<32x2xf32>
    %918 = arith.mulf %881, %898 : vector<1x2xf32>
    %c3_447 = arith.constant 3 : index
    %c64_448 = arith.constant 64 : index
    %c0_449 = arith.constant 0 : index
    %919 = vector.load %arg13[%c3_447, %c64_448, %c0_449] : memref<8x96x2xf32, #tpu.memory_space<vmem>>, vector<1x32x2xf32>
    %920 = vector.shape_cast %919 : vector<1x32x2xf32> to vector<32x2xf32>
    %921 = vector.broadcast %918 : vector<1x2xf32> to vector<32x2xf32>
    %922 = arith.mulf %921, %920 : vector<32x2xf32>
    %923 = arith.addf %917, %922 : vector<32x2xf32>
    %924 = arith.mulf %883, %898 : vector<1x2xf32>
    %c4_450 = arith.constant 4 : index
    %c64_451 = arith.constant 64 : index
    %c0_452 = arith.constant 0 : index
    %925 = vector.load %arg13[%c4_450, %c64_451, %c0_452] : memref<8x96x2xf32, #tpu.memory_space<vmem>>, vector<1x32x2xf32>
    %926 = vector.shape_cast %925 : vector<1x32x2xf32> to vector<32x2xf32>
    %927 = vector.broadcast %924 : vector<1x2xf32> to vector<32x2xf32>
    %928 = arith.mulf %927, %926 : vector<32x2xf32>
    %929 = arith.addf %923, %928 : vector<32x2xf32>
    %930 = arith.mulf %885, %898 : vector<1x2xf32>
    %c5_453 = arith.constant 5 : index
    %c64_454 = arith.constant 64 : index
    %c0_455 = arith.constant 0 : index
    %931 = vector.load %arg13[%c5_453, %c64_454, %c0_455] : memref<8x96x2xf32, #tpu.memory_space<vmem>>, vector<1x32x2xf32>
    %932 = vector.shape_cast %931 : vector<1x32x2xf32> to vector<32x2xf32>
    %933 = vector.broadcast %930 : vector<1x2xf32> to vector<32x2xf32>
    %934 = arith.mulf %933, %932 : vector<32x2xf32>
    %935 = arith.addf %929, %934 : vector<32x2xf32>
    %936 = arith.mulf %887, %898 : vector<1x2xf32>
    %c6_456 = arith.constant 6 : index
    %c64_457 = arith.constant 64 : index
    %c0_458 = arith.constant 0 : index
    %937 = vector.load %arg13[%c6_456, %c64_457, %c0_458] : memref<8x96x2xf32, #tpu.memory_space<vmem>>, vector<1x32x2xf32>
    %938 = vector.shape_cast %937 : vector<1x32x2xf32> to vector<32x2xf32>
    %939 = vector.broadcast %936 : vector<1x2xf32> to vector<32x2xf32>
    %940 = arith.mulf %939, %938 : vector<32x2xf32>
    %941 = arith.addf %935, %940 : vector<32x2xf32>
    %942 = arith.mulf %889, %898 : vector<1x2xf32>
    %c7_459 = arith.constant 7 : index
    %c64_460 = arith.constant 64 : index
    %c0_461 = arith.constant 0 : index
    %943 = vector.load %arg13[%c7_459, %c64_460, %c0_461] : memref<8x96x2xf32, #tpu.memory_space<vmem>>, vector<1x32x2xf32>
    %944 = vector.shape_cast %943 : vector<1x32x2xf32> to vector<32x2xf32>
    %945 = vector.broadcast %942 : vector<1x2xf32> to vector<32x2xf32>
    %946 = arith.mulf %945, %944 : vector<32x2xf32>
    %947 = arith.addf %941, %946 : vector<32x2xf32>
    %c4_462 = arith.constant 4 : index
    %c0_463 = arith.constant 0 : index
    %c0_464 = arith.constant 0 : index
    %948 = vector.load %arg14[%c4_462, %c0_463, %c0_464] : memref<8x32x2xf32, #tpu.memory_space<vmem>>, vector<1x32x2xf32>
    %949 = vector.shape_cast %948 : vector<1x32x2xf32> to vector<32x2xf32>
    %950 = vector.shape_cast %947 : vector<32x2xf32> to vector<1x32x2xf32>
    tpu.vector_store %arg14[%c4_462, %c0_463, %c0_464], %950 {strides = array<i32>} : memref<8x32x2xf32, #tpu.memory_space<vmem>>, vector<1x32x2xf32>,
    %c5_465 = arith.constant 5 : index
    %c0_466 = arith.constant 0 : index
    %c0_467 = arith.constant 0 : index
    %951 = vector.load %arg13[%c5_465, %c0_466, %c0_467] : memref<8x96x2xf32, #tpu.memory_space<vmem>>, vector<1x32x2xf32>
    %952 = vector.shape_cast %951 : vector<1x32x2xf32> to vector<32x2xf32>
    %953 = vector.extract_strided_slice %3 {offsets = [5, 0], sizes = [1, 2], strides = [1, 1]} : vector<8x2xi1> to vector<1x2xi1>
    %c0_468 = arith.constant 0 : index
    %c32_469 = arith.constant 32 : index
    %c0_470 = arith.constant 0 : index
    %954 = vector.load %arg13[%c0_468, %c32_469, %c0_470] : memref<8x96x2xf32, #tpu.memory_space<vmem>>, vector<1x32x2xf32>
    %955 = vector.shape_cast %954 : vector<1x32x2xf32> to vector<32x2xf32>
    %956 = arith.mulf %952, %955 : vector<32x2xf32>
    %cst_471 = arith.constant dense<0.000000e+00> : vector<2xf32>
    %957 = vector.multi_reduction <add>, %956, %cst_471 [0] : vector<32x2xf32> to vector<2xf32>
    %958 = vector.shape_cast %957 : vector<2xf32> to vector<1x2xf32>
    %cst_472 = arith.constant 0.176776692 : f32
    %959 = vector.broadcast %cst_472 : f32 to vector<1x2xf32>
    %960 = arith.mulf %958, %959 : vector<1x2xf32>
    %961 = vector.extract_strided_slice %3 {offsets = [0, 0], sizes = [1, 2], strides = [1, 1]} : vector<8x2xi1> to vector<1x2xi1>
    %962 = arith.andi %953, %961 : vector<1x2xi1>
    %cst_473 = arith.constant -1.000000e+09 : f32
    %963 = vector.broadcast %cst_473 : f32 to vector<1x2xf32>
    %964 = arith.select %962, %960, %963 : vector<1x2xi1>, vector<1x2xf32>
    %c1_474 = arith.constant 1 : index
    %c32_475 = arith.constant 32 : index
    %c0_476 = arith.constant 0 : index
    %965 = vector.load %arg13[%c1_474, %c32_475, %c0_476] : memref<8x96x2xf32, #tpu.memory_space<vmem>>, vector<1x32x2xf32>
    %966 = vector.shape_cast %965 : vector<1x32x2xf32> to vector<32x2xf32>
    %967 = arith.mulf %952, %966 : vector<32x2xf32>
    %cst_477 = arith.constant dense<0.000000e+00> : vector<2xf32>
    %968 = vector.multi_reduction <add>, %967, %cst_477 [0] : vector<32x2xf32> to vector<2xf32>
    %969 = vector.shape_cast %968 : vector<2xf32> to vector<1x2xf32>
    %cst_478 = arith.constant 0.176776692 : f32
    %970 = vector.broadcast %cst_478 : f32 to vector<1x2xf32>
    %971 = arith.mulf %969, %970 : vector<1x2xf32>
    %972 = vector.extract_strided_slice %3 {offsets = [1, 0], sizes = [1, 2], strides = [1, 1]} : vector<8x2xi1> to vector<1x2xi1>
    %973 = arith.andi %953, %972 : vector<1x2xi1>
    %cst_479 = arith.constant -1.000000e+09 : f32
    %974 = vector.broadcast %cst_479 : f32 to vector<1x2xf32>
    %975 = arith.select %973, %971, %974 : vector<1x2xi1>, vector<1x2xf32>
    %c2_480 = arith.constant 2 : index
    %c32_481 = arith.constant 32 : index
    %c0_482 = arith.constant 0 : index
    %976 = vector.load %arg13[%c2_480, %c32_481, %c0_482] : memref<8x96x2xf32, #tpu.memory_space<vmem>>, vector<1x32x2xf32>
    %977 = vector.shape_cast %976 : vector<1x32x2xf32> to vector<32x2xf32>
    %978 = arith.mulf %952, %977 : vector<32x2xf32>
    %cst_483 = arith.constant dense<0.000000e+00> : vector<2xf32>
    %979 = vector.multi_reduction <add>, %978, %cst_483 [0] : vector<32x2xf32> to vector<2xf32>
    %980 = vector.shape_cast %979 : vector<2xf32> to vector<1x2xf32>
    %cst_484 = arith.constant 0.176776692 : f32
    %981 = vector.broadcast %cst_484 : f32 to vector<1x2xf32>
    %982 = arith.mulf %980, %981 : vector<1x2xf32>
    %983 = vector.extract_strided_slice %3 {offsets = [2, 0], sizes = [1, 2], strides = [1, 1]} : vector<8x2xi1> to vector<1x2xi1>
    %984 = arith.andi %953, %983 : vector<1x2xi1>
    %cst_485 = arith.constant -1.000000e+09 : f32
    %985 = vector.broadcast %cst_485 : f32 to vector<1x2xf32>
    %986 = arith.select %984, %982, %985 : vector<1x2xi1>, vector<1x2xf32>
    %c3_486 = arith.constant 3 : index
    %c32_487 = arith.constant 32 : index
    %c0_488 = arith.constant 0 : index
    %987 = vector.load %arg13[%c3_486, %c32_487, %c0_488] : memref<8x96x2xf32, #tpu.memory_space<vmem>>, vector<1x32x2xf32>
    %988 = vector.shape_cast %987 : vector<1x32x2xf32> to vector<32x2xf32>
    %989 = arith.mulf %952, %988 : vector<32x2xf32>
    %cst_489 = arith.constant dense<0.000000e+00> : vector<2xf32>
    %990 = vector.multi_reduction <add>, %989, %cst_489 [0] : vector<32x2xf32> to vector<2xf32>
    %991 = vector.shape_cast %990 : vector<2xf32> to vector<1x2xf32>
    %cst_490 = arith.constant 0.176776692 : f32
    %992 = vector.broadcast %cst_490 : f32 to vector<1x2xf32>
    %993 = arith.mulf %991, %992 : vector<1x2xf32>
    %994 = vector.extract_strided_slice %3 {offsets = [3, 0], sizes = [1, 2], strides = [1, 1]} : vector<8x2xi1> to vector<1x2xi1>
    %995 = arith.andi %953, %994 : vector<1x2xi1>
    %cst_491 = arith.constant -1.000000e+09 : f32
    %996 = vector.broadcast %cst_491 : f32 to vector<1x2xf32>
    %997 = arith.select %995, %993, %996 : vector<1x2xi1>, vector<1x2xf32>
    %c4_492 = arith.constant 4 : index
    %c32_493 = arith.constant 32 : index
    %c0_494 = arith.constant 0 : index
    %998 = vector.load %arg13[%c4_492, %c32_493, %c0_494] : memref<8x96x2xf32, #tpu.memory_space<vmem>>, vector<1x32x2xf32>
    %999 = vector.shape_cast %998 : vector<1x32x2xf32> to vector<32x2xf32>
    %1000 = arith.mulf %952, %999 : vector<32x2xf32>
    %cst_495 = arith.constant dense<0.000000e+00> : vector<2xf32>
    %1001 = vector.multi_reduction <add>, %1000, %cst_495 [0] : vector<32x2xf32> to vector<2xf32>
    %1002 = vector.shape_cast %1001 : vector<2xf32> to vector<1x2xf32>
    %cst_496 = arith.constant 0.176776692 : f32
    %1003 = vector.broadcast %cst_496 : f32 to vector<1x2xf32>
    %1004 = arith.mulf %1002, %1003 : vector<1x2xf32>
    %1005 = vector.extract_strided_slice %3 {offsets = [4, 0], sizes = [1, 2], strides = [1, 1]} : vector<8x2xi1> to vector<1x2xi1>
    %1006 = arith.andi %953, %1005 : vector<1x2xi1>
    %cst_497 = arith.constant -1.000000e+09 : f32
    %1007 = vector.broadcast %cst_497 : f32 to vector<1x2xf32>
    %1008 = arith.select %1006, %1004, %1007 : vector<1x2xi1>, vector<1x2xf32>
    %c5_498 = arith.constant 5 : index
    %c32_499 = arith.constant 32 : index
    %c0_500 = arith.constant 0 : index
    %1009 = vector.load %arg13[%c5_498, %c32_499, %c0_500] : memref<8x96x2xf32, #tpu.memory_space<vmem>>, vector<1x32x2xf32>
    %1010 = vector.shape_cast %1009 : vector<1x32x2xf32> to vector<32x2xf32>
    %1011 = arith.mulf %952, %1010 : vector<32x2xf32>
    %cst_501 = arith.constant dense<0.000000e+00> : vector<2xf32>
    %1012 = vector.multi_reduction <add>, %1011, %cst_501 [0] : vector<32x2xf32> to vector<2xf32>
    %1013 = vector.shape_cast %1012 : vector<2xf32> to vector<1x2xf32>
    %cst_502 = arith.constant 0.176776692 : f32
    %1014 = vector.broadcast %cst_502 : f32 to vector<1x2xf32>
    %1015 = arith.mulf %1013, %1014 : vector<1x2xf32>
    %1016 = vector.extract_strided_slice %3 {offsets = [5, 0], sizes = [1, 2], strides = [1, 1]} : vector<8x2xi1> to vector<1x2xi1>
    %1017 = arith.andi %953, %1016 : vector<1x2xi1>
    %cst_503 = arith.constant -1.000000e+09 : f32
    %1018 = vector.broadcast %cst_503 : f32 to vector<1x2xf32>
    %1019 = arith.select %1017, %1015, %1018 : vector<1x2xi1>, vector<1x2xf32>
    %c6_504 = arith.constant 6 : index
    %c32_505 = arith.constant 32 : index
    %c0_506 = arith.constant 0 : index
    %1020 = vector.load %arg13[%c6_504, %c32_505, %c0_506] : memref<8x96x2xf32, #tpu.memory_space<vmem>>, vector<1x32x2xf32>
    %1021 = vector.shape_cast %1020 : vector<1x32x2xf32> to vector<32x2xf32>
    %1022 = arith.mulf %952, %1021 : vector<32x2xf32>
    %cst_507 = arith.constant dense<0.000000e+00> : vector<2xf32>
    %1023 = vector.multi_reduction <add>, %1022, %cst_507 [0] : vector<32x2xf32> to vector<2xf32>
    %1024 = vector.shape_cast %1023 : vector<2xf32> to vector<1x2xf32>
    %cst_508 = arith.constant 0.176776692 : f32
    %1025 = vector.broadcast %cst_508 : f32 to vector<1x2xf32>
    %1026 = arith.mulf %1024, %1025 : vector<1x2xf32>
    %1027 = vector.extract_strided_slice %3 {offsets = [6, 0], sizes = [1, 2], strides = [1, 1]} : vector<8x2xi1> to vector<1x2xi1>
    %1028 = arith.andi %953, %1027 : vector<1x2xi1>
    %cst_509 = arith.constant -1.000000e+09 : f32
    %1029 = vector.broadcast %cst_509 : f32 to vector<1x2xf32>
    %1030 = arith.select %1028, %1026, %1029 : vector<1x2xi1>, vector<1x2xf32>
    %c7_510 = arith.constant 7 : index
    %c32_511 = arith.constant 32 : index
    %c0_512 = arith.constant 0 : index
    %1031 = vector.load %arg13[%c7_510, %c32_511, %c0_512] : memref<8x96x2xf32, #tpu.memory_space<vmem>>, vector<1x32x2xf32>
    %1032 = vector.shape_cast %1031 : vector<1x32x2xf32> to vector<32x2xf32>
    %1033 = arith.mulf %952, %1032 : vector<32x2xf32>
    %cst_513 = arith.constant dense<0.000000e+00> : vector<2xf32>
    %1034 = vector.multi_reduction <add>, %1033, %cst_513 [0] : vector<32x2xf32> to vector<2xf32>
    %1035 = vector.shape_cast %1034 : vector<2xf32> to vector<1x2xf32>
    %cst_514 = arith.constant 0.176776692 : f32
    %1036 = vector.broadcast %cst_514 : f32 to vector<1x2xf32>
    %1037 = arith.mulf %1035, %1036 : vector<1x2xf32>
    %1038 = vector.extract_strided_slice %3 {offsets = [7, 0], sizes = [1, 2], strides = [1, 1]} : vector<8x2xi1> to vector<1x2xi1>
    %1039 = arith.andi %953, %1038 : vector<1x2xi1>
    %cst_515 = arith.constant -1.000000e+09 : f32
    %1040 = vector.broadcast %cst_515 : f32 to vector<1x2xf32>
    %1041 = arith.select %1039, %1037, %1040 : vector<1x2xi1>, vector<1x2xf32>
    %1042 = arith.maximumf %964, %975 : vector<1x2xf32>
    %1043 = arith.maximumf %1042, %986 : vector<1x2xf32>
    %1044 = arith.maximumf %1043, %997 : vector<1x2xf32>
    %1045 = arith.maximumf %1044, %1008 : vector<1x2xf32>
    %1046 = arith.maximumf %1045, %1019 : vector<1x2xf32>
    %1047 = arith.maximumf %1046, %1030 : vector<1x2xf32>
    %1048 = arith.maximumf %1047, %1041 : vector<1x2xf32>
    %1049 = arith.subf %964, %1048 : vector<1x2xf32>
    %1050 = math.exp %1049 : vector<1x2xf32>
    %1051 = arith.subf %975, %1048 : vector<1x2xf32>
    %1052 = math.exp %1051 : vector<1x2xf32>
    %1053 = arith.subf %986, %1048 : vector<1x2xf32>
    %1054 = math.exp %1053 : vector<1x2xf32>
    %1055 = arith.subf %997, %1048 : vector<1x2xf32>
    %1056 = math.exp %1055 : vector<1x2xf32>
    %1057 = arith.subf %1008, %1048 : vector<1x2xf32>
    %1058 = math.exp %1057 : vector<1x2xf32>
    %1059 = arith.subf %1019, %1048 : vector<1x2xf32>
    %1060 = math.exp %1059 : vector<1x2xf32>
    %1061 = arith.subf %1030, %1048 : vector<1x2xf32>
    %1062 = math.exp %1061 : vector<1x2xf32>
    %1063 = arith.subf %1041, %1048 : vector<1x2xf32>
    %1064 = math.exp %1063 : vector<1x2xf32>
    %1065 = arith.addf %1050, %1052 : vector<1x2xf32>
    %1066 = arith.addf %1065, %1054 : vector<1x2xf32>
    %1067 = arith.addf %1066, %1056 : vector<1x2xf32>
    %1068 = arith.addf %1067, %1058 : vector<1x2xf32>
    %1069 = arith.addf %1068, %1060 : vector<1x2xf32>
    %1070 = arith.addf %1069, %1062 : vector<1x2xf32>
    %1071 = arith.addf %1070, %1064 : vector<1x2xf32>
    %cst_516 = arith.constant 1.000000e+00 : f32
    %1072 = vector.broadcast %cst_516 : f32 to vector<1x2xf32>
    %1073 = arith.divf %1072, %1071 : vector<1x2xf32>
    %cst_517 = arith.constant 0.000000e+00 : f32
    %1074 = vector.broadcast %cst_517 : f32 to vector<32x2xf32>
    %1075 = arith.mulf %1050, %1073 : vector<1x2xf32>
    %c0_518 = arith.constant 0 : index
    %c64_519 = arith.constant 64 : index
    %c0_520 = arith.constant 0 : index
    %1076 = vector.load %arg13[%c0_518, %c64_519, %c0_520] : memref<8x96x2xf32, #tpu.memory_space<vmem>>, vector<1x32x2xf32>
    %1077 = vector.shape_cast %1076 : vector<1x32x2xf32> to vector<32x2xf32>
    %1078 = vector.broadcast %1075 : vector<1x2xf32> to vector<32x2xf32>
    %1079 = arith.mulf %1078, %1077 : vector<32x2xf32>
    %1080 = arith.addf %1074, %1079 : vector<32x2xf32>
    %1081 = arith.mulf %1052, %1073 : vector<1x2xf32>
    %c1_521 = arith.constant 1 : index
    %c64_522 = arith.constant 64 : index
    %c0_523 = arith.constant 0 : index
    %1082 = vector.load %arg13[%c1_521, %c64_522, %c0_523] : memref<8x96x2xf32, #tpu.memory_space<vmem>>, vector<1x32x2xf32>
    %1083 = vector.shape_cast %1082 : vector<1x32x2xf32> to vector<32x2xf32>
    %1084 = vector.broadcast %1081 : vector<1x2xf32> to vector<32x2xf32>
    %1085 = arith.mulf %1084, %1083 : vector<32x2xf32>
    %1086 = arith.addf %1080, %1085 : vector<32x2xf32>
    %1087 = arith.mulf %1054, %1073 : vector<1x2xf32>
    %c2_524 = arith.constant 2 : index
    %c64_525 = arith.constant 64 : index
    %c0_526 = arith.constant 0 : index
    %1088 = vector.load %arg13[%c2_524, %c64_525, %c0_526] : memref<8x96x2xf32, #tpu.memory_space<vmem>>, vector<1x32x2xf32>
    %1089 = vector.shape_cast %1088 : vector<1x32x2xf32> to vector<32x2xf32>
    %1090 = vector.broadcast %1087 : vector<1x2xf32> to vector<32x2xf32>
    %1091 = arith.mulf %1090, %1089 : vector<32x2xf32>
    %1092 = arith.addf %1086, %1091 : vector<32x2xf32>
    %1093 = arith.mulf %1056, %1073 : vector<1x2xf32>
    %c3_527 = arith.constant 3 : index
    %c64_528 = arith.constant 64 : index
    %c0_529 = arith.constant 0 : index
    %1094 = vector.load %arg13[%c3_527, %c64_528, %c0_529] : memref<8x96x2xf32, #tpu.memory_space<vmem>>, vector<1x32x2xf32>
    %1095 = vector.shape_cast %1094 : vector<1x32x2xf32> to vector<32x2xf32>
    %1096 = vector.broadcast %1093 : vector<1x2xf32> to vector<32x2xf32>
    %1097 = arith.mulf %1096, %1095 : vector<32x2xf32>
    %1098 = arith.addf %1092, %1097 : vector<32x2xf32>
    %1099 = arith.mulf %1058, %1073 : vector<1x2xf32>
    %c4_530 = arith.constant 4 : index
    %c64_531 = arith.constant 64 : index
    %c0_532 = arith.constant 0 : index
    %1100 = vector.load %arg13[%c4_530, %c64_531, %c0_532] : memref<8x96x2xf32, #tpu.memory_space<vmem>>, vector<1x32x2xf32>
    %1101 = vector.shape_cast %1100 : vector<1x32x2xf32> to vector<32x2xf32>
    %1102 = vector.broadcast %1099 : vector<1x2xf32> to vector<32x2xf32>
    %1103 = arith.mulf %1102, %1101 : vector<32x2xf32>
    %1104 = arith.addf %1098, %1103 : vector<32x2xf32>
    %1105 = arith.mulf %1060, %1073 : vector<1x2xf32>
    %c5_533 = arith.constant 5 : index
    %c64_534 = arith.constant 64 : index
    %c0_535 = arith.constant 0 : index
    %1106 = vector.load %arg13[%c5_533, %c64_534, %c0_535] : memref<8x96x2xf32, #tpu.memory_space<vmem>>, vector<1x32x2xf32>
    %1107 = vector.shape_cast %1106 : vector<1x32x2xf32> to vector<32x2xf32>
    %1108 = vector.broadcast %1105 : vector<1x2xf32> to vector<32x2xf32>
    %1109 = arith.mulf %1108, %1107 : vector<32x2xf32>
    %1110 = arith.addf %1104, %1109 : vector<32x2xf32>
    %1111 = arith.mulf %1062, %1073 : vector<1x2xf32>
    %c6_536 = arith.constant 6 : index
    %c64_537 = arith.constant 64 : index
    %c0_538 = arith.constant 0 : index
    %1112 = vector.load %arg13[%c6_536, %c64_537, %c0_538] : memref<8x96x2xf32, #tpu.memory_space<vmem>>, vector<1x32x2xf32>
    %1113 = vector.shape_cast %1112 : vector<1x32x2xf32> to vector<32x2xf32>
    %1114 = vector.broadcast %1111 : vector<1x2xf32> to vector<32x2xf32>
    %1115 = arith.mulf %1114, %1113 : vector<32x2xf32>
    %1116 = arith.addf %1110, %1115 : vector<32x2xf32>
    %1117 = arith.mulf %1064, %1073 : vector<1x2xf32>
    %c7_539 = arith.constant 7 : index
    %c64_540 = arith.constant 64 : index
    %c0_541 = arith.constant 0 : index
    %1118 = vector.load %arg13[%c7_539, %c64_540, %c0_541] : memref<8x96x2xf32, #tpu.memory_space<vmem>>, vector<1x32x2xf32>
    %1119 = vector.shape_cast %1118 : vector<1x32x2xf32> to vector<32x2xf32>
    %1120 = vector.broadcast %1117 : vector<1x2xf32> to vector<32x2xf32>
    %1121 = arith.mulf %1120, %1119 : vector<32x2xf32>
    %1122 = arith.addf %1116, %1121 : vector<32x2xf32>
    %c5_542 = arith.constant 5 : index
    %c0_543 = arith.constant 0 : index
    %c0_544 = arith.constant 0 : index
    %1123 = vector.load %arg14[%c5_542, %c0_543, %c0_544] : memref<8x32x2xf32, #tpu.memory_space<vmem>>, vector<1x32x2xf32>
    %1124 = vector.shape_cast %1123 : vector<1x32x2xf32> to vector<32x2xf32>
    %1125 = vector.shape_cast %1122 : vector<32x2xf32> to vector<1x32x2xf32>
    tpu.vector_store %arg14[%c5_542, %c0_543, %c0_544], %1125 {strides = array<i32>} : memref<8x32x2xf32, #tpu.memory_space<vmem>>, vector<1x32x2xf32>,
    %c6_545 = arith.constant 6 : index
    %c0_546 = arith.constant 0 : index
    %c0_547 = arith.constant 0 : index
    %1126 = vector.load %arg13[%c6_545, %c0_546, %c0_547] : memref<8x96x2xf32, #tpu.memory_space<vmem>>, vector<1x32x2xf32>
    %1127 = vector.shape_cast %1126 : vector<1x32x2xf32> to vector<32x2xf32>
    %1128 = vector.extract_strided_slice %3 {offsets = [6, 0], sizes = [1, 2], strides = [1, 1]} : vector<8x2xi1> to vector<1x2xi1>
    %c0_548 = arith.constant 0 : index
    %c32_549 = arith.constant 32 : index
    %c0_550 = arith.constant 0 : index
    %1129 = vector.load %arg13[%c0_548, %c32_549, %c0_550] : memref<8x96x2xf32, #tpu.memory_space<vmem>>, vector<1x32x2xf32>
    %1130 = vector.shape_cast %1129 : vector<1x32x2xf32> to vector<32x2xf32>
    %1131 = arith.mulf %1127, %1130 : vector<32x2xf32>
    %cst_551 = arith.constant dense<0.000000e+00> : vector<2xf32>
    %1132 = vector.multi_reduction <add>, %1131, %cst_551 [0] : vector<32x2xf32> to vector<2xf32>
    %1133 = vector.shape_cast %1132 : vector<2xf32> to vector<1x2xf32>
    %cst_552 = arith.constant 0.176776692 : f32
    %1134 = vector.broadcast %cst_552 : f32 to vector<1x2xf32>
    %1135 = arith.mulf %1133, %1134 : vector<1x2xf32>
    %1136 = vector.extract_strided_slice %3 {offsets = [0, 0], sizes = [1, 2], strides = [1, 1]} : vector<8x2xi1> to vector<1x2xi1>
    %1137 = arith.andi %1128, %1136 : vector<1x2xi1>
    %cst_553 = arith.constant -1.000000e+09 : f32
    %1138 = vector.broadcast %cst_553 : f32 to vector<1x2xf32>
    %1139 = arith.select %1137, %1135, %1138 : vector<1x2xi1>, vector<1x2xf32>
    %c1_554 = arith.constant 1 : index
    %c32_555 = arith.constant 32 : index
    %c0_556 = arith.constant 0 : index
    %1140 = vector.load %arg13[%c1_554, %c32_555, %c0_556] : memref<8x96x2xf32, #tpu.memory_space<vmem>>, vector<1x32x2xf32>
    %1141 = vector.shape_cast %1140 : vector<1x32x2xf32> to vector<32x2xf32>
    %1142 = arith.mulf %1127, %1141 : vector<32x2xf32>
    %cst_557 = arith.constant dense<0.000000e+00> : vector<2xf32>
    %1143 = vector.multi_reduction <add>, %1142, %cst_557 [0] : vector<32x2xf32> to vector<2xf32>
    %1144 = vector.shape_cast %1143 : vector<2xf32> to vector<1x2xf32>
    %cst_558 = arith.constant 0.176776692 : f32
    %1145 = vector.broadcast %cst_558 : f32 to vector<1x2xf32>
    %1146 = arith.mulf %1144, %1145 : vector<1x2xf32>
    %1147 = vector.extract_strided_slice %3 {offsets = [1, 0], sizes = [1, 2], strides = [1, 1]} : vector<8x2xi1> to vector<1x2xi1>
    %1148 = arith.andi %1128, %1147 : vector<1x2xi1>
    %cst_559 = arith.constant -1.000000e+09 : f32
    %1149 = vector.broadcast %cst_559 : f32 to vector<1x2xf32>
    %1150 = arith.select %1148, %1146, %1149 : vector<1x2xi1>, vector<1x2xf32>
    %c2_560 = arith.constant 2 : index
    %c32_561 = arith.constant 32 : index
    %c0_562 = arith.constant 0 : index
    %1151 = vector.load %arg13[%c2_560, %c32_561, %c0_562] : memref<8x96x2xf32, #tpu.memory_space<vmem>>, vector<1x32x2xf32>
    %1152 = vector.shape_cast %1151 : vector<1x32x2xf32> to vector<32x2xf32>
    %1153 = arith.mulf %1127, %1152 : vector<32x2xf32>
    %cst_563 = arith.constant dense<0.000000e+00> : vector<2xf32>
    %1154 = vector.multi_reduction <add>, %1153, %cst_563 [0] : vector<32x2xf32> to vector<2xf32>
    %1155 = vector.shape_cast %1154 : vector<2xf32> to vector<1x2xf32>
    %cst_564 = arith.constant 0.176776692 : f32
    %1156 = vector.broadcast %cst_564 : f32 to vector<1x2xf32>
    %1157 = arith.mulf %1155, %1156 : vector<1x2xf32>
    %1158 = vector.extract_strided_slice %3 {offsets = [2, 0], sizes = [1, 2], strides = [1, 1]} : vector<8x2xi1> to vector<1x2xi1>
    %1159 = arith.andi %1128, %1158 : vector<1x2xi1>
    %cst_565 = arith.constant -1.000000e+09 : f32
    %1160 = vector.broadcast %cst_565 : f32 to vector<1x2xf32>
    %1161 = arith.select %1159, %1157, %1160 : vector<1x2xi1>, vector<1x2xf32>
    %c3_566 = arith.constant 3 : index
    %c32_567 = arith.constant 32 : index
    %c0_568 = arith.constant 0 : index
    %1162 = vector.load %arg13[%c3_566, %c32_567, %c0_568] : memref<8x96x2xf32, #tpu.memory_space<vmem>>, vector<1x32x2xf32>
    %1163 = vector.shape_cast %1162 : vector<1x32x2xf32> to vector<32x2xf32>
    %1164 = arith.mulf %1127, %1163 : vector<32x2xf32>
    %cst_569 = arith.constant dense<0.000000e+00> : vector<2xf32>
    %1165 = vector.multi_reduction <add>, %1164, %cst_569 [0] : vector<32x2xf32> to vector<2xf32>
    %1166 = vector.shape_cast %1165 : vector<2xf32> to vector<1x2xf32>
    %cst_570 = arith.constant 0.176776692 : f32
    %1167 = vector.broadcast %cst_570 : f32 to vector<1x2xf32>
    %1168 = arith.mulf %1166, %1167 : vector<1x2xf32>
    %1169 = vector.extract_strided_slice %3 {offsets = [3, 0], sizes = [1, 2], strides = [1, 1]} : vector<8x2xi1> to vector<1x2xi1>
    %1170 = arith.andi %1128, %1169 : vector<1x2xi1>
    %cst_571 = arith.constant -1.000000e+09 : f32
    %1171 = vector.broadcast %cst_571 : f32 to vector<1x2xf32>
    %1172 = arith.select %1170, %1168, %1171 : vector<1x2xi1>, vector<1x2xf32>
    %c4_572 = arith.constant 4 : index
    %c32_573 = arith.constant 32 : index
    %c0_574 = arith.constant 0 : index
    %1173 = vector.load %arg13[%c4_572, %c32_573, %c0_574] : memref<8x96x2xf32, #tpu.memory_space<vmem>>, vector<1x32x2xf32>
    %1174 = vector.shape_cast %1173 : vector<1x32x2xf32> to vector<32x2xf32>
    %1175 = arith.mulf %1127, %1174 : vector<32x2xf32>
    %cst_575 = arith.constant dense<0.000000e+00> : vector<2xf32>
    %1176 = vector.multi_reduction <add>, %1175, %cst_575 [0] : vector<32x2xf32> to vector<2xf32>
    %1177 = vector.shape_cast %1176 : vector<2xf32> to vector<1x2xf32>
    %cst_576 = arith.constant 0.176776692 : f32
    %1178 = vector.broadcast %cst_576 : f32 to vector<1x2xf32>
    %1179 = arith.mulf %1177, %1178 : vector<1x2xf32>
    %1180 = vector.extract_strided_slice %3 {offsets = [4, 0], sizes = [1, 2], strides = [1, 1]} : vector<8x2xi1> to vector<1x2xi1>
    %1181 = arith.andi %1128, %1180 : vector<1x2xi1>
    %cst_577 = arith.constant -1.000000e+09 : f32
    %1182 = vector.broadcast %cst_577 : f32 to vector<1x2xf32>
    %1183 = arith.select %1181, %1179, %1182 : vector<1x2xi1>, vector<1x2xf32>
    %c5_578 = arith.constant 5 : index
    %c32_579 = arith.constant 32 : index
    %c0_580 = arith.constant 0 : index
    %1184 = vector.load %arg13[%c5_578, %c32_579, %c0_580] : memref<8x96x2xf32, #tpu.memory_space<vmem>>, vector<1x32x2xf32>
    %1185 = vector.shape_cast %1184 : vector<1x32x2xf32> to vector<32x2xf32>
    %1186 = arith.mulf %1127, %1185 : vector<32x2xf32>
    %cst_581 = arith.constant dense<0.000000e+00> : vector<2xf32>
    %1187 = vector.multi_reduction <add>, %1186, %cst_581 [0] : vector<32x2xf32> to vector<2xf32>
    %1188 = vector.shape_cast %1187 : vector<2xf32> to vector<1x2xf32>
    %cst_582 = arith.constant 0.176776692 : f32
    %1189 = vector.broadcast %cst_582 : f32 to vector<1x2xf32>
    %1190 = arith.mulf %1188, %1189 : vector<1x2xf32>
    %1191 = vector.extract_strided_slice %3 {offsets = [5, 0], sizes = [1, 2], strides = [1, 1]} : vector<8x2xi1> to vector<1x2xi1>
    %1192 = arith.andi %1128, %1191 : vector<1x2xi1>
    %cst_583 = arith.constant -1.000000e+09 : f32
    %1193 = vector.broadcast %cst_583 : f32 to vector<1x2xf32>
    %1194 = arith.select %1192, %1190, %1193 : vector<1x2xi1>, vector<1x2xf32>
    %c6_584 = arith.constant 6 : index
    %c32_585 = arith.constant 32 : index
    %c0_586 = arith.constant 0 : index
    %1195 = vector.load %arg13[%c6_584, %c32_585, %c0_586] : memref<8x96x2xf32, #tpu.memory_space<vmem>>, vector<1x32x2xf32>
    %1196 = vector.shape_cast %1195 : vector<1x32x2xf32> to vector<32x2xf32>
    %1197 = arith.mulf %1127, %1196 : vector<32x2xf32>
    %cst_587 = arith.constant dense<0.000000e+00> : vector<2xf32>
    %1198 = vector.multi_reduction <add>, %1197, %cst_587 [0] : vector<32x2xf32> to vector<2xf32>
    %1199 = vector.shape_cast %1198 : vector<2xf32> to vector<1x2xf32>
    %cst_588 = arith.constant 0.176776692 : f32
    %1200 = vector.broadcast %cst_588 : f32 to vector<1x2xf32>
    %1201 = arith.mulf %1199, %1200 : vector<1x2xf32>
    %1202 = vector.extract_strided_slice %3 {offsets = [6, 0], sizes = [1, 2], strides = [1, 1]} : vector<8x2xi1> to vector<1x2xi1>
    %1203 = arith.andi %1128, %1202 : vector<1x2xi1>
    %cst_589 = arith.constant -1.000000e+09 : f32
    %1204 = vector.broadcast %cst_589 : f32 to vector<1x2xf32>
    %1205 = arith.select %1203, %1201, %1204 : vector<1x2xi1>, vector<1x2xf32>
    %c7_590 = arith.constant 7 : index
    %c32_591 = arith.constant 32 : index
    %c0_592 = arith.constant 0 : index
    %1206 = vector.load %arg13[%c7_590, %c32_591, %c0_592] : memref<8x96x2xf32, #tpu.memory_space<vmem>>, vector<1x32x2xf32>
    %1207 = vector.shape_cast %1206 : vector<1x32x2xf32> to vector<32x2xf32>
    %1208 = arith.mulf %1127, %1207 : vector<32x2xf32>
    %cst_593 = arith.constant dense<0.000000e+00> : vector<2xf32>
    %1209 = vector.multi_reduction <add>, %1208, %cst_593 [0] : vector<32x2xf32> to vector<2xf32>
    %1210 = vector.shape_cast %1209 : vector<2xf32> to vector<1x2xf32>
    %cst_594 = arith.constant 0.176776692 : f32
    %1211 = vector.broadcast %cst_594 : f32 to vector<1x2xf32>
    %1212 = arith.mulf %1210, %1211 : vector<1x2xf32>
    %1213 = vector.extract_strided_slice %3 {offsets = [7, 0], sizes = [1, 2], strides = [1, 1]} : vector<8x2xi1> to vector<1x2xi1>
    %1214 = arith.andi %1128, %1213 : vector<1x2xi1>
    %cst_595 = arith.constant -1.000000e+09 : f32
    %1215 = vector.broadcast %cst_595 : f32 to vector<1x2xf32>
    %1216 = arith.select %1214, %1212, %1215 : vector<1x2xi1>, vector<1x2xf32>
    %1217 = arith.maximumf %1139, %1150 : vector<1x2xf32>
    %1218 = arith.maximumf %1217, %1161 : vector<1x2xf32>
    %1219 = arith.maximumf %1218, %1172 : vector<1x2xf32>
    %1220 = arith.maximumf %1219, %1183 : vector<1x2xf32>
    %1221 = arith.maximumf %1220, %1194 : vector<1x2xf32>
    %1222 = arith.maximumf %1221, %1205 : vector<1x2xf32>
    %1223 = arith.maximumf %1222, %1216 : vector<1x2xf32>
    %1224 = arith.subf %1139, %1223 : vector<1x2xf32>
    %1225 = math.exp %1224 : vector<1x2xf32>
    %1226 = arith.subf %1150, %1223 : vector<1x2xf32>
    %1227 = math.exp %1226 : vector<1x2xf32>
    %1228 = arith.subf %1161, %1223 : vector<1x2xf32>
    %1229 = math.exp %1228 : vector<1x2xf32>
    %1230 = arith.subf %1172, %1223 : vector<1x2xf32>
    %1231 = math.exp %1230 : vector<1x2xf32>
    %1232 = arith.subf %1183, %1223 : vector<1x2xf32>
    %1233 = math.exp %1232 : vector<1x2xf32>
    %1234 = arith.subf %1194, %1223 : vector<1x2xf32>
    %1235 = math.exp %1234 : vector<1x2xf32>
    %1236 = arith.subf %1205, %1223 : vector<1x2xf32>
    %1237 = math.exp %1236 : vector<1x2xf32>
    %1238 = arith.subf %1216, %1223 : vector<1x2xf32>
    %1239 = math.exp %1238 : vector<1x2xf32>
    %1240 = arith.addf %1225, %1227 : vector<1x2xf32>
    %1241 = arith.addf %1240, %1229 : vector<1x2xf32>
    %1242 = arith.addf %1241, %1231 : vector<1x2xf32>
    %1243 = arith.addf %1242, %1233 : vector<1x2xf32>
    %1244 = arith.addf %1243, %1235 : vector<1x2xf32>
    %1245 = arith.addf %1244, %1237 : vector<1x2xf32>
    %1246 = arith.addf %1245, %1239 : vector<1x2xf32>
    %cst_596 = arith.constant 1.000000e+00 : f32
    %1247 = vector.broadcast %cst_596 : f32 to vector<1x2xf32>
    %1248 = arith.divf %1247, %1246 : vector<1x2xf32>
    %cst_597 = arith.constant 0.000000e+00 : f32
    %1249 = vector.broadcast %cst_597 : f32 to vector<32x2xf32>
    %1250 = arith.mulf %1225, %1248 : vector<1x2xf32>
    %c0_598 = arith.constant 0 : index
    %c64_599 = arith.constant 64 : index
    %c0_600 = arith.constant 0 : index
    %1251 = vector.load %arg13[%c0_598, %c64_599, %c0_600] : memref<8x96x2xf32, #tpu.memory_space<vmem>>, vector<1x32x2xf32>
    %1252 = vector.shape_cast %1251 : vector<1x32x2xf32> to vector<32x2xf32>
    %1253 = vector.broadcast %1250 : vector<1x2xf32> to vector<32x2xf32>
    %1254 = arith.mulf %1253, %1252 : vector<32x2xf32>
    %1255 = arith.addf %1249, %1254 : vector<32x2xf32>
    %1256 = arith.mulf %1227, %1248 : vector<1x2xf32>
    %c1_601 = arith.constant 1 : index
    %c64_602 = arith.constant 64 : index
    %c0_603 = arith.constant 0 : index
    %1257 = vector.load %arg13[%c1_601, %c64_602, %c0_603] : memref<8x96x2xf32, #tpu.memory_space<vmem>>, vector<1x32x2xf32>
    %1258 = vector.shape_cast %1257 : vector<1x32x2xf32> to vector<32x2xf32>
    %1259 = vector.broadcast %1256 : vector<1x2xf32> to vector<32x2xf32>
    %1260 = arith.mulf %1259, %1258 : vector<32x2xf32>
    %1261 = arith.addf %1255, %1260 : vector<32x2xf32>
    %1262 = arith.mulf %1229, %1248 : vector<1x2xf32>
    %c2_604 = arith.constant 2 : index
    %c64_605 = arith.constant 64 : index
    %c0_606 = arith.constant 0 : index
    %1263 = vector.load %arg13[%c2_604, %c64_605, %c0_606] : memref<8x96x2xf32, #tpu.memory_space<vmem>>, vector<1x32x2xf32>
    %1264 = vector.shape_cast %1263 : vector<1x32x2xf32> to vector<32x2xf32>
    %1265 = vector.broadcast %1262 : vector<1x2xf32> to vector<32x2xf32>
    %1266 = arith.mulf %1265, %1264 : vector<32x2xf32>
    %1267 = arith.addf %1261, %1266 : vector<32x2xf32>
    %1268 = arith.mulf %1231, %1248 : vector<1x2xf32>
    %c3_607 = arith.constant 3 : index
    %c64_608 = arith.constant 64 : index
    %c0_609 = arith.constant 0 : index
    %1269 = vector.load %arg13[%c3_607, %c64_608, %c0_609] : memref<8x96x2xf32, #tpu.memory_space<vmem>>, vector<1x32x2xf32>
    %1270 = vector.shape_cast %1269 : vector<1x32x2xf32> to vector<32x2xf32>
    %1271 = vector.broadcast %1268 : vector<1x2xf32> to vector<32x2xf32>
    %1272 = arith.mulf %1271, %1270 : vector<32x2xf32>
    %1273 = arith.addf %1267, %1272 : vector<32x2xf32>
    %1274 = arith.mulf %1233, %1248 : vector<1x2xf32>
    %c4_610 = arith.constant 4 : index
    %c64_611 = arith.constant 64 : index
    %c0_612 = arith.constant 0 : index
    %1275 = vector.load %arg13[%c4_610, %c64_611, %c0_612] : memref<8x96x2xf32, #tpu.memory_space<vmem>>, vector<1x32x2xf32>
    %1276 = vector.shape_cast %1275 : vector<1x32x2xf32> to vector<32x2xf32>
    %1277 = vector.broadcast %1274 : vector<1x2xf32> to vector<32x2xf32>
    %1278 = arith.mulf %1277, %1276 : vector<32x2xf32>
    %1279 = arith.addf %1273, %1278 : vector<32x2xf32>
    %1280 = arith.mulf %1235, %1248 : vector<1x2xf32>
    %c5_613 = arith.constant 5 : index
    %c64_614 = arith.constant 64 : index
    %c0_615 = arith.constant 0 : index
    %1281 = vector.load %arg13[%c5_613, %c64_614, %c0_615] : memref<8x96x2xf32, #tpu.memory_space<vmem>>, vector<1x32x2xf32>
    %1282 = vector.shape_cast %1281 : vector<1x32x2xf32> to vector<32x2xf32>
    %1283 = vector.broadcast %1280 : vector<1x2xf32> to vector<32x2xf32>
    %1284 = arith.mulf %1283, %1282 : vector<32x2xf32>
    %1285 = arith.addf %1279, %1284 : vector<32x2xf32>
    %1286 = arith.mulf %1237, %1248 : vector<1x2xf32>
    %c6_616 = arith.constant 6 : index
    %c64_617 = arith.constant 64 : index
    %c0_618 = arith.constant 0 : index
    %1287 = vector.load %arg13[%c6_616, %c64_617, %c0_618] : memref<8x96x2xf32, #tpu.memory_space<vmem>>, vector<1x32x2xf32>
    %1288 = vector.shape_cast %1287 : vector<1x32x2xf32> to vector<32x2xf32>
    %1289 = vector.broadcast %1286 : vector<1x2xf32> to vector<32x2xf32>
    %1290 = arith.mulf %1289, %1288 : vector<32x2xf32>
    %1291 = arith.addf %1285, %1290 : vector<32x2xf32>
    %1292 = arith.mulf %1239, %1248 : vector<1x2xf32>
    %c7_619 = arith.constant 7 : index
    %c64_620 = arith.constant 64 : index
    %c0_621 = arith.constant 0 : index
    %1293 = vector.load %arg13[%c7_619, %c64_620, %c0_621] : memref<8x96x2xf32, #tpu.memory_space<vmem>>, vector<1x32x2xf32>
    %1294 = vector.shape_cast %1293 : vector<1x32x2xf32> to vector<32x2xf32>
    %1295 = vector.broadcast %1292 : vector<1x2xf32> to vector<32x2xf32>
    %1296 = arith.mulf %1295, %1294 : vector<32x2xf32>
    %1297 = arith.addf %1291, %1296 : vector<32x2xf32>
    %c6_622 = arith.constant 6 : index
    %c0_623 = arith.constant 0 : index
    %c0_624 = arith.constant 0 : index
    %1298 = vector.load %arg14[%c6_622, %c0_623, %c0_624] : memref<8x32x2xf32, #tpu.memory_space<vmem>>, vector<1x32x2xf32>
    %1299 = vector.shape_cast %1298 : vector<1x32x2xf32> to vector<32x2xf32>
    %1300 = vector.shape_cast %1297 : vector<32x2xf32> to vector<1x32x2xf32>
    tpu.vector_store %arg14[%c6_622, %c0_623, %c0_624], %1300 {strides = array<i32>} : memref<8x32x2xf32, #tpu.memory_space<vmem>>, vector<1x32x2xf32>,
    %c7_625 = arith.constant 7 : index
    %c0_626 = arith.constant 0 : index
    %c0_627 = arith.constant 0 : index
    %1301 = vector.load %arg13[%c7_625, %c0_626, %c0_627] : memref<8x96x2xf32, #tpu.memory_space<vmem>>, vector<1x32x2xf32>
    %1302 = vector.shape_cast %1301 : vector<1x32x2xf32> to vector<32x2xf32>
    %1303 = vector.extract_strided_slice %3 {offsets = [7, 0], sizes = [1, 2], strides = [1, 1]} : vector<8x2xi1> to vector<1x2xi1>
    %c0_628 = arith.constant 0 : index
    %c32_629 = arith.constant 32 : index
    %c0_630 = arith.constant 0 : index
    %1304 = vector.load %arg13[%c0_628, %c32_629, %c0_630] : memref<8x96x2xf32, #tpu.memory_space<vmem>>, vector<1x32x2xf32>
    %1305 = vector.shape_cast %1304 : vector<1x32x2xf32> to vector<32x2xf32>
    %1306 = arith.mulf %1302, %1305 : vector<32x2xf32>
    %cst_631 = arith.constant dense<0.000000e+00> : vector<2xf32>
    %1307 = vector.multi_reduction <add>, %1306, %cst_631 [0] : vector<32x2xf32> to vector<2xf32>
    %1308 = vector.shape_cast %1307 : vector<2xf32> to vector<1x2xf32>
    %cst_632 = arith.constant 0.176776692 : f32
    %1309 = vector.broadcast %cst_632 : f32 to vector<1x2xf32>
    %1310 = arith.mulf %1308, %1309 : vector<1x2xf32>
    %1311 = vector.extract_strided_slice %3 {offsets = [0, 0], sizes = [1, 2], strides = [1, 1]} : vector<8x2xi1> to vector<1x2xi1>
    %1312 = arith.andi %1303, %1311 : vector<1x2xi1>
    %cst_633 = arith.constant -1.000000e+09 : f32
    %1313 = vector.broadcast %cst_633 : f32 to vector<1x2xf32>
    %1314 = arith.select %1312, %1310, %1313 : vector<1x2xi1>, vector<1x2xf32>
    %c1_634 = arith.constant 1 : index
    %c32_635 = arith.constant 32 : index
    %c0_636 = arith.constant 0 : index
    %1315 = vector.load %arg13[%c1_634, %c32_635, %c0_636] : memref<8x96x2xf32, #tpu.memory_space<vmem>>, vector<1x32x2xf32>
    %1316 = vector.shape_cast %1315 : vector<1x32x2xf32> to vector<32x2xf32>
    %1317 = arith.mulf %1302, %1316 : vector<32x2xf32>
    %cst_637 = arith.constant dense<0.000000e+00> : vector<2xf32>
    %1318 = vector.multi_reduction <add>, %1317, %cst_637 [0] : vector<32x2xf32> to vector<2xf32>
    %1319 = vector.shape_cast %1318 : vector<2xf32> to vector<1x2xf32>
    %cst_638 = arith.constant 0.176776692 : f32
    %1320 = vector.broadcast %cst_638 : f32 to vector<1x2xf32>
    %1321 = arith.mulf %1319, %1320 : vector<1x2xf32>
    %1322 = vector.extract_strided_slice %3 {offsets = [1, 0], sizes = [1, 2], strides = [1, 1]} : vector<8x2xi1> to vector<1x2xi1>
    %1323 = arith.andi %1303, %1322 : vector<1x2xi1>
    %cst_639 = arith.constant -1.000000e+09 : f32
    %1324 = vector.broadcast %cst_639 : f32 to vector<1x2xf32>
    %1325 = arith.select %1323, %1321, %1324 : vector<1x2xi1>, vector<1x2xf32>
    %c2_640 = arith.constant 2 : index
    %c32_641 = arith.constant 32 : index
    %c0_642 = arith.constant 0 : index
    %1326 = vector.load %arg13[%c2_640, %c32_641, %c0_642] : memref<8x96x2xf32, #tpu.memory_space<vmem>>, vector<1x32x2xf32>
    %1327 = vector.shape_cast %1326 : vector<1x32x2xf32> to vector<32x2xf32>
    %1328 = arith.mulf %1302, %1327 : vector<32x2xf32>
    %cst_643 = arith.constant dense<0.000000e+00> : vector<2xf32>
    %1329 = vector.multi_reduction <add>, %1328, %cst_643 [0] : vector<32x2xf32> to vector<2xf32>
    %1330 = vector.shape_cast %1329 : vector<2xf32> to vector<1x2xf32>
    %cst_644 = arith.constant 0.176776692 : f32
    %1331 = vector.broadcast %cst_644 : f32 to vector<1x2xf32>
    %1332 = arith.mulf %1330, %1331 : vector<1x2xf32>
    %1333 = vector.extract_strided_slice %3 {offsets = [2, 0], sizes = [1, 2], strides = [1, 1]} : vector<8x2xi1> to vector<1x2xi1>
    %1334 = arith.andi %1303, %1333 : vector<1x2xi1>
    %cst_645 = arith.constant -1.000000e+09 : f32
    %1335 = vector.broadcast %cst_645 : f32 to vector<1x2xf32>
    %1336 = arith.select %1334, %1332, %1335 : vector<1x2xi1>, vector<1x2xf32>
    %c3_646 = arith.constant 3 : index
    %c32_647 = arith.constant 32 : index
    %c0_648 = arith.constant 0 : index
    %1337 = vector.load %arg13[%c3_646, %c32_647, %c0_648] : memref<8x96x2xf32, #tpu.memory_space<vmem>>, vector<1x32x2xf32>
    %1338 = vector.shape_cast %1337 : vector<1x32x2xf32> to vector<32x2xf32>
    %1339 = arith.mulf %1302, %1338 : vector<32x2xf32>
    %cst_649 = arith.constant dense<0.000000e+00> : vector<2xf32>
    %1340 = vector.multi_reduction <add>, %1339, %cst_649 [0] : vector<32x2xf32> to vector<2xf32>
    %1341 = vector.shape_cast %1340 : vector<2xf32> to vector<1x2xf32>
    %cst_650 = arith.constant 0.176776692 : f32
    %1342 = vector.broadcast %cst_650 : f32 to vector<1x2xf32>
    %1343 = arith.mulf %1341, %1342 : vector<1x2xf32>
    %1344 = vector.extract_strided_slice %3 {offsets = [3, 0], sizes = [1, 2], strides = [1, 1]} : vector<8x2xi1> to vector<1x2xi1>
    %1345 = arith.andi %1303, %1344 : vector<1x2xi1>
    %cst_651 = arith.constant -1.000000e+09 : f32
    %1346 = vector.broadcast %cst_651 : f32 to vector<1x2xf32>
    %1347 = arith.select %1345, %1343, %1346 : vector<1x2xi1>, vector<1x2xf32>
    %c4_652 = arith.constant 4 : index
    %c32_653 = arith.constant 32 : index
    %c0_654 = arith.constant 0 : index
    %1348 = vector.load %arg13[%c4_652, %c32_653, %c0_654] : memref<8x96x2xf32, #tpu.memory_space<vmem>>, vector<1x32x2xf32>
    %1349 = vector.shape_cast %1348 : vector<1x32x2xf32> to vector<32x2xf32>
    %1350 = arith.mulf %1302, %1349 : vector<32x2xf32>
    %cst_655 = arith.constant dense<0.000000e+00> : vector<2xf32>
    %1351 = vector.multi_reduction <add>, %1350, %cst_655 [0] : vector<32x2xf32> to vector<2xf32>
    %1352 = vector.shape_cast %1351 : vector<2xf32> to vector<1x2xf32>
    %cst_656 = arith.constant 0.176776692 : f32
    %1353 = vector.broadcast %cst_656 : f32 to vector<1x2xf32>
    %1354 = arith.mulf %1352, %1353 : vector<1x2xf32>
    %1355 = vector.extract_strided_slice %3 {offsets = [4, 0], sizes = [1, 2], strides = [1, 1]} : vector<8x2xi1> to vector<1x2xi1>
    %1356 = arith.andi %1303, %1355 : vector<1x2xi1>
    %cst_657 = arith.constant -1.000000e+09 : f32
    %1357 = vector.broadcast %cst_657 : f32 to vector<1x2xf32>
    %1358 = arith.select %1356, %1354, %1357 : vector<1x2xi1>, vector<1x2xf32>
    %c5_658 = arith.constant 5 : index
    %c32_659 = arith.constant 32 : index
    %c0_660 = arith.constant 0 : index
    %1359 = vector.load %arg13[%c5_658, %c32_659, %c0_660] : memref<8x96x2xf32, #tpu.memory_space<vmem>>, vector<1x32x2xf32>
    %1360 = vector.shape_cast %1359 : vector<1x32x2xf32> to vector<32x2xf32>
    %1361 = arith.mulf %1302, %1360 : vector<32x2xf32>
    %cst_661 = arith.constant dense<0.000000e+00> : vector<2xf32>
    %1362 = vector.multi_reduction <add>, %1361, %cst_661 [0] : vector<32x2xf32> to vector<2xf32>
    %1363 = vector.shape_cast %1362 : vector<2xf32> to vector<1x2xf32>
    %cst_662 = arith.constant 0.176776692 : f32
    %1364 = vector.broadcast %cst_662 : f32 to vector<1x2xf32>
    %1365 = arith.mulf %1363, %1364 : vector<1x2xf32>
    %1366 = vector.extract_strided_slice %3 {offsets = [5, 0], sizes = [1, 2], strides = [1, 1]} : vector<8x2xi1> to vector<1x2xi1>
    %1367 = arith.andi %1303, %1366 : vector<1x2xi1>
    %cst_663 = arith.constant -1.000000e+09 : f32
    %1368 = vector.broadcast %cst_663 : f32 to vector<1x2xf32>
    %1369 = arith.select %1367, %1365, %1368 : vector<1x2xi1>, vector<1x2xf32>
    %c6_664 = arith.constant 6 : index
    %c32_665 = arith.constant 32 : index
    %c0_666 = arith.constant 0 : index
    %1370 = vector.load %arg13[%c6_664, %c32_665, %c0_666] : memref<8x96x2xf32, #tpu.memory_space<vmem>>, vector<1x32x2xf32>
    %1371 = vector.shape_cast %1370 : vector<1x32x2xf32> to vector<32x2xf32>
    %1372 = arith.mulf %1302, %1371 : vector<32x2xf32>
    %cst_667 = arith.constant dense<0.000000e+00> : vector<2xf32>
    %1373 = vector.multi_reduction <add>, %1372, %cst_667 [0] : vector<32x2xf32> to vector<2xf32>
    %1374 = vector.shape_cast %1373 : vector<2xf32> to vector<1x2xf32>
    %cst_668 = arith.constant 0.176776692 : f32
    %1375 = vector.broadcast %cst_668 : f32 to vector<1x2xf32>
    %1376 = arith.mulf %1374, %1375 : vector<1x2xf32>
    %1377 = vector.extract_strided_slice %3 {offsets = [6, 0], sizes = [1, 2], strides = [1, 1]} : vector<8x2xi1> to vector<1x2xi1>
    %1378 = arith.andi %1303, %1377 : vector<1x2xi1>
    %cst_669 = arith.constant -1.000000e+09 : f32
    %1379 = vector.broadcast %cst_669 : f32 to vector<1x2xf32>
    %1380 = arith.select %1378, %1376, %1379 : vector<1x2xi1>, vector<1x2xf32>
    %c7_670 = arith.constant 7 : index
    %c32_671 = arith.constant 32 : index
    %c0_672 = arith.constant 0 : index
    %1381 = vector.load %arg13[%c7_670, %c32_671, %c0_672] : memref<8x96x2xf32, #tpu.memory_space<vmem>>, vector<1x32x2xf32>
    %1382 = vector.shape_cast %1381 : vector<1x32x2xf32> to vector<32x2xf32>
    %1383 = arith.mulf %1302, %1382 : vector<32x2xf32>
    %cst_673 = arith.constant dense<0.000000e+00> : vector<2xf32>
    %1384 = vector.multi_reduction <add>, %1383, %cst_673 [0] : vector<32x2xf32> to vector<2xf32>
    %1385 = vector.shape_cast %1384 : vector<2xf32> to vector<1x2xf32>
    %cst_674 = arith.constant 0.176776692 : f32
    %1386 = vector.broadcast %cst_674 : f32 to vector<1x2xf32>
    %1387 = arith.mulf %1385, %1386 : vector<1x2xf32>
    %1388 = vector.extract_strided_slice %3 {offsets = [7, 0], sizes = [1, 2], strides = [1, 1]} : vector<8x2xi1> to vector<1x2xi1>
    %1389 = arith.andi %1303, %1388 : vector<1x2xi1>
    %cst_675 = arith.constant -1.000000e+09 : f32
    %1390 = vector.broadcast %cst_675 : f32 to vector<1x2xf32>
    %1391 = arith.select %1389, %1387, %1390 : vector<1x2xi1>, vector<1x2xf32>
    %1392 = arith.maximumf %1314, %1325 : vector<1x2xf32>
    %1393 = arith.maximumf %1392, %1336 : vector<1x2xf32>
    %1394 = arith.maximumf %1393, %1347 : vector<1x2xf32>
    %1395 = arith.maximumf %1394, %1358 : vector<1x2xf32>
    %1396 = arith.maximumf %1395, %1369 : vector<1x2xf32>
    %1397 = arith.maximumf %1396, %1380 : vector<1x2xf32>
    %1398 = arith.maximumf %1397, %1391 : vector<1x2xf32>
    %1399 = arith.subf %1314, %1398 : vector<1x2xf32>
    %1400 = math.exp %1399 : vector<1x2xf32>
    %1401 = arith.subf %1325, %1398 : vector<1x2xf32>
    %1402 = math.exp %1401 : vector<1x2xf32>
    %1403 = arith.subf %1336, %1398 : vector<1x2xf32>
    %1404 = math.exp %1403 : vector<1x2xf32>
    %1405 = arith.subf %1347, %1398 : vector<1x2xf32>
    %1406 = math.exp %1405 : vector<1x2xf32>
    %1407 = arith.subf %1358, %1398 : vector<1x2xf32>
    %1408 = math.exp %1407 : vector<1x2xf32>
    %1409 = arith.subf %1369, %1398 : vector<1x2xf32>
    %1410 = math.exp %1409 : vector<1x2xf32>
    %1411 = arith.subf %1380, %1398 : vector<1x2xf32>
    %1412 = math.exp %1411 : vector<1x2xf32>
    %1413 = arith.subf %1391, %1398 : vector<1x2xf32>
    %1414 = math.exp %1413 : vector<1x2xf32>
    %1415 = arith.addf %1400, %1402 : vector<1x2xf32>
    %1416 = arith.addf %1415, %1404 : vector<1x2xf32>
    %1417 = arith.addf %1416, %1406 : vector<1x2xf32>
    %1418 = arith.addf %1417, %1408 : vector<1x2xf32>
    %1419 = arith.addf %1418, %1410 : vector<1x2xf32>
    %1420 = arith.addf %1419, %1412 : vector<1x2xf32>
    %1421 = arith.addf %1420, %1414 : vector<1x2xf32>
    %cst_676 = arith.constant 1.000000e+00 : f32
    %1422 = vector.broadcast %cst_676 : f32 to vector<1x2xf32>
    %1423 = arith.divf %1422, %1421 : vector<1x2xf32>
    %cst_677 = arith.constant 0.000000e+00 : f32
    %1424 = vector.broadcast %cst_677 : f32 to vector<32x2xf32>
    %1425 = arith.mulf %1400, %1423 : vector<1x2xf32>
    %c0_678 = arith.constant 0 : index
    %c64_679 = arith.constant 64 : index
    %c0_680 = arith.constant 0 : index
    %1426 = vector.load %arg13[%c0_678, %c64_679, %c0_680] : memref<8x96x2xf32, #tpu.memory_space<vmem>>, vector<1x32x2xf32>
    %1427 = vector.shape_cast %1426 : vector<1x32x2xf32> to vector<32x2xf32>
    %1428 = vector.broadcast %1425 : vector<1x2xf32> to vector<32x2xf32>
    %1429 = arith.mulf %1428, %1427 : vector<32x2xf32>
    %1430 = arith.addf %1424, %1429 : vector<32x2xf32>
    %1431 = arith.mulf %1402, %1423 : vector<1x2xf32>
    %c1_681 = arith.constant 1 : index
    %c64_682 = arith.constant 64 : index
    %c0_683 = arith.constant 0 : index
    %1432 = vector.load %arg13[%c1_681, %c64_682, %c0_683] : memref<8x96x2xf32, #tpu.memory_space<vmem>>, vector<1x32x2xf32>
    %1433 = vector.shape_cast %1432 : vector<1x32x2xf32> to vector<32x2xf32>
    %1434 = vector.broadcast %1431 : vector<1x2xf32> to vector<32x2xf32>
    %1435 = arith.mulf %1434, %1433 : vector<32x2xf32>
    %1436 = arith.addf %1430, %1435 : vector<32x2xf32>
    %1437 = arith.mulf %1404, %1423 : vector<1x2xf32>
    %c2_684 = arith.constant 2 : index
    %c64_685 = arith.constant 64 : index
    %c0_686 = arith.constant 0 : index
    %1438 = vector.load %arg13[%c2_684, %c64_685, %c0_686] : memref<8x96x2xf32, #tpu.memory_space<vmem>>, vector<1x32x2xf32>
    %1439 = vector.shape_cast %1438 : vector<1x32x2xf32> to vector<32x2xf32>
    %1440 = vector.broadcast %1437 : vector<1x2xf32> to vector<32x2xf32>
    %1441 = arith.mulf %1440, %1439 : vector<32x2xf32>
    %1442 = arith.addf %1436, %1441 : vector<32x2xf32>
    %1443 = arith.mulf %1406, %1423 : vector<1x2xf32>
    %c3_687 = arith.constant 3 : index
    %c64_688 = arith.constant 64 : index
    %c0_689 = arith.constant 0 : index
    %1444 = vector.load %arg13[%c3_687, %c64_688, %c0_689] : memref<8x96x2xf32, #tpu.memory_space<vmem>>, vector<1x32x2xf32>
    %1445 = vector.shape_cast %1444 : vector<1x32x2xf32> to vector<32x2xf32>
    %1446 = vector.broadcast %1443 : vector<1x2xf32> to vector<32x2xf32>
    %1447 = arith.mulf %1446, %1445 : vector<32x2xf32>
    %1448 = arith.addf %1442, %1447 : vector<32x2xf32>
    %1449 = arith.mulf %1408, %1423 : vector<1x2xf32>
    %c4_690 = arith.constant 4 : index
    %c64_691 = arith.constant 64 : index
    %c0_692 = arith.constant 0 : index
    %1450 = vector.load %arg13[%c4_690, %c64_691, %c0_692] : memref<8x96x2xf32, #tpu.memory_space<vmem>>, vector<1x32x2xf32>
    %1451 = vector.shape_cast %1450 : vector<1x32x2xf32> to vector<32x2xf32>
    %1452 = vector.broadcast %1449 : vector<1x2xf32> to vector<32x2xf32>
    %1453 = arith.mulf %1452, %1451 : vector<32x2xf32>
    %1454 = arith.addf %1448, %1453 : vector<32x2xf32>
    %1455 = arith.mulf %1410, %1423 : vector<1x2xf32>
    %c5_693 = arith.constant 5 : index
    %c64_694 = arith.constant 64 : index
    %c0_695 = arith.constant 0 : index
    %1456 = vector.load %arg13[%c5_693, %c64_694, %c0_695] : memref<8x96x2xf32, #tpu.memory_space<vmem>>, vector<1x32x2xf32>
    %1457 = vector.shape_cast %1456 : vector<1x32x2xf32> to vector<32x2xf32>
    %1458 = vector.broadcast %1455 : vector<1x2xf32> to vector<32x2xf32>
    %1459 = arith.mulf %1458, %1457 : vector<32x2xf32>
    %1460 = arith.addf %1454, %1459 : vector<32x2xf32>
    %1461 = arith.mulf %1412, %1423 : vector<1x2xf32>
    %c6_696 = arith.constant 6 : index
    %c64_697 = arith.constant 64 : index
    %c0_698 = arith.constant 0 : index
    %1462 = vector.load %arg13[%c6_696, %c64_697, %c0_698] : memref<8x96x2xf32, #tpu.memory_space<vmem>>, vector<1x32x2xf32>
    %1463 = vector.shape_cast %1462 : vector<1x32x2xf32> to vector<32x2xf32>
    %1464 = vector.broadcast %1461 : vector<1x2xf32> to vector<32x2xf32>
    %1465 = arith.mulf %1464, %1463 : vector<32x2xf32>
    %1466 = arith.addf %1460, %1465 : vector<32x2xf32>
    %1467 = arith.mulf %1414, %1423 : vector<1x2xf32>
    %c7_699 = arith.constant 7 : index
    %c64_700 = arith.constant 64 : index
    %c0_701 = arith.constant 0 : index
    %1468 = vector.load %arg13[%c7_699, %c64_700, %c0_701] : memref<8x96x2xf32, #tpu.memory_space<vmem>>, vector<1x32x2xf32>
    %1469 = vector.shape_cast %1468 : vector<1x32x2xf32> to vector<32x2xf32>
    %1470 = vector.broadcast %1467 : vector<1x2xf32> to vector<32x2xf32>
    %1471 = arith.mulf %1470, %1469 : vector<32x2xf32>
    %1472 = arith.addf %1466, %1471 : vector<32x2xf32>
    %c7_702 = arith.constant 7 : index
    %c0_703 = arith.constant 0 : index
    %c0_704 = arith.constant 0 : index
    %1473 = vector.load %arg14[%c7_702, %c0_703, %c0_704] : memref<8x32x2xf32, #tpu.memory_space<vmem>>, vector<1x32x2xf32>
    %1474 = vector.shape_cast %1473 : vector<1x32x2xf32> to vector<32x2xf32>
    %1475 = vector.shape_cast %1472 : vector<32x2xf32> to vector<1x32x2xf32>
    tpu.vector_store %arg14[%c7_702, %c0_703, %c0_704], %1475 {strides = array<i32>} : memref<8x32x2xf32, #tpu.memory_space<vmem>>, vector<1x32x2xf32>,
    %cst_705 = arith.constant dense<0.000000e+00> : vector<2xf32>
    %1476 = vector.multi_reduction <add>, %5, %cst_705 [0] : vector<8x2xf32> to vector<2xf32>
    %1477 = vector.shape_cast %1476 : vector<2xf32> to vector<1x2xf32>
    %cst_706 = arith.constant 1.000000e+00 : f32
    %1478 = vector.broadcast %cst_706 : f32 to vector<1x2xf32>
    %1479 = arith.maximumf %1477, %1478 : vector<1x2xf32>
    %cst_707 = arith.constant 0.000000e+00 : f32
    %1480 = vector.broadcast %cst_707 : f32 to vector<32x2xf32>
    %1481 = vector.extract_strided_slice %5 {offsets = [0, 0], sizes = [1, 2], strides = [1, 1]} : vector<8x2xf32> to vector<1x2xf32>
    %c0_708 = arith.constant 0 : index
    %c0_709 = arith.constant 0 : index
    %c0_710 = arith.constant 0 : index
    %1482 = vector.load %arg14[%c0_708, %c0_709, %c0_710] : memref<8x32x2xf32, #tpu.memory_space<vmem>>, vector<1x32x2xf32>
    %1483 = vector.shape_cast %1482 : vector<1x32x2xf32> to vector<32x2xf32>
    %1484 = vector.broadcast %1481 : vector<1x2xf32> to vector<32x2xf32>
    %1485 = arith.mulf %1484, %1483 : vector<32x2xf32>
    %1486 = arith.addf %1480, %1485 : vector<32x2xf32>
    %1487 = vector.extract_strided_slice %5 {offsets = [1, 0], sizes = [1, 2], strides = [1, 1]} : vector<8x2xf32> to vector<1x2xf32>
    %c1_711 = arith.constant 1 : index
    %c0_712 = arith.constant 0 : index
    %c0_713 = arith.constant 0 : index
    %1488 = vector.load %arg14[%c1_711, %c0_712, %c0_713] : memref<8x32x2xf32, #tpu.memory_space<vmem>>, vector<1x32x2xf32>
    %1489 = vector.shape_cast %1488 : vector<1x32x2xf32> to vector<32x2xf32>
    %1490 = vector.broadcast %1487 : vector<1x2xf32> to vector<32x2xf32>
    %1491 = arith.mulf %1490, %1489 : vector<32x2xf32>
    %1492 = arith.addf %1486, %1491 : vector<32x2xf32>
    %1493 = vector.extract_strided_slice %5 {offsets = [2, 0], sizes = [1, 2], strides = [1, 1]} : vector<8x2xf32> to vector<1x2xf32>
    %c2_714 = arith.constant 2 : index
    %c0_715 = arith.constant 0 : index
    %c0_716 = arith.constant 0 : index
    %1494 = vector.load %arg14[%c2_714, %c0_715, %c0_716] : memref<8x32x2xf32, #tpu.memory_space<vmem>>, vector<1x32x2xf32>
    %1495 = vector.shape_cast %1494 : vector<1x32x2xf32> to vector<32x2xf32>
    %1496 = vector.broadcast %1493 : vector<1x2xf32> to vector<32x2xf32>
    %1497 = arith.mulf %1496, %1495 : vector<32x2xf32>
    %1498 = arith.addf %1492, %1497 : vector<32x2xf32>
    %1499 = vector.extract_strided_slice %5 {offsets = [3, 0], sizes = [1, 2], strides = [1, 1]} : vector<8x2xf32> to vector<1x2xf32>
    %c3_717 = arith.constant 3 : index
    %c0_718 = arith.constant 0 : index
    %c0_719 = arith.constant 0 : index
    %1500 = vector.load %arg14[%c3_717, %c0_718, %c0_719] : memref<8x32x2xf32, #tpu.memory_space<vmem>>, vector<1x32x2xf32>
    %1501 = vector.shape_cast %1500 : vector<1x32x2xf32> to vector<32x2xf32>
    %1502 = vector.broadcast %1499 : vector<1x2xf32> to vector<32x2xf32>
    %1503 = arith.mulf %1502, %1501 : vector<32x2xf32>
    %1504 = arith.addf %1498, %1503 : vector<32x2xf32>
    %1505 = vector.extract_strided_slice %5 {offsets = [4, 0], sizes = [1, 2], strides = [1, 1]} : vector<8x2xf32> to vector<1x2xf32>
    %c4_720 = arith.constant 4 : index
    %c0_721 = arith.constant 0 : index
    %c0_722 = arith.constant 0 : index
    %1506 = vector.load %arg14[%c4_720, %c0_721, %c0_722] : memref<8x32x2xf32, #tpu.memory_space<vmem>>, vector<1x32x2xf32>
    %1507 = vector.shape_cast %1506 : vector<1x32x2xf32> to vector<32x2xf32>
    %1508 = vector.broadcast %1505 : vector<1x2xf32> to vector<32x2xf32>
    %1509 = arith.mulf %1508, %1507 : vector<32x2xf32>
    %1510 = arith.addf %1504, %1509 : vector<32x2xf32>
    %1511 = vector.extract_strided_slice %5 {offsets = [5, 0], sizes = [1, 2], strides = [1, 1]} : vector<8x2xf32> to vector<1x2xf32>
    %c5_723 = arith.constant 5 : index
    %c0_724 = arith.constant 0 : index
    %c0_725 = arith.constant 0 : index
    %1512 = vector.load %arg14[%c5_723, %c0_724, %c0_725] : memref<8x32x2xf32, #tpu.memory_space<vmem>>, vector<1x32x2xf32>
    %1513 = vector.shape_cast %1512 : vector<1x32x2xf32> to vector<32x2xf32>
    %1514 = vector.broadcast %1511 : vector<1x2xf32> to vector<32x2xf32>
    %1515 = arith.mulf %1514, %1513 : vector<32x2xf32>
    %1516 = arith.addf %1510, %1515 : vector<32x2xf32>
    %1517 = vector.extract_strided_slice %5 {offsets = [6, 0], sizes = [1, 2], strides = [1, 1]} : vector<8x2xf32> to vector<1x2xf32>
    %c6_726 = arith.constant 6 : index
    %c0_727 = arith.constant 0 : index
    %c0_728 = arith.constant 0 : index
    %1518 = vector.load %arg14[%c6_726, %c0_727, %c0_728] : memref<8x32x2xf32, #tpu.memory_space<vmem>>, vector<1x32x2xf32>
    %1519 = vector.shape_cast %1518 : vector<1x32x2xf32> to vector<32x2xf32>
    %1520 = vector.broadcast %1517 : vector<1x2xf32> to vector<32x2xf32>
    %1521 = arith.mulf %1520, %1519 : vector<32x2xf32>
    %1522 = arith.addf %1516, %1521 : vector<32x2xf32>
    %1523 = vector.extract_strided_slice %5 {offsets = [7, 0], sizes = [1, 2], strides = [1, 1]} : vector<8x2xf32> to vector<1x2xf32>
    %c7_729 = arith.constant 7 : index
    %c0_730 = arith.constant 0 : index
    %c0_731 = arith.constant 0 : index
    %1524 = vector.load %arg14[%c7_729, %c0_730, %c0_731] : memref<8x32x2xf32, #tpu.memory_space<vmem>>, vector<1x32x2xf32>
    %1525 = vector.shape_cast %1524 : vector<1x32x2xf32> to vector<32x2xf32>
    %1526 = vector.broadcast %1523 : vector<1x2xf32> to vector<32x2xf32>
    %1527 = arith.mulf %1526, %1525 : vector<32x2xf32>
    %1528 = arith.addf %1522, %1527 : vector<32x2xf32>
    %cst_732 = arith.constant 1.000000e+00 : f32
    %1529 = vector.broadcast %cst_732 : f32 to vector<1x2xf32>
    %1530 = arith.divf %1529, %1479 : vector<1x2xf32>
    %1531 = vector.broadcast %1530 : vector<1x2xf32> to vector<32x2xf32>
    %1532 = arith.mulf %1528, %1531 : vector<32x2xf32>
    %c0_733 = arith.constant 0 : index
    %c0_734 = arith.constant 0 : index
    %1533 = vector.load %arg7[%c0_733, %c0_734] : memref<32x32xf32, #tpu.memory_space<vmem>>, vector<32x32xf32>
    %cst_735 = arith.constant dense<0.000000e+00> : vector<32x2xf32>
    %1534 = tpu.matmul %1533, %1532, %cst_735 {dimension_numbers = #tpu.dot_dimension_numbers<[1], [0], [0], [1], [0, 0, 1, 1], [], []>} : vector<32x32xf32>, vector<32x2xf32>, vector<32x2xf32> -> vector<32x2xf32>
    %c0_736 = arith.constant 0 : index
    %c0_737 = arith.constant 0 : index
    %1535 = vector.load %arg8[%c0_736, %c0_737] : memref<32x32xf32, #tpu.memory_space<vmem>>, vector<32x32xf32>
    %c0_738 = arith.constant 0 : index
    %c0_739 = arith.constant 0 : index
    %1536 = vector.load %arg9[%c0_738, %c0_739] : memref<32x32xf32, #tpu.memory_space<vmem>>, vector<32x32xf32>
    %c0_740 = arith.constant 0 : index
    %c0_741 = arith.constant 0 : index
    %c0_742 = arith.constant 0 : index
    %1537 = vector.load %arg14[%c0_740, %c0_741, %c0_742] : memref<8x32x2xf32, #tpu.memory_space<vmem>>, vector<1x32x2xf32>
    %1538 = vector.shape_cast %1537 : vector<1x32x2xf32> to vector<32x2xf32>
    %cst_743 = arith.constant dense<0.000000e+00> : vector<32x2xf32>
    %1539 = tpu.matmul %1535, %1538, %cst_743 {dimension_numbers = #tpu.dot_dimension_numbers<[1], [0], [0], [1], [0, 0, 1, 1], [], []>} : vector<32x32xf32>, vector<32x2xf32>, vector<32x2xf32> -> vector<32x2xf32>
    %1540 = arith.mulf %1534, %1539 : vector<32x2xf32>
    %cst_744 = arith.constant dense<0.000000e+00> : vector<2xf32>
    %1541 = vector.multi_reduction <add>, %1540, %cst_744 [0] : vector<32x2xf32> to vector<2xf32>
    %1542 = vector.shape_cast %1541 : vector<2xf32> to vector<1x2xf32>
    %cst_745 = arith.constant 0.176776692 : f32
    %1543 = vector.broadcast %cst_745 : f32 to vector<1x2xf32>
    %1544 = arith.mulf %1542, %1543 : vector<1x2xf32>
    %1545 = vector.extract_strided_slice %3 {offsets = [0, 0], sizes = [1, 2], strides = [1, 1]} : vector<8x2xi1> to vector<1x2xi1>
    %cst_746 = arith.constant -1.000000e+09 : f32
    %1546 = vector.broadcast %cst_746 : f32 to vector<1x2xf32>
    %1547 = arith.select %1545, %1544, %1546 : vector<1x2xi1>, vector<1x2xf32>
    %c1_747 = arith.constant 1 : index
    %c0_748 = arith.constant 0 : index
    %c0_749 = arith.constant 0 : index
    %1548 = vector.load %arg14[%c1_747, %c0_748, %c0_749] : memref<8x32x2xf32, #tpu.memory_space<vmem>>, vector<1x32x2xf32>
    %1549 = vector.shape_cast %1548 : vector<1x32x2xf32> to vector<32x2xf32>
    %cst_750 = arith.constant dense<0.000000e+00> : vector<32x2xf32>
    %1550 = tpu.matmul %1535, %1549, %cst_750 {dimension_numbers = #tpu.dot_dimension_numbers<[1], [0], [0], [1], [0, 0, 1, 1], [], []>} : vector<32x32xf32>, vector<32x2xf32>, vector<32x2xf32> -> vector<32x2xf32>
    %1551 = arith.mulf %1534, %1550 : vector<32x2xf32>
    %cst_751 = arith.constant dense<0.000000e+00> : vector<2xf32>
    %1552 = vector.multi_reduction <add>, %1551, %cst_751 [0] : vector<32x2xf32> to vector<2xf32>
    %1553 = vector.shape_cast %1552 : vector<2xf32> to vector<1x2xf32>
    %cst_752 = arith.constant 0.176776692 : f32
    %1554 = vector.broadcast %cst_752 : f32 to vector<1x2xf32>
    %1555 = arith.mulf %1553, %1554 : vector<1x2xf32>
    %1556 = vector.extract_strided_slice %3 {offsets = [1, 0], sizes = [1, 2], strides = [1, 1]} : vector<8x2xi1> to vector<1x2xi1>
    %cst_753 = arith.constant -1.000000e+09 : f32
    %1557 = vector.broadcast %cst_753 : f32 to vector<1x2xf32>
    %1558 = arith.select %1556, %1555, %1557 : vector<1x2xi1>, vector<1x2xf32>
    %c2_754 = arith.constant 2 : index
    %c0_755 = arith.constant 0 : index
    %c0_756 = arith.constant 0 : index
    %1559 = vector.load %arg14[%c2_754, %c0_755, %c0_756] : memref<8x32x2xf32, #tpu.memory_space<vmem>>, vector<1x32x2xf32>
    %1560 = vector.shape_cast %1559 : vector<1x32x2xf32> to vector<32x2xf32>
    %cst_757 = arith.constant dense<0.000000e+00> : vector<32x2xf32>
    %1561 = tpu.matmul %1535, %1560, %cst_757 {dimension_numbers = #tpu.dot_dimension_numbers<[1], [0], [0], [1], [0, 0, 1, 1], [], []>} : vector<32x32xf32>, vector<32x2xf32>, vector<32x2xf32> -> vector<32x2xf32>
    %1562 = arith.mulf %1534, %1561 : vector<32x2xf32>
    %cst_758 = arith.constant dense<0.000000e+00> : vector<2xf32>
    %1563 = vector.multi_reduction <add>, %1562, %cst_758 [0] : vector<32x2xf32> to vector<2xf32>
    %1564 = vector.shape_cast %1563 : vector<2xf32> to vector<1x2xf32>
    %cst_759 = arith.constant 0.176776692 : f32
    %1565 = vector.broadcast %cst_759 : f32 to vector<1x2xf32>
    %1566 = arith.mulf %1564, %1565 : vector<1x2xf32>
    %1567 = vector.extract_strided_slice %3 {offsets = [2, 0], sizes = [1, 2], strides = [1, 1]} : vector<8x2xi1> to vector<1x2xi1>
    %cst_760 = arith.constant -1.000000e+09 : f32
    %1568 = vector.broadcast %cst_760 : f32 to vector<1x2xf32>
    %1569 = arith.select %1567, %1566, %1568 : vector<1x2xi1>, vector<1x2xf32>
    %c3_761 = arith.constant 3 : index
    %c0_762 = arith.constant 0 : index
    %c0_763 = arith.constant 0 : index
    %1570 = vector.load %arg14[%c3_761, %c0_762, %c0_763] : memref<8x32x2xf32, #tpu.memory_space<vmem>>, vector<1x32x2xf32>
    %1571 = vector.shape_cast %1570 : vector<1x32x2xf32> to vector<32x2xf32>
    %cst_764 = arith.constant dense<0.000000e+00> : vector<32x2xf32>
    %1572 = tpu.matmul %1535, %1571, %cst_764 {dimension_numbers = #tpu.dot_dimension_numbers<[1], [0], [0], [1], [0, 0, 1, 1], [], []>} : vector<32x32xf32>, vector<32x2xf32>, vector<32x2xf32> -> vector<32x2xf32>
    %1573 = arith.mulf %1534, %1572 : vector<32x2xf32>
    %cst_765 = arith.constant dense<0.000000e+00> : vector<2xf32>
    %1574 = vector.multi_reduction <add>, %1573, %cst_765 [0] : vector<32x2xf32> to vector<2xf32>
    %1575 = vector.shape_cast %1574 : vector<2xf32> to vector<1x2xf32>
    %cst_766 = arith.constant 0.176776692 : f32
    %1576 = vector.broadcast %cst_766 : f32 to vector<1x2xf32>
    %1577 = arith.mulf %1575, %1576 : vector<1x2xf32>
    %1578 = vector.extract_strided_slice %3 {offsets = [3, 0], sizes = [1, 2], strides = [1, 1]} : vector<8x2xi1> to vector<1x2xi1>
    %cst_767 = arith.constant -1.000000e+09 : f32
    %1579 = vector.broadcast %cst_767 : f32 to vector<1x2xf32>
    %1580 = arith.select %1578, %1577, %1579 : vector<1x2xi1>, vector<1x2xf32>
    %c4_768 = arith.constant 4 : index
    %c0_769 = arith.constant 0 : index
    %c0_770 = arith.constant 0 : index
    %1581 = vector.load %arg14[%c4_768, %c0_769, %c0_770] : memref<8x32x2xf32, #tpu.memory_space<vmem>>, vector<1x32x2xf32>
    %1582 = vector.shape_cast %1581 : vector<1x32x2xf32> to vector<32x2xf32>
    %cst_771 = arith.constant dense<0.000000e+00> : vector<32x2xf32>
    %1583 = tpu.matmul %1535, %1582, %cst_771 {dimension_numbers = #tpu.dot_dimension_numbers<[1], [0], [0], [1], [0, 0, 1, 1], [], []>} : vector<32x32xf32>, vector<32x2xf32>, vector<32x2xf32> -> vector<32x2xf32>
    %1584 = arith.mulf %1534, %1583 : vector<32x2xf32>
    %cst_772 = arith.constant dense<0.000000e+00> : vector<2xf32>
    %1585 = vector.multi_reduction <add>, %1584, %cst_772 [0] : vector<32x2xf32> to vector<2xf32>
    %1586 = vector.shape_cast %1585 : vector<2xf32> to vector<1x2xf32>
    %cst_773 = arith.constant 0.176776692 : f32
    %1587 = vector.broadcast %cst_773 : f32 to vector<1x2xf32>
    %1588 = arith.mulf %1586, %1587 : vector<1x2xf32>
    %1589 = vector.extract_strided_slice %3 {offsets = [4, 0], sizes = [1, 2], strides = [1, 1]} : vector<8x2xi1> to vector<1x2xi1>
    %cst_774 = arith.constant -1.000000e+09 : f32
    %1590 = vector.broadcast %cst_774 : f32 to vector<1x2xf32>
    %1591 = arith.select %1589, %1588, %1590 : vector<1x2xi1>, vector<1x2xf32>
    %c5_775 = arith.constant 5 : index
    %c0_776 = arith.constant 0 : index
    %c0_777 = arith.constant 0 : index
    %1592 = vector.load %arg14[%c5_775, %c0_776, %c0_777] : memref<8x32x2xf32, #tpu.memory_space<vmem>>, vector<1x32x2xf32>
    %1593 = vector.shape_cast %1592 : vector<1x32x2xf32> to vector<32x2xf32>
    %cst_778 = arith.constant dense<0.000000e+00> : vector<32x2xf32>
    %1594 = tpu.matmul %1535, %1593, %cst_778 {dimension_numbers = #tpu.dot_dimension_numbers<[1], [0], [0], [1], [0, 0, 1, 1], [], []>} : vector<32x32xf32>, vector<32x2xf32>, vector<32x2xf32> -> vector<32x2xf32>
    %1595 = arith.mulf %1534, %1594 : vector<32x2xf32>
    %cst_779 = arith.constant dense<0.000000e+00> : vector<2xf32>
    %1596 = vector.multi_reduction <add>, %1595, %cst_779 [0] : vector<32x2xf32> to vector<2xf32>
    %1597 = vector.shape_cast %1596 : vector<2xf32> to vector<1x2xf32>
    %cst_780 = arith.constant 0.176776692 : f32
    %1598 = vector.broadcast %cst_780 : f32 to vector<1x2xf32>
    %1599 = arith.mulf %1597, %1598 : vector<1x2xf32>
    %1600 = vector.extract_strided_slice %3 {offsets = [5, 0], sizes = [1, 2], strides = [1, 1]} : vector<8x2xi1> to vector<1x2xi1>
    %cst_781 = arith.constant -1.000000e+09 : f32
    %1601 = vector.broadcast %cst_781 : f32 to vector<1x2xf32>
    %1602 = arith.select %1600, %1599, %1601 : vector<1x2xi1>, vector<1x2xf32>
    %c6_782 = arith.constant 6 : index
    %c0_783 = arith.constant 0 : index
    %c0_784 = arith.constant 0 : index
    %1603 = vector.load %arg14[%c6_782, %c0_783, %c0_784] : memref<8x32x2xf32, #tpu.memory_space<vmem>>, vector<1x32x2xf32>
    %1604 = vector.shape_cast %1603 : vector<1x32x2xf32> to vector<32x2xf32>
    %cst_785 = arith.constant dense<0.000000e+00> : vector<32x2xf32>
    %1605 = tpu.matmul %1535, %1604, %cst_785 {dimension_numbers = #tpu.dot_dimension_numbers<[1], [0], [0], [1], [0, 0, 1, 1], [], []>} : vector<32x32xf32>, vector<32x2xf32>, vector<32x2xf32> -> vector<32x2xf32>
    %1606 = arith.mulf %1534, %1605 : vector<32x2xf32>
    %cst_786 = arith.constant dense<0.000000e+00> : vector<2xf32>
    %1607 = vector.multi_reduction <add>, %1606, %cst_786 [0] : vector<32x2xf32> to vector<2xf32>
    %1608 = vector.shape_cast %1607 : vector<2xf32> to vector<1x2xf32>
    %cst_787 = arith.constant 0.176776692 : f32
    %1609 = vector.broadcast %cst_787 : f32 to vector<1x2xf32>
    %1610 = arith.mulf %1608, %1609 : vector<1x2xf32>
    %1611 = vector.extract_strided_slice %3 {offsets = [6, 0], sizes = [1, 2], strides = [1, 1]} : vector<8x2xi1> to vector<1x2xi1>
    %cst_788 = arith.constant -1.000000e+09 : f32
    %1612 = vector.broadcast %cst_788 : f32 to vector<1x2xf32>
    %1613 = arith.select %1611, %1610, %1612 : vector<1x2xi1>, vector<1x2xf32>
    %c7_789 = arith.constant 7 : index
    %c0_790 = arith.constant 0 : index
    %c0_791 = arith.constant 0 : index
    %1614 = vector.load %arg14[%c7_789, %c0_790, %c0_791] : memref<8x32x2xf32, #tpu.memory_space<vmem>>, vector<1x32x2xf32>
    %1615 = vector.shape_cast %1614 : vector<1x32x2xf32> to vector<32x2xf32>
    %cst_792 = arith.constant dense<0.000000e+00> : vector<32x2xf32>
    %1616 = tpu.matmul %1535, %1615, %cst_792 {dimension_numbers = #tpu.dot_dimension_numbers<[1], [0], [0], [1], [0, 0, 1, 1], [], []>} : vector<32x32xf32>, vector<32x2xf32>, vector<32x2xf32> -> vector<32x2xf32>
    %1617 = arith.mulf %1534, %1616 : vector<32x2xf32>
    %cst_793 = arith.constant dense<0.000000e+00> : vector<2xf32>
    %1618 = vector.multi_reduction <add>, %1617, %cst_793 [0] : vector<32x2xf32> to vector<2xf32>
    %1619 = vector.shape_cast %1618 : vector<2xf32> to vector<1x2xf32>
    %cst_794 = arith.constant 0.176776692 : f32
    %1620 = vector.broadcast %cst_794 : f32 to vector<1x2xf32>
    %1621 = arith.mulf %1619, %1620 : vector<1x2xf32>
    %1622 = vector.extract_strided_slice %3 {offsets = [7, 0], sizes = [1, 2], strides = [1, 1]} : vector<8x2xi1> to vector<1x2xi1>
    %cst_795 = arith.constant -1.000000e+09 : f32
    %1623 = vector.broadcast %cst_795 : f32 to vector<1x2xf32>
    %1624 = arith.select %1622, %1621, %1623 : vector<1x2xi1>, vector<1x2xf32>
    %1625 = arith.maximumf %1547, %1558 : vector<1x2xf32>
    %1626 = arith.maximumf %1625, %1569 : vector<1x2xf32>
    %1627 = arith.maximumf %1626, %1580 : vector<1x2xf32>
    %1628 = arith.maximumf %1627, %1591 : vector<1x2xf32>
    %1629 = arith.maximumf %1628, %1602 : vector<1x2xf32>
    %1630 = arith.maximumf %1629, %1613 : vector<1x2xf32>
    %1631 = arith.maximumf %1630, %1624 : vector<1x2xf32>
    %1632 = arith.subf %1547, %1631 : vector<1x2xf32>
    %1633 = math.exp %1632 : vector<1x2xf32>
    %1634 = arith.subf %1558, %1631 : vector<1x2xf32>
    %1635 = math.exp %1634 : vector<1x2xf32>
    %1636 = arith.subf %1569, %1631 : vector<1x2xf32>
    %1637 = math.exp %1636 : vector<1x2xf32>
    %1638 = arith.subf %1580, %1631 : vector<1x2xf32>
    %1639 = math.exp %1638 : vector<1x2xf32>
    %1640 = arith.subf %1591, %1631 : vector<1x2xf32>
    %1641 = math.exp %1640 : vector<1x2xf32>
    %1642 = arith.subf %1602, %1631 : vector<1x2xf32>
    %1643 = math.exp %1642 : vector<1x2xf32>
    %1644 = arith.subf %1613, %1631 : vector<1x2xf32>
    %1645 = math.exp %1644 : vector<1x2xf32>
    %1646 = arith.subf %1624, %1631 : vector<1x2xf32>
    %1647 = math.exp %1646 : vector<1x2xf32>
    %1648 = arith.addf %1633, %1635 : vector<1x2xf32>
    %1649 = arith.addf %1648, %1637 : vector<1x2xf32>
    %1650 = arith.addf %1649, %1639 : vector<1x2xf32>
    %1651 = arith.addf %1650, %1641 : vector<1x2xf32>
    %1652 = arith.addf %1651, %1643 : vector<1x2xf32>
    %1653 = arith.addf %1652, %1645 : vector<1x2xf32>
    %1654 = arith.addf %1653, %1647 : vector<1x2xf32>
    %cst_796 = arith.constant 1.000000e+00 : f32
    %1655 = vector.broadcast %cst_796 : f32 to vector<1x2xf32>
    %1656 = arith.divf %1655, %1654 : vector<1x2xf32>
    %cst_797 = arith.constant 0.000000e+00 : f32
    %1657 = vector.broadcast %cst_797 : f32 to vector<32x2xf32>
    %c0_798 = arith.constant 0 : index
    %c0_799 = arith.constant 0 : index
    %c0_800 = arith.constant 0 : index
    %1658 = vector.load %arg14[%c0_798, %c0_799, %c0_800] : memref<8x32x2xf32, #tpu.memory_space<vmem>>, vector<1x32x2xf32>
    %1659 = vector.shape_cast %1658 : vector<1x32x2xf32> to vector<32x2xf32>
    %cst_801 = arith.constant dense<0.000000e+00> : vector<32x2xf32>
    %1660 = tpu.matmul %1536, %1659, %cst_801 {dimension_numbers = #tpu.dot_dimension_numbers<[1], [0], [0], [1], [0, 0, 1, 1], [], []>} : vector<32x32xf32>, vector<32x2xf32>, vector<32x2xf32> -> vector<32x2xf32>
    %1661 = arith.mulf %1633, %1656 : vector<1x2xf32>
    %1662 = vector.broadcast %1661 : vector<1x2xf32> to vector<32x2xf32>
    %1663 = arith.mulf %1662, %1660 : vector<32x2xf32>
    %1664 = arith.addf %1657, %1663 : vector<32x2xf32>
    %c1_802 = arith.constant 1 : index
    %c0_803 = arith.constant 0 : index
    %c0_804 = arith.constant 0 : index
    %1665 = vector.load %arg14[%c1_802, %c0_803, %c0_804] : memref<8x32x2xf32, #tpu.memory_space<vmem>>, vector<1x32x2xf32>
    %1666 = vector.shape_cast %1665 : vector<1x32x2xf32> to vector<32x2xf32>
    %cst_805 = arith.constant dense<0.000000e+00> : vector<32x2xf32>
    %1667 = tpu.matmul %1536, %1666, %cst_805 {dimension_numbers = #tpu.dot_dimension_numbers<[1], [0], [0], [1], [0, 0, 1, 1], [], []>} : vector<32x32xf32>, vector<32x2xf32>, vector<32x2xf32> -> vector<32x2xf32>
    %1668 = arith.mulf %1635, %1656 : vector<1x2xf32>
    %1669 = vector.broadcast %1668 : vector<1x2xf32> to vector<32x2xf32>
    %1670 = arith.mulf %1669, %1667 : vector<32x2xf32>
    %1671 = arith.addf %1664, %1670 : vector<32x2xf32>
    %c2_806 = arith.constant 2 : index
    %c0_807 = arith.constant 0 : index
    %c0_808 = arith.constant 0 : index
    %1672 = vector.load %arg14[%c2_806, %c0_807, %c0_808] : memref<8x32x2xf32, #tpu.memory_space<vmem>>, vector<1x32x2xf32>
    %1673 = vector.shape_cast %1672 : vector<1x32x2xf32> to vector<32x2xf32>
    %cst_809 = arith.constant dense<0.000000e+00> : vector<32x2xf32>
    %1674 = tpu.matmul %1536, %1673, %cst_809 {dimension_numbers = #tpu.dot_dimension_numbers<[1], [0], [0], [1], [0, 0, 1, 1], [], []>} : vector<32x32xf32>, vector<32x2xf32>, vector<32x2xf32> -> vector<32x2xf32>
    %1675 = arith.mulf %1637, %1656 : vector<1x2xf32>
    %1676 = vector.broadcast %1675 : vector<1x2xf32> to vector<32x2xf32>
    %1677 = arith.mulf %1676, %1674 : vector<32x2xf32>
    %1678 = arith.addf %1671, %1677 : vector<32x2xf32>
    %c3_810 = arith.constant 3 : index
    %c0_811 = arith.constant 0 : index
    %c0_812 = arith.constant 0 : index
    %1679 = vector.load %arg14[%c3_810, %c0_811, %c0_812] : memref<8x32x2xf32, #tpu.memory_space<vmem>>, vector<1x32x2xf32>
    %1680 = vector.shape_cast %1679 : vector<1x32x2xf32> to vector<32x2xf32>
    %cst_813 = arith.constant dense<0.000000e+00> : vector<32x2xf32>
    %1681 = tpu.matmul %1536, %1680, %cst_813 {dimension_numbers = #tpu.dot_dimension_numbers<[1], [0], [0], [1], [0, 0, 1, 1], [], []>} : vector<32x32xf32>, vector<32x2xf32>, vector<32x2xf32> -> vector<32x2xf32>
    %1682 = arith.mulf %1639, %1656 : vector<1x2xf32>
    %1683 = vector.broadcast %1682 : vector<1x2xf32> to vector<32x2xf32>
    %1684 = arith.mulf %1683, %1681 : vector<32x2xf32>
    %1685 = arith.addf %1678, %1684 : vector<32x2xf32>
    %c4_814 = arith.constant 4 : index
    %c0_815 = arith.constant 0 : index
    %c0_816 = arith.constant 0 : index
    %1686 = vector.load %arg14[%c4_814, %c0_815, %c0_816] : memref<8x32x2xf32, #tpu.memory_space<vmem>>, vector<1x32x2xf32>
    %1687 = vector.shape_cast %1686 : vector<1x32x2xf32> to vector<32x2xf32>
    %cst_817 = arith.constant dense<0.000000e+00> : vector<32x2xf32>
    %1688 = tpu.matmul %1536, %1687, %cst_817 {dimension_numbers = #tpu.dot_dimension_numbers<[1], [0], [0], [1], [0, 0, 1, 1], [], []>} : vector<32x32xf32>, vector<32x2xf32>, vector<32x2xf32> -> vector<32x2xf32>
    %1689 = arith.mulf %1641, %1656 : vector<1x2xf32>
    %1690 = vector.broadcast %1689 : vector<1x2xf32> to vector<32x2xf32>
    %1691 = arith.mulf %1690, %1688 : vector<32x2xf32>
    %1692 = arith.addf %1685, %1691 : vector<32x2xf32>
    %c5_818 = arith.constant 5 : index
    %c0_819 = arith.constant 0 : index
    %c0_820 = arith.constant 0 : index
    %1693 = vector.load %arg14[%c5_818, %c0_819, %c0_820] : memref<8x32x2xf32, #tpu.memory_space<vmem>>, vector<1x32x2xf32>
    %1694 = vector.shape_cast %1693 : vector<1x32x2xf32> to vector<32x2xf32>
    %cst_821 = arith.constant dense<0.000000e+00> : vector<32x2xf32>
    %1695 = tpu.matmul %1536, %1694, %cst_821 {dimension_numbers = #tpu.dot_dimension_numbers<[1], [0], [0], [1], [0, 0, 1, 1], [], []>} : vector<32x32xf32>, vector<32x2xf32>, vector<32x2xf32> -> vector<32x2xf32>
    %1696 = arith.mulf %1643, %1656 : vector<1x2xf32>
    %1697 = vector.broadcast %1696 : vector<1x2xf32> to vector<32x2xf32>
    %1698 = arith.mulf %1697, %1695 : vector<32x2xf32>
    %1699 = arith.addf %1692, %1698 : vector<32x2xf32>
    %c6_822 = arith.constant 6 : index
    %c0_823 = arith.constant 0 : index
    %c0_824 = arith.constant 0 : index
    %1700 = vector.load %arg14[%c6_822, %c0_823, %c0_824] : memref<8x32x2xf32, #tpu.memory_space<vmem>>, vector<1x32x2xf32>
    %1701 = vector.shape_cast %1700 : vector<1x32x2xf32> to vector<32x2xf32>
    %cst_825 = arith.constant dense<0.000000e+00> : vector<32x2xf32>
    %1702 = tpu.matmul %1536, %1701, %cst_825 {dimension_numbers = #tpu.dot_dimension_numbers<[1], [0], [0], [1], [0, 0, 1, 1], [], []>} : vector<32x32xf32>, vector<32x2xf32>, vector<32x2xf32> -> vector<32x2xf32>
    %1703 = arith.mulf %1645, %1656 : vector<1x2xf32>
    %1704 = vector.broadcast %1703 : vector<1x2xf32> to vector<32x2xf32>
    %1705 = arith.mulf %1704, %1702 : vector<32x2xf32>
    %1706 = arith.addf %1699, %1705 : vector<32x2xf32>
    %c7_826 = arith.constant 7 : index
    %c0_827 = arith.constant 0 : index
    %c0_828 = arith.constant 0 : index
    %1707 = vector.load %arg14[%c7_826, %c0_827, %c0_828] : memref<8x32x2xf32, #tpu.memory_space<vmem>>, vector<1x32x2xf32>
    %1708 = vector.shape_cast %1707 : vector<1x32x2xf32> to vector<32x2xf32>
    %cst_829 = arith.constant dense<0.000000e+00> : vector<32x2xf32>
    %1709 = tpu.matmul %1536, %1708, %cst_829 {dimension_numbers = #tpu.dot_dimension_numbers<[1], [0], [0], [1], [0, 0, 1, 1], [], []>} : vector<32x32xf32>, vector<32x2xf32>, vector<32x2xf32> -> vector<32x2xf32>
    %1710 = arith.mulf %1647, %1656 : vector<1x2xf32>
    %1711 = vector.broadcast %1710 : vector<1x2xf32> to vector<32x2xf32>
    %1712 = arith.mulf %1711, %1709 : vector<32x2xf32>
    %1713 = arith.addf %1706, %1712 : vector<32x2xf32>
    %1714 = arith.index_cast %arg1 : i32 to index
    %c0_830 = arith.constant 0 : index
    %c0_831 = arith.constant 0 : index
    %1715 = vector.load %arg14[%1714, %c0_830, %c0_831] : memref<8x32x2xf32, #tpu.memory_space<vmem>>, vector<1x32x2xf32>
    %1716 = vector.shape_cast %1715 : vector<1x32x2xf32> to vector<32x2xf32>
    %c0_832 = arith.constant 0 : index
    %c0_833 = arith.constant 0 : index
    %1717 = vector.load %arg10[%c0_832, %c0_833] : memref<32x32xf32, #tpu.memory_space<vmem>>, vector<32x32xf32>
    %cst_834 = arith.constant dense<0.000000e+00> : vector<32x2xf32>
    %1718 = tpu.matmul %1717, %1713, %cst_834 {dimension_numbers = #tpu.dot_dimension_numbers<[1], [0], [0], [1], [0, 0, 1, 1], [], []>} : vector<32x32xf32>, vector<32x2xf32>, vector<32x2xf32> -> vector<32x2xf32>
    %1719 = arith.mulf %1718, %1716 : vector<32x2xf32>
    %cst_835 = arith.constant dense<0.000000e+00> : vector<2xf32>
    %1720 = vector.multi_reduction <add>, %1719, %cst_835 [0] : vector<32x2xf32> to vector<2xf32>
    %1721 = vector.shape_cast %1720 : vector<2xf32> to vector<1x2xf32>
    %cst_836 = arith.constant 0.176776692 : f32
    %1722 = vector.broadcast %cst_836 : f32 to vector<1x2xf32>
    %1723 = arith.mulf %1721, %1722 : vector<1x2xf32>
    %1724 = math.tanh %1723 : vector<1x2xf32>
    %cst_837 = arith.constant 1.000000e+01 : f32
    %1725 = vector.broadcast %cst_837 : f32 to vector<1x2xf32>
    %1726 = arith.mulf %1725, %1724 : vector<1x2xf32>
    %cst_838 = arith.constant -1.000000e+09 : f32
    %1727 = vector.shape_cast %1726 : vector<1x2xf32> to vector<1x2xf32>
    %1728 = vector.broadcast %1727 : vector<1x2xf32> to vector<8x2xf32>
    %1729 = vector.broadcast %cst_838 : f32 to vector<8x2xf32>
    %1730 = arith.select %3, %1728, %1729 : vector<8x2xi1>, vector<8x2xf32>
    %cst_839 = arith.constant -1.000000e+09 : f32
    %1731 = vector.shape_cast %9 : vector<1x2xi1> to vector<1x2xi1>
    %1732 = vector.broadcast %1731 : vector<1x2xi1> to vector<8x2xi1>
    %1733 = vector.broadcast %cst_839 : f32 to vector<8x2xf32>
    %1734 = arith.select %1732, %1730, %1733 : vector<8x2xi1>, vector<8x2xf32>
    %c0_840 = arith.constant 0 : index
    %c0_841 = arith.constant 0 : index
    %c0_842 = arith.constant 0 : index
    %1735 = vector.load %arg11[%c0_840, %c0_841, %c0_842] : memref<1x8x2xf32, #tpu.memory_space<vmem>>, vector<1x8x2xf32>
    %1736 = vector.shape_cast %1735 : vector<1x8x2xf32> to vector<8x2xf32>
    %1737 = vector.shape_cast %1734 : vector<8x2xf32> to vector<1x8x2xf32>
    tpu.vector_store %arg11[%c0_840, %c0_841, %c0_842], %1737 {strides = array<i32>} : memref<1x8x2xf32, #tpu.memory_space<vmem>>, vector<1x8x2xf32>,
    %cst_843 = arith.constant 0.000000e+00 : f32
    %1738 = vector.shape_cast %9 : vector<1x2xi1> to vector<1x2xi1>
    %1739 = vector.broadcast %1738 : vector<1x2xi1> to vector<32x2xi1>
    %1740 = vector.broadcast %cst_843 : f32 to vector<32x2xf32>
    %1741 = arith.select %1739, %1532, %1740 : vector<32x2xi1>, vector<32x2xf32>
    %c0_i32 = arith.constant 0 : i32
    %1742 = arith.cmpi eq, %arg1, %c0_i32 : i32
    %1743 = arith.extui %1742 : i1 to i32
    %c0_i32_844 = arith.constant 0 : i32
    %1744 = arith.cmpi ne, %1743, %c0_i32_844 : i32
    scf.if %1744 {
      %cst_849 = arith.constant 0.000000e+00 : f32
      %1748 = vector.broadcast %cst_849 : f32 to vector<32x2xf32>
      %c0_850 = arith.constant 0 : index
      %c0_851 = arith.constant 0 : index
      %1749 = vector.load %arg12[%c0_850, %c0_851] : memref<32x2xf32, #tpu.memory_space<vmem>>, vector<32x2xf32>
      tpu.vector_store %arg12[%c0_850, %c0_851], %1748 {strides = array<i32>} : memref<32x2xf32, #tpu.memory_space<vmem>>, vector<32x2xf32>,
    } else {
    }
    %c0_845 = arith.constant 0 : index
    %c0_846 = arith.constant 0 : index
    %1745 = vector.load %arg12[%c0_845, %c0_846] : memref<32x2xf32, #tpu.memory_space<vmem>>, vector<32x2xf32>
    %1746 = arith.addf %1745, %1741 : vector<32x2xf32>
    %c0_847 = arith.constant 0 : index
    %c0_848 = arith.constant 0 : index
    %1747 = vector.load %arg12[%c0_847, %c0_848] : memref<32x2xf32, #tpu.memory_space<vmem>>, vector<32x2xf32>
    tpu.vector_store %arg12[%c0_847, %c0_848], %1746 {strides = array<i32>} : memref<32x2xf32, #tpu.memory_space<vmem>>, vector<32x2xf32>,
    return
  }
  func.func @transform_0(%arg0: i32, %arg1: i32) -> (i32, i32, i32, i32) {
    %c0_i32 = arith.constant 0 : i32
    %c0_i32_0 = arith.constant 0 : i32
    %c0_i32_1 = arith.constant 0 : i32
    return %arg1, %c0_i32, %c0_i32_0, %arg0 : i32, i32, i32, i32
  }
  func.func @transform_1(%arg0: i32, %arg1: i32) -> (i32, i32, i32) {
    %c0_i32 = arith.constant 0 : i32
    %c0_i32_0 = arith.constant 0 : i32
    return %arg1, %c0_i32, %arg0 : i32, i32, i32
  }
  func.func @transform_2(%arg0: i32, %arg1: i32) -> (i32, i32, i32) {
    %c0_i32 = arith.constant 0 : i32
    %c0_i32_0 = arith.constant 0 : i32
    return %arg1, %c0_i32, %arg0 : i32, i32, i32
  }
  func.func @transform_3(%arg0: i32, %arg1: i32) -> (i32, i32) {
    %c0_i32 = arith.constant 0 : i32
    %c0_i32_0 = arith.constant 0 : i32
    %c0_i32_1 = arith.constant 0 : i32
    return %c0_i32, %c0_i32_0 : i32, i32
  }
  func.func @transform_4(%arg0: i32, %arg1: i32) -> (i32, i32) {
    %c0_i32 = arith.constant 0 : i32
    %c0_i32_0 = arith.constant 0 : i32
    %c0_i32_1 = arith.constant 0 : i32
    return %c0_i32, %c0_i32_0 : i32, i32
  }
  func.func @transform_5(%arg0: i32, %arg1: i32) -> (i32, i32) {
    %c0_i32 = arith.constant 0 : i32
    %c0_i32_0 = arith.constant 0 : i32
    %c0_i32_1 = arith.constant 0 : i32
    return %c0_i32, %c0_i32_0 : i32, i32
  }
  func.func @transform_6(%arg0: i32, %arg1: i32) -> (i32, i32) {
    %c0_i32 = arith.constant 0 : i32
    %c0_i32_0 = arith.constant 0 : i32
    %c0_i32_1 = arith.constant 0 : i32
    return %c0_i32, %c0_i32_0 : i32, i32
  }
  func.func @transform_7(%arg0: i32, %arg1: i32) -> (i32, i32) {
    %c0_i32 = arith.constant 0 : i32
    %c0_i32_0 = arith.constant 0 : i32
    %c0_i32_1 = arith.constant 0 : i32
    return %c0_i32, %c0_i32_0 : i32, i32
  }
  func.func @transform_8(%arg0: i32, %arg1: i32) -> (i32, i32) {
    %c0_i32 = arith.constant 0 : i32
    %c0_i32_0 = arith.constant 0 : i32
    %c0_i32_1 = arith.constant 0 : i32
    return %c0_i32, %c0_i32_0 : i32, i32
  }
  func.func @transform_9(%arg0: i32, %arg1: i32) -> (i32, i32, i32) {
    %c0_i32 = arith.constant 0 : i32
    %c0_i32_0 = arith.constant 0 : i32
    return %arg1, %c0_i32, %arg0 : i32, i32, i32
  }
  func.func @transform_10(%arg0: i32, %arg1: i32) -> (i32, i32) {
    %c0_i32 = arith.constant 0 : i32
    %c0_i32_0 = arith.constant 0 : i32
    return %c0_i32, %arg0 : i32, i32
  }
}

</mosaic_0001>

<llo_original>
// kernel: tpu_custom_call.1
$region0: #{tpu_custom_call.1}
  #allocation0 [shape = 'u32[]', space=smem, size = 0x4, offset = 0x4, fixed_abs, tag = 'smem constant byte address 0x4 - core index']
  #allocation1 [shape = 'u32[72,128]{1,0:T(1,128)}', space=vmem, size = 0x9000, scoped, tag = 'internal scratch']
  #allocation2 [shape = 'f32[8,96,2]{2,1,0:T(8,128)}', space=vmem, size = 0x60000, scoped, tag = 'scratch operand']
  #allocation3 [shape = 'f32[8,32,2]{2,1,0:T(8,128)}', space=vmem, size = 0x20000, scoped, tag = 'scratch operand']
  %s0 = inlined_call_operand.vmem [shape: f32[8,8,8,2], index: 0, kind: input, shape index: {}]
  %s1 = inlined_call_operand.vmem [shape: f32[8,8,2], index: 1, kind: input, shape index: {}]
  %s2 = inlined_call_operand.vmem [shape: f32[8,1,2], index: 2, kind: input, shape index: {}]
  %s3 = inlined_call_operand.vmem [shape: f32[96,8], index: 3, kind: input, shape index: {}]
  %s4 = inlined_call_operand.vmem [shape: f32[96,1], index: 4, kind: input, shape index: {}]
  %s5 = inlined_call_operand.vmem [shape: f32[32,32], index: 5, kind: input, shape index: {}]
  %s6 = inlined_call_operand.vmem [shape: f32[32,32], index: 6, kind: input, shape index: {}]
  %s7 = inlined_call_operand.vmem [shape: f32[32,32], index: 7, kind: input, shape index: {}]
  %s8 = inlined_call_operand.vmem [shape: f32[32,32], index: 8, kind: input, shape index: {}]
  %s9 = inlined_call_operand.vmem [shape: f32[8,8,2], index: 9, kind: output, shape index: {0}]
  %s10 = inlined_call_operand.vmem [shape: f32[32,2], index: 10, kind: output, shape index: {1}]
  %11 = xla_tuple %s9, %s10
  %s12 = sld [smem:[#allocation0]]
  $region81: #{tpu_custom_call.1} parent=0
    _
  %s14 = ssub.s32 1, %s12
  %s15 = scalar_select 0, %s14, %s12
  loop: start=0, step=1, limit=10
  $region2: #{tpu_custom_call.1} parent=0 // loop_pre_header
    _
  $region3: #{tpu_custom_call.1} parent=0 // loop_header
    %s17 = sphi 0, %s21
    %p18 = scmp.ge.s32.totalorder %s17, 10
    %s24 = sphi 0, %s36
    %s25 = sphi 0, %s32
    %s26 = sphi 0, %s24
    %s27 = sphi 0, %s25
    %s28 = sphi 0, %s26
    %s29 = sphi 0, %s27
    %s41 = sphi 0, %s43
    %s44 = sphi 0, %s41
    %s45 = sphi 0, %s44
    %s61 = sphi 0, %s45
    %s69 = sphi 0, %s71
    %s72 = sphi 0, %s69
    %s73 = sphi 0, %s72
    %s89 = sphi 0, %s73
    %s97 = sphi 0, %s99
    %s100 = sphi 0, %s97
    %s101 = sphi 0, %s100
    %s117 = sphi 0, %s101
    %s121 = sphi 0, %s121
    %s123 = sphi 0, %s121
    %s124 = sphi 0, %s123
    %s138 = sphi 0, %s124
    %s142 = sphi 0, %s142
    %s144 = sphi 0, %s142
    %s145 = sphi 0, %s144
    %s159 = sphi 0, %s145
    %s163 = sphi 0, %s163
    %s165 = sphi 0, %s163
    %s166 = sphi 0, %s165
    %s180 = sphi 0, %s166
    %s184 = sphi 0, %s184
    %s186 = sphi 0, %s184
    %s187 = sphi 0, %s186
    %s201 = sphi 0, %s187
    %s205 = sphi 0, %s205
    %s207 = sphi 0, %s205
    %s208 = sphi 0, %s207
    %s222 = sphi 0, %s208
    %s226 = sphi 0, %s226
    %s228 = sphi 0, %s226
    %s229 = sphi 0, %s228
    %s243 = sphi 0, %s229
    %s251 = sphi 0, %s253
    %s254 = sphi 0, %s251
    %s255 = sphi 0, %s254
    %s271 = sphi 0, %s255
    %s277 = sphi 0, %s279
    %s280 = sphi 0, %s277
    %s281 = sphi 0, %s280
    %s297 = sphi 0, %s281
  $region4: #{tpu_custom_call.1} parent=0 // loop_header_branch
    %20 = sbr.rel (%p18) target = $region8
  $region5: #{tpu_custom_call.1} parent=0 // loop_body
    %s22 = ssub.s32 %s17, 1
    %s23 = ssub.s32 %s17, 2
    %s30 = sadd.s32 1, %s25
    %p31 = scmp.ge.s32.totalorder %s30, 8
    %s32 = scalar_select %p31, 0, %s30
    %s33 = sadd.s32 1, %s24
    %s34 = scalar_select %p31, %s33, %s24
    %p35 = scmp.ge.s32.totalorder %s34, 1
    %s36 = scalar_select %p35, 0, %s34
    %s37 = ssub.s32 %s25, %s32
    %s38 = ssub.s32 %s24, %s36
    %s39 = sor.u32 %s37, %s38
    %p40 = scmp.eq.s32.totalorder %s39, 0
    %s42 = sadd.s32 %s41, 1
    %s43 = scalar_select %p40, %s41, %s42
    %p46 = pneg %p40
    %p47 = scmp.eq.s32.totalorder %s17, 7
    %p48 = por %p46, %p47
    %p49 = scmp.ne.s32.totalorder %s41, %s44
    %p50 = scmp.eq.s32.totalorder %s17, 0
    %p51 = por %p49, %p50
    %p52 = scmp.ne.s32.totalorder %s41, %s44
    %p53 = scmp.eq.s32.totalorder %s22, 7
    %p54 = por %p52, %p53
    %p55 = scmp.ne.s32.totalorder %s44, %s45
    %p56 = scmp.eq.s32.totalorder %s22, 0
    %p57 = por %p55, %p56
    %p58 = scmp.ne.s32.totalorder %s44, %s45
    %p59 = scmp.eq.s32.totalorder %s23, 7
    %p60 = por %p58, %p59
    %p62 = scmp.ne.s32.totalorder %s45, %s61
    %p63 = scmp.eq.s32.totalorder %s23, 0
    %p64 = por %p62, %p63
    %s65 = ssub.s32 %s25, %s32
    %s66 = ssub.s32 %s24, %s36
    %s67 = sor.u32 %s65, %s66
    %p68 = scmp.eq.s32.totalorder %s67, 0
    %s70 = sadd.s32 %s69, 1
    %s71 = scalar_select %p68, %s69, %s70
    %p74 = pneg %p68
    %p75 = scmp.eq.s32.totalorder %s17, 7
    %p76 = por %p74, %p75
    %p77 = scmp.ne.s32.totalorder %s69, %s72
    %p78 = scmp.eq.s32.totalorder %s17, 0
    %p79 = por %p77, %p78
    %p80 = scmp.ne.s32.totalorder %s69, %s72
    %p81 = scmp.eq.s32.totalorder %s22, 7
    %p82 = por %p80, %p81
    %p83 = scmp.ne.s32.totalorder %s72, %s73
    %p84 = scmp.eq.s32.totalorder %s22, 0
    %p85 = por %p83, %p84
    %p86 = scmp.ne.s32.totalorder %s72, %s73
    %p87 = scmp.eq.s32.totalorder %s23, 7
    %p88 = por %p86, %p87
    %p90 = scmp.ne.s32.totalorder %s73, %s89
    %p91 = scmp.eq.s32.totalorder %s23, 0
    %p92 = por %p90, %p91
    %s93 = ssub.s32 %s25, %s32
    %s94 = ssub.s32 %s24, %s36
    %s95 = sor.u32 %s93, %s94
    %p96 = scmp.eq.s32.totalorder %s95, 0
    %s98 = sadd.s32 %s97, 1
    %s99 = scalar_select %p96, %s97, %s98
    %p102 = pneg %p96
    %p103 = scmp.eq.s32.totalorder %s17, 7
    %p104 = por %p102, %p103
    %p105 = scmp.ne.s32.totalorder %s97, %s100
    %p106 = scmp.eq.s32.totalorder %s17, 0
    %p107 = por %p105, %p106
    %p108 = scmp.ne.s32.totalorder %s97, %s100
    %p109 = scmp.eq.s32.totalorder %s22, 7
    %p110 = por %p108, %p109
    %p111 = scmp.ne.s32.totalorder %s100, %s101
    %p112 = scmp.eq.s32.totalorder %s22, 0
    %p113 = por %p111, %p112
    %p114 = scmp.ne.s32.totalorder %s100, %s101
    %p115 = scmp.eq.s32.totalorder %s23, 7
    %p116 = por %p114, %p115
    %p118 = scmp.ne.s32.totalorder %s101, %s117
    %p119 = scmp.eq.s32.totalorder %s23, 0
    %p120 = por %p118, %p119
    %s122 = sadd.s32 %s121, 1
    %p125 = scmp.eq.s32.totalorder %s17, 7
    %p126 = scmp.ne.s32.totalorder %s121, %s123
    %p127 = scmp.eq.s32.totalorder %s17, 0
    %p128 = por %p126, %p127
    %p129 = scmp.ne.s32.totalorder %s121, %s123
    %p130 = scmp.eq.s32.totalorder %s22, 7
    %p131 = por %p129, %p130
    %p132 = scmp.ne.s32.totalorder %s123, %s124
    %p133 = scmp.eq.s32.totalorder %s22, 0
    %p134 = por %p132, %p133
    %p135 = scmp.ne.s32.totalorder %s123, %s124
    %p136 = scmp.eq.s32.totalorder %s23, 7
    %p137 = por %p135, %p136
    %p139 = scmp.ne.s32.totalorder %s124, %s138
    %p140 = scmp.eq.s32.totalorder %s23, 0
    %p141 = por %p139, %p140
    %s143 = sadd.s32 %s142, 1
    %p146 = scmp.eq.s32.totalorder %s17, 7
    %p147 = scmp.ne.s32.totalorder %s142, %s144
    %p148 = scmp.eq.s32.totalorder %s17, 0
    %p149 = por %p147, %p148
    %p150 = scmp.ne.s32.totalorder %s142, %s144
    %p151 = scmp.eq.s32.totalorder %s22, 7
    %p152 = por %p150, %p151
    %p153 = scmp.ne.s32.totalorder %s144, %s145
    %p154 = scmp.eq.s32.totalorder %s22, 0
    %p155 = por %p153, %p154
    %p156 = scmp.ne.s32.totalorder %s144, %s145
    %p157 = scmp.eq.s32.totalorder %s23, 7
    %p158 = por %p156, %p157
    %p160 = scmp.ne.s32.totalorder %s145, %s159
    %p161 = scmp.eq.s32.totalorder %s23, 0
    %p162 = por %p160, %p161
    %s164 = sadd.s32 %s163, 1
    %p167 = scmp.eq.s32.totalorder %s17, 7
    %p168 = scmp.ne.s32.totalorder %s163, %s165
    %p169 = scmp.eq.s32.totalorder %s17, 0
    %p170 = por %p168, %p169
    %p171 = scmp.ne.s32.totalorder %s163, %s165
    %p172 = scmp.eq.s32.totalorder %s22, 7
    %p173 = por %p171, %p172
    %p174 = scmp.ne.s32.totalorder %s165, %s166
    %p175 = scmp.eq.s32.totalorder %s22, 0
    %p176 = por %p174, %p175
    %p177 = scmp.ne.s32.totalorder %s165, %s166
    %p178 = scmp.eq.s32.totalorder %s23, 7
    %p179 = por %p177, %p178
    %p181 = scmp.ne.s32.totalorder %s166, %s180
    %p182 = scmp.eq.s32.totalorder %s23, 0
    %p183 = por %p181, %p182
    %s185 = sadd.s32 %s184, 1
    %p188 = scmp.eq.s32.totalorder %s17, 7
    %p189 = scmp.ne.s32.totalorder %s184, %s186
    %p190 = scmp.eq.s32.totalorder %s17, 0
    %p191 = por %p189, %p190
    %p192 = scmp.ne.s32.totalorder %s184, %s186
    %p193 = scmp.eq.s32.totalorder %s22, 7
    %p194 = por %p192, %p193
    %p195 = scmp.ne.s32.totalorder %s186, %s187
    %p196 = scmp.eq.s32.totalorder %s22, 0
    %p197 = por %p195, %p196
    %p198 = scmp.ne.s32.totalorder %s186, %s187
    %p199 = scmp.eq.s32.totalorder %s23, 7
    %p200 = por %p198, %p199
    %p202 = scmp.ne.s32.totalorder %s187, %s201
    %p203 = scmp.eq.s32.totalorder %s23, 0
    %p204 = por %p202, %p203
    %s206 = sadd.s32 %s205, 1
    %p209 = scmp.eq.s32.totalorder %s17, 7
    %p210 = scmp.ne.s32.totalorder %s205, %s207
    %p211 = scmp.eq.s32.totalorder %s17, 0
    %p212 = por %p210, %p211
    %p213 = scmp.ne.s32.totalorder %s205, %s207
    %p214 = scmp.eq.s32.totalorder %s22, 7
    %p215 = por %p213, %p214
    %p216 = scmp.ne.s32.totalorder %s207, %s208
    %p217 = scmp.eq.s32.totalorder %s22, 0
    %p218 = por %p216, %p217
    %p219 = scmp.ne.s32.totalorder %s207, %s208
    %p220 = scmp.eq.s32.totalorder %s23, 7
    %p221 = por %p219, %p220
    %p223 = scmp.ne.s32.totalorder %s208, %s222
    %p224 = scmp.eq.s32.totalorder %s23, 0
    %p225 = por %p223, %p224
    %s227 = sadd.s32 %s226, 1
    %p230 = scmp.eq.s32.totalorder %s17, 7
    %p231 = scmp.ne.s32.totalorder %s226, %s228
    %p232 = scmp.eq.s32.totalorder %s17, 0
    %p233 = por %p231, %p232
    %p234 = scmp.ne.s32.totalorder %s226, %s228
    %p235 = scmp.eq.s32.totalorder %s22, 7
    %p236 = por %p234, %p235
    %p237 = scmp.ne.s32.totalorder %s228, %s229
    %p238 = scmp.eq.s32.totalorder %s22, 0
    %p239 = por %p237, %p238
    %p240 = scmp.ne.s32.totalorder %s228, %s229
    %p241 = scmp.eq.s32.totalorder %s23, 7
    %p242 = por %p240, %p241
    %p244 = scmp.ne.s32.totalorder %s229, %s243
    %p245 = scmp.eq.s32.totalorder %s23, 0
    %p246 = por %p244, %p245
    %s247 = ssub.s32 %s25, %s32
    %s248 = ssub.s32 %s24, %s36
    %s249 = sor.u32 %s247, %s248
    %p250 = scmp.eq.s32.totalorder %s249, 0
    %s252 = sadd.s32 %s251, 1
    %s253 = scalar_select %p250, %s251, %s252
    %p256 = pneg %p250
    %p257 = scmp.eq.s32.totalorder %s17, 7
    %p258 = por %p256, %p257
    %p259 = scmp.ne.s32.totalorder %s251, %s254
    %p260 = scmp.eq.s32.totalorder %s17, 0
    %p261 = por %p259, %p260
    %p262 = scmp.ne.s32.totalorder %s251, %s254
    %p263 = scmp.eq.s32.totalorder %s22, 7
    %p264 = por %p262, %p263
    %p265 = scmp.ne.s32.totalorder %s254, %s255
    %p266 = scmp.eq.s32.totalorder %s22, 0
    %p267 = por %p265, %p266
    %p268 = scmp.ne.s32.totalorder %s254, %s255
    %p269 = scmp.eq.s32.totalorder %s23, 7
    %p270 = por %p268, %p269
    %p272 = scmp.ne.s32.totalorder %s255, %s271
    %p273 = scmp.eq.s32.totalorder %s23, 0
    %p274 = por %p272, %p273
    %s275 = ssub.s32 %s24, %s36
    %p276 = scmp.eq.s32.totalorder %s275, 0
    %s278 = sadd.s32 %s277, 1
    %s279 = scalar_select %p276, %s277, %s278
    %p282 = pneg %p276
    %p283 = scmp.eq.s32.totalorder %s17, 7
    %p284 = por %p282, %p283
    %p285 = scmp.ne.s32.totalorder %s277, %s280
    %p286 = scmp.eq.s32.totalorder %s17, 0
    %p287 = por %p285, %p286
    %p288 = scmp.ne.s32.totalorder %s277, %s280
    %p289 = scmp.eq.s32.totalorder %s22, 7
    %p290 = por %p288, %p289
    %p291 = scmp.ne.s32.totalorder %s280, %s281
    %p292 = scmp.eq.s32.totalorder %s22, 0
    %p293 = por %p291, %p292
    %p294 = scmp.ne.s32.totalorder %s280, %s281
    %p295 = scmp.eq.s32.totalorder %s23, 7
    %p296 = por %p294, %p295
    %p298 = scmp.ne.s32.totalorder %s281, %s297
    %p299 = scmp.eq.s32.totalorder %s23, 0
    %p300 = por %p298, %p299
    %p301 = scmp.le.s32.totalorder 1, %s17
    %p302 = scmp.lt.s32.totalorder %s17, 9
    %p303 = pnand %p301, %p302
    %p304 = pneg %p303
    // Predicated region
    $region9: #{tpu_custom_call.1} parent=5 // pred_check
      _
    $region10: #{tpu_custom_call.1} parent=5 // pred_check_branch
      %306 = sbr.rel (%p303) target = $region12
    $region11: #{tpu_custom_call.1} parent=5 // pred_region
      %s307 = ssub.s32 %s17, 1
      // Predicated region
      $region13: #{tpu_custom_call.1} parent=11 // pred_check
        %p308 = pneg %p134
      $region14: #{tpu_custom_call.1} parent=11 // pred_check_branch
        %310 = sbr.rel (%p308) target = $region16
      $region15: #{tpu_custom_call.1} parent=11 // pred_region
        _
      $region16: #{tpu_custom_call.1} parent=11 // pred_fallthru
        _
      // Predicated region
      $region17: #{tpu_custom_call.1} parent=11 // pred_check
        %p311 = pneg %p155
      $region18: #{tpu_custom_call.1} parent=11 // pred_check_branch
        %313 = sbr.rel (%p311) target = $region20
      $region19: #{tpu_custom_call.1} parent=11 // pred_region
        _
      $region20: #{tpu_custom_call.1} parent=11 // pred_fallthru
        _
      // Predicated region
      $region21: #{tpu_custom_call.1} parent=11 // pred_check
        %p314 = pneg %p176
      $region22: #{tpu_custom_call.1} parent=11 // pred_check_branch
        %316 = sbr.rel (%p314) target = $region24
      $region23: #{tpu_custom_call.1} parent=11 // pred_region
        _
      $region24: #{tpu_custom_call.1} parent=11 // pred_fallthru
        _
      // Predicated region
      $region25: #{tpu_custom_call.1} parent=11 // pred_check
        %p317 = pneg %p197
      $region26: #{tpu_custom_call.1} parent=11 // pred_check_branch
        %319 = sbr.rel (%p317) target = $region28
      $region27: #{tpu_custom_call.1} parent=11 // pred_region
        _
      $region28: #{tpu_custom_call.1} parent=11 // pred_fallthru
        _
      // Predicated region
      $region29: #{tpu_custom_call.1} parent=11 // pred_check
        %p320 = pneg %p218
      $region30: #{tpu_custom_call.1} parent=11 // pred_check_branch
        %322 = sbr.rel (%p320) target = $region32
      $region31: #{tpu_custom_call.1} parent=11 // pred_region
        _
      $region32: #{tpu_custom_call.1} parent=11 // pred_fallthru
        _
      // Predicated region
      $region33: #{tpu_custom_call.1} parent=11 // pred_check
        %p323 = pneg %p239
      $region34: #{tpu_custom_call.1} parent=11 // pred_check_branch
        %325 = sbr.rel (%p323) target = $region36
      $region35: #{tpu_custom_call.1} parent=11 // pred_region
        _
      $region36: #{tpu_custom_call.1} parent=11 // pred_fallthru
        _
    $region12: #{tpu_custom_call.1} parent=5 // pred_fallthru
      _
    %p326 = scmp.lt.s32.totalorder %s17, 8
    // Predicated region
    $region37: #{tpu_custom_call.1} parent=5 // pred_check
      %p327 = pneg %p326
    $region38: #{tpu_custom_call.1} parent=5 // pred_check_branch
      %329 = sbr.rel (%p327) target = $region40
    $region39: #{tpu_custom_call.1} parent=5 // pred_region
      // Predicated region
      $region41: #{tpu_custom_call.1} parent=39 // pred_check
        %p330 = pneg %p51
      $region42: #{tpu_custom_call.1} parent=39 // pred_check_branch
        %332 = sbr.rel (%p330) target = $region44
      $region43: #{tpu_custom_call.1} parent=39 // pred_region
        %p333 = scmp.lt.s32.totalorder %s25, 7
        %s334 = scalar_select %p333, %s25, 7
        %p335 = scmp.lt.s32.totalorder %s24, 0
        %s336 = scalar_select %p335, %s24, 0
        %s337 = smul.addr %s334, 8
        %s338 = sadd.s32 %s336, %s337
        %s339 = smul.addr %s338, 8
        %s340 = scalar_lea.vmem %s0, %s339
      $region44: #{tpu_custom_call.1} parent=39 // pred_fallthru
        _
      // Predicated region
      $region45: #{tpu_custom_call.1} parent=39 // pred_check
        %p341 = pneg %p79
      $region46: #{tpu_custom_call.1} parent=39 // pred_check_branch
        %343 = sbr.rel (%p341) target = $region48
      $region47: #{tpu_custom_call.1} parent=39 // pred_region
        %p344 = scmp.lt.s32.totalorder %s25, 7
        %s345 = scalar_select %p344, %s25, 7
        %p346 = scmp.lt.s32.totalorder %s24, 0
        %s347 = scalar_select %p346, %s24, 0
        %s348 = sadd.s32 %s347, %s345
        %s349 = smul.addr %s348, 8
        %s350 = scalar_lea.vmem %s1, %s349
      $region48: #{tpu_custom_call.1} parent=39 // pred_fallthru
        _
      // Predicated region
      $region49: #{tpu_custom_call.1} parent=39 // pred_check
        %p351 = pneg %p107
      $region50: #{tpu_custom_call.1} parent=39 // pred_check_branch
        %353 = sbr.rel (%p351) target = $region52
      $region51: #{tpu_custom_call.1} parent=39 // pred_region
        %p354 = scmp.lt.s32.totalorder %s25, 7
        %s355 = scalar_select %p354, %s25, 7
        %p356 = scmp.lt.s32.totalorder %s24, 0
        %s357 = scalar_select %p356, %s24, 0
        %s358 = sadd.s32 %s357, %s355
        %s359 = scalar_lea.vmem %s2, %s358
      $region52: #{tpu_custom_call.1} parent=39 // pred_fallthru
        _
    $region40: #{tpu_custom_call.1} parent=5 // pred_fallthru
      _
    %p360 = scmp.le.s32.totalorder 1, %s17
    %p361 = scmp.lt.s32.totalorder %s17, 9
    %p362 = pnand %p360, %p361
    %p363 = pneg %p362
    // Predicated region
    $region53: #{tpu_custom_call.1} parent=5 // pred_check
      _
    $region54: #{tpu_custom_call.1} parent=5 // pred_check_branch
      %365 = sbr.rel (%p362) target = $region56
    $region55: #{tpu_custom_call.1} parent=5 // pred_region
      %s366 = ssub.s32 %s17, 1
      %p367 = scmp.lt.s32.totalorder %s27, 7
      %s368 = scalar_select %p367, %s27, 7
      %p369 = scmp.lt.s32.totalorder %s26, 0
      %s370 = scalar_select %p369, %s26, 0
      %s371 = smul.addr %s368, 8
      %s372 = sadd.s32 %s370, %s371
      %s373 = smul.addr %s372, 8
      %s374 = scalar_lea.vmem %s0, %s373
      %p375 = pneg %p57
      %p376 = pneg %p54
      %p377 = scmp.lt.s32.totalorder %s27, 7
      %s378 = scalar_select %p377, %s27, 7
      %p379 = scmp.lt.s32.totalorder %s26, 0
      %s380 = scalar_select %p379, %s26, 0
      %s381 = sadd.s32 %s380, %s378
      %s382 = smul.addr %s381, 8
      %s383 = scalar_lea.vmem %s1, %s382
      %p384 = pneg %p85
      %p385 = pneg %p82
      %p386 = scmp.lt.s32.totalorder %s27, 7
      %s387 = scalar_select %p386, %s27, 7
      %p388 = scmp.lt.s32.totalorder %s26, 0
      %s389 = scalar_select %p388, %s26, 0
      %s390 = sadd.s32 %s389, %s387
      %s391 = scalar_lea.vmem %s2, %s390
      %p392 = pneg %p113
      %p393 = pneg %p110
      %p394 = pneg %p134
      %p395 = pneg %p131
      %p396 = pneg %p155
      %p397 = pneg %p152
      %p398 = pneg %p176
      %p399 = pneg %p173
      %p400 = pneg %p197
      %p401 = pneg %p194
      %p402 = pneg %p218
      %p403 = pneg %p215
      %p404 = pneg %p239
      %p405 = pneg %p236
      %p406 = pneg %p267
      %p407 = pneg %p264
      %p408 = scmp.lt.s32.totalorder %s27, 7
      %s409 = scalar_select %p408, %s27, 7
      %p410 = scmp.lt.s32.totalorder %s26, 0
      %s411 = scalar_select %p410, %s26, 0
      %s412 = sadd.s32 %s411, %s409
      %s413 = smul.addr %s412, 8
      %s414 = scalar_lea.vmem %s9, %s413
      %p415 = pneg %p293
      %p416 = pneg %p290
      %p417 = scmp.lt.s32.totalorder %s26, 0
      %s418 = scalar_select %p417, %s26, 0
      %s419 = smul.addr %s418, 8
      %s420 = scalar_lea.vmem %s10, %s419
      %p421 = scmp.lt.s32.totalorder %s27, 7
      %s422 = scalar_select %p421, %s27, 7
      %p423 = scmp.lt.s32.totalorder %s26, 0
      %s424 = scalar_select %p423, %s26, 0
      %s425 = smul.addr %s422, 8
      %s426 = sadd.s32 %s424, %s425
      %s427 = smul.addr %s426, 8
      %s428 = scalar_lea.vmem %s0, %s427
      %p429 = scmp.lt.s32.totalorder %s27, 7
      %s430 = scalar_select %p429, %s27, 7
      %p431 = scmp.lt.s32.totalorder %s26, 0
      %s432 = scalar_select %p431, %s26, 0
      %s433 = sadd.s32 %s432, %s430
      %s434 = smul.addr %s433, 8
      %s435 = scalar_lea.vmem %s1, %s434
      %p436 = scmp.lt.s32.totalorder %s27, 7
      %s437 = scalar_select %p436, %s27, 7
      %p438 = scmp.lt.s32.totalorder %s26, 0
      %s439 = scalar_select %p438, %s26, 0
      %s440 = sadd.s32 %s439, %s437
      %s441 = scalar_lea.vmem %s2, %s440
      %p442 = scmp.lt.s32.totalorder %s27, 7
      %s443 = scalar_select %p442, %s27, 7
      %p444 = scmp.lt.s32.totalorder %s26, 0
      %s445 = scalar_select %p444, %s26, 0
      %s446 = sadd.s32 %s445, %s443
      %s447 = smul.addr %s446, 8
      %s448 = scalar_lea.vmem %s9, %s447
      %p449 = scmp.lt.s32.totalorder %s26, 0
      %s450 = scalar_select %p449, %s26, 0
      %s451 = smul.addr %s450, 8
      %s452 = scalar_lea.vmem %s10, %s451
      %v453 = vld [vmem:[%s435] sm:$0xff]
      %vm454 = vcmp.ne.f32.partialorder %v453, 0.0
      %v455 = vsel %vm454, 1, 0
      %v456 = vcvt.s32.f32 %v455
      %v457 = vld [vmem:[%s441] sm:$0x1]
      %vm458 = vcmp.ne.f32.partialorder %v457, 0.0
      %v459 = vld [vmem:[%s3] sm:$0xff]
      %v460 = vld [vmem:[%s3 + $0x8] sm:$0xff]
      %v461 = vld [vmem:[%s3 + $0x10] sm:$0xff]
      %v462 = vld [vmem:[%s3 + $0x18] sm:$0xff]
      %v463 = vld [vmem:[%s3 + $0x20] sm:$0xff]
      %v464 = vld [vmem:[%s3 + $0x28] sm:$0xff]
      %v465 = vld [vmem:[%s3 + $0x30] sm:$0xff]
      %v466 = vld [vmem:[%s3 + $0x38] sm:$0xff]
      %v467 = vld [vmem:[%s3 + $0x40] sm:$0xff]
      %v468 = vld [vmem:[%s3 + $0x48] sm:$0xff]
      %v469 = vld [vmem:[%s3 + $0x50] sm:$0xff]
      %v470 = vld [vmem:[%s3 + $0x58] sm:$0xff]
      %v471 = vld [vmem:[%s4] sm:$0xff]
      %v472 = vld [vmem:[%s4 + $0x8] sm:$0xff]
      %v473 = vld [vmem:[%s4 + $0x10] sm:$0xff]
      %v474 = vld [vmem:[%s4 + $0x18] sm:$0xff]
      %v475 = vld [vmem:[%s4 + $0x20] sm:$0xff]
      %v476 = vld [vmem:[%s4 + $0x28] sm:$0xff]
      %v477 = vld [vmem:[%s4 + $0x30] sm:$0xff]
      %v478 = vld [vmem:[%s4 + $0x38] sm:$0xff]
      %v479 = vld [vmem:[%s4 + $0x40] sm:$0xff]
      %v480 = vld [vmem:[%s4 + $0x48] sm:$0xff]
      %v481 = vld [vmem:[%s4 + $0x50] sm:$0xff]
      %v482 = vld [vmem:[%s4 + $0x58] sm:$0xff]
      %v483 = vld [vmem:[%s428] sm:$0xff]
      %485 = vset.pattern.permute.xlu0 0
      %486 = vperm.xlu0 %485, %v471
      %v487 = vpop.permute.xlu0 %486
      %490 = vset.pattern.permute.xlu0 0
      %491 = vperm.xlu0 %490, %v472
      %v492 = vpop.permute.xlu0 %491
      %495 = vset.pattern.permute.xlu0 0
      %496 = vperm.xlu0 %495, %v473
      %v497 = vpop.permute.xlu0 %496
      %500 = vset.pattern.permute.xlu0 0
      %501 = vperm.xlu0 %500, %v474
      %v502 = vpop.permute.xlu0 %501
      %505 = vset.pattern.permute.xlu0 0
      %506 = vperm.xlu0 %505, %v475
      %v507 = vpop.permute.xlu0 %506
      %510 = vset.pattern.permute.xlu0 0
      %511 = vperm.xlu0 %510, %v476
      %v512 = vpop.permute.xlu0 %511
      %515 = vset.pattern.permute.xlu0 0
      %516 = vperm.xlu0 %515, %v477
      %v517 = vpop.permute.xlu0 %516
      %520 = vset.pattern.permute.xlu0 0
      %521 = vperm.xlu0 %520, %v478
      %v522 = vpop.permute.xlu0 %521
      %525 = vset.pattern.permute.xlu0 0
      %526 = vperm.xlu0 %525, %v479
      %v527 = vpop.permute.xlu0 %526
      %530 = vset.pattern.permute.xlu0 0
      %531 = vperm.xlu0 %530, %v480
      %v532 = vpop.permute.xlu0 %531
      %535 = vset.pattern.permute.xlu0 0
      %536 = vperm.xlu0 %535, %v481
      %v537 = vpop.permute.xlu0 %536
      %540 = vset.pattern.permute.xlu0 0
      %541 = vperm.xlu0 %540, %v482
      %v542 = vpop.permute.xlu0 %541
      %vm544 = vcmask 64512
      %v546 = vsel %vm544, %v459, 0
      %v549 = vsel %vm544, %v460, 0
      %v552 = vsel %vm544, %v461, 0
      %v555 = vsel %vm544, %v462, 0
      %v558 = vsel %vm544, %v463, 0
      %v561 = vsel %vm544, %v464, 0
      %v564 = vsel %vm544, %v465, 0
      %v567 = vsel %vm544, %v466, 0
      %v570 = vsel %vm544, %v467, 0
      %v573 = vsel %vm544, %v468, 0
      %v576 = vsel %vm544, %v469, 0
      %v579 = vsel %vm544, %v470, 0
      %581 = vmatpush.msra.mxu0 0.0
      %582 = vmatpush.msra.mxu0 0.0
      %583 = vmatpush.msra.mxu0 0.0
      %584 = vmatpush.msra.mxu0 0.0
      %585 = vmatpush.msra.mxu0 0.0
      %586 = vmatpush.msra.mxu0 0.0
      %587 = vmatpush.msra.mxu0 0.0
      %588 = vmatpush.msra.mxu0 0.0
      %589 = vmatpush.msra.mxu0 0.0
      %590 = vmatpush.msra.mxu0 0.0
      %591 = vmatpush.msra.mxu0 0.0
      %592 = vmatpush.msra.mxu0 0.0
      %593 = vmatpush.msra.mxu0 0.0
      %594 = vmatpush.msra.mxu0 0.0
      %595 = vmatpush.msra.mxu0 0.0
      %596 = vmatpush.msra.mxu0 %v483
      %597 = vmatmul.f32.gmra.mxu0 %v546
      %v598 = vpop.f32.mrf.mxu0
      %v599 = vadd.f32 %v487, %v598
      %600 = vmatmul.f32.gmra.mxu0 %v549
      %v601 = vpop.f32.mrf.mxu0
      %v602 = vadd.f32 %v492, %v601
      %603 = vmatmul.f32.gmra.mxu0 %v552
      %v604 = vpop.f32.mrf.mxu0
      %v605 = vadd.f32 %v497, %v604
      %606 = vmatmul.f32.gmra.mxu0 %v555
      %v607 = vpop.f32.mrf.mxu0
      %v608 = vadd.f32 %v502, %v607
      %609 = vmatmul.f32.gmra.mxu0 %v558
      %v610 = vpop.f32.mrf.mxu0
      %v611 = vadd.f32 %v507, %v610
      %612 = vmatmul.f32.gmra.mxu0 %v561
      %v613 = vpop.f32.mrf.mxu0
      %v614 = vadd.f32 %v512, %v613
      %615 = vmatmul.f32.gmra.mxu0 %v564
      %v616 = vpop.f32.mrf.mxu0
      %v617 = vadd.f32 %v517, %v616
      %618 = vmatmul.f32.gmra.mxu0 %v567
      %v619 = vpop.f32.mrf.mxu0
      %v620 = vadd.f32 %v522, %v619
      %621 = vmatmul.f32.gmra.mxu0 %v570
      %v622 = vpop.f32.mrf.mxu0
      %v623 = vadd.f32 %v527, %v622
      %624 = vmatmul.f32.gmra.mxu0 %v573
      %v625 = vpop.f32.mrf.mxu0
      %v626 = vadd.f32 %v532, %v625
      %627 = vmatmul.f32.gmra.mxu0 %v576
      %v628 = vpop.f32.mrf.mxu0
      %v629 = vadd.f32 %v537, %v628
      %630 = vmatmul.f32.gmra.mxu0 %v579
      %v631 = vpop.f32.mrf.mxu0
      %v632 = vadd.f32 %v542, %v631
      %633 = vdwg.mxu0
      %vm634 = vcmask 15360
      %635 = vst.msk [vmem:[#allocation2] sm:$0xff] %vm634, %v599
      %636 = vst.msk [vmem:[#allocation2 + $0x8] sm:$0xff] %vm634, %v602
      %637 = vst.msk [vmem:[#allocation2 + $0x10] sm:$0xff] %vm634, %v605
      %638 = vst.msk [vmem:[#allocation2 + $0x18] sm:$0xff] %vm634, %v608
      %639 = vst.msk [vmem:[#allocation2 + $0x20] sm:$0xff] %vm634, %v611
      %640 = vst.msk [vmem:[#allocation2 + $0x28] sm:$0xff] %vm634, %v614
      %641 = vst.msk [vmem:[#allocation2 + $0x30] sm:$0xff] %vm634, %v617
      %642 = vst.msk [vmem:[#allocation2 + $0x38] sm:$0xff] %vm634, %v620
      %643 = vst.msk [vmem:[#allocation2 + $0x40] sm:$0xff] %vm634, %v623
      %644 = vst.msk [vmem:[#allocation2 + $0x48] sm:$0xff] %vm634, %v626
      %645 = vst.msk [vmem:[#allocation2 + $0x50] sm:$0xff] %vm634, %v629
      %646 = vst.msk [vmem:[#allocation2 + $0x58] sm:$0xff] %vm634, %v632
      %s647 = scalar_lea.vmem %s428, 8
      %v648 = vld [vmem:[%s647] sm:$0xff]
      %649 = vmatpush.msra.mxu0 0.0
      %650 = vmatpush.msra.mxu0 0.0
      %651 = vmatpush.msra.mxu0 0.0
      %652 = vmatpush.msra.mxu0 0.0
      %653 = vmatpush.msra.mxu0 0.0
      %654 = vmatpush.msra.mxu0 0.0
      %655 = vmatpush.msra.mxu0 0.0
      %656 = vmatpush.msra.mxu0 0.0
      %657 = vmatpush.msra.mxu0 0.0
      %658 = vmatpush.msra.mxu0 0.0
      %659 = vmatpush.msra.mxu0 0.0
      %660 = vmatpush.msra.mxu0 0.0
      %661 = vmatpush.msra.mxu0 0.0
      %662 = vmatpush.msra.mxu0 0.0
      %663 = vmatpush.msra.mxu0 0.0
      %664 = vmatpush.msra.mxu0 %v648
      %665 = vmatmul.f32.gmra.mxu0 %v546
      %v666 = vpop.f32.mrf.mxu0
      %v667 = vadd.f32 %v487, %v666
      %668 = vmatmul.f32.gmra.mxu0 %v549
      %v669 = vpop.f32.mrf.mxu0
      %v670 = vadd.f32 %v492, %v669
      %671 = vmatmul.f32.gmra.mxu0 %v552
      %v672 = vpop.f32.mrf.mxu0
      %v673 = vadd.f32 %v497, %v672
      %674 = vmatmul.f32.gmra.mxu0 %v555
      %v675 = vpop.f32.mrf.mxu0
      %v676 = vadd.f32 %v502, %v675
      %677 = vmatmul.f32.gmra.mxu0 %v558
      %v678 = vpop.f32.mrf.mxu0
      %v679 = vadd.f32 %v507, %v678
      %680 = vmatmul.f32.gmra.mxu0 %v561
      %v681 = vpop.f32.mrf.mxu0
      %v682 = vadd.f32 %v512, %v681
      %683 = vmatmul.f32.gmra.mxu0 %v564
      %v684 = vpop.f32.mrf.mxu0
      %v685 = vadd.f32 %v517, %v684
      %686 = vmatmul.f32.gmra.mxu0 %v567
      %v687 = vpop.f32.mrf.mxu0
      %v688 = vadd.f32 %v522, %v687
      %689 = vmatmul.f32.gmra.mxu0 %v570
      %v690 = vpop.f32.mrf.mxu0
      %v691 = vadd.f32 %v527, %v690
      %692 = vmatmul.f32.gmra.mxu0 %v573
      %v693 = vpop.f32.mrf.mxu0
      %v694 = vadd.f32 %v532, %v693
      %695 = vmatmul.f32.gmra.mxu0 %v576
      %v696 = vpop.f32.mrf.mxu0
      %v697 = vadd.f32 %v537, %v696
      %698 = vmatmul.f32.gmra.mxu0 %v579
      %v699 = vpop.f32.mrf.mxu0
      %v700 = vadd.f32 %v542, %v699
      %701 = vdwg.mxu0
      %s702 = scalar_lea.vmem [#allocation2], 96
      %703 = vst.msk [vmem:[%s702] sm:$0xff] %vm634, %v667
      %704 = vst.msk [vmem:[%s702 + $0x8] sm:$0xff] %vm634, %v670
      %705 = vst.msk [vmem:[%s702 + $0x10] sm:$0xff] %vm634, %v673
      %706 = vst.msk [vmem:[%s702 + $0x18] sm:$0xff] %vm634, %v676
      %707 = vst.msk [vmem:[%s702 + $0x20] sm:$0xff] %vm634, %v679
      %708 = vst.msk [vmem:[%s702 + $0x28] sm:$0xff] %vm634, %v682
      %709 = vst.msk [vmem:[%s702 + $0x30] sm:$0xff] %vm634, %v685
      %710 = vst.msk [vmem:[%s702 + $0x38] sm:$0xff] %vm634, %v688
      %711 = vst.msk [vmem:[%s702 + $0x40] sm:$0xff] %vm634, %v691
      %712 = vst.msk [vmem:[%s702 + $0x48] sm:$0xff] %vm634, %v694
      %713 = vst.msk [vmem:[%s702 + $0x50] sm:$0xff] %vm634, %v697
      %714 = vst.msk [vmem:[%s702 + $0x58] sm:$0xff] %vm634, %v700
      %s715 = scalar_lea.vmem %s428, 16
      %v716 = vld [vmem:[%s715] sm:$0xff]
      %717 = vmatpush.msra.mxu0 0.0
      %718 = vmatpush.msra.mxu0 0.0
      %719 = vmatpush.msra.mxu0 0.0
      %720 = vmatpush.msra.mxu0 0.0
      %721 = vmatpush.msra.mxu0 0.0
      %722 = vmatpush.msra.mxu0 0.0
      %723 = vmatpush.msra.mxu0 0.0
      %724 = vmatpush.msra.mxu0 0.0
      %725 = vmatpush.msra.mxu0 0.0
      %726 = vmatpush.msra.mxu0 0.0
      %727 = vmatpush.msra.mxu0 0.0
      %728 = vmatpush.msra.mxu0 0.0
      %729 = vmatpush.msra.mxu0 0.0
      %730 = vmatpush.msra.mxu0 0.0
      %731 = vmatpush.msra.mxu0 0.0
      %732 = vmatpush.msra.mxu0 %v716
      %733 = vmatmul.f32.gmra.mxu0 %v546
      %v734 = vpop.f32.mrf.mxu0
      %v735 = vadd.f32 %v487, %v734
      %736 = vmatmul.f32.gmra.mxu0 %v549
      %v737 = vpop.f32.mrf.mxu0
      %v738 = vadd.f32 %v492, %v737
      %739 = vmatmul.f32.gmra.mxu0 %v552
      %v740 = vpop.f32.mrf.mxu0
      %v741 = vadd.f32 %v497, %v740
      %742 = vmatmul.f32.gmra.mxu0 %v555
      %v743 = vpop.f32.mrf.mxu0
      %v744 = vadd.f32 %v502, %v743
      %745 = vmatmul.f32.gmra.mxu0 %v558
      %v746 = vpop.f32.mrf.mxu0
      %v747 = vadd.f32 %v507, %v746
      %748 = vmatmul.f32.gmra.mxu0 %v561
      %v749 = vpop.f32.mrf.mxu0
      %v750 = vadd.f32 %v512, %v749
      %751 = vmatmul.f32.gmra.mxu0 %v564
      %v752 = vpop.f32.mrf.mxu0
      %v753 = vadd.f32 %v517, %v752
      %754 = vmatmul.f32.gmra.mxu0 %v567
      %v755 = vpop.f32.mrf.mxu0
      %v756 = vadd.f32 %v522, %v755
      %757 = vmatmul.f32.gmra.mxu0 %v570
      %v758 = vpop.f32.mrf.mxu0
      %v759 = vadd.f32 %v527, %v758
      %760 = vmatmul.f32.gmra.mxu0 %v573
      %v761 = vpop.f32.mrf.mxu0
      %v762 = vadd.f32 %v532, %v761
      %763 = vmatmul.f32.gmra.mxu0 %v576
      %v764 = vpop.f32.mrf.mxu0
      %v765 = vadd.f32 %v537, %v764
      %766 = vmatmul.f32.gmra.mxu0 %v579
      %v767 = vpop.f32.mrf.mxu0
      %v768 = vadd.f32 %v542, %v767
      %769 = vdwg.mxu0
      %s770 = scalar_lea.vmem [#allocation2], 192
      %771 = vst.msk [vmem:[%s770] sm:$0xff] %vm634, %v735
      %772 = vst.msk [vmem:[%s770 + $0x8] sm:$0xff] %vm634, %v738
      %773 = vst.msk [vmem:[%s770 + $0x10] sm:$0xff] %vm634, %v741
      %774 = vst.msk [vmem:[%s770 + $0x18] sm:$0xff] %vm634, %v744
      %775 = vst.msk [vmem:[%s770 + $0x20] sm:$0xff] %vm634, %v747
      %776 = vst.msk [vmem:[%s770 + $0x28] sm:$0xff] %vm634, %v750
      %777 = vst.msk [vmem:[%s770 + $0x30] sm:$0xff] %vm634, %v753
      %778 = vst.msk [vmem:[%s770 + $0x38] sm:$0xff] %vm634, %v756
      %779 = vst.msk [vmem:[%s770 + $0x40] sm:$0xff] %vm634, %v759
      %780 = vst.msk [vmem:[%s770 + $0x48] sm:$0xff] %vm634, %v762
      %781 = vst.msk [vmem:[%s770 + $0x50] sm:$0xff] %vm634, %v765
      %782 = vst.msk [vmem:[%s770 + $0x58] sm:$0xff] %vm634, %v768
      %s783 = scalar_lea.vmem %s428, 24
      %v784 = vld [vmem:[%s783] sm:$0xff]
      %785 = vmatpush.msra.mxu0 0.0
      %786 = vmatpush.msra.mxu0 0.0
      %787 = vmatpush.msra.mxu0 0.0
      %788 = vmatpush.msra.mxu0 0.0
      %789 = vmatpush.msra.mxu0 0.0
      %790 = vmatpush.msra.mxu0 0.0
      %791 = vmatpush.msra.mxu0 0.0
      %792 = vmatpush.msra.mxu0 0.0
      %793 = vmatpush.msra.mxu0 0.0
      %794 = vmatpush.msra.mxu0 0.0
      %795 = vmatpush.msra.mxu0 0.0
      %796 = vmatpush.msra.mxu0 0.0
      %797 = vmatpush.msra.mxu0 0.0
      %798 = vmatpush.msra.mxu0 0.0
      %799 = vmatpush.msra.mxu0 0.0
      %800 = vmatpush.msra.mxu0 %v784
      %801 = vmatmul.f32.gmra.mxu0 %v546
      %v802 = vpop.f32.mrf.mxu0
      %v803 = vadd.f32 %v487, %v802
      %804 = vmatmul.f32.gmra.mxu0 %v549
      %v805 = vpop.f32.mrf.mxu0
      %v806 = vadd.f32 %v492, %v805
      %807 = vmatmul.f32.gmra.mxu0 %v552
      %v808 = vpop.f32.mrf.mxu0
      %v809 = vadd.f32 %v497, %v808
      %810 = vmatmul.f32.gmra.mxu0 %v555
      %v811 = vpop.f32.mrf.mxu0
      %v812 = vadd.f32 %v502, %v811
      %813 = vmatmul.f32.gmra.mxu0 %v558
      %v814 = vpop.f32.mrf.mxu0
      %v815 = vadd.f32 %v507, %v814
      %816 = vmatmul.f32.gmra.mxu0 %v561
      %v817 = vpop.f32.mrf.mxu0
      %v818 = vadd.f32 %v512, %v817
      %819 = vmatmul.f32.gmra.mxu0 %v564
      %v820 = vpop.f32.mrf.mxu0
      %v821 = vadd.f32 %v517, %v820
      %822 = vmatmul.f32.gmra.mxu0 %v567
      %v823 = vpop.f32.mrf.mxu0
      %v824 = vadd.f32 %v522, %v823
      %825 = vmatmul.f32.gmra.mxu0 %v570
      %v826 = vpop.f32.mrf.mxu0
      %v827 = vadd.f32 %v527, %v826
      %828 = vmatmul.f32.gmra.mxu0 %v573
      %v829 = vpop.f32.mrf.mxu0
      %v830 = vadd.f32 %v532, %v829
      %831 = vmatmul.f32.gmra.mxu0 %v576
      %v832 = vpop.f32.mrf.mxu0
      %v833 = vadd.f32 %v537, %v832
      %834 = vmatmul.f32.gmra.mxu0 %v579
      %v835 = vpop.f32.mrf.mxu0
      %v836 = vadd.f32 %v542, %v835
      %837 = vdwg.mxu0
      %s838 = scalar_lea.vmem [#allocation2], 288
      %839 = vst.msk [vmem:[%s838] sm:$0xff] %vm634, %v803
      %840 = vst.msk [vmem:[%s838 + $0x8] sm:$0xff] %vm634, %v806
      %841 = vst.msk [vmem:[%s838 + $0x10] sm:$0xff] %vm634, %v809
      %842 = vst.msk [vmem:[%s838 + $0x18] sm:$0xff] %vm634, %v812
      %843 = vst.msk [vmem:[%s838 + $0x20] sm:$0xff] %vm634, %v815
      %844 = vst.msk [vmem:[%s838 + $0x28] sm:$0xff] %vm634, %v818
      %845 = vst.msk [vmem:[%s838 + $0x30] sm:$0xff] %vm634, %v821
      %846 = vst.msk [vmem:[%s838 + $0x38] sm:$0xff] %vm634, %v824
      %847 = vst.msk [vmem:[%s838 + $0x40] sm:$0xff] %vm634, %v827
      %848 = vst.msk [vmem:[%s838 + $0x48] sm:$0xff] %vm634, %v830
      %849 = vst.msk [vmem:[%s838 + $0x50] sm:$0xff] %vm634, %v833
      %850 = vst.msk [vmem:[%s838 + $0x58] sm:$0xff] %vm634, %v836
      %s851 = scalar_lea.vmem %s428, 32
      %v852 = vld [vmem:[%s851] sm:$0xff]
      %853 = vmatpush.msra.mxu0 0.0
      %854 = vmatpush.msra.mxu0 0.0
      %855 = vmatpush.msra.mxu0 0.0
      %856 = vmatpush.msra.mxu0 0.0
      %857 = vmatpush.msra.mxu0 0.0
      %858 = vmatpush.msra.mxu0 0.0
      %859 = vmatpush.msra.mxu0 0.0
      %860 = vmatpush.msra.mxu0 0.0
      %861 = vmatpush.msra.mxu0 0.0
      %862 = vmatpush.msra.mxu0 0.0
      %863 = vmatpush.msra.mxu0 0.0
      %864 = vmatpush.msra.mxu0 0.0
      %865 = vmatpush.msra.mxu0 0.0
      %866 = vmatpush.msra.mxu0 0.0
      %867 = vmatpush.msra.mxu0 0.0
      %868 = vmatpush.msra.mxu0 %v852
      %869 = vmatmul.f32.gmra.mxu0 %v546
      %v870 = vpop.f32.mrf.mxu0
      %v871 = vadd.f32 %v487, %v870
      %872 = vmatmul.f32.gmra.mxu0 %v549
      %v873 = vpop.f32.mrf.mxu0
      %v874 = vadd.f32 %v492, %v873
      %875 = vmatmul.f32.gmra.mxu0 %v552
      %v876 = vpop.f32.mrf.mxu0
      %v877 = vadd.f32 %v497, %v876
      %878 = vmatmul.f32.gmra.mxu0 %v555
      %v879 = vpop.f32.mrf.mxu0
      %v880 = vadd.f32 %v502, %v879
      %881 = vmatmul.f32.gmra.mxu0 %v558
      %v882 = vpop.f32.mrf.mxu0
      %v883 = vadd.f32 %v507, %v882
      %884 = vmatmul.f32.gmra.mxu0 %v561
      %v885 = vpop.f32.mrf.mxu0
      %v886 = vadd.f32 %v512, %v885
      %887 = vmatmul.f32.gmra.mxu0 %v564
      %v888 = vpop.f32.mrf.mxu0
      %v889 = vadd.f32 %v517, %v888
      %890 = vmatmul.f32.gmra.mxu0 %v567
      %v891 = vpop.f32.mrf.mxu0
      %v892 = vadd.f32 %v522, %v891
      %893 = vmatmul.f32.gmra.mxu0 %v570
      %v894 = vpop.f32.mrf.mxu0
      %v895 = vadd.f32 %v527, %v894
      %896 = vmatmul.f32.gmra.mxu0 %v573
      %v897 = vpop.f32.mrf.mxu0
      %v898 = vadd.f32 %v532, %v897
      %899 = vmatmul.f32.gmra.mxu0 %v576
      %v900 = vpop.f32.mrf.mxu0
      %v901 = vadd.f32 %v537, %v900
      %902 = vmatmul.f32.gmra.mxu0 %v579
      %v903 = vpop.f32.mrf.mxu0
      %v904 = vadd.f32 %v542, %v903
      %905 = vdwg.mxu0
      %s906 = scalar_lea.vmem [#allocation2], 384
      %907 = vst.msk [vmem:[%s906] sm:$0xff] %vm634, %v871
      %908 = vst.msk [vmem:[%s906 + $0x8] sm:$0xff] %vm634, %v874
      %909 = vst.msk [vmem:[%s906 + $0x10] sm:$0xff] %vm634, %v877
      %910 = vst.msk [vmem:[%s906 + $0x18] sm:$0xff] %vm634, %v880
      %911 = vst.msk [vmem:[%s906 + $0x20] sm:$0xff] %vm634, %v883
      %912 = vst.msk [vmem:[%s906 + $0x28] sm:$0xff] %vm634, %v886
      %913 = vst.msk [vmem:[%s906 + $0x30] sm:$0xff] %vm634, %v889
      %914 = vst.msk [vmem:[%s906 + $0x38] sm:$0xff] %vm634, %v892
      %915 = vst.msk [vmem:[%s906 + $0x40] sm:$0xff] %vm634, %v895
      %916 = vst.msk [vmem:[%s906 + $0x48] sm:$0xff] %vm634, %v898
      %917 = vst.msk [vmem:[%s906 + $0x50] sm:$0xff] %vm634, %v901
      %918 = vst.msk [vmem:[%s906 + $0x58] sm:$0xff] %vm634, %v904
      %s919 = scalar_lea.vmem %s428, 40
      %v920 = vld [vmem:[%s919] sm:$0xff]
      %921 = vmatpush.msra.mxu0 0.0
      %922 = vmatpush.msra.mxu0 0.0
      %923 = vmatpush.msra.mxu0 0.0
      %924 = vmatpush.msra.mxu0 0.0
      %925 = vmatpush.msra.mxu0 0.0
      %926 = vmatpush.msra.mxu0 0.0
      %927 = vmatpush.msra.mxu0 0.0
      %928 = vmatpush.msra.mxu0 0.0
      %929 = vmatpush.msra.mxu0 0.0
      %930 = vmatpush.msra.mxu0 0.0
      %931 = vmatpush.msra.mxu0 0.0
      %932 = vmatpush.msra.mxu0 0.0
      %933 = vmatpush.msra.mxu0 0.0
      %934 = vmatpush.msra.mxu0 0.0
      %935 = vmatpush.msra.mxu0 0.0
      %936 = vmatpush.msra.mxu0 %v920
      %937 = vmatmul.f32.gmra.mxu0 %v546
      %v938 = vpop.f32.mrf.mxu0
      %v939 = vadd.f32 %v487, %v938
      %940 = vmatmul.f32.gmra.mxu0 %v549
      %v941 = vpop.f32.mrf.mxu0
      %v942 = vadd.f32 %v492, %v941
      %943 = vmatmul.f32.gmra.mxu0 %v552
      %v944 = vpop.f32.mrf.mxu0
      %v945 = vadd.f32 %v497, %v944
      %946 = vmatmul.f32.gmra.mxu0 %v555
      %v947 = vpop.f32.mrf.mxu0
      %v948 = vadd.f32 %v502, %v947
      %949 = vmatmul.f32.gmra.mxu0 %v558
      %v950 = vpop.f32.mrf.mxu0
      %v951 = vadd.f32 %v507, %v950
      %952 = vmatmul.f32.gmra.mxu0 %v561
      %v953 = vpop.f32.mrf.mxu0
      %v954 = vadd.f32 %v512, %v953
      %955 = vmatmul.f32.gmra.mxu0 %v564
      %v956 = vpop.f32.mrf.mxu0
      %v957 = vadd.f32 %v517, %v956
      %958 = vmatmul.f32.gmra.mxu0 %v567
      %v959 = vpop.f32.mrf.mxu0
      %v960 = vadd.f32 %v522, %v959
      %961 = vmatmul.f32.gmra.mxu0 %v570
      %v962 = vpop.f32.mrf.mxu0
      %v963 = vadd.f32 %v527, %v962
      %964 = vmatmul.f32.gmra.mxu0 %v573
      %v965 = vpop.f32.mrf.mxu0
      %v966 = vadd.f32 %v532, %v965
      %967 = vmatmul.f32.gmra.mxu0 %v576
      %v968 = vpop.f32.mrf.mxu0
      %v969 = vadd.f32 %v537, %v968
      %970 = vmatmul.f32.gmra.mxu0 %v579
      %v971 = vpop.f32.mrf.mxu0
      %v972 = vadd.f32 %v542, %v971
      %973 = vdwg.mxu0
      %s974 = scalar_lea.vmem [#allocation2], 480
      %975 = vst.msk [vmem:[%s974] sm:$0xff] %vm634, %v939
      %976 = vst.msk [vmem:[%s974 + $0x8] sm:$0xff] %vm634, %v942
      %977 = vst.msk [vmem:[%s974 + $0x10] sm:$0xff] %vm634, %v945
      %978 = vst.msk [vmem:[%s974 + $0x18] sm:$0xff] %vm634, %v948
      %979 = vst.msk [vmem:[%s974 + $0x20] sm:$0xff] %vm634, %v951
      %980 = vst.msk [vmem:[%s974 + $0x28] sm:$0xff] %vm634, %v954
      %981 = vst.msk [vmem:[%s974 + $0x30] sm:$0xff] %vm634, %v957
      %982 = vst.msk [vmem:[%s974 + $0x38] sm:$0xff] %vm634, %v960
      %983 = vst.msk [vmem:[%s974 + $0x40] sm:$0xff] %vm634, %v963
      %984 = vst.msk [vmem:[%s974 + $0x48] sm:$0xff] %vm634, %v966
      %985 = vst.msk [vmem:[%s974 + $0x50] sm:$0xff] %vm634, %v969
      %986 = vst.msk [vmem:[%s974 + $0x58] sm:$0xff] %vm634, %v972
      %s987 = scalar_lea.vmem %s428, 48
      %v988 = vld [vmem:[%s987] sm:$0xff]
      %989 = vmatpush.msra.mxu0 0.0
      %990 = vmatpush.msra.mxu0 0.0
      %991 = vmatpush.msra.mxu0 0.0
      %992 = vmatpush.msra.mxu0 0.0
      %993 = vmatpush.msra.mxu0 0.0
      %994 = vmatpush.msra.mxu0 0.0
      %995 = vmatpush.msra.mxu0 0.0
      %996 = vmatpush.msra.mxu0 0.0
      %997 = vmatpush.msra.mxu0 0.0
      %998 = vmatpush.msra.mxu0 0.0
      %999 = vmatpush.msra.mxu0 0.0
      %1000 = vmatpush.msra.mxu0 0.0
      %1001 = vmatpush.msra.mxu0 0.0
      %1002 = vmatpush.msra.mxu0 0.0
      %1003 = vmatpush.msra.mxu0 0.0
      %1004 = vmatpush.msra.mxu0 %v988
      %1005 = vmatmul.f32.gmra.mxu0 %v546
      %v1006 = vpop.f32.mrf.mxu0
      %v1007 = vadd.f32 %v487, %v1006
      %1008 = vmatmul.f32.gmra.mxu0 %v549
      %v1009 = vpop.f32.mrf.mxu0
      %v1010 = vadd.f32 %v492, %v1009
      %1011 = vmatmul.f32.gmra.mxu0 %v552
      %v1012 = vpop.f32.mrf.mxu0
      %v1013 = vadd.f32 %v497, %v1012
      %1014 = vmatmul.f32.gmra.mxu0 %v555
      %v1015 = vpop.f32.mrf.mxu0
      %v1016 = vadd.f32 %v502, %v1015
      %1017 = vmatmul.f32.gmra.mxu0 %v558
      %v1018 = vpop.f32.mrf.mxu0
      %v1019 = vadd.f32 %v507, %v1018
      %1020 = vmatmul.f32.gmra.mxu0 %v561
      %v1021 = vpop.f32.mrf.mxu0
      %v1022 = vadd.f32 %v512, %v1021
      %1023 = vmatmul.f32.gmra.mxu0 %v564
      %v1024 = vpop.f32.mrf.mxu0
      %v1025 = vadd.f32 %v517, %v1024
      %1026 = vmatmul.f32.gmra.mxu0 %v567
      %v1027 = vpop.f32.mrf.mxu0
      %v1028 = vadd.f32 %v522, %v1027
      %1029 = vmatmul.f32.gmra.mxu0 %v570
      %v1030 = vpop.f32.mrf.mxu0
      %v1031 = vadd.f32 %v527, %v1030
      %1032 = vmatmul.f32.gmra.mxu0 %v573
      %v1033 = vpop.f32.mrf.mxu0
      %v1034 = vadd.f32 %v532, %v1033
      %1035 = vmatmul.f32.gmra.mxu0 %v576
      %v1036 = vpop.f32.mrf.mxu0
      %v1037 = vadd.f32 %v537, %v1036
      %1038 = vmatmul.f32.gmra.mxu0 %v579
      %v1039 = vpop.f32.mrf.mxu0
      %v1040 = vadd.f32 %v542, %v1039
      %1041 = vdwg.mxu0
      %s1042 = scalar_lea.vmem [#allocation2], 576
      %1043 = vst.msk [vmem:[%s1042] sm:$0xff] %vm634, %v1007
      %1044 = vst.msk [vmem:[%s1042 + $0x8] sm:$0xff] %vm634, %v1010
      %1045 = vst.msk [vmem:[%s1042 + $0x10] sm:$0xff] %vm634, %v1013
      %1046 = vst.msk [vmem:[%s1042 + $0x18] sm:$0xff] %vm634, %v1016
      %1047 = vst.msk [vmem:[%s1042 + $0x20] sm:$0xff] %vm634, %v1019
      %1048 = vst.msk [vmem:[%s1042 + $0x28] sm:$0xff] %vm634, %v1022
      %1049 = vst.msk [vmem:[%s1042 + $0x30] sm:$0xff] %vm634, %v1025
      %1050 = vst.msk [vmem:[%s1042 + $0x38] sm:$0xff] %vm634, %v1028
      %1051 = vst.msk [vmem:[%s1042 + $0x40] sm:$0xff] %vm634, %v1031
      %1052 = vst.msk [vmem:[%s1042 + $0x48] sm:$0xff] %vm634, %v1034
      %1053 = vst.msk [vmem:[%s1042 + $0x50] sm:$0xff] %vm634, %v1037
      %1054 = vst.msk [vmem:[%s1042 + $0x58] sm:$0xff] %vm634, %v1040
      %s1055 = scalar_lea.vmem %s428, 56
      %v1056 = vld [vmem:[%s1055] sm:$0xff]
      %1057 = vmatpush.msra.mxu0 0.0
      %1058 = vmatpush.msra.mxu0 0.0
      %1059 = vmatpush.msra.mxu0 0.0
      %1060 = vmatpush.msra.mxu0 0.0
      %1061 = vmatpush.msra.mxu0 0.0
      %1062 = vmatpush.msra.mxu0 0.0
      %1063 = vmatpush.msra.mxu0 0.0
      %1064 = vmatpush.msra.mxu0 0.0
      %1065 = vmatpush.msra.mxu0 0.0
      %1066 = vmatpush.msra.mxu0 0.0
      %1067 = vmatpush.msra.mxu0 0.0
      %1068 = vmatpush.msra.mxu0 0.0
      %1069 = vmatpush.msra.mxu0 0.0
      %1070 = vmatpush.msra.mxu0 0.0
      %1071 = vmatpush.msra.mxu0 0.0
      %1072 = vmatpush.msra.mxu0 %v1056
      %1073 = vmatmul.f32.gmra.mxu0 %v546
      %v1074 = vpop.f32.mrf.mxu0
      %v1075 = vadd.f32 %v487, %v1074
      %1076 = vmatmul.f32.gmra.mxu0 %v549
      %v1077 = vpop.f32.mrf.mxu0
      %v1078 = vadd.f32 %v492, %v1077
      %1079 = vmatmul.f32.gmra.mxu0 %v552
      %v1080 = vpop.f32.mrf.mxu0
      %v1081 = vadd.f32 %v497, %v1080
      %1082 = vmatmul.f32.gmra.mxu0 %v555
      %v1083 = vpop.f32.mrf.mxu0
      %v1084 = vadd.f32 %v502, %v1083
      %1085 = vmatmul.f32.gmra.mxu0 %v558
      %v1086 = vpop.f32.mrf.mxu0
      %v1087 = vadd.f32 %v507, %v1086
      %1088 = vmatmul.f32.gmra.mxu0 %v561
      %v1089 = vpop.f32.mrf.mxu0
      %v1090 = vadd.f32 %v512, %v1089
      %1091 = vmatmul.f32.gmra.mxu0 %v564
      %v1092 = vpop.f32.mrf.mxu0
      %v1093 = vadd.f32 %v517, %v1092
      %1094 = vmatmul.f32.gmra.mxu0 %v567
      %v1095 = vpop.f32.mrf.mxu0
      %v1096 = vadd.f32 %v522, %v1095
      %1097 = vmatmul.f32.gmra.mxu0 %v570
      %v1098 = vpop.f32.mrf.mxu0
      %v1099 = vadd.f32 %v527, %v1098
      %1100 = vmatmul.f32.gmra.mxu0 %v573
      %v1101 = vpop.f32.mrf.mxu0
      %v1102 = vadd.f32 %v532, %v1101
      %1103 = vmatmul.f32.gmra.mxu0 %v576
      %v1104 = vpop.f32.mrf.mxu0
      %v1105 = vadd.f32 %v537, %v1104
      %1106 = vmatmul.f32.gmra.mxu0 %v579
      %v1107 = vpop.f32.mrf.mxu0
      %v1108 = vadd.f32 %v542, %v1107
      %1109 = vdwg.mxu0
      %s1110 = scalar_lea.vmem [#allocation2], 672
      %1111 = vst.msk [vmem:[%s1110] sm:$0xff] %vm634, %v1075
      %1112 = vst.msk [vmem:[%s1110 + $0x8] sm:$0xff] %vm634, %v1078
      %1113 = vst.msk [vmem:[%s1110 + $0x10] sm:$0xff] %vm634, %v1081
      %1114 = vst.msk [vmem:[%s1110 + $0x18] sm:$0xff] %vm634, %v1084
      %1115 = vst.msk [vmem:[%s1110 + $0x20] sm:$0xff] %vm634, %v1087
      %1116 = vst.msk [vmem:[%s1110 + $0x28] sm:$0xff] %vm634, %v1090
      %1117 = vst.msk [vmem:[%s1110 + $0x30] sm:$0xff] %vm634, %v1093
      %1118 = vst.msk [vmem:[%s1110 + $0x38] sm:$0xff] %vm634, %v1096
      %1119 = vst.msk [vmem:[%s1110 + $0x40] sm:$0xff] %vm634, %v1099
      %1120 = vst.msk [vmem:[%s1110 + $0x48] sm:$0xff] %vm634, %v1102
      %1121 = vst.msk [vmem:[%s1110 + $0x50] sm:$0xff] %vm634, %v1105
      %1122 = vst.msk [vmem:[%s1110 + $0x58] sm:$0xff] %vm634, %v1108
      %v1123 = vld [vmem:[#allocation2] sm:$0xff]
      %v1124 = vld [vmem:[#allocation2 + $0x8] sm:$0xff]
      %v1125 = vld [vmem:[#allocation2 + $0x10] sm:$0xff]
      %v1126 = vld [vmem:[#allocation2 + $0x18] sm:$0xff]
      %v1127 = vld [vmem:[#allocation2 + $0x20] sm:$0xff]
      %v1128 = vld [vmem:[#allocation2 + $0x28] sm:$0xff]
      %v1129 = vld [vmem:[#allocation2 + $0x30] sm:$0xff]
      %v1130 = vld [vmem:[#allocation2 + $0x38] sm:$0xff]
      %v1131 = vmul.f32 %v1123, %v1127
      %v1132 = vmul.f32 %v1124, %v1128
      %v1133 = vmul.f32 %v1125, %v1129
      %v1134 = vmul.f32 %v1126, %v1130
      %v1135 = vsel %vm634, %v1131, 0.0
      %v1136 = vsel %vm634, %v1132, 0.0
      %v1137 = vadd.f32 %v1135, %v1136
      %v1138 = vsel %vm634, %v1133, 0.0
      %v1139 = vadd.f32 %v1137, %v1138
      %v1140 = vsel %vm634, %v1134, 0.0
      %v1141 = vadd.f32 %v1139, %v1140
      %v1142 = vrot.slane %v1141, 4
      %v1143 = vadd.f32 %v1141, %v1142
      %v1144 = vrot.slane %v1143, 2
      %v1145 = vadd.f32 %v1143, %v1144
      %v1146 = vrot.slane %v1145, 1
      %v1147 = vadd.f32 %v1145, %v1146
      %v1148 = vmul.f32 %v1147, 0.17677669
      %v1149 = vsel %vm454, %v1148, -1e+09
      %v1150 = vld [vmem:[%s702 + $0x20] sm:$0xff]
      %v1151 = vld [vmem:[%s702 + $0x28] sm:$0xff]
      %v1152 = vld [vmem:[%s702 + $0x30] sm:$0xff]
      %v1153 = vld [vmem:[%s702 + $0x38] sm:$0xff]
      %v1154 = vmul.f32 %v1123, %v1150
      %v1155 = vmul.f32 %v1124, %v1151
      %v1156 = vmul.f32 %v1125, %v1152
      %v1157 = vmul.f32 %v1126, %v1153
      %v1158 = vsel %vm634, %v1154, 0.0
      %v1159 = vsel %vm634, %v1155, 0.0
      %v1160 = vadd.f32 %v1158, %v1159
      %v1161 = vsel %vm634, %v1156, 0.0
      %v1162 = vadd.f32 %v1160, %v1161
      %v1163 = vsel %vm634, %v1157, 0.0
      %v1164 = vadd.f32 %v1162, %v1163
      %v1165 = vrot.slane %v1164, 4
      %v1166 = vadd.f32 %v1164, %v1165
      %v1167 = vrot.slane %v1166, 2
      %v1168 = vadd.f32 %v1166, %v1167
      %v1169 = vrot.slane %v1168, 1
      %v1170 = vadd.f32 %v1168, %v1169
      %v1171 = vmul.f32 %v1170, 0.17677669
      %v1172 = vrot.slane %v455, 1
      %vm1173 = vcmp.ne.s32.totalorder %v1172, 0
      %vm1174 = vmand %vm454, %vm1173
      %v1175 = vsel %vm1174, %v1171, -1e+09
      %v1176 = vld [vmem:[%s770 + $0x20] sm:$0xff]
      %v1177 = vld [vmem:[%s770 + $0x28] sm:$0xff]
      %v1178 = vld [vmem:[%s770 + $0x30] sm:$0xff]
      %v1179 = vld [vmem:[%s770 + $0x38] sm:$0xff]
      %v1180 = vmul.f32 %v1123, %v1176
      %v1181 = vmul.f32 %v1124, %v1177
      %v1182 = vmul.f32 %v1125, %v1178
      %v1183 = vmul.f32 %v1126, %v1179
      %v1184 = vsel %vm634, %v1180, 0.0
      %v1185 = vsel %vm634, %v1181, 0.0
      %v1186 = vadd.f32 %v1184, %v1185
      %v1187 = vsel %vm634, %v1182, 0.0
      %v1188 = vadd.f32 %v1186, %v1187
      %v1189 = vsel %vm634, %v1183, 0.0
      %v1190 = vadd.f32 %v1188, %v1189
      %v1191 = vrot.slane %v1190, 4
      %v1192 = vadd.f32 %v1190, %v1191
      %v1193 = vrot.slane %v1192, 2
      %v1194 = vadd.f32 %v1192, %v1193
      %v1195 = vrot.slane %v1194, 1
      %v1196 = vadd.f32 %v1194, %v1195
      %v1197 = vmul.f32 %v1196, 0.17677669
      %v1198 = vrot.slane %v455, 2
      %vm1199 = vcmp.ne.s32.totalorder %v1198, 0
      %vm1200 = vmand %vm454, %vm1199
      %v1201 = vsel %vm1200, %v1197, -1e+09
      %v1202 = vld [vmem:[%s838 + $0x20] sm:$0xff]
      %v1203 = vld [vmem:[%s838 + $0x28] sm:$0xff]
      %v1204 = vld [vmem:[%s838 + $0x30] sm:$0xff]
      %v1205 = vld [vmem:[%s838 + $0x38] sm:$0xff]
      %v1206 = vmul.f32 %v1123, %v1202
      %v1207 = vmul.f32 %v1124, %v1203
      %v1208 = vmul.f32 %v1125, %v1204
      %v1209 = vmul.f32 %v1126, %v1205
      %v1210 = vsel %vm634, %v1206, 0.0
      %v1211 = vsel %vm634, %v1207, 0.0
      %v1212 = vadd.f32 %v1210, %v1211
      %v1213 = vsel %vm634, %v1208, 0.0
      %v1214 = vadd.f32 %v1212, %v1213
      %v1215 = vsel %vm634, %v1209, 0.0
      %v1216 = vadd.f32 %v1214, %v1215
      %v1217 = vrot.slane %v1216, 4
      %v1218 = vadd.f32 %v1216, %v1217
      %v1219 = vrot.slane %v1218, 2
      %v1220 = vadd.f32 %v1218, %v1219
      %v1221 = vrot.slane %v1220, 1
      %v1222 = vadd.f32 %v1220, %v1221
      %v1223 = vmul.f32 %v1222, 0.17677669
      %v1224 = vrot.slane %v455, 3
      %vm1225 = vcmp.ne.s32.totalorder %v1224, 0
      %vm1226 = vmand %vm454, %vm1225
      %v1227 = vsel %vm1226, %v1223, -1e+09
      %v1228 = vld [vmem:[%s906 + $0x20] sm:$0xff]
      %v1229 = vld [vmem:[%s906 + $0x28] sm:$0xff]
      %v1230 = vld [vmem:[%s906 + $0x30] sm:$0xff]
      %v1231 = vld [vmem:[%s906 + $0x38] sm:$0xff]
      %v1232 = vmul.f32 %v1123, %v1228
      %v1233 = vmul.f32 %v1124, %v1229
      %v1234 = vmul.f32 %v1125, %v1230
      %v1235 = vmul.f32 %v1126, %v1231
      %v1236 = vsel %vm634, %v1232, 0.0
      %v1237 = vsel %vm634, %v1233, 0.0
      %v1238 = vadd.f32 %v1236, %v1237
      %v1239 = vsel %vm634, %v1234, 0.0
      %v1240 = vadd.f32 %v1238, %v1239
      %v1241 = vsel %vm634, %v1235, 0.0
      %v1242 = vadd.f32 %v1240, %v1241
      %v1243 = vrot.slane %v1242, 4
      %v1244 = vadd.f32 %v1242, %v1243
      %v1245 = vrot.slane %v1244, 2
      %v1246 = vadd.f32 %v1244, %v1245
      %v1247 = vrot.slane %v1246, 1
      %v1248 = vadd.f32 %v1246, %v1247
      %v1249 = vmul.f32 %v1248, 0.17677669
      %v1250 = vrot.slane %v455, 4
      %vm1251 = vcmp.ne.s32.totalorder %v1250, 0
      %vm1252 = vmand %vm454, %vm1251
      %v1253 = vsel %vm1252, %v1249, -1e+09
      %v1254 = vld [vmem:[%s974 + $0x20] sm:$0xff]
      %v1255 = vld [vmem:[%s974 + $0x28] sm:$0xff]
      %v1256 = vld [vmem:[%s974 + $0x30] sm:$0xff]
      %v1257 = vld [vmem:[%s974 + $0x38] sm:$0xff]
      %v1258 = vmul.f32 %v1123, %v1254
      %v1259 = vmul.f32 %v1124, %v1255
      %v1260 = vmul.f32 %v1125, %v1256
      %v1261 = vmul.f32 %v1126, %v1257
      %v1262 = vsel %vm634, %v1258, 0.0
      %v1263 = vsel %vm634, %v1259, 0.0
      %v1264 = vadd.f32 %v1262, %v1263
      %v1265 = vsel %vm634, %v1260, 0.0
      %v1266 = vadd.f32 %v1264, %v1265
      %v1267 = vsel %vm634, %v1261, 0.0
      %v1268 = vadd.f32 %v1266, %v1267
      %v1269 = vrot.slane %v1268, 4
      %v1270 = vadd.f32 %v1268, %v1269
      %v1271 = vrot.slane %v1270, 2
      %v1272 = vadd.f32 %v1270, %v1271
      %v1273 = vrot.slane %v1272, 1
      %v1274 = vadd.f32 %v1272, %v1273
      %v1275 = vmul.f32 %v1274, 0.17677669
      %v1276 = vrot.slane %v455, 5
      %vm1277 = vcmp.ne.s32.totalorder %v1276, 0
      %vm1278 = vmand %vm454, %vm1277
      %v1279 = vsel %vm1278, %v1275, -1e+09
      %v1280 = vld [vmem:[%s1042 + $0x20] sm:$0xff]
      %v1281 = vld [vmem:[%s1042 + $0x28] sm:$0xff]
      %v1282 = vld [vmem:[%s1042 + $0x30] sm:$0xff]
      %v1283 = vld [vmem:[%s1042 + $0x38] sm:$0xff]
      %v1284 = vmul.f32 %v1123, %v1280
      %v1285 = vmul.f32 %v1124, %v1281
      %v1286 = vmul.f32 %v1125, %v1282
      %v1287 = vmul.f32 %v1126, %v1283
      %v1288 = vsel %vm634, %v1284, 0.0
      %v1289 = vsel %vm634, %v1285, 0.0
      %v1290 = vadd.f32 %v1288, %v1289
      %v1291 = vsel %vm634, %v1286, 0.0
      %v1292 = vadd.f32 %v1290, %v1291
      %v1293 = vsel %vm634, %v1287, 0.0
      %v1294 = vadd.f32 %v1292, %v1293
      %v1295 = vrot.slane %v1294, 4
      %v1296 = vadd.f32 %v1294, %v1295
      %v1297 = vrot.slane %v1296, 2
      %v1298 = vadd.f32 %v1296, %v1297
      %v1299 = vrot.slane %v1298, 1
      %v1300 = vadd.f32 %v1298, %v1299
      %v1301 = vmul.f32 %v1300, 0.17677669
      %v1302 = vrot.slane %v455, 6
      %vm1303 = vcmp.ne.s32.totalorder %v1302, 0
      %vm1304 = vmand %vm454, %vm1303
      %v1305 = vsel %vm1304, %v1301, -1e+09
      %v1306 = vld [vmem:[%s1110 + $0x20] sm:$0xff]
      %v1307 = vld [vmem:[%s1110 + $0x28] sm:$0xff]
      %v1308 = vld [vmem:[%s1110 + $0x30] sm:$0xff]
      %v1309 = vld [vmem:[%s1110 + $0x38] sm:$0xff]
      %v1310 = vmul.f32 %v1123, %v1306
      %v1311 = vmul.f32 %v1124, %v1307
      %v1312 = vmul.f32 %v1125, %v1308
      %v1313 = vmul.f32 %v1126, %v1309
      %v1314 = vsel %vm634, %v1310, 0.0
      %v1315 = vsel %vm634, %v1311, 0.0
      %v1316 = vadd.f32 %v1314, %v1315
      %v1317 = vsel %vm634, %v1312, 0.0
      %v1318 = vadd.f32 %v1316, %v1317
      %v1319 = vsel %vm634, %v1313, 0.0
      %v1320 = vadd.f32 %v1318, %v1319
      %v1321 = vrot.slane %v1320, 4
      %v1322 = vadd.f32 %v1320, %v1321
      %v1323 = vrot.slane %v1322, 2
      %v1324 = vadd.f32 %v1322, %v1323
      %v1325 = vrot.slane %v1324, 1
      %v1326 = vadd.f32 %v1324, %v1325
      %v1327 = vmul.f32 %v1326, 0.17677669
      %v1328 = vrot.slane %v455, 7
      %vm1329 = vcmp.ne.s32.totalorder %v1328, 0
      %vm1330 = vmand %vm454, %vm1329
      %v1331 = vsel %vm1330, %v1327, -1e+09
      %v1332 = vmax.f32 %v1149, %v1175
      %v1333 = vmax.f32 %v1332, %v1201
      %v1334 = vmax.f32 %v1333, %v1227
      %v1335 = vmax.f32 %v1334, %v1253
      %v1336 = vmax.f32 %v1335, %v1279
      %v1337 = vmax.f32 %v1336, %v1305
      %v1338 = vmax.f32 %v1337, %v1331
      %v1339 = vsub.f32 %v1149, %v1338
      %v1340 = vmul.f32 %v1339, 1.442695
      %v1341 = vpow.pop %v1340
      %v1342 = vsub.f32 %v1175, %v1338
      %v1343 = vmul.f32 %v1342, 1.442695
      %v1344 = vpow.pop %v1343
      %v1345 = vsub.f32 %v1201, %v1338
      %v1346 = vmul.f32 %v1345, 1.442695
      %v1347 = vpow.pop %v1346
      %v1348 = vsub.f32 %v1227, %v1338
      %v1349 = vmul.f32 %v1348, 1.442695
      %v1350 = vpow.pop %v1349
      %v1351 = vsub.f32 %v1253, %v1338
      %v1352 = vmul.f32 %v1351, 1.442695
      %v1353 = vpow.pop %v1352
      %v1354 = vsub.f32 %v1279, %v1338
      %v1355 = vmul.f32 %v1354, 1.442695
      %v1356 = vpow.pop %v1355
      %v1357 = vsub.f32 %v1305, %v1338
      %v1358 = vmul.f32 %v1357, 1.442695
      %v1359 = vpow.pop %v1358
      %v1360 = vsub.f32 %v1331, %v1338
      %v1361 = vmul.f32 %v1360, 1.442695
      %v1362 = vpow.pop %v1361
      %v1363 = vadd.f32 %v1341, %v1344
      %v1364 = vadd.f32 %v1363, %v1347
      %v1365 = vadd.f32 %v1364, %v1350
      %v1366 = vadd.f32 %v1365, %v1353
      %v1367 = vadd.f32 %v1366, %v1356
      %v1368 = vadd.f32 %v1367, %v1359
      %v1369 = vadd.f32 %v1368, %v1362
      %v1370 = vrcp.pop %v1369
      %v1371 = vmul.f32 %v1369, %v1370
      %v1372 = vsub.f32 1.0, %v1371
      %v1373 = vmul.f32 %v1370, %v1372
      %v1374 = vadd.f32 %v1370, %v1373
      %vm1375 = vweird.f32 %v1369
      %vm1376 = vweird.f32 %v1370
      %vm1377 = vmor %vm1375, %vm1376
      %v1378 = vsel %vm1377, %v1370, %v1374
      %v1379 = vand.u32 2147483647, %v1369
      %vm1380 = vcmp.eq.f32.partialorder %v1379, 8.507059e+37
      %v1381 = vand.u32 %v1369, 2147483648
      %v1382 = vor.u32 1.1754944e-38, %v1381
      %v1383 = vsel %vm1380, %v1382, %v1378
      %v1384 = vmul.f32 1.0, %v1383
      %v1385 = vmul.f32 %v1341, %v1384
      %v1386 = vld [vmem:[#allocation2 + $0x40] sm:$0xff]
      %v1387 = vld [vmem:[#allocation2 + $0x48] sm:$0xff]
      %v1388 = vld [vmem:[#allocation2 + $0x50] sm:$0xff]
      %v1389 = vld [vmem:[#allocation2 + $0x58] sm:$0xff]
      %v1390 = vperm.slane %v1385, 0
      %v1391 = vmul.f32 %v1390, %v1386
      %v1392 = vmul.f32 %v1390, %v1387
      %v1393 = vmul.f32 %v1390, %v1388
      %v1394 = vmul.f32 %v1390, %v1389
      %v1395 = vadd.f32 %v1391, 0.0
      %v1396 = vadd.f32 %v1392, 0.0
      %v1397 = vadd.f32 %v1393, 0.0
      %v1398 = vadd.f32 %v1394, 0.0
      %v1399 = vmul.f32 %v1344, %v1384
      %v1400 = vld [vmem:[%s702 + $0x40] sm:$0xff]
      %v1401 = vld [vmem:[%s702 + $0x48] sm:$0xff]
      %v1402 = vld [vmem:[%s702 + $0x50] sm:$0xff]
      %v1403 = vld [vmem:[%s702 + $0x58] sm:$0xff]
      %v1404 = vperm.slane %v1399, 0
      %v1405 = vmul.f32 %v1404, %v1400
      %v1406 = vmul.f32 %v1404, %v1401
      %v1407 = vmul.f32 %v1404, %v1402
      %v1408 = vmul.f32 %v1404, %v1403
      %v1409 = vadd.f32 %v1395, %v1405
      %v1410 = vadd.f32 %v1396, %v1406
      %v1411 = vadd.f32 %v1397, %v1407
      %v1412 = vadd.f32 %v1398, %v1408
      %v1413 = vmul.f32 %v1347, %v1384
      %v1414 = vld [vmem:[%s770 + $0x40] sm:$0xff]
      %v1415 = vld [vmem:[%s770 + $0x48] sm:$0xff]
      %v1416 = vld [vmem:[%s770 + $0x50] sm:$0xff]
      %v1417 = vld [vmem:[%s770 + $0x58] sm:$0xff]
      %v1418 = vperm.slane %v1413, 0
      %v1419 = vmul.f32 %v1418, %v1414
      %v1420 = vmul.f32 %v1418, %v1415
      %v1421 = vmul.f32 %v1418, %v1416
      %v1422 = vmul.f32 %v1418, %v1417
      %v1423 = vadd.f32 %v1409, %v1419
      %v1424 = vadd.f32 %v1410, %v1420
      %v1425 = vadd.f32 %v1411, %v1421
      %v1426 = vadd.f32 %v1412, %v1422
      %v1427 = vmul.f32 %v1350, %v1384
      %v1428 = vld [vmem:[%s838 + $0x40] sm:$0xff]
      %v1429 = vld [vmem:[%s838 + $0x48] sm:$0xff]
      %v1430 = vld [vmem:[%s838 + $0x50] sm:$0xff]
      %v1431 = vld [vmem:[%s838 + $0x58] sm:$0xff]
      %v1432 = vperm.slane %v1427, 0
      %v1433 = vmul.f32 %v1432, %v1428
      %v1434 = vmul.f32 %v1432, %v1429
      %v1435 = vmul.f32 %v1432, %v1430
      %v1436 = vmul.f32 %v1432, %v1431
      %v1437 = vadd.f32 %v1423, %v1433
      %v1438 = vadd.f32 %v1424, %v1434
      %v1439 = vadd.f32 %v1425, %v1435
      %v1440 = vadd.f32 %v1426, %v1436
      %v1441 = vmul.f32 %v1353, %v1384
      %v1442 = vld [vmem:[%s906 + $0x40] sm:$0xff]
      %v1443 = vld [vmem:[%s906 + $0x48] sm:$0xff]
      %v1444 = vld [vmem:[%s906 + $0x50] sm:$0xff]
      %v1445 = vld [vmem:[%s906 + $0x58] sm:$0xff]
      %v1446 = vperm.slane %v1441, 0
      %v1447 = vmul.f32 %v1446, %v1442
      %v1448 = vmul.f32 %v1446, %v1443
      %v1449 = vmul.f32 %v1446, %v1444
      %v1450 = vmul.f32 %v1446, %v1445
      %v1451 = vadd.f32 %v1437, %v1447
      %v1452 = vadd.f32 %v1438, %v1448
      %v1453 = vadd.f32 %v1439, %v1449
      %v1454 = vadd.f32 %v1440, %v1450
      %v1455 = vmul.f32 %v1356, %v1384
      %v1456 = vld [vmem:[%s974 + $0x40] sm:$0xff]
      %v1457 = vld [vmem:[%s974 + $0x48] sm:$0xff]
      %v1458 = vld [vmem:[%s974 + $0x50] sm:$0xff]
      %v1459 = vld [vmem:[%s974 + $0x58] sm:$0xff]
      %v1460 = vperm.slane %v1455, 0
      %v1461 = vmul.f32 %v1460, %v1456
      %v1462 = vmul.f32 %v1460, %v1457
      %v1463 = vmul.f32 %v1460, %v1458
      %v1464 = vmul.f32 %v1460, %v1459
      %v1465 = vadd.f32 %v1451, %v1461
      %v1466 = vadd.f32 %v1452, %v1462
      %v1467 = vadd.f32 %v1453, %v1463
      %v1468 = vadd.f32 %v1454, %v1464
      %v1469 = vmul.f32 %v1359, %v1384
      %v1470 = vld [vmem:[%s1042 + $0x40] sm:$0xff]
      %v1471 = vld [vmem:[%s1042 + $0x48] sm:$0xff]
      %v1472 = vld [vmem:[%s1042 + $0x50] sm:$0xff]
      %v1473 = vld [vmem:[%s1042 + $0x58] sm:$0xff]
      %v1474 = vperm.slane %v1469, 0
      %v1475 = vmul.f32 %v1474, %v1470
      %v1476 = vmul.f32 %v1474, %v1471
      %v1477 = vmul.f32 %v1474, %v1472
      %v1478 = vmul.f32 %v1474, %v1473
      %v1479 = vadd.f32 %v1465, %v1475
      %v1480 = vadd.f32 %v1466, %v1476
      %v1481 = vadd.f32 %v1467, %v1477
      %v1482 = vadd.f32 %v1468, %v1478
      %v1483 = vmul.f32 %v1362, %v1384
      %v1484 = vld [vmem:[%s1110 + $0x40] sm:$0xff]
      %v1485 = vld [vmem:[%s1110 + $0x48] sm:$0xff]
      %v1486 = vld [vmem:[%s1110 + $0x50] sm:$0xff]
      %v1487 = vld [vmem:[%s1110 + $0x58] sm:$0xff]
      %v1488 = vperm.slane %v1483, 0
      %v1489 = vmul.f32 %v1488, %v1484
      %v1490 = vmul.f32 %v1488, %v1485
      %v1491 = vmul.f32 %v1488, %v1486
      %v1492 = vmul.f32 %v1488, %v1487
      %v1493 = vadd.f32 %v1479, %v1489
      %v1494 = vadd.f32 %v1480, %v1490
      %v1495 = vadd.f32 %v1481, %v1491
      %v1496 = vadd.f32 %v1482, %v1492
      %1497 = vst.msk [vmem:[#allocation3] sm:$0xff] %vm634, %v1493
      %1498 = vst.msk [vmem:[#allocation3 + $0x8] sm:$0xff] %vm634, %v1494
      %1499 = vst.msk [vmem:[#allocation3 + $0x10] sm:$0xff] %vm634, %v1495
      %1500 = vst.msk [vmem:[#allocation3 + $0x18] sm:$0xff] %vm634, %v1496
      %v1501 = vld [vmem:[%s702] sm:$0xff]
      %v1502 = vld [vmem:[%s702 + $0x8] sm:$0xff]
      %v1503 = vld [vmem:[%s702 + $0x10] sm:$0xff]
      %v1504 = vld [vmem:[%s702 + $0x18] sm:$0xff]
      %v1505 = vld [vmem:[#allocation2 + $0x20] sm:$0xff]
      %v1506 = vld [vmem:[#allocation2 + $0x28] sm:$0xff]
      %v1507 = vld [vmem:[#allocation2 + $0x30] sm:$0xff]
      %v1508 = vld [vmem:[#allocation2 + $0x38] sm:$0xff]
      %v1509 = vmul.f32 %v1501, %v1505
      %v1510 = vmul.f32 %v1502, %v1506
      %v1511 = vmul.f32 %v1503, %v1507
      %v1512 = vmul.f32 %v1504, %v1508
      %v1513 = vsel %vm634, %v1509, 0.0
      %v1514 = vsel %vm634, %v1510, 0.0
      %v1515 = vadd.f32 %v1513, %v1514
      %v1516 = vsel %vm634, %v1511, 0.0
      %v1517 = vadd.f32 %v1515, %v1516
      %v1518 = vsel %vm634, %v1512, 0.0
      %v1519 = vadd.f32 %v1517, %v1518
      %v1520 = vrot.slane %v1519, 4
      %v1521 = vadd.f32 %v1519, %v1520
      %v1522 = vrot.slane %v1521, 2
      %v1523 = vadd.f32 %v1521, %v1522
      %v1524 = vrot.slane %v1523, 1
      %v1525 = vadd.f32 %v1523, %v1524
      %v1526 = vmul.f32 %v1525, 0.17677669
      %v1527 = vsel %vm1174, %v1526, -1e+09
      %v1528 = vld [vmem:[%s702 + $0x20] sm:$0xff]
      %v1529 = vld [vmem:[%s702 + $0x28] sm:$0xff]
      %v1530 = vld [vmem:[%s702 + $0x30] sm:$0xff]
      %v1531 = vld [vmem:[%s702 + $0x38] sm:$0xff]
      %v1532 = vmul.f32 %v1501, %v1528
      %v1533 = vmul.f32 %v1502, %v1529
      %v1534 = vmul.f32 %v1503, %v1530
      %v1535 = vmul.f32 %v1504, %v1531
      %v1536 = vsel %vm634, %v1532, 0.0
      %v1537 = vsel %vm634, %v1533, 0.0
      %v1538 = vadd.f32 %v1536, %v1537
      %v1539 = vsel %vm634, %v1534, 0.0
      %v1540 = vadd.f32 %v1538, %v1539
      %v1541 = vsel %vm634, %v1535, 0.0
      %v1542 = vadd.f32 %v1540, %v1541
      %v1543 = vrot.slane %v1542, 4
      %v1544 = vadd.f32 %v1542, %v1543
      %v1545 = vrot.slane %v1544, 2
      %v1546 = vadd.f32 %v1544, %v1545
      %v1547 = vrot.slane %v1546, 1
      %v1548 = vadd.f32 %v1546, %v1547
      %v1549 = vmul.f32 %v1548, 0.17677669
      %v1550 = vsel %vm454, %v1549, -1e+09
      %v1551 = vld [vmem:[%s770 + $0x20] sm:$0xff]
      %v1552 = vld [vmem:[%s770 + $0x28] sm:$0xff]
      %v1553 = vld [vmem:[%s770 + $0x30] sm:$0xff]
      %v1554 = vld [vmem:[%s770 + $0x38] sm:$0xff]
      %v1555 = vmul.f32 %v1501, %v1551
      %v1556 = vmul.f32 %v1502, %v1552
      %v1557 = vmul.f32 %v1503, %v1553
      %v1558 = vmul.f32 %v1504, %v1554
      %v1559 = vsel %vm634, %v1555, 0.0
      %v1560 = vsel %vm634, %v1556, 0.0
      %v1561 = vadd.f32 %v1559, %v1560
      %v1562 = vsel %vm634, %v1557, 0.0
      %v1563 = vadd.f32 %v1561, %v1562
      %v1564 = vsel %vm634, %v1558, 0.0
      %v1565 = vadd.f32 %v1563, %v1564
      %v1566 = vrot.slane %v1565, 4
      %v1567 = vadd.f32 %v1565, %v1566
      %v1568 = vrot.slane %v1567, 2
      %v1569 = vadd.f32 %v1567, %v1568
      %v1570 = vrot.slane %v1569, 1
      %v1571 = vadd.f32 %v1569, %v1570
      %v1572 = vmul.f32 %v1571, 0.17677669
      %v1573 = vsel %vm1174, %v1572, -1e+09
      %v1574 = vld [vmem:[%s838 + $0x20] sm:$0xff]
      %v1575 = vld [vmem:[%s838 + $0x28] sm:$0xff]
      %v1576 = vld [vmem:[%s838 + $0x30] sm:$0xff]
      %v1577 = vld [vmem:[%s838 + $0x38] sm:$0xff]
      %v1578 = vmul.f32 %v1501, %v1574
      %v1579 = vmul.f32 %v1502, %v1575
      %v1580 = vmul.f32 %v1503, %v1576
      %v1581 = vmul.f32 %v1504, %v1577
      %v1582 = vsel %vm634, %v1578, 0.0
      %v1583 = vsel %vm634, %v1579, 0.0
      %v1584 = vadd.f32 %v1582, %v1583
      %v1585 = vsel %vm634, %v1580, 0.0
      %v1586 = vadd.f32 %v1584, %v1585
      %v1587 = vsel %vm634, %v1581, 0.0
      %v1588 = vadd.f32 %v1586, %v1587
      %v1589 = vrot.slane %v1588, 4
      %v1590 = vadd.f32 %v1588, %v1589
      %v1591 = vrot.slane %v1590, 2
      %v1592 = vadd.f32 %v1590, %v1591
      %v1593 = vrot.slane %v1592, 1
      %v1594 = vadd.f32 %v1592, %v1593
      %v1595 = vmul.f32 %v1594, 0.17677669
      %v1596 = vsel %vm1200, %v1595, -1e+09
      %v1597 = vld [vmem:[%s906 + $0x20] sm:$0xff]
      %v1598 = vld [vmem:[%s906 + $0x28] sm:$0xff]
      %v1599 = vld [vmem:[%s906 + $0x30] sm:$0xff]
      %v1600 = vld [vmem:[%s906 + $0x38] sm:$0xff]
      %v1601 = vmul.f32 %v1501, %v1597
      %v1602 = vmul.f32 %v1502, %v1598
      %v1603 = vmul.f32 %v1503, %v1599
      %v1604 = vmul.f32 %v1504, %v1600
      %v1605 = vsel %vm634, %v1601, 0.0
      %v1606 = vsel %vm634, %v1602, 0.0
      %v1607 = vadd.f32 %v1605, %v1606
      %v1608 = vsel %vm634, %v1603, 0.0
      %v1609 = vadd.f32 %v1607, %v1608
      %v1610 = vsel %vm634, %v1604, 0.0
      %v1611 = vadd.f32 %v1609, %v1610
      %v1612 = vrot.slane %v1611, 4
      %v1613 = vadd.f32 %v1611, %v1612
      %v1614 = vrot.slane %v1613, 2
      %v1615 = vadd.f32 %v1613, %v1614
      %v1616 = vrot.slane %v1615, 1
      %v1617 = vadd.f32 %v1615, %v1616
      %v1618 = vmul.f32 %v1617, 0.17677669
      %v1619 = vsel %vm1226, %v1618, -1e+09
      %v1620 = vld [vmem:[%s974 + $0x20] sm:$0xff]
      %v1621 = vld [vmem:[%s974 + $0x28] sm:$0xff]
      %v1622 = vld [vmem:[%s974 + $0x30] sm:$0xff]
      %v1623 = vld [vmem:[%s974 + $0x38] sm:$0xff]
      %v1624 = vmul.f32 %v1501, %v1620
      %v1625 = vmul.f32 %v1502, %v1621
      %v1626 = vmul.f32 %v1503, %v1622
      %v1627 = vmul.f32 %v1504, %v1623
      %v1628 = vsel %vm634, %v1624, 0.0
      %v1629 = vsel %vm634, %v1625, 0.0
      %v1630 = vadd.f32 %v1628, %v1629
      %v1631 = vsel %vm634, %v1626, 0.0
      %v1632 = vadd.f32 %v1630, %v1631
      %v1633 = vsel %vm634, %v1627, 0.0
      %v1634 = vadd.f32 %v1632, %v1633
      %v1635 = vrot.slane %v1634, 4
      %v1636 = vadd.f32 %v1634, %v1635
      %v1637 = vrot.slane %v1636, 2
      %v1638 = vadd.f32 %v1636, %v1637
      %v1639 = vrot.slane %v1638, 1
      %v1640 = vadd.f32 %v1638, %v1639
      %v1641 = vmul.f32 %v1640, 0.17677669
      %v1642 = vsel %vm1252, %v1641, -1e+09
      %v1643 = vld [vmem:[%s1042 + $0x20] sm:$0xff]
      %v1644 = vld [vmem:[%s1042 + $0x28] sm:$0xff]
      %v1645 = vld [vmem:[%s1042 + $0x30] sm:$0xff]
      %v1646 = vld [vmem:[%s1042 + $0x38] sm:$0xff]
      %v1647 = vmul.f32 %v1501, %v1643
      %v1648 = vmul.f32 %v1502, %v1644
      %v1649 = vmul.f32 %v1503, %v1645
      %v1650 = vmul.f32 %v1504, %v1646
      %v1651 = vsel %vm634, %v1647, 0.0
      %v1652 = vsel %vm634, %v1648, 0.0
      %v1653 = vadd.f32 %v1651, %v1652
      %v1654 = vsel %vm634, %v1649, 0.0
      %v1655 = vadd.f32 %v1653, %v1654
      %v1656 = vsel %vm634, %v1650, 0.0
      %v1657 = vadd.f32 %v1655, %v1656
      %v1658 = vrot.slane %v1657, 4
      %v1659 = vadd.f32 %v1657, %v1658
      %v1660 = vrot.slane %v1659, 2
      %v1661 = vadd.f32 %v1659, %v1660
      %v1662 = vrot.slane %v1661, 1
      %v1663 = vadd.f32 %v1661, %v1662
      %v1664 = vmul.f32 %v1663, 0.17677669
      %v1665 = vsel %vm1278, %v1664, -1e+09
      %v1666 = vld [vmem:[%s1110 + $0x20] sm:$0xff]
      %v1667 = vld [vmem:[%s1110 + $0x28] sm:$0xff]
      %v1668 = vld [vmem:[%s1110 + $0x30] sm:$0xff]
      %v1669 = vld [vmem:[%s1110 + $0x38] sm:$0xff]
      %v1670 = vmul.f32 %v1501, %v1666
      %v1671 = vmul.f32 %v1502, %v1667
      %v1672 = vmul.f32 %v1503, %v1668
      %v1673 = vmul.f32 %v1504, %v1669
      %v1674 = vsel %vm634, %v1670, 0.0
      %v1675 = vsel %vm634, %v1671, 0.0
      %v1676 = vadd.f32 %v1674, %v1675
      %v1677 = vsel %vm634, %v1672, 0.0
      %v1678 = vadd.f32 %v1676, %v1677
      %v1679 = vsel %vm634, %v1673, 0.0
      %v1680 = vadd.f32 %v1678, %v1679
      %v1681 = vrot.slane %v1680, 4
      %v1682 = vadd.f32 %v1680, %v1681
      %v1683 = vrot.slane %v1682, 2
      %v1684 = vadd.f32 %v1682, %v1683
      %v1685 = vrot.slane %v1684, 1
      %v1686 = vadd.f32 %v1684, %v1685
      %v1687 = vmul.f32 %v1686, 0.17677669
      %v1688 = vsel %vm1304, %v1687, -1e+09
      %v1690 = vrot.slane %v1550, 1
      %v1692 = vmax.f32 %v1527, %v1690
      %v1694 = vrot.slane %v1573, 1
      %v1696 = vmax.f32 %v1692, %v1694
      %v1698 = vrot.slane %v1596, 1
      %v1700 = vmax.f32 %v1696, %v1698
      %v1702 = vrot.slane %v1619, 1
      %v1704 = vmax.f32 %v1700, %v1702
      %v1706 = vrot.slane %v1642, 1
      %v1708 = vmax.f32 %v1704, %v1706
      %v1710 = vrot.slane %v1665, 1
      %v1712 = vmax.f32 %v1708, %v1710
      %v1714 = vrot.slane %v1688, 1
      %v1716 = vmax.f32 %v1712, %v1714
      %v1717 = vsub.f32 %v1527, %v1716
      %v1718 = vmul.f32 %v1717, 1.442695
      %v1719 = vpow.pop %v1718
      %v1721 = vrot.slane %v1716, 7
      %v1723 = vsub.f32 %v1550, %v1721
      %v1724 = vmul.f32 %v1723, 1.442695
      %v1725 = vpow.pop %v1724
      %v1726 = vsub.f32 %v1573, %v1721
      %v1727 = vmul.f32 %v1726, 1.442695
      %v1728 = vpow.pop %v1727
      %v1729 = vsub.f32 %v1596, %v1721
      %v1730 = vmul.f32 %v1729, 1.442695
      %v1731 = vpow.pop %v1730
      %v1732 = vsub.f32 %v1619, %v1721
      %v1733 = vmul.f32 %v1732, 1.442695
      %v1734 = vpow.pop %v1733
      %v1735 = vsub.f32 %v1642, %v1721
      %v1736 = vmul.f32 %v1735, 1.442695
      %v1737 = vpow.pop %v1736
      %v1738 = vsub.f32 %v1665, %v1721
      %v1739 = vmul.f32 %v1738, 1.442695
      %v1740 = vpow.pop %v1739
      %v1741 = vsub.f32 %v1688, %v1721
      %v1742 = vmul.f32 %v1741, 1.442695
      %v1743 = vpow.pop %v1742
      %v1745 = vrot.slane %v1725, 1
      %v1747 = vadd.f32 %v1719, %v1745
      %v1749 = vrot.slane %v1728, 1
      %v1751 = vadd.f32 %v1747, %v1749
      %v1753 = vrot.slane %v1731, 1
      %v1755 = vadd.f32 %v1751, %v1753
      %v1757 = vrot.slane %v1734, 1
      %v1759 = vadd.f32 %v1755, %v1757
      %v1761 = vrot.slane %v1737, 1
      %v1763 = vadd.f32 %v1759, %v1761
      %v1765 = vrot.slane %v1740, 1
      %v1767 = vadd.f32 %v1763, %v1765
      %v1769 = vrot.slane %v1743, 1
      %v1771 = vadd.f32 %v1767, %v1769
      %v1772 = vrcp.pop %v1771
      %v1773 = vmul.f32 %v1771, %v1772
      %v1774 = vsub.f32 1.0, %v1773
      %v1775 = vmul.f32 %v1772, %v1774
      %v1776 = vadd.f32 %v1772, %v1775
      %vm1777 = vweird.f32 %v1771
      %vm1778 = vweird.f32 %v1772
      %vm1779 = vmor %vm1777, %vm1778
      %v1780 = vsel %vm1779, %v1772, %v1776
      %v1781 = vand.u32 2147483647, %v1771
      %vm1782 = vcmp.eq.f32.partialorder %v1781, 8.507059e+37
      %v1783 = vand.u32 %v1771, 2147483648
      %v1784 = vor.u32 1.1754944e-38, %v1783
      %v1785 = vsel %vm1782, %v1784, %v1780
      %v1786 = vmul.f32 1.0, %v1785
      %v1787 = vmul.f32 %v1719, %v1786
      %v1788 = vld [vmem:[#allocation2 + $0x40] sm:$0xff]
      %v1789 = vld [vmem:[#allocation2 + $0x48] sm:$0xff]
      %v1790 = vld [vmem:[#allocation2 + $0x50] sm:$0xff]
      %v1791 = vld [vmem:[#allocation2 + $0x58] sm:$0xff]
      %v1792 = vperm.slane %v1787, 0
      %v1793 = vmul.f32 %v1792, %v1788
      %v1794 = vmul.f32 %v1792, %v1789
      %v1795 = vmul.f32 %v1792, %v1790
      %v1796 = vmul.f32 %v1792, %v1791
      %v1797 = vadd.f32 %v1793, 0.0
      %v1798 = vadd.f32 %v1794, 0.0
      %v1799 = vadd.f32 %v1795, 0.0
      %v1800 = vadd.f32 %v1796, 0.0
      %v1802 = vrot.slane %v1786, 7
      %v1804 = vmul.f32 %v1725, %v1802
      %v1805 = vld [vmem:[%s702 + $0x40] sm:$0xff]
      %v1806 = vld [vmem:[%s702 + $0x48] sm:$0xff]
      %v1807 = vld [vmem:[%s702 + $0x50] sm:$0xff]
      %v1808 = vld [vmem:[%s702 + $0x58] sm:$0xff]
      %v1809 = vperm.slane %v1804, 1
      %v1810 = vmul.f32 %v1809, %v1805
      %v1811 = vmul.f32 %v1809, %v1806
      %v1812 = vmul.f32 %v1809, %v1807
      %v1813 = vmul.f32 %v1809, %v1808
      %v1814 = vadd.f32 %v1797, %v1810
      %v1815 = vadd.f32 %v1798, %v1811
      %v1816 = vadd.f32 %v1799, %v1812
      %v1817 = vadd.f32 %v1800, %v1813
      %v1818 = vmul.f32 %v1728, %v1802
      %v1819 = vld [vmem:[%s770 + $0x40] sm:$0xff]
      %v1820 = vld [vmem:[%s770 + $0x48] sm:$0xff]
      %v1821 = vld [vmem:[%s770 + $0x50] sm:$0xff]
      %v1822 = vld [vmem:[%s770 + $0x58] sm:$0xff]
      %v1823 = vperm.slane %v1818, 1
      %v1824 = vmul.f32 %v1823, %v1819
      %v1825 = vmul.f32 %v1823, %v1820
      %v1826 = vmul.f32 %v1823, %v1821
      %v1827 = vmul.f32 %v1823, %v1822
      %v1828 = vadd.f32 %v1814, %v1824
      %v1829 = vadd.f32 %v1815, %v1825
      %v1830 = vadd.f32 %v1816, %v1826
      %v1831 = vadd.f32 %v1817, %v1827
      %v1832 = vmul.f32 %v1731, %v1802
      %v1833 = vld [vmem:[%s838 + $0x40] sm:$0xff]
      %v1834 = vld [vmem:[%s838 + $0x48] sm:$0xff]
      %v1835 = vld [vmem:[%s838 + $0x50] sm:$0xff]
      %v1836 = vld [vmem:[%s838 + $0x58] sm:$0xff]
      %v1837 = vperm.slane %v1832, 1
      %v1838 = vmul.f32 %v1837, %v1833
      %v1839 = vmul.f32 %v1837, %v1834
      %v1840 = vmul.f32 %v1837, %v1835
      %v1841 = vmul.f32 %v1837, %v1836
      %v1842 = vadd.f32 %v1828, %v1838
      %v1843 = vadd.f32 %v1829, %v1839
      %v1844 = vadd.f32 %v1830, %v1840
      %v1845 = vadd.f32 %v1831, %v1841
      %v1846 = vmul.f32 %v1734, %v1802
      %v1847 = vld [vmem:[%s906 + $0x40] sm:$0xff]
      %v1848 = vld [vmem:[%s906 + $0x48] sm:$0xff]
      %v1849 = vld [vmem:[%s906 + $0x50] sm:$0xff]
      %v1850 = vld [vmem:[%s906 + $0x58] sm:$0xff]
      %v1851 = vperm.slane %v1846, 1
      %v1852 = vmul.f32 %v1851, %v1847
      %v1853 = vmul.f32 %v1851, %v1848
      %v1854 = vmul.f32 %v1851, %v1849
      %v1855 = vmul.f32 %v1851, %v1850
      %v1856 = vadd.f32 %v1842, %v1852
      %v1857 = vadd.f32 %v1843, %v1853
      %v1858 = vadd.f32 %v1844, %v1854
      %v1859 = vadd.f32 %v1845, %v1855
      %v1860 = vmul.f32 %v1737, %v1802
      %v1861 = vld [vmem:[%s974 + $0x40] sm:$0xff]
      %v1862 = vld [vmem:[%s974 + $0x48] sm:$0xff]
      %v1863 = vld [vmem:[%s974 + $0x50] sm:$0xff]
      %v1864 = vld [vmem:[%s974 + $0x58] sm:$0xff]
      %v1865 = vperm.slane %v1860, 1
      %v1866 = vmul.f32 %v1865, %v1861
      %v1867 = vmul.f32 %v1865, %v1862
      %v1868 = vmul.f32 %v1865, %v1863
      %v1869 = vmul.f32 %v1865, %v1864
      %v1870 = vadd.f32 %v1856, %v1866
      %v1871 = vadd.f32 %v1857, %v1867
      %v1872 = vadd.f32 %v1858, %v1868
      %v1873 = vadd.f32 %v1859, %v1869
      %v1874 = vmul.f32 %v1740, %v1802
      %v1875 = vld [vmem:[%s1042 + $0x40] sm:$0xff]
      %v1876 = vld [vmem:[%s1042 + $0x48] sm:$0xff]
      %v1877 = vld [vmem:[%s1042 + $0x50] sm:$0xff]
      %v1878 = vld [vmem:[%s1042 + $0x58] sm:$0xff]
      %v1879 = vperm.slane %v1874, 1
      %v1880 = vmul.f32 %v1879, %v1875
      %v1881 = vmul.f32 %v1879, %v1876
      %v1882 = vmul.f32 %v1879, %v1877
      %v1883 = vmul.f32 %v1879, %v1878
      %v1884 = vadd.f32 %v1870, %v1880
      %v1885 = vadd.f32 %v1871, %v1881
      %v1886 = vadd.f32 %v1872, %v1882
      %v1887 = vadd.f32 %v1873, %v1883
      %v1888 = vmul.f32 %v1743, %v1802
      %v1889 = vld [vmem:[%s1110 + $0x40] sm:$0xff]
      %v1890 = vld [vmem:[%s1110 + $0x48] sm:$0xff]
      %v1891 = vld [vmem:[%s1110 + $0x50] sm:$0xff]
      %v1892 = vld [vmem:[%s1110 + $0x58] sm:$0xff]
      %v1893 = vperm.slane %v1888, 1
      %v1894 = vmul.f32 %v1893, %v1889
      %v1895 = vmul.f32 %v1893, %v1890
      %v1896 = vmul.f32 %v1893, %v1891
      %v1897 = vmul.f32 %v1893, %v1892
      %v1898 = vadd.f32 %v1884, %v1894
      %v1899 = vadd.f32 %v1885, %v1895
      %v1900 = vadd.f32 %v1886, %v1896
      %v1901 = vadd.f32 %v1887, %v1897
      %s1902 = scalar_lea.vmem [#allocation3], 32
      %1903 = vst.msk [vmem:[%s1902] sm:$0xff] %vm634, %v1898
      %1904 = vst.msk [vmem:[%s1902 + $0x8] sm:$0xff] %vm634, %v1899
      %1905 = vst.msk [vmem:[%s1902 + $0x10] sm:$0xff] %vm634, %v1900
      %1906 = vst.msk [vmem:[%s1902 + $0x18] sm:$0xff] %vm634, %v1901
      %v1907 = vld [vmem:[%s770] sm:$0xff]
      %v1908 = vld [vmem:[%s770 + $0x8] sm:$0xff]
      %v1909 = vld [vmem:[%s770 + $0x10] sm:$0xff]
      %v1910 = vld [vmem:[%s770 + $0x18] sm:$0xff]
      %v1911 = vld [vmem:[#allocation2 + $0x20] sm:$0xff]
      %v1912 = vld [vmem:[#allocation2 + $0x28] sm:$0xff]
      %v1913 = vld [vmem:[#allocation2 + $0x30] sm:$0xff]
      %v1914 = vld [vmem:[#allocation2 + $0x38] sm:$0xff]
      %v1915 = vmul.f32 %v1907, %v1911
      %v1916 = vmul.f32 %v1908, %v1912
      %v1917 = vmul.f32 %v1909, %v1913
      %v1918 = vmul.f32 %v1910, %v1914
      %v1919 = vsel %vm634, %v1915, 0.0
      %v1920 = vsel %vm634, %v1916, 0.0
      %v1921 = vadd.f32 %v1919, %v1920
      %v1922 = vsel %vm634, %v1917, 0.0
      %v1923 = vadd.f32 %v1921, %v1922
      %v1924 = vsel %vm634, %v1918, 0.0
      %v1925 = vadd.f32 %v1923, %v1924
      %v1926 = vrot.slane %v1925, 4
      %v1927 = vadd.f32 %v1925, %v1926
      %v1928 = vrot.slane %v1927, 2
      %v1929 = vadd.f32 %v1927, %v1928
      %v1930 = vrot.slane %v1929, 1
      %v1931 = vadd.f32 %v1929, %v1930
      %v1932 = vmul.f32 %v1931, 0.17677669
      %v1933 = vsel %vm1200, %v1932, -1e+09
      %v1934 = vld [vmem:[%s702 + $0x20] sm:$0xff]
      %v1935 = vld [vmem:[%s702 + $0x28] sm:$0xff]
      %v1936 = vld [vmem:[%s702 + $0x30] sm:$0xff]
      %v1937 = vld [vmem:[%s702 + $0x38] sm:$0xff]
      %v1938 = vmul.f32 %v1907, %v1934
      %v1939 = vmul.f32 %v1908, %v1935
      %v1940 = vmul.f32 %v1909, %v1936
      %v1941 = vmul.f32 %v1910, %v1937
      %v1942 = vsel %vm634, %v1938, 0.0
      %v1943 = vsel %vm634, %v1939, 0.0
      %v1944 = vadd.f32 %v1942, %v1943
      %v1945 = vsel %vm634, %v1940, 0.0
      %v1946 = vadd.f32 %v1944, %v1945
      %v1947 = vsel %vm634, %v1941, 0.0
      %v1948 = vadd.f32 %v1946, %v1947
      %v1949 = vrot.slane %v1948, 4
      %v1950 = vadd.f32 %v1948, %v1949
      %v1951 = vrot.slane %v1950, 2
      %v1952 = vadd.f32 %v1950, %v1951
      %v1953 = vrot.slane %v1952, 1
      %v1954 = vadd.f32 %v1952, %v1953
      %v1955 = vmul.f32 %v1954, 0.17677669
      %v1956 = vsel %vm1174, %v1955, -1e+09
      %v1957 = vld [vmem:[%s770 + $0x20] sm:$0xff]
      %v1958 = vld [vmem:[%s770 + $0x28] sm:$0xff]
      %v1959 = vld [vmem:[%s770 + $0x30] sm:$0xff]
      %v1960 = vld [vmem:[%s770 + $0x38] sm:$0xff]
      %v1961 = vmul.f32 %v1907, %v1957
      %v1962 = vmul.f32 %v1908, %v1958
      %v1963 = vmul.f32 %v1909, %v1959
      %v1964 = vmul.f32 %v1910, %v1960
      %v1965 = vsel %vm634, %v1961, 0.0
      %v1966 = vsel %vm634, %v1962, 0.0
      %v1967 = vadd.f32 %v1965, %v1966
      %v1968 = vsel %vm634, %v1963, 0.0
      %v1969 = vadd.f32 %v1967, %v1968
      %v1970 = vsel %vm634, %v1964, 0.0
      %v1971 = vadd.f32 %v1969, %v1970
      %v1972 = vrot.slane %v1971, 4
      %v1973 = vadd.f32 %v1971, %v1972
      %v1974 = vrot.slane %v1973, 2
      %v1975 = vadd.f32 %v1973, %v1974
      %v1976 = vrot.slane %v1975, 1
      %v1977 = vadd.f32 %v1975, %v1976
      %v1978 = vmul.f32 %v1977, 0.17677669
      %v1979 = vsel %vm454, %v1978, -1e+09
      %v1980 = vld [vmem:[%s838 + $0x20] sm:$0xff]
      %v1981 = vld [vmem:[%s838 + $0x28] sm:$0xff]
      %v1982 = vld [vmem:[%s838 + $0x30] sm:$0xff]
      %v1983 = vld [vmem:[%s838 + $0x38] sm:$0xff]
      %v1984 = vmul.f32 %v1907, %v1980
      %v1985 = vmul.f32 %v1908, %v1981
      %v1986 = vmul.f32 %v1909, %v1982
      %v1987 = vmul.f32 %v1910, %v1983
      %v1988 = vsel %vm634, %v1984, 0.0
      %v1989 = vsel %vm634, %v1985, 0.0
      %v1990 = vadd.f32 %v1988, %v1989
      %v1991 = vsel %vm634, %v1986, 0.0
      %v1992 = vadd.f32 %v1990, %v1991
      %v1993 = vsel %vm634, %v1987, 0.0
      %v1994 = vadd.f32 %v1992, %v1993
      %v1995 = vrot.slane %v1994, 4
      %v1996 = vadd.f32 %v1994, %v1995
      %v1997 = vrot.slane %v1996, 2
      %v1998 = vadd.f32 %v1996, %v1997
      %v1999 = vrot.slane %v1998, 1
      %v2000 = vadd.f32 %v1998, %v1999
      %v2001 = vmul.f32 %v2000, 0.17677669
      %v2002 = vsel %vm1174, %v2001, -1e+09
      %v2003 = vld [vmem:[%s906 + $0x20] sm:$0xff]
      %v2004 = vld [vmem:[%s906 + $0x28] sm:$0xff]
      %v2005 = vld [vmem:[%s906 + $0x30] sm:$0xff]
      %v2006 = vld [vmem:[%s906 + $0x38] sm:$0xff]
      %v2007 = vmul.f32 %v1907, %v2003
      %v2008 = vmul.f32 %v1908, %v2004
      %v2009 = vmul.f32 %v1909, %v2005
      %v2010 = vmul.f32 %v1910, %v2006
      %v2011 = vsel %vm634, %v2007, 0.0
      %v2012 = vsel %vm634, %v2008, 0.0
      %v2013 = vadd.f32 %v2011, %v2012
      %v2014 = vsel %vm634, %v2009, 0.0
      %v2015 = vadd.f32 %v2013, %v2014
      %v2016 = vsel %vm634, %v2010, 0.0
      %v2017 = vadd.f32 %v2015, %v2016
      %v2018 = vrot.slane %v2017, 4
      %v2019 = vadd.f32 %v2017, %v2018
      %v2020 = vrot.slane %v2019, 2
      %v2021 = vadd.f32 %v2019, %v2020
      %v2022 = vrot.slane %v2021, 1
      %v2023 = vadd.f32 %v2021, %v2022
      %v2024 = vmul.f32 %v2023, 0.17677669
      %v2025 = vsel %vm1200, %v2024, -1e+09
      %v2026 = vld [vmem:[%s974 + $0x20] sm:$0xff]
      %v2027 = vld [vmem:[%s974 + $0x28] sm:$0xff]
      %v2028 = vld [vmem:[%s974 + $0x30] sm:$0xff]
      %v2029 = vld [vmem:[%s974 + $0x38] sm:$0xff]
      %v2030 = vmul.f32 %v1907, %v2026
      %v2031 = vmul.f32 %v1908, %v2027
      %v2032 = vmul.f32 %v1909, %v2028
      %v2033 = vmul.f32 %v1910, %v2029
      %v2034 = vsel %vm634, %v2030, 0.0
      %v2035 = vsel %vm634, %v2031, 0.0
      %v2036 = vadd.f32 %v2034, %v2035
      %v2037 = vsel %vm634, %v2032, 0.0
      %v2038 = vadd.f32 %v2036, %v2037
      %v2039 = vsel %vm634, %v2033, 0.0
      %v2040 = vadd.f32 %v2038, %v2039
      %v2041 = vrot.slane %v2040, 4
      %v2042 = vadd.f32 %v2040, %v2041
      %v2043 = vrot.slane %v2042, 2
      %v2044 = vadd.f32 %v2042, %v2043
      %v2045 = vrot.slane %v2044, 1
      %v2046 = vadd.f32 %v2044, %v2045
      %v2047 = vmul.f32 %v2046, 0.17677669
      %v2048 = vsel %vm1226, %v2047, -1e+09
      %v2049 = vld [vmem:[%s1042 + $0x20] sm:$0xff]
      %v2050 = vld [vmem:[%s1042 + $0x28] sm:$0xff]
      %v2051 = vld [vmem:[%s1042 + $0x30] sm:$0xff]
      %v2052 = vld [vmem:[%s1042 + $0x38] sm:$0xff]
      %v2053 = vmul.f32 %v1907, %v2049
      %v2054 = vmul.f32 %v1908, %v2050
      %v2055 = vmul.f32 %v1909, %v2051
      %v2056 = vmul.f32 %v1910, %v2052
      %v2057 = vsel %vm634, %v2053, 0.0
      %v2058 = vsel %vm634, %v2054, 0.0
      %v2059 = vadd.f32 %v2057, %v2058
      %v2060 = vsel %vm634, %v2055, 0.0
      %v2061 = vadd.f32 %v2059, %v2060
      %v2062 = vsel %vm634, %v2056, 0.0
      %v2063 = vadd.f32 %v2061, %v2062
      %v2064 = vrot.slane %v2063, 4
      %v2065 = vadd.f32 %v2063, %v2064
      %v2066 = vrot.slane %v2065, 2
      %v2067 = vadd.f32 %v2065, %v2066
      %v2068 = vrot.slane %v2067, 1
      %v2069 = vadd.f32 %v2067, %v2068
      %v2070 = vmul.f32 %v2069, 0.17677669
      %v2071 = vsel %vm1252, %v2070, -1e+09
      %v2072 = vld [vmem:[%s1110 + $0x20] sm:$0xff]
      %v2073 = vld [vmem:[%s1110 + $0x28] sm:$0xff]
      %v2074 = vld [vmem:[%s1110 + $0x30] sm:$0xff]
      %v2075 = vld [vmem:[%s1110 + $0x38] sm:$0xff]
      %v2076 = vmul.f32 %v1907, %v2072
      %v2077 = vmul.f32 %v1908, %v2073
      %v2078 = vmul.f32 %v1909, %v2074
      %v2079 = vmul.f32 %v1910, %v2075
      %v2080 = vsel %vm634, %v2076, 0.0
      %v2081 = vsel %vm634, %v2077, 0.0
      %v2082 = vadd.f32 %v2080, %v2081
      %v2083 = vsel %vm634, %v2078, 0.0
      %v2084 = vadd.f32 %v2082, %v2083
      %v2085 = vsel %vm634, %v2079, 0.0
      %v2086 = vadd.f32 %v2084, %v2085
      %v2087 = vrot.slane %v2086, 4
      %v2088 = vadd.f32 %v2086, %v2087
      %v2089 = vrot.slane %v2088, 2
      %v2090 = vadd.f32 %v2088, %v2089
      %v2091 = vrot.slane %v2090, 1
      %v2092 = vadd.f32 %v2090, %v2091
      %v2093 = vmul.f32 %v2092, 0.17677669
      %v2094 = vsel %vm1278, %v2093, -1e+09
      %v2096 = vrot.slane %v1956, 1
      %v2098 = vmax.f32 %v1933, %v2096
      %v2100 = vrot.slane %v1979, 2
      %v2102 = vmax.f32 %v2098, %v2100
      %v2104 = vrot.slane %v2002, 2
      %v2106 = vmax.f32 %v2102, %v2104
      %v2108 = vrot.slane %v2025, 2
      %v2110 = vmax.f32 %v2106, %v2108
      %v2112 = vrot.slane %v2048, 2
      %v2114 = vmax.f32 %v2110, %v2112
      %v2116 = vrot.slane %v2071, 2
      %v2118 = vmax.f32 %v2114, %v2116
      %v2120 = vrot.slane %v2094, 2
      %v2122 = vmax.f32 %v2118, %v2120
      %v2123 = vsub.f32 %v1933, %v2122
      %v2124 = vmul.f32 %v2123, 1.442695
      %v2125 = vpow.pop %v2124
      %v2127 = vrot.slane %v2122, 7
      %v2129 = vsub.f32 %v1956, %v2127
      %v2130 = vmul.f32 %v2129, 1.442695
      %v2131 = vpow.pop %v2130
      %v2132 = vrot.slane %v2122, 6
      %v2134 = vsub.f32 %v1979, %v2132
      %v2135 = vmul.f32 %v2134, 1.442695
      %v2136 = vpow.pop %v2135
      %v2137 = vsub.f32 %v2002, %v2132
      %v2138 = vmul.f32 %v2137, 1.442695
      %v2139 = vpow.pop %v2138
      %v2140 = vsub.f32 %v2025, %v2132
      %v2141 = vmul.f32 %v2140, 1.442695
      %v2142 = vpow.pop %v2141
      %v2143 = vsub.f32 %v2048, %v2132
      %v2144 = vmul.f32 %v2143, 1.442695
      %v2145 = vpow.pop %v2144
      %v2146 = vsub.f32 %v2071, %v2132
      %v2147 = vmul.f32 %v2146, 1.442695
      %v2148 = vpow.pop %v2147
      %v2149 = vsub.f32 %v2094, %v2132
      %v2150 = vmul.f32 %v2149, 1.442695
      %v2151 = vpow.pop %v2150
      %v2153 = vrot.slane %v2131, 1
      %v2155 = vadd.f32 %v2125, %v2153
      %v2157 = vrot.slane %v2136, 2
      %v2159 = vadd.f32 %v2155, %v2157
      %v2161 = vrot.slane %v2139, 2
      %v2163 = vadd.f32 %v2159, %v2161
      %v2165 = vrot.slane %v2142, 2
      %v2167 = vadd.f32 %v2163, %v2165
      %v2169 = vrot.slane %v2145, 2
      %v2171 = vadd.f32 %v2167, %v2169
      %v2173 = vrot.slane %v2148, 2
      %v2175 = vadd.f32 %v2171, %v2173
      %v2177 = vrot.slane %v2151, 2
      %v2179 = vadd.f32 %v2175, %v2177
      %v2180 = vrcp.pop %v2179
      %v2181 = vmul.f32 %v2179, %v2180
      %v2182 = vsub.f32 1.0, %v2181
      %v2183 = vmul.f32 %v2180, %v2182
      %v2184 = vadd.f32 %v2180, %v2183
      %vm2185 = vweird.f32 %v2179
      %vm2186 = vweird.f32 %v2180
      %vm2187 = vmor %vm2185, %vm2186
      %v2188 = vsel %vm2187, %v2180, %v2184
      %v2189 = vand.u32 2147483647, %v2179
      %vm2190 = vcmp.eq.f32.partialorder %v2189, 8.507059e+37
      %v2191 = vand.u32 %v2179, 2147483648
      %v2192 = vor.u32 1.1754944e-38, %v2191
      %v2193 = vsel %vm2190, %v2192, %v2188
      %v2194 = vmul.f32 1.0, %v2193
      %v2195 = vmul.f32 %v2125, %v2194
      %v2196 = vld [vmem:[#allocation2 + $0x40] sm:$0xff]
      %v2197 = vld [vmem:[#allocation2 + $0x48] sm:$0xff]
      %v2198 = vld [vmem:[#allocation2 + $0x50] sm:$0xff]
      %v2199 = vld [vmem:[#allocation2 + $0x58] sm:$0xff]
      %v2200 = vperm.slane %v2195, 0
      %v2201 = vmul.f32 %v2200, %v2196
      %v2202 = vmul.f32 %v2200, %v2197
      %v2203 = vmul.f32 %v2200, %v2198
      %v2204 = vmul.f32 %v2200, %v2199
      %v2205 = vadd.f32 %v2201, 0.0
      %v2206 = vadd.f32 %v2202, 0.0
      %v2207 = vadd.f32 %v2203, 0.0
      %v2208 = vadd.f32 %v2204, 0.0
      %v2210 = vrot.slane %v2194, 7
      %v2212 = vmul.f32 %v2131, %v2210
      %v2213 = vld [vmem:[%s702 + $0x40] sm:$0xff]
      %v2214 = vld [vmem:[%s702 + $0x48] sm:$0xff]
      %v2215 = vld [vmem:[%s702 + $0x50] sm:$0xff]
      %v2216 = vld [vmem:[%s702 + $0x58] sm:$0xff]
      %v2217 = vperm.slane %v2212, 1
      %v2218 = vmul.f32 %v2217, %v2213
      %v2219 = vmul.f32 %v2217, %v2214
      %v2220 = vmul.f32 %v2217, %v2215
      %v2221 = vmul.f32 %v2217, %v2216
      %v2222 = vadd.f32 %v2205, %v2218
      %v2223 = vadd.f32 %v2206, %v2219
      %v2224 = vadd.f32 %v2207, %v2220
      %v2225 = vadd.f32 %v2208, %v2221
      %v2226 = vrot.slane %v2194, 6
      %v2228 = vmul.f32 %v2136, %v2226
      %v2229 = vld [vmem:[%s770 + $0x40] sm:$0xff]
      %v2230 = vld [vmem:[%s770 + $0x48] sm:$0xff]
      %v2231 = vld [vmem:[%s770 + $0x50] sm:$0xff]
      %v2232 = vld [vmem:[%s770 + $0x58] sm:$0xff]
      %v2233 = vperm.slane %v2228, 2
      %v2234 = vmul.f32 %v2233, %v2229
      %v2235 = vmul.f32 %v2233, %v2230
      %v2236 = vmul.f32 %v2233, %v2231
      %v2237 = vmul.f32 %v2233, %v2232
      %v2238 = vadd.f32 %v2222, %v2234
      %v2239 = vadd.f32 %v2223, %v2235
      %v2240 = vadd.f32 %v2224, %v2236
      %v2241 = vadd.f32 %v2225, %v2237
      %v2242 = vmul.f32 %v2139, %v2226
      %v2243 = vld [vmem:[%s838 + $0x40] sm:$0xff]
      %v2244 = vld [vmem:[%s838 + $0x48] sm:$0xff]
      %v2245 = vld [vmem:[%s838 + $0x50] sm:$0xff]
      %v2246 = vld [vmem:[%s838 + $0x58] sm:$0xff]
      %v2247 = vperm.slane %v2242, 2
      %v2248 = vmul.f32 %v2247, %v2243
      %v2249 = vmul.f32 %v2247, %v2244
      %v2250 = vmul.f32 %v2247, %v2245
      %v2251 = vmul.f32 %v2247, %v2246
      %v2252 = vadd.f32 %v2238, %v2248
      %v2253 = vadd.f32 %v2239, %v2249
      %v2254 = vadd.f32 %v2240, %v2250
      %v2255 = vadd.f32 %v2241, %v2251
      %v2256 = vmul.f32 %v2142, %v2226
      %v2257 = vld [vmem:[%s906 + $0x40] sm:$0xff]
      %v2258 = vld [vmem:[%s906 + $0x48] sm:$0xff]
      %v2259 = vld [vmem:[%s906 + $0x50] sm:$0xff]
      %v2260 = vld [vmem:[%s906 + $0x58] sm:$0xff]
      %v2261 = vperm.slane %v2256, 2
      %v2262 = vmul.f32 %v2261, %v2257
      %v2263 = vmul.f32 %v2261, %v2258
      %v2264 = vmul.f32 %v2261, %v2259
      %v2265 = vmul.f32 %v2261, %v2260
      %v2266 = vadd.f32 %v2252, %v2262
      %v2267 = vadd.f32 %v2253, %v2263
      %v2268 = vadd.f32 %v2254, %v2264
      %v2269 = vadd.f32 %v2255, %v2265
      %v2270 = vmul.f32 %v2145, %v2226
      %v2271 = vld [vmem:[%s974 + $0x40] sm:$0xff]
      %v2272 = vld [vmem:[%s974 + $0x48] sm:$0xff]
      %v2273 = vld [vmem:[%s974 + $0x50] sm:$0xff]
      %v2274 = vld [vmem:[%s974 + $0x58] sm:$0xff]
      %v2275 = vperm.slane %v2270, 2
      %v2276 = vmul.f32 %v2275, %v2271
      %v2277 = vmul.f32 %v2275, %v2272
      %v2278 = vmul.f32 %v2275, %v2273
      %v2279 = vmul.f32 %v2275, %v2274
      %v2280 = vadd.f32 %v2266, %v2276
      %v2281 = vadd.f32 %v2267, %v2277
      %v2282 = vadd.f32 %v2268, %v2278
      %v2283 = vadd.f32 %v2269, %v2279
      %v2284 = vmul.f32 %v2148, %v2226
      %v2285 = vld [vmem:[%s1042 + $0x40] sm:$0xff]
      %v2286 = vld [vmem:[%s1042 + $0x48] sm:$0xff]
      %v2287 = vld [vmem:[%s1042 + $0x50] sm:$0xff]
      %v2288 = vld [vmem:[%s1042 + $0x58] sm:$0xff]
      %v2289 = vperm.slane %v2284, 2
      %v2290 = vmul.f32 %v2289, %v2285
      %v2291 = vmul.f32 %v2289, %v2286
      %v2292 = vmul.f32 %v2289, %v2287
      %v2293 = vmul.f32 %v2289, %v2288
      %v2294 = vadd.f32 %v2280, %v2290
      %v2295 = vadd.f32 %v2281, %v2291
      %v2296 = vadd.f32 %v2282, %v2292
      %v2297 = vadd.f32 %v2283, %v2293
      %v2298 = vmul.f32 %v2151, %v2226
      %v2299 = vld [vmem:[%s1110 + $0x40] sm:$0xff]
      %v2300 = vld [vmem:[%s1110 + $0x48] sm:$0xff]
      %v2301 = vld [vmem:[%s1110 + $0x50] sm:$0xff]
      %v2302 = vld [vmem:[%s1110 + $0x58] sm:$0xff]
      %v2303 = vperm.slane %v2298, 2
      %v2304 = vmul.f32 %v2303, %v2299
      %v2305 = vmul.f32 %v2303, %v2300
      %v2306 = vmul.f32 %v2303, %v2301
      %v2307 = vmul.f32 %v2303, %v2302
      %v2308 = vadd.f32 %v2294, %v2304
      %v2309 = vadd.f32 %v2295, %v2305
      %v2310 = vadd.f32 %v2296, %v2306
      %v2311 = vadd.f32 %v2297, %v2307
      %s2312 = scalar_lea.vmem [#allocation3], 64
      %2313 = vst.msk [vmem:[%s2312] sm:$0xff] %vm634, %v2308
      %2314 = vst.msk [vmem:[%s2312 + $0x8] sm:$0xff] %vm634, %v2309
      %2315 = vst.msk [vmem:[%s2312 + $0x10] sm:$0xff] %vm634, %v2310
      %2316 = vst.msk [vmem:[%s2312 + $0x18] sm:$0xff] %vm634, %v2311
      %v2317 = vld [vmem:[%s838] sm:$0xff]
      %v2318 = vld [vmem:[%s838 + $0x8] sm:$0xff]
      %v2319 = vld [vmem:[%s838 + $0x10] sm:$0xff]
      %v2320 = vld [vmem:[%s838 + $0x18] sm:$0xff]
      %v2321 = vld [vmem:[#allocation2 + $0x20] sm:$0xff]
      %v2322 = vld [vmem:[#allocation2 + $0x28] sm:$0xff]
      %v2323 = vld [vmem:[#allocation2 + $0x30] sm:$0xff]
      %v2324 = vld [vmem:[#allocation2 + $0x38] sm:$0xff]
      %v2325 = vmul.f32 %v2317, %v2321
      %v2326 = vmul.f32 %v2318, %v2322
      %v2327 = vmul.f32 %v2319, %v2323
      %v2328 = vmul.f32 %v2320, %v2324
      %v2329 = vsel %vm634, %v2325, 0.0
      %v2330 = vsel %vm634, %v2326, 0.0
      %v2331 = vadd.f32 %v2329, %v2330
      %v2332 = vsel %vm634, %v2327, 0.0
      %v2333 = vadd.f32 %v2331, %v2332
      %v2334 = vsel %vm634, %v2328, 0.0
      %v2335 = vadd.f32 %v2333, %v2334
      %v2336 = vrot.slane %v2335, 4
      %v2337 = vadd.f32 %v2335, %v2336
      %v2338 = vrot.slane %v2337, 2
      %v2339 = vadd.f32 %v2337, %v2338
      %v2340 = vrot.slane %v2339, 1
      %v2341 = vadd.f32 %v2339, %v2340
      %v2342 = vmul.f32 %v2341, 0.17677669
      %v2343 = vsel %vm1226, %v2342, -1e+09
      %v2344 = vld [vmem:[%s702 + $0x20] sm:$0xff]
      %v2345 = vld [vmem:[%s702 + $0x28] sm:$0xff]
      %v2346 = vld [vmem:[%s702 + $0x30] sm:$0xff]
      %v2347 = vld [vmem:[%s702 + $0x38] sm:$0xff]
      %v2348 = vmul.f32 %v2317, %v2344
      %v2349 = vmul.f32 %v2318, %v2345
      %v2350 = vmul.f32 %v2319, %v2346
      %v2351 = vmul.f32 %v2320, %v2347
      %v2352 = vsel %vm634, %v2348, 0.0
      %v2353 = vsel %vm634, %v2349, 0.0
      %v2354 = vadd.f32 %v2352, %v2353
      %v2355 = vsel %vm634, %v2350, 0.0
      %v2356 = vadd.f32 %v2354, %v2355
      %v2357 = vsel %vm634, %v2351, 0.0
      %v2358 = vadd.f32 %v2356, %v2357
      %v2359 = vrot.slane %v2358, 4
      %v2360 = vadd.f32 %v2358, %v2359
      %v2361 = vrot.slane %v2360, 2
      %v2362 = vadd.f32 %v2360, %v2361
      %v2363 = vrot.slane %v2362, 1
      %v2364 = vadd.f32 %v2362, %v2363
      %v2365 = vmul.f32 %v2364, 0.17677669
      %v2366 = vsel %vm1200, %v2365, -1e+09
      %v2367 = vld [vmem:[%s770 + $0x20] sm:$0xff]
      %v2368 = vld [vmem:[%s770 + $0x28] sm:$0xff]
      %v2369 = vld [vmem:[%s770 + $0x30] sm:$0xff]
      %v2370 = vld [vmem:[%s770 + $0x38] sm:$0xff]
      %v2371 = vmul.f32 %v2317, %v2367
      %v2372 = vmul.f32 %v2318, %v2368
      %v2373 = vmul.f32 %v2319, %v2369
      %v2374 = vmul.f32 %v2320, %v2370
      %v2375 = vsel %vm634, %v2371, 0.0
      %v2376 = vsel %vm634, %v2372, 0.0
      %v2377 = vadd.f32 %v2375, %v2376
      %v2378 = vsel %vm634, %v2373, 0.0
      %v2379 = vadd.f32 %v2377, %v2378
      %v2380 = vsel %vm634, %v2374, 0.0
      %v2381 = vadd.f32 %v2379, %v2380
      %v2382 = vrot.slane %v2381, 4
      %v2383 = vadd.f32 %v2381, %v2382
      %v2384 = vrot.slane %v2383, 2
      %v2385 = vadd.f32 %v2383, %v2384
      %v2386 = vrot.slane %v2385, 1
      %v2387 = vadd.f32 %v2385, %v2386
      %v2388 = vmul.f32 %v2387, 0.17677669
      %v2389 = vsel %vm1174, %v2388, -1e+09
      %v2390 = vld [vmem:[%s838 + $0x20] sm:$0xff]
      %v2391 = vld [vmem:[%s838 + $0x28] sm:$0xff]
      %v2392 = vld [vmem:[%s838 + $0x30] sm:$0xff]
      %v2393 = vld [vmem:[%s838 + $0x38] sm:$0xff]
      %v2394 = vmul.f32 %v2317, %v2390
      %v2395 = vmul.f32 %v2318, %v2391
      %v2396 = vmul.f32 %v2319, %v2392
      %v2397 = vmul.f32 %v2320, %v2393
      %v2398 = vsel %vm634, %v2394, 0.0
      %v2399 = vsel %vm634, %v2395, 0.0
      %v2400 = vadd.f32 %v2398, %v2399
      %v2401 = vsel %vm634, %v2396, 0.0
      %v2402 = vadd.f32 %v2400, %v2401
      %v2403 = vsel %vm634, %v2397, 0.0
      %v2404 = vadd.f32 %v2402, %v2403
      %v2405 = vrot.slane %v2404, 4
      %v2406 = vadd.f32 %v2404, %v2405
      %v2407 = vrot.slane %v2406, 2
      %v2408 = vadd.f32 %v2406, %v2407
      %v2409 = vrot.slane %v2408, 1
      %v2410 = vadd.f32 %v2408, %v2409
      %v2411 = vmul.f32 %v2410, 0.17677669
      %v2412 = vsel %vm454, %v2411, -1e+09
      %v2413 = vld [vmem:[%s906 + $0x20] sm:$0xff]
      %v2414 = vld [vmem:[%s906 + $0x28] sm:$0xff]
      %v2415 = vld [vmem:[%s906 + $0x30] sm:$0xff]
      %v2416 = vld [vmem:[%s906 + $0x38] sm:$0xff]
      %v2417 = vmul.f32 %v2317, %v2413
      %v2418 = vmul.f32 %v2318, %v2414
      %v2419 = vmul.f32 %v2319, %v2415
      %v2420 = vmul.f32 %v2320, %v2416
      %v2421 = vsel %vm634, %v2417, 0.0
      %v2422 = vsel %vm634, %v2418, 0.0
      %v2423 = vadd.f32 %v2421, %v2422
      %v2424 = vsel %vm634, %v2419, 0.0
      %v2425 = vadd.f32 %v2423, %v2424
      %v2426 = vsel %vm634, %v2420, 0.0
      %v2427 = vadd.f32 %v2425, %v2426
      %v2428 = vrot.slane %v2427, 4
      %v2429 = vadd.f32 %v2427, %v2428
      %v2430 = vrot.slane %v2429, 2
      %v2431 = vadd.f32 %v2429, %v2430
      %v2432 = vrot.slane %v2431, 1
      %v2433 = vadd.f32 %v2431, %v2432
      %v2434 = vmul.f32 %v2433, 0.17677669
      %v2435 = vsel %vm1174, %v2434, -1e+09
      %v2436 = vld [vmem:[%s974 + $0x20] sm:$0xff]
      %v2437 = vld [vmem:[%s974 + $0x28] sm:$0xff]
      %v2438 = vld [vmem:[%s974 + $0x30] sm:$0xff]
      %v2439 = vld [vmem:[%s974 + $0x38] sm:$0xff]
      %v2440 = vmul.f32 %v2317, %v2436
      %v2441 = vmul.f32 %v2318, %v2437
      %v2442 = vmul.f32 %v2319, %v2438
      %v2443 = vmul.f32 %v2320, %v2439
      %v2444 = vsel %vm634, %v2440, 0.0
      %v2445 = vsel %vm634, %v2441, 0.0
      %v2446 = vadd.f32 %v2444, %v2445
      %v2447 = vsel %vm634, %v2442, 0.0
      %v2448 = vadd.f32 %v2446, %v2447
      %v2449 = vsel %vm634, %v2443, 0.0
      %v2450 = vadd.f32 %v2448, %v2449
      %v2451 = vrot.slane %v2450, 4
      %v2452 = vadd.f32 %v2450, %v2451
      %v2453 = vrot.slane %v2452, 2
      %v2454 = vadd.f32 %v2452, %v2453
      %v2455 = vrot.slane %v2454, 1
      %v2456 = vadd.f32 %v2454, %v2455
      %v2457 = vmul.f32 %v2456, 0.17677669
      %v2458 = vsel %vm1200, %v2457, -1e+09
      %v2459 = vld [vmem:[%s1042 + $0x20] sm:$0xff]
      %v2460 = vld [vmem:[%s1042 + $0x28] sm:$0xff]
      %v2461 = vld [vmem:[%s1042 + $0x30] sm:$0xff]
      %v2462 = vld [vmem:[%s1042 + $0x38] sm:$0xff]
      %v2463 = vmul.f32 %v2317, %v2459
      %v2464 = vmul.f32 %v2318, %v2460
      %v2465 = vmul.f32 %v2319, %v2461
      %v2466 = vmul.f32 %v2320, %v2462
      %v2467 = vsel %vm634, %v2463, 0.0
      %v2468 = vsel %vm634, %v2464, 0.0
      %v2469 = vadd.f32 %v2467, %v2468
      %v2470 = vsel %vm634, %v2465, 0.0
      %v2471 = vadd.f32 %v2469, %v2470
      %v2472 = vsel %vm634, %v2466, 0.0
      %v2473 = vadd.f32 %v2471, %v2472
      %v2474 = vrot.slane %v2473, 4
      %v2475 = vadd.f32 %v2473, %v2474
      %v2476 = vrot.slane %v2475, 2
      %v2477 = vadd.f32 %v2475, %v2476
      %v2478 = vrot.slane %v2477, 1
      %v2479 = vadd.f32 %v2477, %v2478
      %v2480 = vmul.f32 %v2479, 0.17677669
      %v2481 = vsel %vm1226, %v2480, -1e+09
      %v2482 = vld [vmem:[%s1110 + $0x20] sm:$0xff]
      %v2483 = vld [vmem:[%s1110 + $0x28] sm:$0xff]
      %v2484 = vld [vmem:[%s1110 + $0x30] sm:$0xff]
      %v2485 = vld [vmem:[%s1110 + $0x38] sm:$0xff]
      %v2486 = vmul.f32 %v2317, %v2482
      %v2487 = vmul.f32 %v2318, %v2483
      %v2488 = vmul.f32 %v2319, %v2484
      %v2489 = vmul.f32 %v2320, %v2485
      %v2490 = vsel %vm634, %v2486, 0.0
      %v2491 = vsel %vm634, %v2487, 0.0
      %v2492 = vadd.f32 %v2490, %v2491
      %v2493 = vsel %vm634, %v2488, 0.0
      %v2494 = vadd.f32 %v2492, %v2493
      %v2495 = vsel %vm634, %v2489, 0.0
      %v2496 = vadd.f32 %v2494, %v2495
      %v2497 = vrot.slane %v2496, 4
      %v2498 = vadd.f32 %v2496, %v2497
      %v2499 = vrot.slane %v2498, 2
      %v2500 = vadd.f32 %v2498, %v2499
      %v2501 = vrot.slane %v2500, 1
      %v2502 = vadd.f32 %v2500, %v2501
      %v2503 = vmul.f32 %v2502, 0.17677669
      %v2504 = vsel %vm1252, %v2503, -1e+09
      %v2506 = vrot.slane %v2366, 1
      %v2508 = vmax.f32 %v2343, %v2506
      %v2510 = vrot.slane %v2389, 2
      %v2512 = vmax.f32 %v2508, %v2510
      %v2514 = vrot.slane %v2412, 3
      %v2516 = vmax.f32 %v2512, %v2514
      %v2518 = vrot.slane %v2435, 3
      %v2520 = vmax.f32 %v2516, %v2518
      %v2522 = vrot.slane %v2458, 3
      %v2524 = vmax.f32 %v2520, %v2522
      %v2526 = vrot.slane %v2481, 3
      %v2528 = vmax.f32 %v2524, %v2526
      %v2530 = vrot.slane %v2504, 3
      %v2532 = vmax.f32 %v2528, %v2530
      %v2533 = vsub.f32 %v2343, %v2532
      %v2534 = vmul.f32 %v2533, 1.442695
      %v2535 = vpow.pop %v2534
      %v2537 = vrot.slane %v2532, 7
      %v2539 = vsub.f32 %v2366, %v2537
      %v2540 = vmul.f32 %v2539, 1.442695
      %v2541 = vpow.pop %v2540
      %v2542 = vrot.slane %v2532, 6
      %v2544 = vsub.f32 %v2389, %v2542
      %v2545 = vmul.f32 %v2544, 1.442695
      %v2546 = vpow.pop %v2545
      %v2547 = vrot.slane %v2532, 5
      %v2549 = vsub.f32 %v2412, %v2547
      %v2550 = vmul.f32 %v2549, 1.442695
      %v2551 = vpow.pop %v2550
      %v2552 = vsub.f32 %v2435, %v2547
      %v2553 = vmul.f32 %v2552, 1.442695
      %v2554 = vpow.pop %v2553
      %v2555 = vsub.f32 %v2458, %v2547
      %v2556 = vmul.f32 %v2555, 1.442695
      %v2557 = vpow.pop %v2556
      %v2558 = vsub.f32 %v2481, %v2547
      %v2559 = vmul.f32 %v2558, 1.442695
      %v2560 = vpow.pop %v2559
      %v2561 = vsub.f32 %v2504, %v2547
      %v2562 = vmul.f32 %v2561, 1.442695
      %v2563 = vpow.pop %v2562
      %v2565 = vrot.slane %v2541, 1
      %v2567 = vadd.f32 %v2535, %v2565
      %v2569 = vrot.slane %v2546, 2
      %v2571 = vadd.f32 %v2567, %v2569
      %v2573 = vrot.slane %v2551, 3
      %v2575 = vadd.f32 %v2571, %v2573
      %v2577 = vrot.slane %v2554, 3
      %v2579 = vadd.f32 %v2575, %v2577
      %v2581 = vrot.slane %v2557, 3
      %v2583 = vadd.f32 %v2579, %v2581
      %v2585 = vrot.slane %v2560, 3
      %v2587 = vadd.f32 %v2583, %v2585
      %v2589 = vrot.slane %v2563, 3
      %v2591 = vadd.f32 %v2587, %v2589
      %v2592 = vrcp.pop %v2591
      %v2593 = vmul.f32 %v2591, %v2592
      %v2594 = vsub.f32 1.0, %v2593
      %v2595 = vmul.f32 %v2592, %v2594
      %v2596 = vadd.f32 %v2592, %v2595
      %vm2597 = vweird.f32 %v2591
      %vm2598 = vweird.f32 %v2592
      %vm2599 = vmor %vm2597, %vm2598
      %v2600 = vsel %vm2599, %v2592, %v2596
      %v2601 = vand.u32 2147483647, %v2591
      %vm2602 = vcmp.eq.f32.partialorder %v2601, 8.507059e+37
      %v2603 = vand.u32 %v2591, 2147483648
      %v2604 = vor.u32 1.1754944e-38, %v2603
      %v2605 = vsel %vm2602, %v2604, %v2600
      %v2606 = vmul.f32 1.0, %v2605
      %v2607 = vmul.f32 %v2535, %v2606
      %v2608 = vld [vmem:[#allocation2 + $0x40] sm:$0xff]
      %v2609 = vld [vmem:[#allocation2 + $0x48] sm:$0xff]
      %v2610 = vld [vmem:[#allocation2 + $0x50] sm:$0xff]
      %v2611 = vld [vmem:[#allocation2 + $0x58] sm:$0xff]
      %v2612 = vperm.slane %v2607, 0
      %v2613 = vmul.f32 %v2612, %v2608
      %v2614 = vmul.f32 %v2612, %v2609
      %v2615 = vmul.f32 %v2612, %v2610
      %v2616 = vmul.f32 %v2612, %v2611
      %v2617 = vadd.f32 %v2613, 0.0
      %v2618 = vadd.f32 %v2614, 0.0
      %v2619 = vadd.f32 %v2615, 0.0
      %v2620 = vadd.f32 %v2616, 0.0
      %v2622 = vrot.slane %v2606, 7
      %v2624 = vmul.f32 %v2541, %v2622
      %v2625 = vld [vmem:[%s702 + $0x40] sm:$0xff]
      %v2626 = vld [vmem:[%s702 + $0x48] sm:$0xff]
      %v2627 = vld [vmem:[%s702 + $0x50] sm:$0xff]
      %v2628 = vld [vmem:[%s702 + $0x58] sm:$0xff]
      %v2629 = vperm.slane %v2624, 1
      %v2630 = vmul.f32 %v2629, %v2625
      %v2631 = vmul.f32 %v2629, %v2626
      %v2632 = vmul.f32 %v2629, %v2627
      %v2633 = vmul.f32 %v2629, %v2628
      %v2634 = vadd.f32 %v2617, %v2630
      %v2635 = vadd.f32 %v2618, %v2631
      %v2636 = vadd.f32 %v2619, %v2632
      %v2637 = vadd.f32 %v2620, %v2633
      %v2638 = vrot.slane %v2606, 6
      %v2640 = vmul.f32 %v2546, %v2638
      %v2641 = vld [vmem:[%s770 + $0x40] sm:$0xff]
      %v2642 = vld [vmem:[%s770 + $0x48] sm:$0xff]
      %v2643 = vld [vmem:[%s770 + $0x50] sm:$0xff]
      %v2644 = vld [vmem:[%s770 + $0x58] sm:$0xff]
      %v2645 = vperm.slane %v2640, 2
      %v2646 = vmul.f32 %v2645, %v2641
      %v2647 = vmul.f32 %v2645, %v2642
      %v2648 = vmul.f32 %v2645, %v2643
      %v2649 = vmul.f32 %v2645, %v2644
      %v2650 = vadd.f32 %v2634, %v2646
      %v2651 = vadd.f32 %v2635, %v2647
      %v2652 = vadd.f32 %v2636, %v2648
      %v2653 = vadd.f32 %v2637, %v2649
      %v2654 = vrot.slane %v2606, 5
      %v2656 = vmul.f32 %v2551, %v2654
      %v2657 = vld [vmem:[%s838 + $0x40] sm:$0xff]
      %v2658 = vld [vmem:[%s838 + $0x48] sm:$0xff]
      %v2659 = vld [vmem:[%s838 + $0x50] sm:$0xff]
      %v2660 = vld [vmem:[%s838 + $0x58] sm:$0xff]
      %v2661 = vperm.slane %v2656, 3
      %v2662 = vmul.f32 %v2661, %v2657
      %v2663 = vmul.f32 %v2661, %v2658
      %v2664 = vmul.f32 %v2661, %v2659
      %v2665 = vmul.f32 %v2661, %v2660
      %v2666 = vadd.f32 %v2650, %v2662
      %v2667 = vadd.f32 %v2651, %v2663
      %v2668 = vadd.f32 %v2652, %v2664
      %v2669 = vadd.f32 %v2653, %v2665
      %v2670 = vmul.f32 %v2554, %v2654
      %v2671 = vld [vmem:[%s906 + $0x40] sm:$0xff]
      %v2672 = vld [vmem:[%s906 + $0x48] sm:$0xff]
      %v2673 = vld [vmem:[%s906 + $0x50] sm:$0xff]
      %v2674 = vld [vmem:[%s906 + $0x58] sm:$0xff]
      %v2675 = vperm.slane %v2670, 3
      %v2676 = vmul.f32 %v2675, %v2671
      %v2677 = vmul.f32 %v2675, %v2672
      %v2678 = vmul.f32 %v2675, %v2673
      %v2679 = vmul.f32 %v2675, %v2674
      %v2680 = vadd.f32 %v2666, %v2676
      %v2681 = vadd.f32 %v2667, %v2677
      %v2682 = vadd.f32 %v2668, %v2678
      %v2683 = vadd.f32 %v2669, %v2679
      %v2684 = vmul.f32 %v2557, %v2654
      %v2685 = vld [vmem:[%s974 + $0x40] sm:$0xff]
      %v2686 = vld [vmem:[%s974 + $0x48] sm:$0xff]
      %v2687 = vld [vmem:[%s974 + $0x50] sm:$0xff]
      %v2688 = vld [vmem:[%s974 + $0x58] sm:$0xff]
      %v2689 = vperm.slane %v2684, 3
      %v2690 = vmul.f32 %v2689, %v2685
      %v2691 = vmul.f32 %v2689, %v2686
      %v2692 = vmul.f32 %v2689, %v2687
      %v2693 = vmul.f32 %v2689, %v2688
      %v2694 = vadd.f32 %v2680, %v2690
      %v2695 = vadd.f32 %v2681, %v2691
      %v2696 = vadd.f32 %v2682, %v2692
      %v2697 = vadd.f32 %v2683, %v2693
      %v2698 = vmul.f32 %v2560, %v2654
      %v2699 = vld [vmem:[%s1042 + $0x40] sm:$0xff]
      %v2700 = vld [vmem:[%s1042 + $0x48] sm:$0xff]
      %v2701 = vld [vmem:[%s1042 + $0x50] sm:$0xff]
      %v2702 = vld [vmem:[%s1042 + $0x58] sm:$0xff]
      %v2703 = vperm.slane %v2698, 3
      %v2704 = vmul.f32 %v2703, %v2699
      %v2705 = vmul.f32 %v2703, %v2700
      %v2706 = vmul.f32 %v2703, %v2701
      %v2707 = vmul.f32 %v2703, %v2702
      %v2708 = vadd.f32 %v2694, %v2704
      %v2709 = vadd.f32 %v2695, %v2705
      %v2710 = vadd.f32 %v2696, %v2706
      %v2711 = vadd.f32 %v2697, %v2707
      %v2712 = vmul.f32 %v2563, %v2654
      %v2713 = vld [vmem:[%s1110 + $0x40] sm:$0xff]
      %v2714 = vld [vmem:[%s1110 + $0x48] sm:$0xff]
      %v2715 = vld [vmem:[%s1110 + $0x50] sm:$0xff]
      %v2716 = vld [vmem:[%s1110 + $0x58] sm:$0xff]
      %v2717 = vperm.slane %v2712, 3
      %v2718 = vmul.f32 %v2717, %v2713
      %v2719 = vmul.f32 %v2717, %v2714
      %v2720 = vmul.f32 %v2717, %v2715
      %v2721 = vmul.f32 %v2717, %v2716
      %v2722 = vadd.f32 %v2708, %v2718
      %v2723 = vadd.f32 %v2709, %v2719
      %v2724 = vadd.f32 %v2710, %v2720
      %v2725 = vadd.f32 %v2711, %v2721
      %s2726 = scalar_lea.vmem [#allocation3], 96
      %2727 = vst.msk [vmem:[%s2726] sm:$0xff] %vm634, %v2722
      %2728 = vst.msk [vmem:[%s2726 + $0x8] sm:$0xff] %vm634, %v2723
      %2729 = vst.msk [vmem:[%s2726 + $0x10] sm:$0xff] %vm634, %v2724
      %2730 = vst.msk [vmem:[%s2726 + $0x18] sm:$0xff] %vm634, %v2725
      %v2731 = vld [vmem:[%s906] sm:$0xff]
      %v2732 = vld [vmem:[%s906 + $0x8] sm:$0xff]
      %v2733 = vld [vmem:[%s906 + $0x10] sm:$0xff]
      %v2734 = vld [vmem:[%s906 + $0x18] sm:$0xff]
      %v2735 = vld [vmem:[#allocation2 + $0x20] sm:$0xff]
      %v2736 = vld [vmem:[#allocation2 + $0x28] sm:$0xff]
      %v2737 = vld [vmem:[#allocation2 + $0x30] sm:$0xff]
      %v2738 = vld [vmem:[#allocation2 + $0x38] sm:$0xff]
      %v2739 = vmul.f32 %v2731, %v2735
      %v2740 = vmul.f32 %v2732, %v2736
      %v2741 = vmul.f32 %v2733, %v2737
      %v2742 = vmul.f32 %v2734, %v2738
      %v2743 = vsel %vm634, %v2739, 0.0
      %v2744 = vsel %vm634, %v2740, 0.0
      %v2745 = vadd.f32 %v2743, %v2744
      %v2746 = vsel %vm634, %v2741, 0.0
      %v2747 = vadd.f32 %v2745, %v2746
      %v2748 = vsel %vm634, %v2742, 0.0
      %v2749 = vadd.f32 %v2747, %v2748
      %v2750 = vrot.slane %v2749, 4
      %v2751 = vadd.f32 %v2749, %v2750
      %v2752 = vrot.slane %v2751, 2
      %v2753 = vadd.f32 %v2751, %v2752
      %v2754 = vrot.slane %v2753, 1
      %v2755 = vadd.f32 %v2753, %v2754
      %v2756 = vmul.f32 %v2755, 0.17677669
      %v2757 = vsel %vm1252, %v2756, -1e+09
      %v2758 = vld [vmem:[%s702 + $0x20] sm:$0xff]
      %v2759 = vld [vmem:[%s702 + $0x28] sm:$0xff]
      %v2760 = vld [vmem:[%s702 + $0x30] sm:$0xff]
      %v2761 = vld [vmem:[%s702 + $0x38] sm:$0xff]
      %v2762 = vmul.f32 %v2731, %v2758
      %v2763 = vmul.f32 %v2732, %v2759
      %v2764 = vmul.f32 %v2733, %v2760
      %v2765 = vmul.f32 %v2734, %v2761
      %v2766 = vsel %vm634, %v2762, 0.0
      %v2767 = vsel %vm634, %v2763, 0.0
      %v2768 = vadd.f32 %v2766, %v2767
      %v2769 = vsel %vm634, %v2764, 0.0
      %v2770 = vadd.f32 %v2768, %v2769
      %v2771 = vsel %vm634, %v2765, 0.0
      %v2772 = vadd.f32 %v2770, %v2771
      %v2773 = vrot.slane %v2772, 4
      %v2774 = vadd.f32 %v2772, %v2773
      %v2775 = vrot.slane %v2774, 2
      %v2776 = vadd.f32 %v2774, %v2775
      %v2777 = vrot.slane %v2776, 1
      %v2778 = vadd.f32 %v2776, %v2777
      %v2779 = vmul.f32 %v2778, 0.17677669
      %v2780 = vsel %vm1226, %v2779, -1e+09
      %v2781 = vld [vmem:[%s770 + $0x20] sm:$0xff]
      %v2782 = vld [vmem:[%s770 + $0x28] sm:$0xff]
      %v2783 = vld [vmem:[%s770 + $0x30] sm:$0xff]
      %v2784 = vld [vmem:[%s770 + $0x38] sm:$0xff]
      %v2785 = vmul.f32 %v2731, %v2781
      %v2786 = vmul.f32 %v2732, %v2782
      %v2787 = vmul.f32 %v2733, %v2783
      %v2788 = vmul.f32 %v2734, %v2784
      %v2789 = vsel %vm634, %v2785, 0.0
      %v2790 = vsel %vm634, %v2786, 0.0
      %v2791 = vadd.f32 %v2789, %v2790
      %v2792 = vsel %vm634, %v2787, 0.0
      %v2793 = vadd.f32 %v2791, %v2792
      %v2794 = vsel %vm634, %v2788, 0.0
      %v2795 = vadd.f32 %v2793, %v2794
      %v2796 = vrot.slane %v2795, 4
      %v2797 = vadd.f32 %v2795, %v2796
      %v2798 = vrot.slane %v2797, 2
      %v2799 = vadd.f32 %v2797, %v2798
      %v2800 = vrot.slane %v2799, 1
      %v2801 = vadd.f32 %v2799, %v2800
      %v2802 = vmul.f32 %v2801, 0.17677669
      %v2803 = vsel %vm1200, %v2802, -1e+09
      %v2804 = vld [vmem:[%s838 + $0x20] sm:$0xff]
      %v2805 = vld [vmem:[%s838 + $0x28] sm:$0xff]
      %v2806 = vld [vmem:[%s838 + $0x30] sm:$0xff]
      %v2807 = vld [vmem:[%s838 + $0x38] sm:$0xff]
      %v2808 = vmul.f32 %v2731, %v2804
      %v2809 = vmul.f32 %v2732, %v2805
      %v2810 = vmul.f32 %v2733, %v2806
      %v2811 = vmul.f32 %v2734, %v2807
      %v2812 = vsel %vm634, %v2808, 0.0
      %v2813 = vsel %vm634, %v2809, 0.0
      %v2814 = vadd.f32 %v2812, %v2813
      %v2815 = vsel %vm634, %v2810, 0.0
      %v2816 = vadd.f32 %v2814, %v2815
      %v2817 = vsel %vm634, %v2811, 0.0
      %v2818 = vadd.f32 %v2816, %v2817
      %v2819 = vrot.slane %v2818, 4
      %v2820 = vadd.f32 %v2818, %v2819
      %v2821 = vrot.slane %v2820, 2
      %v2822 = vadd.f32 %v2820, %v2821
      %v2823 = vrot.slane %v2822, 1
      %v2824 = vadd.f32 %v2822, %v2823
      %v2825 = vmul.f32 %v2824, 0.17677669
      %v2826 = vsel %vm1174, %v2825, -1e+09
      %v2827 = vld [vmem:[%s906 + $0x20] sm:$0xff]
      %v2828 = vld [vmem:[%s906 + $0x28] sm:$0xff]
      %v2829 = vld [vmem:[%s906 + $0x30] sm:$0xff]
      %v2830 = vld [vmem:[%s906 + $0x38] sm:$0xff]
      %v2831 = vmul.f32 %v2731, %v2827
      %v2832 = vmul.f32 %v2732, %v2828
      %v2833 = vmul.f32 %v2733, %v2829
      %v2834 = vmul.f32 %v2734, %v2830
      %v2835 = vsel %vm634, %v2831, 0.0
      %v2836 = vsel %vm634, %v2832, 0.0
      %v2837 = vadd.f32 %v2835, %v2836
      %v2838 = vsel %vm634, %v2833, 0.0
      %v2839 = vadd.f32 %v2837, %v2838
      %v2840 = vsel %vm634, %v2834, 0.0
      %v2841 = vadd.f32 %v2839, %v2840
      %v2842 = vrot.slane %v2841, 4
      %v2843 = vadd.f32 %v2841, %v2842
      %v2844 = vrot.slane %v2843, 2
      %v2845 = vadd.f32 %v2843, %v2844
      %v2846 = vrot.slane %v2845, 1
      %v2847 = vadd.f32 %v2845, %v2846
      %v2848 = vmul.f32 %v2847, 0.17677669
      %v2849 = vsel %vm454, %v2848, -1e+09
      %v2850 = vld [vmem:[%s974 + $0x20] sm:$0xff]
      %v2851 = vld [vmem:[%s974 + $0x28] sm:$0xff]
      %v2852 = vld [vmem:[%s974 + $0x30] sm:$0xff]
      %v2853 = vld [vmem:[%s974 + $0x38] sm:$0xff]
      %v2854 = vmul.f32 %v2731, %v2850
      %v2855 = vmul.f32 %v2732, %v2851
      %v2856 = vmul.f32 %v2733, %v2852
      %v2857 = vmul.f32 %v2734, %v2853
      %v2858 = vsel %vm634, %v2854, 0.0
      %v2859 = vsel %vm634, %v2855, 0.0
      %v2860 = vadd.f32 %v2858, %v2859
      %v2861 = vsel %vm634, %v2856, 0.0
      %v2862 = vadd.f32 %v2860, %v2861
      %v2863 = vsel %vm634, %v2857, 0.0
      %v2864 = vadd.f32 %v2862, %v2863
      %v2865 = vrot.slane %v2864, 4
      %v2866 = vadd.f32 %v2864, %v2865
      %v2867 = vrot.slane %v2866, 2
      %v2868 = vadd.f32 %v2866, %v2867
      %v2869 = vrot.slane %v2868, 1
      %v2870 = vadd.f32 %v2868, %v2869
      %v2871 = vmul.f32 %v2870, 0.17677669
      %v2872 = vsel %vm1174, %v2871, -1e+09
      %v2873 = vld [vmem:[%s1042 + $0x20] sm:$0xff]
      %v2874 = vld [vmem:[%s1042 + $0x28] sm:$0xff]
      %v2875 = vld [vmem:[%s1042 + $0x30] sm:$0xff]
      %v2876 = vld [vmem:[%s1042 + $0x38] sm:$0xff]
      %v2877 = vmul.f32 %v2731, %v2873
      %v2878 = vmul.f32 %v2732, %v2874
      %v2879 = vmul.f32 %v2733, %v2875
      %v2880 = vmul.f32 %v2734, %v2876
      %v2881 = vsel %vm634, %v2877, 0.0
      %v2882 = vsel %vm634, %v2878, 0.0
      %v2883 = vadd.f32 %v2881, %v2882
      %v2884 = vsel %vm634, %v2879, 0.0
      %v2885 = vadd.f32 %v2883, %v2884
      %v2886 = vsel %vm634, %v2880, 0.0
      %v2887 = vadd.f32 %v2885, %v2886
      %v2888 = vrot.slane %v2887, 4
      %v2889 = vadd.f32 %v2887, %v2888
      %v2890 = vrot.slane %v2889, 2
      %v2891 = vadd.f32 %v2889, %v2890
      %v2892 = vrot.slane %v2891, 1
      %v2893 = vadd.f32 %v2891, %v2892
      %v2894 = vmul.f32 %v2893, 0.17677669
      %v2895 = vsel %vm1200, %v2894, -1e+09
      %v2896 = vld [vmem:[%s1110 + $0x20] sm:$0xff]
      %v2897 = vld [vmem:[%s1110 + $0x28] sm:$0xff]
      %v2898 = vld [vmem:[%s1110 + $0x30] sm:$0xff]
      %v2899 = vld [vmem:[%s1110 + $0x38] sm:$0xff]
      %v2900 = vmul.f32 %v2731, %v2896
      %v2901 = vmul.f32 %v2732, %v2897
      %v2902 = vmul.f32 %v2733, %v2898
      %v2903 = vmul.f32 %v2734, %v2899
      %v2904 = vsel %vm634, %v2900, 0.0
      %v2905 = vsel %vm634, %v2901, 0.0
      %v2906 = vadd.f32 %v2904, %v2905
      %v2907 = vsel %vm634, %v2902, 0.0
      %v2908 = vadd.f32 %v2906, %v2907
      %v2909 = vsel %vm634, %v2903, 0.0
      %v2910 = vadd.f32 %v2908, %v2909
      %v2911 = vrot.slane %v2910, 4
      %v2912 = vadd.f32 %v2910, %v2911
      %v2913 = vrot.slane %v2912, 2
      %v2914 = vadd.f32 %v2912, %v2913
      %v2915 = vrot.slane %v2914, 1
      %v2916 = vadd.f32 %v2914, %v2915
      %v2917 = vmul.f32 %v2916, 0.17677669
      %v2918 = vsel %vm1226, %v2917, -1e+09
      %v2920 = vrot.slane %v2780, 1
      %v2922 = vmax.f32 %v2757, %v2920
      %v2924 = vrot.slane %v2803, 2
      %v2926 = vmax.f32 %v2922, %v2924
      %v2928 = vrot.slane %v2826, 3
      %v2930 = vmax.f32 %v2926, %v2928
      %v2932 = vrot.slane %v2849, 4
      %v2934 = vmax.f32 %v2930, %v2932
      %v2936 = vrot.slane %v2872, 4
      %v2938 = vmax.f32 %v2934, %v2936
      %v2940 = vrot.slane %v2895, 4
      %v2942 = vmax.f32 %v2938, %v2940
      %v2944 = vrot.slane %v2918, 4
      %v2946 = vmax.f32 %v2942, %v2944
      %v2947 = vsub.f32 %v2757, %v2946
      %v2948 = vmul.f32 %v2947, 1.442695
      %v2949 = vpow.pop %v2948
      %v2951 = vrot.slane %v2946, 7
      %v2953 = vsub.f32 %v2780, %v2951
      %v2954 = vmul.f32 %v2953, 1.442695
      %v2955 = vpow.pop %v2954
      %v2956 = vrot.slane %v2946, 6
      %v2958 = vsub.f32 %v2803, %v2956
      %v2959 = vmul.f32 %v2958, 1.442695
      %v2960 = vpow.pop %v2959
      %v2961 = vrot.slane %v2946, 5
      %v2963 = vsub.f32 %v2826, %v2961
      %v2964 = vmul.f32 %v2963, 1.442695
      %v2965 = vpow.pop %v2964
      %v2966 = vrot.slane %v2946, 4
      %v2968 = vsub.f32 %v2849, %v2966
      %v2969 = vmul.f32 %v2968, 1.442695
      %v2970 = vpow.pop %v2969
      %v2971 = vsub.f32 %v2872, %v2966
      %v2972 = vmul.f32 %v2971, 1.442695
      %v2973 = vpow.pop %v2972
      %v2974 = vsub.f32 %v2895, %v2966
      %v2975 = vmul.f32 %v2974, 1.442695
      %v2976 = vpow.pop %v2975
      %v2977 = vsub.f32 %v2918, %v2966
      %v2978 = vmul.f32 %v2977, 1.442695
      %v2979 = vpow.pop %v2978
      %v2981 = vrot.slane %v2955, 1
      %v2983 = vadd.f32 %v2949, %v2981
      %v2985 = vrot.slane %v2960, 2
      %v2987 = vadd.f32 %v2983, %v2985
      %v2989 = vrot.slane %v2965, 3
      %v2991 = vadd.f32 %v2987, %v2989
      %v2993 = vrot.slane %v2970, 4
      %v2995 = vadd.f32 %v2991, %v2993
      %v2997 = vrot.slane %v2973, 4
      %v2999 = vadd.f32 %v2995, %v2997
      %v3001 = vrot.slane %v2976, 4
      %v3003 = vadd.f32 %v2999, %v3001
      %v3005 = vrot.slane %v2979, 4
      %v3007 = vadd.f32 %v3003, %v3005
      %v3008 = vrcp.pop %v3007
      %v3009 = vmul.f32 %v3007, %v3008
      %v3010 = vsub.f32 1.0, %v3009
      %v3011 = vmul.f32 %v3008, %v3010
      %v3012 = vadd.f32 %v3008, %v3011
      %vm3013 = vweird.f32 %v3007
      %vm3014 = vweird.f32 %v3008
      %vm3015 = vmor %vm3013, %vm3014
      %v3016 = vsel %vm3015, %v3008, %v3012
      %v3017 = vand.u32 2147483647, %v3007
      %vm3018 = vcmp.eq.f32.partialorder %v3017, 8.507059e+37
      %v3019 = vand.u32 %v3007, 2147483648
      %v3020 = vor.u32 1.1754944e-38, %v3019
      %v3021 = vsel %vm3018, %v3020, %v3016
      %v3022 = vmul.f32 1.0, %v3021
      %v3023 = vmul.f32 %v2949, %v3022
      %v3024 = vld [vmem:[#allocation2 + $0x40] sm:$0xff]
      %v3025 = vld [vmem:[#allocation2 + $0x48] sm:$0xff]
      %v3026 = vld [vmem:[#allocation2 + $0x50] sm:$0xff]
      %v3027 = vld [vmem:[#allocation2 + $0x58] sm:$0xff]
      %v3028 = vperm.slane %v3023, 0
      %v3029 = vmul.f32 %v3028, %v3024
      %v3030 = vmul.f32 %v3028, %v3025
      %v3031 = vmul.f32 %v3028, %v3026
      %v3032 = vmul.f32 %v3028, %v3027
      %v3033 = vadd.f32 %v3029, 0.0
      %v3034 = vadd.f32 %v3030, 0.0
      %v3035 = vadd.f32 %v3031, 0.0
      %v3036 = vadd.f32 %v3032, 0.0
      %v3038 = vrot.slane %v3022, 7
      %v3040 = vmul.f32 %v2955, %v3038
      %v3041 = vld [vmem:[%s702 + $0x40] sm:$0xff]
      %v3042 = vld [vmem:[%s702 + $0x48] sm:$0xff]
      %v3043 = vld [vmem:[%s702 + $0x50] sm:$0xff]
      %v3044 = vld [vmem:[%s702 + $0x58] sm:$0xff]
      %v3045 = vperm.slane %v3040, 1
      %v3046 = vmul.f32 %v3045, %v3041
      %v3047 = vmul.f32 %v3045, %v3042
      %v3048 = vmul.f32 %v3045, %v3043
      %v3049 = vmul.f32 %v3045, %v3044
      %v3050 = vadd.f32 %v3033, %v3046
      %v3051 = vadd.f32 %v3034, %v3047
      %v3052 = vadd.f32 %v3035, %v3048
      %v3053 = vadd.f32 %v3036, %v3049
      %v3054 = vrot.slane %v3022, 6
      %v3056 = vmul.f32 %v2960, %v3054
      %v3057 = vld [vmem:[%s770 + $0x40] sm:$0xff]
      %v3058 = vld [vmem:[%s770 + $0x48] sm:$0xff]
      %v3059 = vld [vmem:[%s770 + $0x50] sm:$0xff]
      %v3060 = vld [vmem:[%s770 + $0x58] sm:$0xff]
      %v3061 = vperm.slane %v3056, 2
      %v3062 = vmul.f32 %v3061, %v3057
      %v3063 = vmul.f32 %v3061, %v3058
      %v3064 = vmul.f32 %v3061, %v3059
      %v3065 = vmul.f32 %v3061, %v3060
      %v3066 = vadd.f32 %v3050, %v3062
      %v3067 = vadd.f32 %v3051, %v3063
      %v3068 = vadd.f32 %v3052, %v3064
      %v3069 = vadd.f32 %v3053, %v3065
      %v3070 = vrot.slane %v3022, 5
      %v3072 = vmul.f32 %v2965, %v3070
      %v3073 = vld [vmem:[%s838 + $0x40] sm:$0xff]
      %v3074 = vld [vmem:[%s838 + $0x48] sm:$0xff]
      %v3075 = vld [vmem:[%s838 + $0x50] sm:$0xff]
      %v3076 = vld [vmem:[%s838 + $0x58] sm:$0xff]
      %v3077 = vperm.slane %v3072, 3
      %v3078 = vmul.f32 %v3077, %v3073
      %v3079 = vmul.f32 %v3077, %v3074
      %v3080 = vmul.f32 %v3077, %v3075
      %v3081 = vmul.f32 %v3077, %v3076
      %v3082 = vadd.f32 %v3066, %v3078
      %v3083 = vadd.f32 %v3067, %v3079
      %v3084 = vadd.f32 %v3068, %v3080
      %v3085 = vadd.f32 %v3069, %v3081
      %v3086 = vrot.slane %v3022, 4
      %v3088 = vmul.f32 %v2970, %v3086
      %v3089 = vld [vmem:[%s906 + $0x40] sm:$0xff]
      %v3090 = vld [vmem:[%s906 + $0x48] sm:$0xff]
      %v3091 = vld [vmem:[%s906 + $0x50] sm:$0xff]
      %v3092 = vld [vmem:[%s906 + $0x58] sm:$0xff]
      %v3093 = vperm.slane %v3088, 4
      %v3094 = vmul.f32 %v3093, %v3089
      %v3095 = vmul.f32 %v3093, %v3090
      %v3096 = vmul.f32 %v3093, %v3091
      %v3097 = vmul.f32 %v3093, %v3092
      %v3098 = vadd.f32 %v3082, %v3094
      %v3099 = vadd.f32 %v3083, %v3095
      %v3100 = vadd.f32 %v3084, %v3096
      %v3101 = vadd.f32 %v3085, %v3097
      %v3102 = vmul.f32 %v2973, %v3086
      %v3103 = vld [vmem:[%s974 + $0x40] sm:$0xff]
      %v3104 = vld [vmem:[%s974 + $0x48] sm:$0xff]
      %v3105 = vld [vmem:[%s974 + $0x50] sm:$0xff]
      %v3106 = vld [vmem:[%s974 + $0x58] sm:$0xff]
      %v3107 = vperm.slane %v3102, 4
      %v3108 = vmul.f32 %v3107, %v3103
      %v3109 = vmul.f32 %v3107, %v3104
      %v3110 = vmul.f32 %v3107, %v3105
      %v3111 = vmul.f32 %v3107, %v3106
      %v3112 = vadd.f32 %v3098, %v3108
      %v3113 = vadd.f32 %v3099, %v3109
      %v3114 = vadd.f32 %v3100, %v3110
      %v3115 = vadd.f32 %v3101, %v3111
      %v3116 = vmul.f32 %v2976, %v3086
      %v3117 = vld [vmem:[%s1042 + $0x40] sm:$0xff]
      %v3118 = vld [vmem:[%s1042 + $0x48] sm:$0xff]
      %v3119 = vld [vmem:[%s1042 + $0x50] sm:$0xff]
      %v3120 = vld [vmem:[%s1042 + $0x58] sm:$0xff]
      %v3121 = vperm.slane %v3116, 4
      %v3122 = vmul.f32 %v3121, %v3117
      %v3123 = vmul.f32 %v3121, %v3118
      %v3124 = vmul.f32 %v3121, %v3119
      %v3125 = vmul.f32 %v3121, %v3120
      %v3126 = vadd.f32 %v3112, %v3122
      %v3127 = vadd.f32 %v3113, %v3123
      %v3128 = vadd.f32 %v3114, %v3124
      %v3129 = vadd.f32 %v3115, %v3125
      %v3130 = vmul.f32 %v2979, %v3086
      %v3131 = vld [vmem:[%s1110 + $0x40] sm:$0xff]
      %v3132 = vld [vmem:[%s1110 + $0x48] sm:$0xff]
      %v3133 = vld [vmem:[%s1110 + $0x50] sm:$0xff]
      %v3134 = vld [vmem:[%s1110 + $0x58] sm:$0xff]
      %v3135 = vperm.slane %v3130, 4
      %v3136 = vmul.f32 %v3135, %v3131
      %v3137 = vmul.f32 %v3135, %v3132
      %v3138 = vmul.f32 %v3135, %v3133
      %v3139 = vmul.f32 %v3135, %v3134
      %v3140 = vadd.f32 %v3126, %v3136
      %v3141 = vadd.f32 %v3127, %v3137
      %v3142 = vadd.f32 %v3128, %v3138
      %v3143 = vadd.f32 %v3129, %v3139
      %s3144 = scalar_lea.vmem [#allocation3], 128
      %3145 = vst.msk [vmem:[%s3144] sm:$0xff] %vm634, %v3140
      %3146 = vst.msk [vmem:[%s3144 + $0x8] sm:$0xff] %vm634, %v3141
      %3147 = vst.msk [vmem:[%s3144 + $0x10] sm:$0xff] %vm634, %v3142
      %3148 = vst.msk [vmem:[%s3144 + $0x18] sm:$0xff] %vm634, %v3143
      %v3149 = vld [vmem:[%s974] sm:$0xff]
      %v3150 = vld [vmem:[%s974 + $0x8] sm:$0xff]
      %v3151 = vld [vmem:[%s974 + $0x10] sm:$0xff]
      %v3152 = vld [vmem:[%s974 + $0x18] sm:$0xff]
      %v3153 = vld [vmem:[#allocation2 + $0x20] sm:$0xff]
      %v3154 = vld [vmem:[#allocation2 + $0x28] sm:$0xff]
      %v3155 = vld [vmem:[#allocation2 + $0x30] sm:$0xff]
      %v3156 = vld [vmem:[#allocation2 + $0x38] sm:$0xff]
      %v3157 = vmul.f32 %v3149, %v3153
      %v3158 = vmul.f32 %v3150, %v3154
      %v3159 = vmul.f32 %v3151, %v3155
      %v3160 = vmul.f32 %v3152, %v3156
      %v3161 = vsel %vm634, %v3157, 0.0
      %v3162 = vsel %vm634, %v3158, 0.0
      %v3163 = vadd.f32 %v3161, %v3162
      %v3164 = vsel %vm634, %v3159, 0.0
      %v3165 = vadd.f32 %v3163, %v3164
      %v3166 = vsel %vm634, %v3160, 0.0
      %v3167 = vadd.f32 %v3165, %v3166
      %v3168 = vrot.slane %v3167, 4
      %v3169 = vadd.f32 %v3167, %v3168
      %v3170 = vrot.slane %v3169, 2
      %v3171 = vadd.f32 %v3169, %v3170
      %v3172 = vrot.slane %v3171, 1
      %v3173 = vadd.f32 %v3171, %v3172
      %v3174 = vmul.f32 %v3173, 0.17677669
      %v3175 = vsel %vm1278, %v3174, -1e+09
      %v3176 = vld [vmem:[%s702 + $0x20] sm:$0xff]
      %v3177 = vld [vmem:[%s702 + $0x28] sm:$0xff]
      %v3178 = vld [vmem:[%s702 + $0x30] sm:$0xff]
      %v3179 = vld [vmem:[%s702 + $0x38] sm:$0xff]
      %v3180 = vmul.f32 %v3149, %v3176
      %v3181 = vmul.f32 %v3150, %v3177
      %v3182 = vmul.f32 %v3151, %v3178
      %v3183 = vmul.f32 %v3152, %v3179
      %v3184 = vsel %vm634, %v3180, 0.0
      %v3185 = vsel %vm634, %v3181, 0.0
      %v3186 = vadd.f32 %v3184, %v3185
      %v3187 = vsel %vm634, %v3182, 0.0
      %v3188 = vadd.f32 %v3186, %v3187
      %v3189 = vsel %vm634, %v3183, 0.0
      %v3190 = vadd.f32 %v3188, %v3189
      %v3191 = vrot.slane %v3190, 4
      %v3192 = vadd.f32 %v3190, %v3191
      %v3193 = vrot.slane %v3192, 2
      %v3194 = vadd.f32 %v3192, %v3193
      %v3195 = vrot.slane %v3194, 1
      %v3196 = vadd.f32 %v3194, %v3195
      %v3197 = vmul.f32 %v3196, 0.17677669
      %v3198 = vsel %vm1252, %v3197, -1e+09
      %v3199 = vld [vmem:[%s770 + $0x20] sm:$0xff]
      %v3200 = vld [vmem:[%s770 + $0x28] sm:$0xff]
      %v3201 = vld [vmem:[%s770 + $0x30] sm:$0xff]
      %v3202 = vld [vmem:[%s770 + $0x38] sm:$0xff]
      %v3203 = vmul.f32 %v3149, %v3199
      %v3204 = vmul.f32 %v3150, %v3200
      %v3205 = vmul.f32 %v3151, %v3201
      %v3206 = vmul.f32 %v3152, %v3202
      %v3207 = vsel %vm634, %v3203, 0.0
      %v3208 = vsel %vm634, %v3204, 0.0
      %v3209 = vadd.f32 %v3207, %v3208
      %v3210 = vsel %vm634, %v3205, 0.0
      %v3211 = vadd.f32 %v3209, %v3210
      %v3212 = vsel %vm634, %v3206, 0.0
      %v3213 = vadd.f32 %v3211, %v3212
      %v3214 = vrot.slane %v3213, 4
      %v3215 = vadd.f32 %v3213, %v3214
      %v3216 = vrot.slane %v3215, 2
      %v3217 = vadd.f32 %v3215, %v3216
      %v3218 = vrot.slane %v3217, 1
      %v3219 = vadd.f32 %v3217, %v3218
      %v3220 = vmul.f32 %v3219, 0.17677669
      %v3221 = vsel %vm1226, %v3220, -1e+09
      %v3222 = vld [vmem:[%s838 + $0x20] sm:$0xff]
      %v3223 = vld [vmem:[%s838 + $0x28] sm:$0xff]
      %v3224 = vld [vmem:[%s838 + $0x30] sm:$0xff]
      %v3225 = vld [vmem:[%s838 + $0x38] sm:$0xff]
      %v3226 = vmul.f32 %v3149, %v3222
      %v3227 = vmul.f32 %v3150, %v3223
      %v3228 = vmul.f32 %v3151, %v3224
      %v3229 = vmul.f32 %v3152, %v3225
      %v3230 = vsel %vm634, %v3226, 0.0
      %v3231 = vsel %vm634, %v3227, 0.0
      %v3232 = vadd.f32 %v3230, %v3231
      %v3233 = vsel %vm634, %v3228, 0.0
      %v3234 = vadd.f32 %v3232, %v3233
      %v3235 = vsel %vm634, %v3229, 0.0
      %v3236 = vadd.f32 %v3234, %v3235
      %v3237 = vrot.slane %v3236, 4
      %v3238 = vadd.f32 %v3236, %v3237
      %v3239 = vrot.slane %v3238, 2
      %v3240 = vadd.f32 %v3238, %v3239
      %v3241 = vrot.slane %v3240, 1
      %v3242 = vadd.f32 %v3240, %v3241
      %v3243 = vmul.f32 %v3242, 0.17677669
      %v3244 = vsel %vm1200, %v3243, -1e+09
      %v3245 = vld [vmem:[%s906 + $0x20] sm:$0xff]
      %v3246 = vld [vmem:[%s906 + $0x28] sm:$0xff]
      %v3247 = vld [vmem:[%s906 + $0x30] sm:$0xff]
      %v3248 = vld [vmem:[%s906 + $0x38] sm:$0xff]
      %v3249 = vmul.f32 %v3149, %v3245
      %v3250 = vmul.f32 %v3150, %v3246
      %v3251 = vmul.f32 %v3151, %v3247
      %v3252 = vmul.f32 %v3152, %v3248
      %v3253 = vsel %vm634, %v3249, 0.0
      %v3254 = vsel %vm634, %v3250, 0.0
      %v3255 = vadd.f32 %v3253, %v3254
      %v3256 = vsel %vm634, %v3251, 0.0
      %v3257 = vadd.f32 %v3255, %v3256
      %v3258 = vsel %vm634, %v3252, 0.0
      %v3259 = vadd.f32 %v3257, %v3258
      %v3260 = vrot.slane %v3259, 4
      %v3261 = vadd.f32 %v3259, %v3260
      %v3262 = vrot.slane %v3261, 2
      %v3263 = vadd.f32 %v3261, %v3262
      %v3264 = vrot.slane %v3263, 1
      %v3265 = vadd.f32 %v3263, %v3264
      %v3266 = vmul.f32 %v3265, 0.17677669
      %v3267 = vsel %vm1174, %v3266, -1e+09
      %v3268 = vld [vmem:[%s974 + $0x20] sm:$0xff]
      %v3269 = vld [vmem:[%s974 + $0x28] sm:$0xff]
      %v3270 = vld [vmem:[%s974 + $0x30] sm:$0xff]
      %v3271 = vld [vmem:[%s974 + $0x38] sm:$0xff]
      %v3272 = vmul.f32 %v3149, %v3268
      %v3273 = vmul.f32 %v3150, %v3269
      %v3274 = vmul.f32 %v3151, %v3270
      %v3275 = vmul.f32 %v3152, %v3271
      %v3276 = vsel %vm634, %v3272, 0.0
      %v3277 = vsel %vm634, %v3273, 0.0
      %v3278 = vadd.f32 %v3276, %v3277
      %v3279 = vsel %vm634, %v3274, 0.0
      %v3280 = vadd.f32 %v3278, %v3279
      %v3281 = vsel %vm634, %v3275, 0.0
      %v3282 = vadd.f32 %v3280, %v3281
      %v3283 = vrot.slane %v3282, 4
      %v3284 = vadd.f32 %v3282, %v3283
      %v3285 = vrot.slane %v3284, 2
      %v3286 = vadd.f32 %v3284, %v3285
      %v3287 = vrot.slane %v3286, 1
      %v3288 = vadd.f32 %v3286, %v3287
      %v3289 = vmul.f32 %v3288, 0.17677669
      %v3290 = vsel %vm454, %v3289, -1e+09
      %v3291 = vld [vmem:[%s1042 + $0x20] sm:$0xff]
      %v3292 = vld [vmem:[%s1042 + $0x28] sm:$0xff]
      %v3293 = vld [vmem:[%s1042 + $0x30] sm:$0xff]
      %v3294 = vld [vmem:[%s1042 + $0x38] sm:$0xff]
      %v3295 = vmul.f32 %v3149, %v3291
      %v3296 = vmul.f32 %v3150, %v3292
      %v3297 = vmul.f32 %v3151, %v3293
      %v3298 = vmul.f32 %v3152, %v3294
      %v3299 = vsel %vm634, %v3295, 0.0
      %v3300 = vsel %vm634, %v3296, 0.0
      %v3301 = vadd.f32 %v3299, %v3300
      %v3302 = vsel %vm634, %v3297, 0.0
      %v3303 = vadd.f32 %v3301, %v3302
      %v3304 = vsel %vm634, %v3298, 0.0
      %v3305 = vadd.f32 %v3303, %v3304
      %v3306 = vrot.slane %v3305, 4
      %v3307 = vadd.f32 %v3305, %v3306
      %v3308 = vrot.slane %v3307, 2
      %v3309 = vadd.f32 %v3307, %v3308
      %v3310 = vrot.slane %v3309, 1
      %v3311 = vadd.f32 %v3309, %v3310
      %v3312 = vmul.f32 %v3311, 0.17677669
      %v3313 = vsel %vm1174, %v3312, -1e+09
      %v3314 = vld [vmem:[%s1110 + $0x20] sm:$0xff]
      %v3315 = vld [vmem:[%s1110 + $0x28] sm:$0xff]
      %v3316 = vld [vmem:[%s1110 + $0x30] sm:$0xff]
      %v3317 = vld [vmem:[%s1110 + $0x38] sm:$0xff]
      %v3318 = vmul.f32 %v3149, %v3314
      %v3319 = vmul.f32 %v3150, %v3315
      %v3320 = vmul.f32 %v3151, %v3316
      %v3321 = vmul.f32 %v3152, %v3317
      %v3322 = vsel %vm634, %v3318, 0.0
      %v3323 = vsel %vm634, %v3319, 0.0
      %v3324 = vadd.f32 %v3322, %v3323
      %v3325 = vsel %vm634, %v3320, 0.0
      %v3326 = vadd.f32 %v3324, %v3325
      %v3327 = vsel %vm634, %v3321, 0.0
      %v3328 = vadd.f32 %v3326, %v3327
      %v3329 = vrot.slane %v3328, 4
      %v3330 = vadd.f32 %v3328, %v3329
      %v3331 = vrot.slane %v3330, 2
      %v3332 = vadd.f32 %v3330, %v3331
      %v3333 = vrot.slane %v3332, 1
      %v3334 = vadd.f32 %v3332, %v3333
      %v3335 = vmul.f32 %v3334, 0.17677669
      %v3336 = vsel %vm1200, %v3335, -1e+09
      %v3338 = vrot.slane %v3198, 1
      %v3340 = vmax.f32 %v3175, %v3338
      %v3342 = vrot.slane %v3221, 2
      %v3344 = vmax.f32 %v3340, %v3342
      %v3346 = vrot.slane %v3244, 3
      %v3348 = vmax.f32 %v3344, %v3346
      %v3350 = vrot.slane %v3267, 4
      %v3352 = vmax.f32 %v3348, %v3350
      %v3354 = vrot.slane %v3290, 5
      %v3356 = vmax.f32 %v3352, %v3354
      %v3358 = vrot.slane %v3313, 5
      %v3360 = vmax.f32 %v3356, %v3358
      %v3362 = vrot.slane %v3336, 5
      %v3364 = vmax.f32 %v3360, %v3362
      %v3365 = vsub.f32 %v3175, %v3364
      %v3366 = vmul.f32 %v3365, 1.442695
      %v3367 = vpow.pop %v3366
      %v3369 = vrot.slane %v3364, 7
      %v3371 = vsub.f32 %v3198, %v3369
      %v3372 = vmul.f32 %v3371, 1.442695
      %v3373 = vpow.pop %v3372
      %v3374 = vrot.slane %v3364, 6
      %v3376 = vsub.f32 %v3221, %v3374
      %v3377 = vmul.f32 %v3376, 1.442695
      %v3378 = vpow.pop %v3377
      %v3379 = vrot.slane %v3364, 5
      %v3381 = vsub.f32 %v3244, %v3379
      %v3382 = vmul.f32 %v3381, 1.442695
      %v3383 = vpow.pop %v3382
      %v3384 = vrot.slane %v3364, 4
      %v3386 = vsub.f32 %v3267, %v3384
      %v3387 = vmul.f32 %v3386, 1.442695
      %v3388 = vpow.pop %v3387
      %v3389 = vrot.slane %v3364, 3
      %v3391 = vsub.f32 %v3290, %v3389
      %v3392 = vmul.f32 %v3391, 1.442695
      %v3393 = vpow.pop %v3392
      %v3394 = vsub.f32 %v3313, %v3389
      %v3395 = vmul.f32 %v3394, 1.442695
      %v3396 = vpow.pop %v3395
      %v3397 = vsub.f32 %v3336, %v3389
      %v3398 = vmul.f32 %v3397, 1.442695
      %v3399 = vpow.pop %v3398
      %v3401 = vrot.slane %v3373, 1
      %v3403 = vadd.f32 %v3367, %v3401
      %v3405 = vrot.slane %v3378, 2
      %v3407 = vadd.f32 %v3403, %v3405
      %v3409 = vrot.slane %v3383, 3
      %v3411 = vadd.f32 %v3407, %v3409
      %v3413 = vrot.slane %v3388, 4
      %v3415 = vadd.f32 %v3411, %v3413
      %v3417 = vrot.slane %v3393, 5
      %v3419 = vadd.f32 %v3415, %v3417
      %v3421 = vrot.slane %v3396, 5
      %v3423 = vadd.f32 %v3419, %v3421
      %v3425 = vrot.slane %v3399, 5
      %v3427 = vadd.f32 %v3423, %v3425
      %v3428 = vrcp.pop %v3427
      %v3429 = vmul.f32 %v3427, %v3428
      %v3430 = vsub.f32 1.0, %v3429
      %v3431 = vmul.f32 %v3428, %v3430
      %v3432 = vadd.f32 %v3428, %v3431
      %vm3433 = vweird.f32 %v3427
      %vm3434 = vweird.f32 %v3428
      %vm3435 = vmor %vm3433, %vm3434
      %v3436 = vsel %vm3435, %v3428, %v3432
      %v3437 = vand.u32 2147483647, %v3427
      %vm3438 = vcmp.eq.f32.partialorder %v3437, 8.507059e+37
      %v3439 = vand.u32 %v3427, 2147483648
      %v3440 = vor.u32 1.1754944e-38, %v3439
      %v3441 = vsel %vm3438, %v3440, %v3436
      %v3442 = vmul.f32 1.0, %v3441
      %v3443 = vmul.f32 %v3367, %v3442
      %v3444 = vld [vmem:[#allocation2 + $0x40] sm:$0xff]
      %v3445 = vld [vmem:[#allocation2 + $0x48] sm:$0xff]
      %v3446 = vld [vmem:[#allocation2 + $0x50] sm:$0xff]
      %v3447 = vld [vmem:[#allocation2 + $0x58] sm:$0xff]
      %v3448 = vperm.slane %v3443, 0
      %v3449 = vmul.f32 %v3448, %v3444
      %v3450 = vmul.f32 %v3448, %v3445
      %v3451 = vmul.f32 %v3448, %v3446
      %v3452 = vmul.f32 %v3448, %v3447
      %v3453 = vadd.f32 %v3449, 0.0
      %v3454 = vadd.f32 %v3450, 0.0
      %v3455 = vadd.f32 %v3451, 0.0
      %v3456 = vadd.f32 %v3452, 0.0
      %v3458 = vrot.slane %v3442, 7
      %v3460 = vmul.f32 %v3373, %v3458
      %v3461 = vld [vmem:[%s702 + $0x40] sm:$0xff]
      %v3462 = vld [vmem:[%s702 + $0x48] sm:$0xff]
      %v3463 = vld [vmem:[%s702 + $0x50] sm:$0xff]
      %v3464 = vld [vmem:[%s702 + $0x58] sm:$0xff]
      %v3465 = vperm.slane %v3460, 1
      %v3466 = vmul.f32 %v3465, %v3461
      %v3467 = vmul.f32 %v3465, %v3462
      %v3468 = vmul.f32 %v3465, %v3463
      %v3469 = vmul.f32 %v3465, %v3464
      %v3470 = vadd.f32 %v3453, %v3466
      %v3471 = vadd.f32 %v3454, %v3467
      %v3472 = vadd.f32 %v3455, %v3468
      %v3473 = vadd.f32 %v3456, %v3469
      %v3474 = vrot.slane %v3442, 6
      %v3476 = vmul.f32 %v3378, %v3474
      %v3477 = vld [vmem:[%s770 + $0x40] sm:$0xff]
      %v3478 = vld [vmem:[%s770 + $0x48] sm:$0xff]
      %v3479 = vld [vmem:[%s770 + $0x50] sm:$0xff]
      %v3480 = vld [vmem:[%s770 + $0x58] sm:$0xff]
      %v3481 = vperm.slane %v3476, 2
      %v3482 = vmul.f32 %v3481, %v3477
      %v3483 = vmul.f32 %v3481, %v3478
      %v3484 = vmul.f32 %v3481, %v3479
      %v3485 = vmul.f32 %v3481, %v3480
      %v3486 = vadd.f32 %v3470, %v3482
      %v3487 = vadd.f32 %v3471, %v3483
      %v3488 = vadd.f32 %v3472, %v3484
      %v3489 = vadd.f32 %v3473, %v3485
      %v3490 = vrot.slane %v3442, 5
      %v3492 = vmul.f32 %v3383, %v3490
      %v3493 = vld [vmem:[%s838 + $0x40] sm:$0xff]
      %v3494 = vld [vmem:[%s838 + $0x48] sm:$0xff]
      %v3495 = vld [vmem:[%s838 + $0x50] sm:$0xff]
      %v3496 = vld [vmem:[%s838 + $0x58] sm:$0xff]
      %v3497 = vperm.slane %v3492, 3
      %v3498 = vmul.f32 %v3497, %v3493
      %v3499 = vmul.f32 %v3497, %v3494
      %v3500 = vmul.f32 %v3497, %v3495
      %v3501 = vmul.f32 %v3497, %v3496
      %v3502 = vadd.f32 %v3486, %v3498
      %v3503 = vadd.f32 %v3487, %v3499
      %v3504 = vadd.f32 %v3488, %v3500
      %v3505 = vadd.f32 %v3489, %v3501
      %v3506 = vrot.slane %v3442, 4
      %v3508 = vmul.f32 %v3388, %v3506
      %v3509 = vld [vmem:[%s906 + $0x40] sm:$0xff]
      %v3510 = vld [vmem:[%s906 + $0x48] sm:$0xff]
      %v3511 = vld [vmem:[%s906 + $0x50] sm:$0xff]
      %v3512 = vld [vmem:[%s906 + $0x58] sm:$0xff]
      %v3513 = vperm.slane %v3508, 4
      %v3514 = vmul.f32 %v3513, %v3509
      %v3515 = vmul.f32 %v3513, %v3510
      %v3516 = vmul.f32 %v3513, %v3511
      %v3517 = vmul.f32 %v3513, %v3512
      %v3518 = vadd.f32 %v3502, %v3514
      %v3519 = vadd.f32 %v3503, %v3515
      %v3520 = vadd.f32 %v3504, %v3516
      %v3521 = vadd.f32 %v3505, %v3517
      %v3522 = vrot.slane %v3442, 3
      %v3524 = vmul.f32 %v3393, %v3522
      %v3525 = vld [vmem:[%s974 + $0x40] sm:$0xff]
      %v3526 = vld [vmem:[%s974 + $0x48] sm:$0xff]
      %v3527 = vld [vmem:[%s974 + $0x50] sm:$0xff]
      %v3528 = vld [vmem:[%s974 + $0x58] sm:$0xff]
      %v3529 = vperm.slane %v3524, 5
      %v3530 = vmul.f32 %v3529, %v3525
      %v3531 = vmul.f32 %v3529, %v3526
      %v3532 = vmul.f32 %v3529, %v3527
      %v3533 = vmul.f32 %v3529, %v3528
      %v3534 = vadd.f32 %v3518, %v3530
      %v3535 = vadd.f32 %v3519, %v3531
      %v3536 = vadd.f32 %v3520, %v3532
      %v3537 = vadd.f32 %v3521, %v3533
      %v3538 = vmul.f32 %v3396, %v3522
      %v3539 = vld [vmem:[%s1042 + $0x40] sm:$0xff]
      %v3540 = vld [vmem:[%s1042 + $0x48] sm:$0xff]
      %v3541 = vld [vmem:[%s1042 + $0x50] sm:$0xff]
      %v3542 = vld [vmem:[%s1042 + $0x58] sm:$0xff]
      %v3543 = vperm.slane %v3538, 5
      %v3544 = vmul.f32 %v3543, %v3539
      %v3545 = vmul.f32 %v3543, %v3540
      %v3546 = vmul.f32 %v3543, %v3541
      %v3547 = vmul.f32 %v3543, %v3542
      %v3548 = vadd.f32 %v3534, %v3544
      %v3549 = vadd.f32 %v3535, %v3545
      %v3550 = vadd.f32 %v3536, %v3546
      %v3551 = vadd.f32 %v3537, %v3547
      %v3552 = vmul.f32 %v3399, %v3522
      %v3553 = vld [vmem:[%s1110 + $0x40] sm:$0xff]
      %v3554 = vld [vmem:[%s1110 + $0x48] sm:$0xff]
      %v3555 = vld [vmem:[%s1110 + $0x50] sm:$0xff]
      %v3556 = vld [vmem:[%s1110 + $0x58] sm:$0xff]
      %v3557 = vperm.slane %v3552, 5
      %v3558 = vmul.f32 %v3557, %v3553
      %v3559 = vmul.f32 %v3557, %v3554
      %v3560 = vmul.f32 %v3557, %v3555
      %v3561 = vmul.f32 %v3557, %v3556
      %v3562 = vadd.f32 %v3548, %v3558
      %v3563 = vadd.f32 %v3549, %v3559
      %v3564 = vadd.f32 %v3550, %v3560
      %v3565 = vadd.f32 %v3551, %v3561
      %s3566 = scalar_lea.vmem [#allocation3], 160
      %3567 = vst.msk [vmem:[%s3566] sm:$0xff] %vm634, %v3562
      %3568 = vst.msk [vmem:[%s3566 + $0x8] sm:$0xff] %vm634, %v3563
      %3569 = vst.msk [vmem:[%s3566 + $0x10] sm:$0xff] %vm634, %v3564
      %3570 = vst.msk [vmem:[%s3566 + $0x18] sm:$0xff] %vm634, %v3565
      %v3571 = vld [vmem:[%s1042] sm:$0xff]
      %v3572 = vld [vmem:[%s1042 + $0x8] sm:$0xff]
      %v3573 = vld [vmem:[%s1042 + $0x10] sm:$0xff]
      %v3574 = vld [vmem:[%s1042 + $0x18] sm:$0xff]
      %v3575 = vld [vmem:[#allocation2 + $0x20] sm:$0xff]
      %v3576 = vld [vmem:[#allocation2 + $0x28] sm:$0xff]
      %v3577 = vld [vmem:[#allocation2 + $0x30] sm:$0xff]
      %v3578 = vld [vmem:[#allocation2 + $0x38] sm:$0xff]
      %v3579 = vmul.f32 %v3571, %v3575
      %v3580 = vmul.f32 %v3572, %v3576
      %v3581 = vmul.f32 %v3573, %v3577
      %v3582 = vmul.f32 %v3574, %v3578
      %v3583 = vsel %vm634, %v3579, 0.0
      %v3584 = vsel %vm634, %v3580, 0.0
      %v3585 = vadd.f32 %v3583, %v3584
      %v3586 = vsel %vm634, %v3581, 0.0
      %v3587 = vadd.f32 %v3585, %v3586
      %v3588 = vsel %vm634, %v3582, 0.0
      %v3589 = vadd.f32 %v3587, %v3588
      %v3590 = vrot.slane %v3589, 4
      %v3591 = vadd.f32 %v3589, %v3590
      %v3592 = vrot.slane %v3591, 2
      %v3593 = vadd.f32 %v3591, %v3592
      %v3594 = vrot.slane %v3593, 1
      %v3595 = vadd.f32 %v3593, %v3594
      %v3596 = vmul.f32 %v3595, 0.17677669
      %v3597 = vsel %vm1304, %v3596, -1e+09
      %v3598 = vld [vmem:[%s702 + $0x20] sm:$0xff]
      %v3599 = vld [vmem:[%s702 + $0x28] sm:$0xff]
      %v3600 = vld [vmem:[%s702 + $0x30] sm:$0xff]
      %v3601 = vld [vmem:[%s702 + $0x38] sm:$0xff]
      %v3602 = vmul.f32 %v3571, %v3598
      %v3603 = vmul.f32 %v3572, %v3599
      %v3604 = vmul.f32 %v3573, %v3600
      %v3605 = vmul.f32 %v3574, %v3601
      %v3606 = vsel %vm634, %v3602, 0.0
      %v3607 = vsel %vm634, %v3603, 0.0
      %v3608 = vadd.f32 %v3606, %v3607
      %v3609 = vsel %vm634, %v3604, 0.0
      %v3610 = vadd.f32 %v3608, %v3609
      %v3611 = vsel %vm634, %v3605, 0.0
      %v3612 = vadd.f32 %v3610, %v3611
      %v3613 = vrot.slane %v3612, 4
      %v3614 = vadd.f32 %v3612, %v3613
      %v3615 = vrot.slane %v3614, 2
      %v3616 = vadd.f32 %v3614, %v3615
      %v3617 = vrot.slane %v3616, 1
      %v3618 = vadd.f32 %v3616, %v3617
      %v3619 = vmul.f32 %v3618, 0.17677669
      %v3620 = vsel %vm1278, %v3619, -1e+09
      %v3621 = vld [vmem:[%s770 + $0x20] sm:$0xff]
      %v3622 = vld [vmem:[%s770 + $0x28] sm:$0xff]
      %v3623 = vld [vmem:[%s770 + $0x30] sm:$0xff]
      %v3624 = vld [vmem:[%s770 + $0x38] sm:$0xff]
      %v3625 = vmul.f32 %v3571, %v3621
      %v3626 = vmul.f32 %v3572, %v3622
      %v3627 = vmul.f32 %v3573, %v3623
      %v3628 = vmul.f32 %v3574, %v3624
      %v3629 = vsel %vm634, %v3625, 0.0
      %v3630 = vsel %vm634, %v3626, 0.0
      %v3631 = vadd.f32 %v3629, %v3630
      %v3632 = vsel %vm634, %v3627, 0.0
      %v3633 = vadd.f32 %v3631, %v3632
      %v3634 = vsel %vm634, %v3628, 0.0
      %v3635 = vadd.f32 %v3633, %v3634
      %v3636 = vrot.slane %v3635, 4
      %v3637 = vadd.f32 %v3635, %v3636
      %v3638 = vrot.slane %v3637, 2
      %v3639 = vadd.f32 %v3637, %v3638
      %v3640 = vrot.slane %v3639, 1
      %v3641 = vadd.f32 %v3639, %v3640
      %v3642 = vmul.f32 %v3641, 0.17677669
      %v3643 = vsel %vm1252, %v3642, -1e+09
      %v3644 = vld [vmem:[%s838 + $0x20] sm:$0xff]
      %v3645 = vld [vmem:[%s838 + $0x28] sm:$0xff]
      %v3646 = vld [vmem:[%s838 + $0x30] sm:$0xff]
      %v3647 = vld [vmem:[%s838 + $0x38] sm:$0xff]
      %v3648 = vmul.f32 %v3571, %v3644
      %v3649 = vmul.f32 %v3572, %v3645
      %v3650 = vmul.f32 %v3573, %v3646
      %v3651 = vmul.f32 %v3574, %v3647
      %v3652 = vsel %vm634, %v3648, 0.0
      %v3653 = vsel %vm634, %v3649, 0.0
      %v3654 = vadd.f32 %v3652, %v3653
      %v3655 = vsel %vm634, %v3650, 0.0
      %v3656 = vadd.f32 %v3654, %v3655
      %v3657 = vsel %vm634, %v3651, 0.0
      %v3658 = vadd.f32 %v3656, %v3657
      %v3659 = vrot.slane %v3658, 4
      %v3660 = vadd.f32 %v3658, %v3659
      %v3661 = vrot.slane %v3660, 2
      %v3662 = vadd.f32 %v3660, %v3661
      %v3663 = vrot.slane %v3662, 1
      %v3664 = vadd.f32 %v3662, %v3663
      %v3665 = vmul.f32 %v3664, 0.17677669
      %v3666 = vsel %vm1226, %v3665, -1e+09
      %v3667 = vld [vmem:[%s906 + $0x20] sm:$0xff]
      %v3668 = vld [vmem:[%s906 + $0x28] sm:$0xff]
      %v3669 = vld [vmem:[%s906 + $0x30] sm:$0xff]
      %v3670 = vld [vmem:[%s906 + $0x38] sm:$0xff]
      %v3671 = vmul.f32 %v3571, %v3667
      %v3672 = vmul.f32 %v3572, %v3668
      %v3673 = vmul.f32 %v3573, %v3669
      %v3674 = vmul.f32 %v3574, %v3670
      %v3675 = vsel %vm634, %v3671, 0.0
      %v3676 = vsel %vm634, %v3672, 0.0
      %v3677 = vadd.f32 %v3675, %v3676
      %v3678 = vsel %vm634, %v3673, 0.0
      %v3679 = vadd.f32 %v3677, %v3678
      %v3680 = vsel %vm634, %v3674, 0.0
      %v3681 = vadd.f32 %v3679, %v3680
      %v3682 = vrot.slane %v3681, 4
      %v3683 = vadd.f32 %v3681, %v3682
      %v3684 = vrot.slane %v3683, 2
      %v3685 = vadd.f32 %v3683, %v3684
      %v3686 = vrot.slane %v3685, 1
      %v3687 = vadd.f32 %v3685, %v3686
      %v3688 = vmul.f32 %v3687, 0.17677669
      %v3689 = vsel %vm1200, %v3688, -1e+09
      %v3690 = vld [vmem:[%s974 + $0x20] sm:$0xff]
      %v3691 = vld [vmem:[%s974 + $0x28] sm:$0xff]
      %v3692 = vld [vmem:[%s974 + $0x30] sm:$0xff]
      %v3693 = vld [vmem:[%s974 + $0x38] sm:$0xff]
      %v3694 = vmul.f32 %v3571, %v3690
      %v3695 = vmul.f32 %v3572, %v3691
      %v3696 = vmul.f32 %v3573, %v3692
      %v3697 = vmul.f32 %v3574, %v3693
      %v3698 = vsel %vm634, %v3694, 0.0
      %v3699 = vsel %vm634, %v3695, 0.0
      %v3700 = vadd.f32 %v3698, %v3699
      %v3701 = vsel %vm634, %v3696, 0.0
      %v3702 = vadd.f32 %v3700, %v3701
      %v3703 = vsel %vm634, %v3697, 0.0
      %v3704 = vadd.f32 %v3702, %v3703
      %v3705 = vrot.slane %v3704, 4
      %v3706 = vadd.f32 %v3704, %v3705
      %v3707 = vrot.slane %v3706, 2
      %v3708 = vadd.f32 %v3706, %v3707
      %v3709 = vrot.slane %v3708, 1
      %v3710 = vadd.f32 %v3708, %v3709
      %v3711 = vmul.f32 %v3710, 0.17677669
      %v3712 = vsel %vm1174, %v3711, -1e+09
      %v3713 = vld [vmem:[%s1042 + $0x20] sm:$0xff]
      %v3714 = vld [vmem:[%s1042 + $0x28] sm:$0xff]
      %v3715 = vld [vmem:[%s1042 + $0x30] sm:$0xff]
      %v3716 = vld [vmem:[%s1042 + $0x38] sm:$0xff]
      %v3717 = vmul.f32 %v3571, %v3713
      %v3718 = vmul.f32 %v3572, %v3714
      %v3719 = vmul.f32 %v3573, %v3715
      %v3720 = vmul.f32 %v3574, %v3716
      %v3721 = vsel %vm634, %v3717, 0.0
      %v3722 = vsel %vm634, %v3718, 0.0
      %v3723 = vadd.f32 %v3721, %v3722
      %v3724 = vsel %vm634, %v3719, 0.0
      %v3725 = vadd.f32 %v3723, %v3724
      %v3726 = vsel %vm634, %v3720, 0.0
      %v3727 = vadd.f32 %v3725, %v3726
      %v3728 = vrot.slane %v3727, 4
      %v3729 = vadd.f32 %v3727, %v3728
      %v3730 = vrot.slane %v3729, 2
      %v3731 = vadd.f32 %v3729, %v3730
      %v3732 = vrot.slane %v3731, 1
      %v3733 = vadd.f32 %v3731, %v3732
      %v3734 = vmul.f32 %v3733, 0.17677669
      %v3735 = vsel %vm454, %v3734, -1e+09
      %v3736 = vld [vmem:[%s1110 + $0x20] sm:$0xff]
      %v3737 = vld [vmem:[%s1110 + $0x28] sm:$0xff]
      %v3738 = vld [vmem:[%s1110 + $0x30] sm:$0xff]
      %v3739 = vld [vmem:[%s1110 + $0x38] sm:$0xff]
      %v3740 = vmul.f32 %v3571, %v3736
      %v3741 = vmul.f32 %v3572, %v3737
      %v3742 = vmul.f32 %v3573, %v3738
      %v3743 = vmul.f32 %v3574, %v3739
      %v3744 = vsel %vm634, %v3740, 0.0
      %v3745 = vsel %vm634, %v3741, 0.0
      %v3746 = vadd.f32 %v3744, %v3745
      %v3747 = vsel %vm634, %v3742, 0.0
      %v3748 = vadd.f32 %v3746, %v3747
      %v3749 = vsel %vm634, %v3743, 0.0
      %v3750 = vadd.f32 %v3748, %v3749
      %v3751 = vrot.slane %v3750, 4
      %v3752 = vadd.f32 %v3750, %v3751
      %v3753 = vrot.slane %v3752, 2
      %v3754 = vadd.f32 %v3752, %v3753
      %v3755 = vrot.slane %v3754, 1
      %v3756 = vadd.f32 %v3754, %v3755
      %v3757 = vmul.f32 %v3756, 0.17677669
      %v3758 = vsel %vm1174, %v3757, -1e+09
      %v3760 = vrot.slane %v3620, 1
      %v3762 = vmax.f32 %v3597, %v3760
      %v3764 = vrot.slane %v3643, 2
      %v3766 = vmax.f32 %v3762, %v3764
      %v3768 = vrot.slane %v3666, 3
      %v3770 = vmax.f32 %v3766, %v3768
      %v3772 = vrot.slane %v3689, 4
      %v3774 = vmax.f32 %v3770, %v3772
      %v3776 = vrot.slane %v3712, 5
      %v3778 = vmax.f32 %v3774, %v3776
      %v3780 = vrot.slane %v3735, 6
      %v3782 = vmax.f32 %v3778, %v3780
      %v3784 = vrot.slane %v3758, 6
      %v3786 = vmax.f32 %v3782, %v3784
      %v3787 = vsub.f32 %v3597, %v3786
      %v3788 = vmul.f32 %v3787, 1.442695
      %v3789 = vpow.pop %v3788
      %v3791 = vrot.slane %v3786, 7
      %v3793 = vsub.f32 %v3620, %v3791
      %v3794 = vmul.f32 %v3793, 1.442695
      %v3795 = vpow.pop %v3794
      %v3796 = vrot.slane %v3786, 6
      %v3798 = vsub.f32 %v3643, %v3796
      %v3799 = vmul.f32 %v3798, 1.442695
      %v3800 = vpow.pop %v3799
      %v3801 = vrot.slane %v3786, 5
      %v3803 = vsub.f32 %v3666, %v3801
      %v3804 = vmul.f32 %v3803, 1.442695
      %v3805 = vpow.pop %v3804
      %v3806 = vrot.slane %v3786, 4
      %v3808 = vsub.f32 %v3689, %v3806
      %v3809 = vmul.f32 %v3808, 1.442695
      %v3810 = vpow.pop %v3809
      %v3811 = vrot.slane %v3786, 3
      %v3813 = vsub.f32 %v3712, %v3811
      %v3814 = vmul.f32 %v3813, 1.442695
      %v3815 = vpow.pop %v3814
      %v3816 = vrot.slane %v3786, 2
      %v3818 = vsub.f32 %v3735, %v3816
      %v3819 = vmul.f32 %v3818, 1.442695
      %v3820 = vpow.pop %v3819
      %v3821 = vsub.f32 %v3758, %v3816
      %v3822 = vmul.f32 %v3821, 1.442695
      %v3823 = vpow.pop %v3822
      %v3825 = vrot.slane %v3795, 1
      %v3827 = vadd.f32 %v3789, %v3825
      %v3829 = vrot.slane %v3800, 2
      %v3831 = vadd.f32 %v3827, %v3829
      %v3833 = vrot.slane %v3805, 3
      %v3835 = vadd.f32 %v3831, %v3833
      %v3837 = vrot.slane %v3810, 4
      %v3839 = vadd.f32 %v3835, %v3837
      %v3841 = vrot.slane %v3815, 5
      %v3843 = vadd.f32 %v3839, %v3841
      %v3845 = vrot.slane %v3820, 6
      %v3847 = vadd.f32 %v3843, %v3845
      %v3849 = vrot.slane %v3823, 6
      %v3851 = vadd.f32 %v3847, %v3849
      %v3852 = vrcp.pop %v3851
      %v3853 = vmul.f32 %v3851, %v3852
      %v3854 = vsub.f32 1.0, %v3853
      %v3855 = vmul.f32 %v3852, %v3854
      %v3856 = vadd.f32 %v3852, %v3855
      %vm3857 = vweird.f32 %v3851
      %vm3858 = vweird.f32 %v3852
      %vm3859 = vmor %vm3857, %vm3858
      %v3860 = vsel %vm3859, %v3852, %v3856
      %v3861 = vand.u32 2147483647, %v3851
      %vm3862 = vcmp.eq.f32.partialorder %v3861, 8.507059e+37
      %v3863 = vand.u32 %v3851, 2147483648
      %v3864 = vor.u32 1.1754944e-38, %v3863
      %v3865 = vsel %vm3862, %v3864, %v3860
      %v3866 = vmul.f32 1.0, %v3865
      %v3867 = vmul.f32 %v3789, %v3866
      %v3868 = vld [vmem:[#allocation2 + $0x40] sm:$0xff]
      %v3869 = vld [vmem:[#allocation2 + $0x48] sm:$0xff]
      %v3870 = vld [vmem:[#allocation2 + $0x50] sm:$0xff]
      %v3871 = vld [vmem:[#allocation2 + $0x58] sm:$0xff]
      %v3872 = vperm.slane %v3867, 0
      %v3873 = vmul.f32 %v3872, %v3868
      %v3874 = vmul.f32 %v3872, %v3869
      %v3875 = vmul.f32 %v3872, %v3870
      %v3876 = vmul.f32 %v3872, %v3871
      %v3877 = vadd.f32 %v3873, 0.0
      %v3878 = vadd.f32 %v3874, 0.0
      %v3879 = vadd.f32 %v3875, 0.0
      %v3880 = vadd.f32 %v3876, 0.0
      %v3882 = vrot.slane %v3866, 7
      %v3884 = vmul.f32 %v3795, %v3882
      %v3885 = vld [vmem:[%s702 + $0x40] sm:$0xff]
      %v3886 = vld [vmem:[%s702 + $0x48] sm:$0xff]
      %v3887 = vld [vmem:[%s702 + $0x50] sm:$0xff]
      %v3888 = vld [vmem:[%s702 + $0x58] sm:$0xff]
      %v3889 = vperm.slane %v3884, 1
      %v3890 = vmul.f32 %v3889, %v3885
      %v3891 = vmul.f32 %v3889, %v3886
      %v3892 = vmul.f32 %v3889, %v3887
      %v3893 = vmul.f32 %v3889, %v3888
      %v3894 = vadd.f32 %v3877, %v3890
      %v3895 = vadd.f32 %v3878, %v3891
      %v3896 = vadd.f32 %v3879, %v3892
      %v3897 = vadd.f32 %v3880, %v3893
      %v3898 = vrot.slane %v3866, 6
      %v3900 = vmul.f32 %v3800, %v3898
      %v3901 = vld [vmem:[%s770 + $0x40] sm:$0xff]
      %v3902 = vld [vmem:[%s770 + $0x48] sm:$0xff]
      %v3903 = vld [vmem:[%s770 + $0x50] sm:$0xff]
      %v3904 = vld [vmem:[%s770 + $0x58] sm:$0xff]
      %v3905 = vperm.slane %v3900, 2
      %v3906 = vmul.f32 %v3905, %v3901
      %v3907 = vmul.f32 %v3905, %v3902
      %v3908 = vmul.f32 %v3905, %v3903
      %v3909 = vmul.f32 %v3905, %v3904
      %v3910 = vadd.f32 %v3894, %v3906
      %v3911 = vadd.f32 %v3895, %v3907
      %v3912 = vadd.f32 %v3896, %v3908
      %v3913 = vadd.f32 %v3897, %v3909
      %v3914 = vrot.slane %v3866, 5
      %v3916 = vmul.f32 %v3805, %v3914
      %v3917 = vld [vmem:[%s838 + $0x40] sm:$0xff]
      %v3918 = vld [vmem:[%s838 + $0x48] sm:$0xff]
      %v3919 = vld [vmem:[%s838 + $0x50] sm:$0xff]
      %v3920 = vld [vmem:[%s838 + $0x58] sm:$0xff]
      %v3921 = vperm.slane %v3916, 3
      %v3922 = vmul.f32 %v3921, %v3917
      %v3923 = vmul.f32 %v3921, %v3918
      %v3924 = vmul.f32 %v3921, %v3919
      %v3925 = vmul.f32 %v3921, %v3920
      %v3926 = vadd.f32 %v3910, %v3922
      %v3927 = vadd.f32 %v3911, %v3923
      %v3928 = vadd.f32 %v3912, %v3924
      %v3929 = vadd.f32 %v3913, %v3925
      %v3930 = vrot.slane %v3866, 4
      %v3932 = vmul.f32 %v3810, %v3930
      %v3933 = vld [vmem:[%s906 + $0x40] sm:$0xff]
      %v3934 = vld [vmem:[%s906 + $0x48] sm:$0xff]
      %v3935 = vld [vmem:[%s906 + $0x50] sm:$0xff]
      %v3936 = vld [vmem:[%s906 + $0x58] sm:$0xff]
      %v3937 = vperm.slane %v3932, 4
      %v3938 = vmul.f32 %v3937, %v3933
      %v3939 = vmul.f32 %v3937, %v3934
      %v3940 = vmul.f32 %v3937, %v3935
      %v3941 = vmul.f32 %v3937, %v3936
      %v3942 = vadd.f32 %v3926, %v3938
      %v3943 = vadd.f32 %v3927, %v3939
      %v3944 = vadd.f32 %v3928, %v3940
      %v3945 = vadd.f32 %v3929, %v3941
      %v3946 = vrot.slane %v3866, 3
      %v3948 = vmul.f32 %v3815, %v3946
      %v3949 = vld [vmem:[%s974 + $0x40] sm:$0xff]
      %v3950 = vld [vmem:[%s974 + $0x48] sm:$0xff]
      %v3951 = vld [vmem:[%s974 + $0x50] sm:$0xff]
      %v3952 = vld [vmem:[%s974 + $0x58] sm:$0xff]
      %v3953 = vperm.slane %v3948, 5
      %v3954 = vmul.f32 %v3953, %v3949
      %v3955 = vmul.f32 %v3953, %v3950
      %v3956 = vmul.f32 %v3953, %v3951
      %v3957 = vmul.f32 %v3953, %v3952
      %v3958 = vadd.f32 %v3942, %v3954
      %v3959 = vadd.f32 %v3943, %v3955
      %v3960 = vadd.f32 %v3944, %v3956
      %v3961 = vadd.f32 %v3945, %v3957
      %v3962 = vrot.slane %v3866, 2
      %v3964 = vmul.f32 %v3820, %v3962
      %v3965 = vld [vmem:[%s1042 + $0x40] sm:$0xff]
      %v3966 = vld [vmem:[%s1042 + $0x48] sm:$0xff]
      %v3967 = vld [vmem:[%s1042 + $0x50] sm:$0xff]
      %v3968 = vld [vmem:[%s1042 + $0x58] sm:$0xff]
      %v3969 = vperm.slane %v3964, 6
      %v3970 = vmul.f32 %v3969, %v3965
      %v3971 = vmul.f32 %v3969, %v3966
      %v3972 = vmul.f32 %v3969, %v3967
      %v3973 = vmul.f32 %v3969, %v3968
      %v3974 = vadd.f32 %v3958, %v3970
      %v3975 = vadd.f32 %v3959, %v3971
      %v3976 = vadd.f32 %v3960, %v3972
      %v3977 = vadd.f32 %v3961, %v3973
      %v3978 = vmul.f32 %v3823, %v3962
      %v3979 = vld [vmem:[%s1110 + $0x40] sm:$0xff]
      %v3980 = vld [vmem:[%s1110 + $0x48] sm:$0xff]
      %v3981 = vld [vmem:[%s1110 + $0x50] sm:$0xff]
      %v3982 = vld [vmem:[%s1110 + $0x58] sm:$0xff]
      %v3983 = vperm.slane %v3978, 6
      %v3984 = vmul.f32 %v3983, %v3979
      %v3985 = vmul.f32 %v3983, %v3980
      %v3986 = vmul.f32 %v3983, %v3981
      %v3987 = vmul.f32 %v3983, %v3982
      %v3988 = vadd.f32 %v3974, %v3984
      %v3989 = vadd.f32 %v3975, %v3985
      %v3990 = vadd.f32 %v3976, %v3986
      %v3991 = vadd.f32 %v3977, %v3987
      %s3992 = scalar_lea.vmem [#allocation3], 192
      %3993 = vst.msk [vmem:[%s3992] sm:$0xff] %vm634, %v3988
      %3994 = vst.msk [vmem:[%s3992 + $0x8] sm:$0xff] %vm634, %v3989
      %3995 = vst.msk [vmem:[%s3992 + $0x10] sm:$0xff] %vm634, %v3990
      %3996 = vst.msk [vmem:[%s3992 + $0x18] sm:$0xff] %vm634, %v3991
      %v3997 = vld [vmem:[%s1110] sm:$0xff]
      %v3998 = vld [vmem:[%s1110 + $0x8] sm:$0xff]
      %v3999 = vld [vmem:[%s1110 + $0x10] sm:$0xff]
      %v4000 = vld [vmem:[%s1110 + $0x18] sm:$0xff]
      %v4001 = vld [vmem:[#allocation2 + $0x20] sm:$0xff]
      %v4002 = vld [vmem:[#allocation2 + $0x28] sm:$0xff]
      %v4003 = vld [vmem:[#allocation2 + $0x30] sm:$0xff]
      %v4004 = vld [vmem:[#allocation2 + $0x38] sm:$0xff]
      %v4005 = vmul.f32 %v3997, %v4001
      %v4006 = vmul.f32 %v3998, %v4002
      %v4007 = vmul.f32 %v3999, %v4003
      %v4008 = vmul.f32 %v4000, %v4004
      %v4009 = vsel %vm634, %v4005, 0.0
      %v4010 = vsel %vm634, %v4006, 0.0
      %v4011 = vadd.f32 %v4009, %v4010
      %v4012 = vsel %vm634, %v4007, 0.0
      %v4013 = vadd.f32 %v4011, %v4012
      %v4014 = vsel %vm634, %v4008, 0.0
      %v4015 = vadd.f32 %v4013, %v4014
      %v4016 = vrot.slane %v4015, 4
      %v4017 = vadd.f32 %v4015, %v4016
      %v4018 = vrot.slane %v4017, 2
      %v4019 = vadd.f32 %v4017, %v4018
      %v4020 = vrot.slane %v4019, 1
      %v4021 = vadd.f32 %v4019, %v4020
      %v4022 = vmul.f32 %v4021, 0.17677669
      %v4023 = vsel %vm1330, %v4022, -1e+09
      %v4024 = vld [vmem:[%s702 + $0x20] sm:$0xff]
      %v4025 = vld [vmem:[%s702 + $0x28] sm:$0xff]
      %v4026 = vld [vmem:[%s702 + $0x30] sm:$0xff]
      %v4027 = vld [vmem:[%s702 + $0x38] sm:$0xff]
      %v4028 = vmul.f32 %v3997, %v4024
      %v4029 = vmul.f32 %v3998, %v4025
      %v4030 = vmul.f32 %v3999, %v4026
      %v4031 = vmul.f32 %v4000, %v4027
      %v4032 = vsel %vm634, %v4028, 0.0
      %v4033 = vsel %vm634, %v4029, 0.0
      %v4034 = vadd.f32 %v4032, %v4033
      %v4035 = vsel %vm634, %v4030, 0.0
      %v4036 = vadd.f32 %v4034, %v4035
      %v4037 = vsel %vm634, %v4031, 0.0
      %v4038 = vadd.f32 %v4036, %v4037
      %v4039 = vrot.slane %v4038, 4
      %v4040 = vadd.f32 %v4038, %v4039
      %v4041 = vrot.slane %v4040, 2
      %v4042 = vadd.f32 %v4040, %v4041
      %v4043 = vrot.slane %v4042, 1
      %v4044 = vadd.f32 %v4042, %v4043
      %v4045 = vmul.f32 %v4044, 0.17677669
      %v4046 = vsel %vm1304, %v4045, -1e+09
      %v4047 = vld [vmem:[%s770 + $0x20] sm:$0xff]
      %v4048 = vld [vmem:[%s770 + $0x28] sm:$0xff]
      %v4049 = vld [vmem:[%s770 + $0x30] sm:$0xff]
      %v4050 = vld [vmem:[%s770 + $0x38] sm:$0xff]
      %v4051 = vmul.f32 %v3997, %v4047
      %v4052 = vmul.f32 %v3998, %v4048
      %v4053 = vmul.f32 %v3999, %v4049
      %v4054 = vmul.f32 %v4000, %v4050
      %v4055 = vsel %vm634, %v4051, 0.0
      %v4056 = vsel %vm634, %v4052, 0.0
      %v4057 = vadd.f32 %v4055, %v4056
      %v4058 = vsel %vm634, %v4053, 0.0
      %v4059 = vadd.f32 %v4057, %v4058
      %v4060 = vsel %vm634, %v4054, 0.0
      %v4061 = vadd.f32 %v4059, %v4060
      %v4062 = vrot.slane %v4061, 4
      %v4063 = vadd.f32 %v4061, %v4062
      %v4064 = vrot.slane %v4063, 2
      %v4065 = vadd.f32 %v4063, %v4064
      %v4066 = vrot.slane %v4065, 1
      %v4067 = vadd.f32 %v4065, %v4066
      %v4068 = vmul.f32 %v4067, 0.17677669
      %v4069 = vsel %vm1278, %v4068, -1e+09
      %v4070 = vld [vmem:[%s838 + $0x20] sm:$0xff]
      %v4071 = vld [vmem:[%s838 + $0x28] sm:$0xff]
      %v4072 = vld [vmem:[%s838 + $0x30] sm:$0xff]
      %v4073 = vld [vmem:[%s838 + $0x38] sm:$0xff]
      %v4074 = vmul.f32 %v3997, %v4070
      %v4075 = vmul.f32 %v3998, %v4071
      %v4076 = vmul.f32 %v3999, %v4072
      %v4077 = vmul.f32 %v4000, %v4073
      %v4078 = vsel %vm634, %v4074, 0.0
      %v4079 = vsel %vm634, %v4075, 0.0
      %v4080 = vadd.f32 %v4078, %v4079
      %v4081 = vsel %vm634, %v4076, 0.0
      %v4082 = vadd.f32 %v4080, %v4081
      %v4083 = vsel %vm634, %v4077, 0.0
      %v4084 = vadd.f32 %v4082, %v4083
      %v4085 = vrot.slane %v4084, 4
      %v4086 = vadd.f32 %v4084, %v4085
      %v4087 = vrot.slane %v4086, 2
      %v4088 = vadd.f32 %v4086, %v4087
      %v4089 = vrot.slane %v4088, 1
      %v4090 = vadd.f32 %v4088, %v4089
      %v4091 = vmul.f32 %v4090, 0.17677669
      %v4092 = vsel %vm1252, %v4091, -1e+09
      %v4093 = vld [vmem:[%s906 + $0x20] sm:$0xff]
      %v4094 = vld [vmem:[%s906 + $0x28] sm:$0xff]
      %v4095 = vld [vmem:[%s906 + $0x30] sm:$0xff]
      %v4096 = vld [vmem:[%s906 + $0x38] sm:$0xff]
      %v4097 = vmul.f32 %v3997, %v4093
      %v4098 = vmul.f32 %v3998, %v4094
      %v4099 = vmul.f32 %v3999, %v4095
      %v4100 = vmul.f32 %v4000, %v4096
      %v4101 = vsel %vm634, %v4097, 0.0
      %v4102 = vsel %vm634, %v4098, 0.0
      %v4103 = vadd.f32 %v4101, %v4102
      %v4104 = vsel %vm634, %v4099, 0.0
      %v4105 = vadd.f32 %v4103, %v4104
      %v4106 = vsel %vm634, %v4100, 0.0
      %v4107 = vadd.f32 %v4105, %v4106
      %v4108 = vrot.slane %v4107, 4
      %v4109 = vadd.f32 %v4107, %v4108
      %v4110 = vrot.slane %v4109, 2
      %v4111 = vadd.f32 %v4109, %v4110
      %v4112 = vrot.slane %v4111, 1
      %v4113 = vadd.f32 %v4111, %v4112
      %v4114 = vmul.f32 %v4113, 0.17677669
      %v4115 = vsel %vm1226, %v4114, -1e+09
      %v4116 = vld [vmem:[%s974 + $0x20] sm:$0xff]
      %v4117 = vld [vmem:[%s974 + $0x28] sm:$0xff]
      %v4118 = vld [vmem:[%s974 + $0x30] sm:$0xff]
      %v4119 = vld [vmem:[%s974 + $0x38] sm:$0xff]
      %v4120 = vmul.f32 %v3997, %v4116
      %v4121 = vmul.f32 %v3998, %v4117
      %v4122 = vmul.f32 %v3999, %v4118
      %v4123 = vmul.f32 %v4000, %v4119
      %v4124 = vsel %vm634, %v4120, 0.0
      %v4125 = vsel %vm634, %v4121, 0.0
      %v4126 = vadd.f32 %v4124, %v4125
      %v4127 = vsel %vm634, %v4122, 0.0
      %v4128 = vadd.f32 %v4126, %v4127
      %v4129 = vsel %vm634, %v4123, 0.0
      %v4130 = vadd.f32 %v4128, %v4129
      %v4131 = vrot.slane %v4130, 4
      %v4132 = vadd.f32 %v4130, %v4131
      %v4133 = vrot.slane %v4132, 2
      %v4134 = vadd.f32 %v4132, %v4133
      %v4135 = vrot.slane %v4134, 1
      %v4136 = vadd.f32 %v4134, %v4135
      %v4137 = vmul.f32 %v4136, 0.17677669
      %v4138 = vsel %vm1200, %v4137, -1e+09
      %v4139 = vld [vmem:[%s1042 + $0x20] sm:$0xff]
      %v4140 = vld [vmem:[%s1042 + $0x28] sm:$0xff]
      %v4141 = vld [vmem:[%s1042 + $0x30] sm:$0xff]
      %v4142 = vld [vmem:[%s1042 + $0x38] sm:$0xff]
      %v4143 = vmul.f32 %v3997, %v4139
      %v4144 = vmul.f32 %v3998, %v4140
      %v4145 = vmul.f32 %v3999, %v4141
      %v4146 = vmul.f32 %v4000, %v4142
      %v4147 = vsel %vm634, %v4143, 0.0
      %v4148 = vsel %vm634, %v4144, 0.0
      %v4149 = vadd.f32 %v4147, %v4148
      %v4150 = vsel %vm634, %v4145, 0.0
      %v4151 = vadd.f32 %v4149, %v4150
      %v4152 = vsel %vm634, %v4146, 0.0
      %v4153 = vadd.f32 %v4151, %v4152
      %v4154 = vrot.slane %v4153, 4
      %v4155 = vadd.f32 %v4153, %v4154
      %v4156 = vrot.slane %v4155, 2
      %v4157 = vadd.f32 %v4155, %v4156
      %v4158 = vrot.slane %v4157, 1
      %v4159 = vadd.f32 %v4157, %v4158
      %v4160 = vmul.f32 %v4159, 0.17677669
      %v4161 = vsel %vm1174, %v4160, -1e+09
      %v4162 = vld [vmem:[%s1110 + $0x20] sm:$0xff]
      %v4163 = vld [vmem:[%s1110 + $0x28] sm:$0xff]
      %v4164 = vld [vmem:[%s1110 + $0x30] sm:$0xff]
      %v4165 = vld [vmem:[%s1110 + $0x38] sm:$0xff]
      %v4166 = vmul.f32 %v3997, %v4162
      %v4167 = vmul.f32 %v3998, %v4163
      %v4168 = vmul.f32 %v3999, %v4164
      %v4169 = vmul.f32 %v4000, %v4165
      %v4170 = vsel %vm634, %v4166, 0.0
      %v4171 = vsel %vm634, %v4167, 0.0
      %v4172 = vadd.f32 %v4170, %v4171
      %v4173 = vsel %vm634, %v4168, 0.0
      %v4174 = vadd.f32 %v4172, %v4173
      %v4175 = vsel %vm634, %v4169, 0.0
      %v4176 = vadd.f32 %v4174, %v4175
      %v4177 = vrot.slane %v4176, 4
      %v4178 = vadd.f32 %v4176, %v4177
      %v4179 = vrot.slane %v4178, 2
      %v4180 = vadd.f32 %v4178, %v4179
      %v4181 = vrot.slane %v4180, 1
      %v4182 = vadd.f32 %v4180, %v4181
      %v4183 = vmul.f32 %v4182, 0.17677669
      %v4184 = vsel %vm454, %v4183, -1e+09
      %v4186 = vrot.slane %v4046, 1
      %v4188 = vmax.f32 %v4023, %v4186
      %v4190 = vrot.slane %v4069, 2
      %v4192 = vmax.f32 %v4188, %v4190
      %v4194 = vrot.slane %v4092, 3
      %v4196 = vmax.f32 %v4192, %v4194
      %v4198 = vrot.slane %v4115, 4
      %v4200 = vmax.f32 %v4196, %v4198
      %v4202 = vrot.slane %v4138, 5
      %v4204 = vmax.f32 %v4200, %v4202
      %v4206 = vrot.slane %v4161, 6
      %v4208 = vmax.f32 %v4204, %v4206
      %v4210 = vrot.slane %v4184, 7
      %v4212 = vmax.f32 %v4208, %v4210
      %v4213 = vsub.f32 %v4023, %v4212
      %v4214 = vmul.f32 %v4213, 1.442695
      %v4215 = vpow.pop %v4214
      %v4217 = vrot.slane %v4212, 7
      %v4219 = vsub.f32 %v4046, %v4217
      %v4220 = vmul.f32 %v4219, 1.442695
      %v4221 = vpow.pop %v4220
      %v4222 = vrot.slane %v4212, 6
      %v4224 = vsub.f32 %v4069, %v4222
      %v4225 = vmul.f32 %v4224, 1.442695
      %v4226 = vpow.pop %v4225
      %v4227 = vrot.slane %v4212, 5
      %v4229 = vsub.f32 %v4092, %v4227
      %v4230 = vmul.f32 %v4229, 1.442695
      %v4231 = vpow.pop %v4230
      %v4232 = vrot.slane %v4212, 4
      %v4234 = vsub.f32 %v4115, %v4232
      %v4235 = vmul.f32 %v4234, 1.442695
      %v4236 = vpow.pop %v4235
      %v4237 = vrot.slane %v4212, 3
      %v4239 = vsub.f32 %v4138, %v4237
      %v4240 = vmul.f32 %v4239, 1.442695
      %v4241 = vpow.pop %v4240
      %v4242 = vrot.slane %v4212, 2
      %v4244 = vsub.f32 %v4161, %v4242
      %v4245 = vmul.f32 %v4244, 1.442695
      %v4246 = vpow.pop %v4245
      %v4247 = vrot.slane %v4212, 1
      %v4249 = vsub.f32 %v4184, %v4247
      %v4250 = vmul.f32 %v4249, 1.442695
      %v4251 = vpow.pop %v4250
      %v4253 = vrot.slane %v4221, 1
      %v4255 = vadd.f32 %v4215, %v4253
      %v4257 = vrot.slane %v4226, 2
      %v4259 = vadd.f32 %v4255, %v4257
      %v4261 = vrot.slane %v4231, 3
      %v4263 = vadd.f32 %v4259, %v4261
      %v4265 = vrot.slane %v4236, 4
      %v4267 = vadd.f32 %v4263, %v4265
      %v4269 = vrot.slane %v4241, 5
      %v4271 = vadd.f32 %v4267, %v4269
      %v4273 = vrot.slane %v4246, 6
      %v4275 = vadd.f32 %v4271, %v4273
      %v4277 = vrot.slane %v4251, 7
      %v4279 = vadd.f32 %v4275, %v4277
      %v4280 = vrcp.pop %v4279
      %v4281 = vmul.f32 %v4279, %v4280
      %v4282 = vsub.f32 1.0, %v4281
      %v4283 = vmul.f32 %v4280, %v4282
      %v4284 = vadd.f32 %v4280, %v4283
      %vm4285 = vweird.f32 %v4279
      %vm4286 = vweird.f32 %v4280
      %vm4287 = vmor %vm4285, %vm4286
      %v4288 = vsel %vm4287, %v4280, %v4284
      %v4289 = vand.u32 2147483647, %v4279
      %vm4290 = vcmp.eq.f32.partialorder %v4289, 8.507059e+37
      %v4291 = vand.u32 %v4279, 2147483648
      %v4292 = vor.u32 1.1754944e-38, %v4291
      %v4293 = vsel %vm4290, %v4292, %v4288
      %v4294 = vmul.f32 1.0, %v4293
      %v4295 = vmul.f32 %v4215, %v4294
      %v4296 = vld [vmem:[#allocation2 + $0x40] sm:$0xff]
      %v4297 = vld [vmem:[#allocation2 + $0x48] sm:$0xff]
      %v4298 = vld [vmem:[#allocation2 + $0x50] sm:$0xff]
      %v4299 = vld [vmem:[#allocation2 + $0x58] sm:$0xff]
      %v4300 = vperm.slane %v4295, 0
      %v4301 = vmul.f32 %v4300, %v4296
      %v4302 = vmul.f32 %v4300, %v4297
      %v4303 = vmul.f32 %v4300, %v4298
      %v4304 = vmul.f32 %v4300, %v4299
      %v4305 = vadd.f32 %v4301, 0.0
      %v4306 = vadd.f32 %v4302, 0.0
      %v4307 = vadd.f32 %v4303, 0.0
      %v4308 = vadd.f32 %v4304, 0.0
      %v4310 = vrot.slane %v4294, 7
      %v4312 = vmul.f32 %v4221, %v4310
      %v4313 = vld [vmem:[%s702 + $0x40] sm:$0xff]
      %v4314 = vld [vmem:[%s702 + $0x48] sm:$0xff]
      %v4315 = vld [vmem:[%s702 + $0x50] sm:$0xff]
      %v4316 = vld [vmem:[%s702 + $0x58] sm:$0xff]
      %v4317 = vperm.slane %v4312, 1
      %v4318 = vmul.f32 %v4317, %v4313
      %v4319 = vmul.f32 %v4317, %v4314
      %v4320 = vmul.f32 %v4317, %v4315
      %v4321 = vmul.f32 %v4317, %v4316
      %v4322 = vadd.f32 %v4305, %v4318
      %v4323 = vadd.f32 %v4306, %v4319
      %v4324 = vadd.f32 %v4307, %v4320
      %v4325 = vadd.f32 %v4308, %v4321
      %v4326 = vrot.slane %v4294, 6
      %v4328 = vmul.f32 %v4226, %v4326
      %v4329 = vld [vmem:[%s770 + $0x40] sm:$0xff]
      %v4330 = vld [vmem:[%s770 + $0x48] sm:$0xff]
      %v4331 = vld [vmem:[%s770 + $0x50] sm:$0xff]
      %v4332 = vld [vmem:[%s770 + $0x58] sm:$0xff]
      %v4333 = vperm.slane %v4328, 2
      %v4334 = vmul.f32 %v4333, %v4329
      %v4335 = vmul.f32 %v4333, %v4330
      %v4336 = vmul.f32 %v4333, %v4331
      %v4337 = vmul.f32 %v4333, %v4332
      %v4338 = vadd.f32 %v4322, %v4334
      %v4339 = vadd.f32 %v4323, %v4335
      %v4340 = vadd.f32 %v4324, %v4336
      %v4341 = vadd.f32 %v4325, %v4337
      %v4342 = vrot.slane %v4294, 5
      %v4344 = vmul.f32 %v4231, %v4342
      %v4345 = vld [vmem:[%s838 + $0x40] sm:$0xff]
      %v4346 = vld [vmem:[%s838 + $0x48] sm:$0xff]
      %v4347 = vld [vmem:[%s838 + $0x50] sm:$0xff]
      %v4348 = vld [vmem:[%s838 + $0x58] sm:$0xff]
      %v4349 = vperm.slane %v4344, 3
      %v4350 = vmul.f32 %v4349, %v4345
      %v4351 = vmul.f32 %v4349, %v4346
      %v4352 = vmul.f32 %v4349, %v4347
      %v4353 = vmul.f32 %v4349, %v4348
      %v4354 = vadd.f32 %v4338, %v4350
      %v4355 = vadd.f32 %v4339, %v4351
      %v4356 = vadd.f32 %v4340, %v4352
      %v4357 = vadd.f32 %v4341, %v4353
      %v4358 = vrot.slane %v4294, 4
      %v4360 = vmul.f32 %v4236, %v4358
      %v4361 = vld [vmem:[%s906 + $0x40] sm:$0xff]
      %v4362 = vld [vmem:[%s906 + $0x48] sm:$0xff]
      %v4363 = vld [vmem:[%s906 + $0x50] sm:$0xff]
      %v4364 = vld [vmem:[%s906 + $0x58] sm:$0xff]
      %v4365 = vperm.slane %v4360, 4
      %v4366 = vmul.f32 %v4365, %v4361
      %v4367 = vmul.f32 %v4365, %v4362
      %v4368 = vmul.f32 %v4365, %v4363
      %v4369 = vmul.f32 %v4365, %v4364
      %v4370 = vadd.f32 %v4354, %v4366
      %v4371 = vadd.f32 %v4355, %v4367
      %v4372 = vadd.f32 %v4356, %v4368
      %v4373 = vadd.f32 %v4357, %v4369
      %v4374 = vrot.slane %v4294, 3
      %v4376 = vmul.f32 %v4241, %v4374
      %v4377 = vld [vmem:[%s974 + $0x40] sm:$0xff]
      %v4378 = vld [vmem:[%s974 + $0x48] sm:$0xff]
      %v4379 = vld [vmem:[%s974 + $0x50] sm:$0xff]
      %v4380 = vld [vmem:[%s974 + $0x58] sm:$0xff]
      %v4381 = vperm.slane %v4376, 5
      %v4382 = vmul.f32 %v4381, %v4377
      %v4383 = vmul.f32 %v4381, %v4378
      %v4384 = vmul.f32 %v4381, %v4379
      %v4385 = vmul.f32 %v4381, %v4380
      %v4386 = vadd.f32 %v4370, %v4382
      %v4387 = vadd.f32 %v4371, %v4383
      %v4388 = vadd.f32 %v4372, %v4384
      %v4389 = vadd.f32 %v4373, %v4385
      %v4390 = vrot.slane %v4294, 2
      %v4392 = vmul.f32 %v4246, %v4390
      %v4393 = vld [vmem:[%s1042 + $0x40] sm:$0xff]
      %v4394 = vld [vmem:[%s1042 + $0x48] sm:$0xff]
      %v4395 = vld [vmem:[%s1042 + $0x50] sm:$0xff]
      %v4396 = vld [vmem:[%s1042 + $0x58] sm:$0xff]
      %v4397 = vperm.slane %v4392, 6
      %v4398 = vmul.f32 %v4397, %v4393
      %v4399 = vmul.f32 %v4397, %v4394
      %v4400 = vmul.f32 %v4397, %v4395
      %v4401 = vmul.f32 %v4397, %v4396
      %v4402 = vadd.f32 %v4386, %v4398
      %v4403 = vadd.f32 %v4387, %v4399
      %v4404 = vadd.f32 %v4388, %v4400
      %v4405 = vadd.f32 %v4389, %v4401
      %v4406 = vrot.slane %v4294, 1
      %v4408 = vmul.f32 %v4251, %v4406
      %v4409 = vld [vmem:[%s1110 + $0x40] sm:$0xff]
      %v4410 = vld [vmem:[%s1110 + $0x48] sm:$0xff]
      %v4411 = vld [vmem:[%s1110 + $0x50] sm:$0xff]
      %v4412 = vld [vmem:[%s1110 + $0x58] sm:$0xff]
      %v4413 = vperm.slane %v4408, 7
      %v4414 = vmul.f32 %v4413, %v4409
      %v4415 = vmul.f32 %v4413, %v4410
      %v4416 = vmul.f32 %v4413, %v4411
      %v4417 = vmul.f32 %v4413, %v4412
      %v4418 = vadd.f32 %v4402, %v4414
      %v4419 = vadd.f32 %v4403, %v4415
      %v4420 = vadd.f32 %v4404, %v4416
      %v4421 = vadd.f32 %v4405, %v4417
      %s4422 = scalar_lea.vmem [#allocation3], 224
      %4423 = vst.msk [vmem:[%s4422] sm:$0xff] %vm634, %v4418
      %4424 = vst.msk [vmem:[%s4422 + $0x8] sm:$0xff] %vm634, %v4419
      %4425 = vst.msk [vmem:[%s4422 + $0x10] sm:$0xff] %vm634, %v4420
      %4426 = vst.msk [vmem:[%s4422 + $0x18] sm:$0xff] %vm634, %v4421
      %v4427 = vsel %vm634, %v456, 0.0
      %v4428 = vrot.slane %v4427, 4
      %v4429 = vadd.f32 %v4427, %v4428
      %v4430 = vrot.slane %v4429, 2
      %v4431 = vadd.f32 %v4429, %v4430
      %v4432 = vrot.slane %v4431, 1
      %v4433 = vadd.f32 %v4431, %v4432
      %v4434 = vmax.f32 %v4433, 1.0
      %v4435 = vld [vmem:[#allocation3] sm:$0xff]
      %v4436 = vld [vmem:[#allocation3 + $0x8] sm:$0xff]
      %v4437 = vld [vmem:[#allocation3 + $0x10] sm:$0xff]
      %v4438 = vld [vmem:[#allocation3 + $0x18] sm:$0xff]
      %v4439 = vperm.slane %v456, 0
      %v4440 = vmul.f32 %v4439, %v4435
      %v4441 = vmul.f32 %v4439, %v4436
      %v4442 = vmul.f32 %v4439, %v4437
      %v4443 = vmul.f32 %v4439, %v4438
      %v4444 = vadd.f32 %v4440, 0.0
      %v4445 = vadd.f32 %v4441, 0.0
      %v4446 = vadd.f32 %v4442, 0.0
      %v4447 = vadd.f32 %v4443, 0.0
      %v4448 = vld [vmem:[%s1902] sm:$0xff]
      %v4449 = vld [vmem:[%s1902 + $0x8] sm:$0xff]
      %v4450 = vld [vmem:[%s1902 + $0x10] sm:$0xff]
      %v4451 = vld [vmem:[%s1902 + $0x18] sm:$0xff]
      %v4452 = vperm.slane %v456, 1
      %v4453 = vmul.f32 %v4452, %v4448
      %v4454 = vmul.f32 %v4452, %v4449
      %v4455 = vmul.f32 %v4452, %v4450
      %v4456 = vmul.f32 %v4452, %v4451
      %v4457 = vadd.f32 %v4444, %v4453
      %v4458 = vadd.f32 %v4445, %v4454
      %v4459 = vadd.f32 %v4446, %v4455
      %v4460 = vadd.f32 %v4447, %v4456
      %v4461 = vld [vmem:[%s2312] sm:$0xff]
      %v4462 = vld [vmem:[%s2312 + $0x8] sm:$0xff]
      %v4463 = vld [vmem:[%s2312 + $0x10] sm:$0xff]
      %v4464 = vld [vmem:[%s2312 + $0x18] sm:$0xff]
      %v4465 = vperm.slane %v456, 2
      %v4466 = vmul.f32 %v4465, %v4461
      %v4467 = vmul.f32 %v4465, %v4462
      %v4468 = vmul.f32 %v4465, %v4463
      %v4469 = vmul.f32 %v4465, %v4464
      %v4470 = vadd.f32 %v4457, %v4466
      %v4471 = vadd.f32 %v4458, %v4467
      %v4472 = vadd.f32 %v4459, %v4468
      %v4473 = vadd.f32 %v4460, %v4469
      %v4474 = vld [vmem:[%s2726] sm:$0xff]
      %v4475 = vld [vmem:[%s2726 + $0x8] sm:$0xff]
      %v4476 = vld [vmem:[%s2726 + $0x10] sm:$0xff]
      %v4477 = vld [vmem:[%s2726 + $0x18] sm:$0xff]
      %v4478 = vperm.slane %v456, 3
      %v4479 = vmul.f32 %v4478, %v4474
      %v4480 = vmul.f32 %v4478, %v4475
      %v4481 = vmul.f32 %v4478, %v4476
      %v4482 = vmul.f32 %v4478, %v4477
      %v4483 = vadd.f32 %v4470, %v4479
      %v4484 = vadd.f32 %v4471, %v4480
      %v4485 = vadd.f32 %v4472, %v4481
      %v4486 = vadd.f32 %v4473, %v4482
      %v4487 = vld [vmem:[%s3144] sm:$0xff]
      %v4488 = vld [vmem:[%s3144 + $0x8] sm:$0xff]
      %v4489 = vld [vmem:[%s3144 + $0x10] sm:$0xff]
      %v4490 = vld [vmem:[%s3144 + $0x18] sm:$0xff]
      %v4491 = vperm.slane %v456, 4
      %v4492 = vmul.f32 %v4491, %v4487
      %v4493 = vmul.f32 %v4491, %v4488
      %v4494 = vmul.f32 %v4491, %v4489
      %v4495 = vmul.f32 %v4491, %v4490
      %v4496 = vadd.f32 %v4483, %v4492
      %v4497 = vadd.f32 %v4484, %v4493
      %v4498 = vadd.f32 %v4485, %v4494
      %v4499 = vadd.f32 %v4486, %v4495
      %v4500 = vld [vmem:[%s3566] sm:$0xff]
      %v4501 = vld [vmem:[%s3566 + $0x8] sm:$0xff]
      %v4502 = vld [vmem:[%s3566 + $0x10] sm:$0xff]
      %v4503 = vld [vmem:[%s3566 + $0x18] sm:$0xff]
      %v4504 = vperm.slane %v456, 5
      %v4505 = vmul.f32 %v4504, %v4500
      %v4506 = vmul.f32 %v4504, %v4501
      %v4507 = vmul.f32 %v4504, %v4502
      %v4508 = vmul.f32 %v4504, %v4503
      %v4509 = vadd.f32 %v4496, %v4505
      %v4510 = vadd.f32 %v4497, %v4506
      %v4511 = vadd.f32 %v4498, %v4507
      %v4512 = vadd.f32 %v4499, %v4508
      %v4513 = vld [vmem:[%s3992] sm:$0xff]
      %v4514 = vld [vmem:[%s3992 + $0x8] sm:$0xff]
      %v4515 = vld [vmem:[%s3992 + $0x10] sm:$0xff]
      %v4516 = vld [vmem:[%s3992 + $0x18] sm:$0xff]
      %v4517 = vperm.slane %v456, 6
      %v4518 = vmul.f32 %v4517, %v4513
      %v4519 = vmul.f32 %v4517, %v4514
      %v4520 = vmul.f32 %v4517, %v4515
      %v4521 = vmul.f32 %v4517, %v4516
      %v4522 = vadd.f32 %v4509, %v4518
      %v4523 = vadd.f32 %v4510, %v4519
      %v4524 = vadd.f32 %v4511, %v4520
      %v4525 = vadd.f32 %v4512, %v4521
      %v4526 = vld [vmem:[%s4422] sm:$0xff]
      %v4527 = vld [vmem:[%s4422 + $0x8] sm:$0xff]
      %v4528 = vld [vmem:[%s4422 + $0x10] sm:$0xff]
      %v4529 = vld [vmem:[%s4422 + $0x18] sm:$0xff]
      %v4530 = vperm.slane %v456, 7
      %v4531 = vmul.f32 %v4530, %v4526
      %v4532 = vmul.f32 %v4530, %v4527
      %v4533 = vmul.f32 %v4530, %v4528
      %v4534 = vmul.f32 %v4530, %v4529
      %v4535 = vadd.f32 %v4522, %v4531
      %v4536 = vadd.f32 %v4523, %v4532
      %v4537 = vadd.f32 %v4524, %v4533
      %v4538 = vadd.f32 %v4525, %v4534
      %v4539 = vrcp.pop %v4434
      %v4540 = vmul.f32 %v4434, %v4539
      %v4541 = vsub.f32 1.0, %v4540
      %v4542 = vmul.f32 %v4539, %v4541
      %v4543 = vadd.f32 %v4539, %v4542
      %vm4544 = vweird.f32 %v4434
      %vm4545 = vweird.f32 %v4539
      %vm4546 = vmor %vm4544, %vm4545
      %v4547 = vsel %vm4546, %v4539, %v4543
      %v4548 = vand.u32 2147483647, %v4434
      %vm4549 = vcmp.eq.f32.partialorder %v4548, 8.507059e+37
      %v4550 = vand.u32 %v4434, 2147483648
      %v4551 = vor.u32 1.1754944e-38, %v4550
      %v4552 = vsel %vm4549, %v4551, %v4547
      %v4553 = vmul.f32 1.0, %v4552
      %v4554 = vmul.f32 %v4535, %v4553
      %v4555 = vmul.f32 %v4536, %v4553
      %v4556 = vmul.f32 %v4537, %v4553
      %v4557 = vmul.f32 %v4538, %v4553
      %v4558 = vld [vmem:[%s5] sm:$0xff]
      %v4559 = vld [vmem:[%s5 + $0x8] sm:$0xff]
      %v4560 = vld [vmem:[%s5 + $0x10] sm:$0xff]
      %v4561 = vld [vmem:[%s5 + $0x18] sm:$0xff]
      %vm4562 = vcmask 261120
      %v4564 = vsel %vm4562, %v4558, 0
      %v4567 = vsel %vm4562, %v4559, 0
      %v4570 = vsel %vm4562, %v4560, 0
      %v4573 = vsel %vm4562, %v4561, 0
      %4575 = vmatpush.msra.mxu0 0.0
      %4576 = vmatpush.msra.mxu0 0.0
      %4577 = vmatpush.msra.mxu0 0.0
      %4578 = vmatpush.msra.mxu0 0.0
      %4579 = vmatpush.msra.mxu0 0.0
      %4580 = vmatpush.msra.mxu0 0.0
      %4581 = vmatpush.msra.mxu0 0.0
      %4582 = vmatpush.msra.mxu0 0.0
      %4583 = vmatpush.msra.mxu0 0.0
      %4584 = vmatpush.msra.mxu0 0.0
      %4585 = vmatpush.msra.mxu0 0.0
      %4586 = vmatpush.msra.mxu0 0.0
      %4587 = vmatpush.msra.mxu0 %v4557
      %4588 = vmatpush.msra.mxu0 %v4556
      %4589 = vmatpush.msra.mxu0 %v4555
      %4590 = vmatpush.msra.mxu0 %v4554
      %4591 = vmatmul.f32.gmra.mxu0 %v4564
      %v4592 = vpop.f32.mrf.mxu0
      %v4593 = vadd.f32 0.0, %v4592
      %4594 = vmatmul.f32.gmra.mxu0 %v4567
      %v4595 = vpop.f32.mrf.mxu0
      %v4596 = vadd.f32 0.0, %v4595
      %4597 = vmatmul.f32.gmra.mxu0 %v4570
      %v4598 = vpop.f32.mrf.mxu0
      %v4599 = vadd.f32 0.0, %v4598
      %4600 = vmatmul.f32.gmra.mxu0 %v4573
      %v4601 = vpop.f32.mrf.mxu0
      %v4602 = vadd.f32 0.0, %v4601
      %4603 = vdwg.mxu0
      %v4604 = vld [vmem:[%s6] sm:$0xff]
      %v4605 = vld [vmem:[%s6 + $0x8] sm:$0xff]
      %v4606 = vld [vmem:[%s6 + $0x10] sm:$0xff]
      %v4607 = vld [vmem:[%s6 + $0x18] sm:$0xff]
      %v4608 = vld [vmem:[%s7] sm:$0xff]
      %v4609 = vld [vmem:[%s7 + $0x8] sm:$0xff]
      %v4610 = vld [vmem:[%s7 + $0x10] sm:$0xff]
      %v4611 = vld [vmem:[%s7 + $0x18] sm:$0xff]
      %v4613 = vsel %vm4562, %v4604, 0
      %v4616 = vsel %vm4562, %v4605, 0
      %v4619 = vsel %vm4562, %v4606, 0
      %v4622 = vsel %vm4562, %v4607, 0
      %4624 = vmatpush.msra.mxu0 0.0
      %4625 = vmatpush.msra.mxu0 0.0
      %4626 = vmatpush.msra.mxu0 0.0
      %4627 = vmatpush.msra.mxu0 0.0
      %4628 = vmatpush.msra.mxu0 0.0
      %4629 = vmatpush.msra.mxu0 0.0
      %4630 = vmatpush.msra.mxu0 0.0
      %4631 = vmatpush.msra.mxu0 0.0
      %4632 = vmatpush.msra.mxu0 0.0
      %4633 = vmatpush.msra.mxu0 0.0
      %4634 = vmatpush.msra.mxu0 0.0
      %4635 = vmatpush.msra.mxu0 0.0
      %4636 = vmatpush.msra.mxu0 %v4438
      %4637 = vmatpush.msra.mxu0 %v4437
      %4638 = vmatpush.msra.mxu0 %v4436
      %4639 = vmatpush.msra.mxu0 %v4435
      %4640 = vmatmul.f32.gmra.mxu0 %v4613
      %v4641 = vpop.f32.mrf.mxu0
      %v4642 = vadd.f32 0.0, %v4641
      %4643 = vmatmul.f32.gmra.mxu0 %v4616
      %v4644 = vpop.f32.mrf.mxu0
      %v4645 = vadd.f32 0.0, %v4644
      %4646 = vmatmul.f32.gmra.mxu0 %v4619
      %v4647 = vpop.f32.mrf.mxu0
      %v4648 = vadd.f32 0.0, %v4647
      %4649 = vmatmul.f32.gmra.mxu0 %v4622
      %v4650 = vpop.f32.mrf.mxu0
      %v4651 = vadd.f32 0.0, %v4650
      %4652 = vdwg.mxu0
      %v4653 = vmul.f32 %v4593, %v4642
      %v4654 = vmul.f32 %v4596, %v4645
      %v4655 = vmul.f32 %v4599, %v4648
      %v4656 = vmul.f32 %v4602, %v4651
      %v4657 = vsel %vm634, %v4653, 0.0
      %v4658 = vsel %vm634, %v4654, 0.0
      %v4659 = vadd.f32 %v4657, %v4658
      %v4660 = vsel %vm634, %v4655, 0.0
      %v4661 = vadd.f32 %v4659, %v4660
      %v4662 = vsel %vm634, %v4656, 0.0
      %v4663 = vadd.f32 %v4661, %v4662
      %v4664 = vrot.slane %v4663, 4
      %v4665 = vadd.f32 %v4663, %v4664
      %v4666 = vrot.slane %v4665, 2
      %v4667 = vadd.f32 %v4665, %v4666
      %v4668 = vrot.slane %v4667, 1
      %v4669 = vadd.f32 %v4667, %v4668
      %v4670 = vmul.f32 %v4669, 0.17677669
      %v4671 = vsel %vm454, %v4670, -1e+09
      %4672 = vmatpush.msra.mxu0 0.0
      %4673 = vmatpush.msra.mxu0 0.0
      %4674 = vmatpush.msra.mxu0 0.0
      %4675 = vmatpush.msra.mxu0 0.0
      %4676 = vmatpush.msra.mxu0 0.0
      %4677 = vmatpush.msra.mxu0 0.0
      %4678 = vmatpush.msra.mxu0 0.0
      %4679 = vmatpush.msra.mxu0 0.0
      %4680 = vmatpush.msra.mxu0 0.0
      %4681 = vmatpush.msra.mxu0 0.0
      %4682 = vmatpush.msra.mxu0 0.0
      %4683 = vmatpush.msra.mxu0 0.0
      %4684 = vmatpush.msra.mxu0 %v4451
      %4685 = vmatpush.msra.mxu0 %v4450
      %4686 = vmatpush.msra.mxu0 %v4449
      %4687 = vmatpush.msra.mxu0 %v4448
      %4688 = vmatmul.f32.gmra.mxu0 %v4613
      %v4689 = vpop.f32.mrf.mxu0
      %v4690 = vadd.f32 0.0, %v4689
      %4691 = vmatmul.f32.gmra.mxu0 %v4616
      %v4692 = vpop.f32.mrf.mxu0
      %v4693 = vadd.f32 0.0, %v4692
      %4694 = vmatmul.f32.gmra.mxu0 %v4619
      %v4695 = vpop.f32.mrf.mxu0
      %v4696 = vadd.f32 0.0, %v4695
      %4697 = vmatmul.f32.gmra.mxu0 %v4622
      %v4698 = vpop.f32.mrf.mxu0
      %v4699 = vadd.f32 0.0, %v4698
      %4700 = vdwg.mxu0
      %v4701 = vmul.f32 %v4593, %v4690
      %v4702 = vmul.f32 %v4596, %v4693
      %v4703 = vmul.f32 %v4599, %v4696
      %v4704 = vmul.f32 %v4602, %v4699
      %v4705 = vsel %vm634, %v4701, 0.0
      %v4706 = vsel %vm634, %v4702, 0.0
      %v4707 = vadd.f32 %v4705, %v4706
      %v4708 = vsel %vm634, %v4703, 0.0
      %v4709 = vadd.f32 %v4707, %v4708
      %v4710 = vsel %vm634, %v4704, 0.0
      %v4711 = vadd.f32 %v4709, %v4710
      %v4712 = vrot.slane %v4711, 4
      %v4713 = vadd.f32 %v4711, %v4712
      %v4714 = vrot.slane %v4713, 2
      %v4715 = vadd.f32 %v4713, %v4714
      %v4716 = vrot.slane %v4715, 1
      %v4717 = vadd.f32 %v4715, %v4716
      %v4718 = vmul.f32 %v4717, 0.17677669
      %v4719 = vsel %vm454, %v4718, -1e+09
      %4720 = vmatpush.msra.mxu0 0.0
      %4721 = vmatpush.msra.mxu0 0.0
      %4722 = vmatpush.msra.mxu0 0.0
      %4723 = vmatpush.msra.mxu0 0.0
      %4724 = vmatpush.msra.mxu0 0.0
      %4725 = vmatpush.msra.mxu0 0.0
      %4726 = vmatpush.msra.mxu0 0.0
      %4727 = vmatpush.msra.mxu0 0.0
      %4728 = vmatpush.msra.mxu0 0.0
      %4729 = vmatpush.msra.mxu0 0.0
      %4730 = vmatpush.msra.mxu0 0.0
      %4731 = vmatpush.msra.mxu0 0.0
      %4732 = vmatpush.msra.mxu0 %v4464
      %4733 = vmatpush.msra.mxu0 %v4463
      %4734 = vmatpush.msra.mxu0 %v4462
      %4735 = vmatpush.msra.mxu0 %v4461
      %4736 = vmatmul.f32.gmra.mxu0 %v4613
      %v4737 = vpop.f32.mrf.mxu0
      %v4738 = vadd.f32 0.0, %v4737
      %4739 = vmatmul.f32.gmra.mxu0 %v4616
      %v4740 = vpop.f32.mrf.mxu0
      %v4741 = vadd.f32 0.0, %v4740
      %4742 = vmatmul.f32.gmra.mxu0 %v4619
      %v4743 = vpop.f32.mrf.mxu0
      %v4744 = vadd.f32 0.0, %v4743
      %4745 = vmatmul.f32.gmra.mxu0 %v4622
      %v4746 = vpop.f32.mrf.mxu0
      %v4747 = vadd.f32 0.0, %v4746
      %4748 = vdwg.mxu0
      %v4749 = vmul.f32 %v4593, %v4738
      %v4750 = vmul.f32 %v4596, %v4741
      %v4751 = vmul.f32 %v4599, %v4744
      %v4752 = vmul.f32 %v4602, %v4747
      %v4753 = vsel %vm634, %v4749, 0.0
      %v4754 = vsel %vm634, %v4750, 0.0
      %v4755 = vadd.f32 %v4753, %v4754
      %v4756 = vsel %vm634, %v4751, 0.0
      %v4757 = vadd.f32 %v4755, %v4756
      %v4758 = vsel %vm634, %v4752, 0.0
      %v4759 = vadd.f32 %v4757, %v4758
      %v4760 = vrot.slane %v4759, 4
      %v4761 = vadd.f32 %v4759, %v4760
      %v4762 = vrot.slane %v4761, 2
      %v4763 = vadd.f32 %v4761, %v4762
      %v4764 = vrot.slane %v4763, 1
      %v4765 = vadd.f32 %v4763, %v4764
      %v4766 = vmul.f32 %v4765, 0.17677669
      %v4767 = vsel %vm454, %v4766, -1e+09
      %4768 = vmatpush.msra.mxu0 0.0
      %4769 = vmatpush.msra.mxu0 0.0
      %4770 = vmatpush.msra.mxu0 0.0
      %4771 = vmatpush.msra.mxu0 0.0
      %4772 = vmatpush.msra.mxu0 0.0
      %4773 = vmatpush.msra.mxu0 0.0
      %4774 = vmatpush.msra.mxu0 0.0
      %4775 = vmatpush.msra.mxu0 0.0
      %4776 = vmatpush.msra.mxu0 0.0
      %4777 = vmatpush.msra.mxu0 0.0
      %4778 = vmatpush.msra.mxu0 0.0
      %4779 = vmatpush.msra.mxu0 0.0
      %4780 = vmatpush.msra.mxu0 %v4477
      %4781 = vmatpush.msra.mxu0 %v4476
      %4782 = vmatpush.msra.mxu0 %v4475
      %4783 = vmatpush.msra.mxu0 %v4474
      %4784 = vmatmul.f32.gmra.mxu0 %v4613
      %v4785 = vpop.f32.mrf.mxu0
      %v4786 = vadd.f32 0.0, %v4785
      %4787 = vmatmul.f32.gmra.mxu0 %v4616
      %v4788 = vpop.f32.mrf.mxu0
      %v4789 = vadd.f32 0.0, %v4788
      %4790 = vmatmul.f32.gmra.mxu0 %v4619
      %v4791 = vpop.f32.mrf.mxu0
      %v4792 = vadd.f32 0.0, %v4791
      %4793 = vmatmul.f32.gmra.mxu0 %v4622
      %v4794 = vpop.f32.mrf.mxu0
      %v4795 = vadd.f32 0.0, %v4794
      %4796 = vdwg.mxu0
      %v4797 = vmul.f32 %v4593, %v4786
      %v4798 = vmul.f32 %v4596, %v4789
      %v4799 = vmul.f32 %v4599, %v4792
      %v4800 = vmul.f32 %v4602, %v4795
      %v4801 = vsel %vm634, %v4797, 0.0
      %v4802 = vsel %vm634, %v4798, 0.0
      %v4803 = vadd.f32 %v4801, %v4802
      %v4804 = vsel %vm634, %v4799, 0.0
      %v4805 = vadd.f32 %v4803, %v4804
      %v4806 = vsel %vm634, %v4800, 0.0
      %v4807 = vadd.f32 %v4805, %v4806
      %v4808 = vrot.slane %v4807, 4
      %v4809 = vadd.f32 %v4807, %v4808
      %v4810 = vrot.slane %v4809, 2
      %v4811 = vadd.f32 %v4809, %v4810
      %v4812 = vrot.slane %v4811, 1
      %v4813 = vadd.f32 %v4811, %v4812
      %v4814 = vmul.f32 %v4813, 0.17677669
      %v4815 = vsel %vm454, %v4814, -1e+09
      %4816 = vmatpush.msra.mxu0 0.0
      %4817 = vmatpush.msra.mxu0 0.0
      %4818 = vmatpush.msra.mxu0 0.0
      %4819 = vmatpush.msra.mxu0 0.0
      %4820 = vmatpush.msra.mxu0 0.0
      %4821 = vmatpush.msra.mxu0 0.0
      %4822 = vmatpush.msra.mxu0 0.0
      %4823 = vmatpush.msra.mxu0 0.0
      %4824 = vmatpush.msra.mxu0 0.0
      %4825 = vmatpush.msra.mxu0 0.0
      %4826 = vmatpush.msra.mxu0 0.0
      %4827 = vmatpush.msra.mxu0 0.0
      %4828 = vmatpush.msra.mxu0 %v4490
      %4829 = vmatpush.msra.mxu0 %v4489
      %4830 = vmatpush.msra.mxu0 %v4488
      %4831 = vmatpush.msra.mxu0 %v4487
      %4832 = vmatmul.f32.gmra.mxu0 %v4613
      %v4833 = vpop.f32.mrf.mxu0
      %v4834 = vadd.f32 0.0, %v4833
      %4835 = vmatmul.f32.gmra.mxu0 %v4616
      %v4836 = vpop.f32.mrf.mxu0
      %v4837 = vadd.f32 0.0, %v4836
      %4838 = vmatmul.f32.gmra.mxu0 %v4619
      %v4839 = vpop.f32.mrf.mxu0
      %v4840 = vadd.f32 0.0, %v4839
      %4841 = vmatmul.f32.gmra.mxu0 %v4622
      %v4842 = vpop.f32.mrf.mxu0
      %v4843 = vadd.f32 0.0, %v4842
      %4844 = vdwg.mxu0
      %v4845 = vmul.f32 %v4593, %v4834
      %v4846 = vmul.f32 %v4596, %v4837
      %v4847 = vmul.f32 %v4599, %v4840
      %v4848 = vmul.f32 %v4602, %v4843
      %v4849 = vsel %vm634, %v4845, 0.0
      %v4850 = vsel %vm634, %v4846, 0.0
      %v4851 = vadd.f32 %v4849, %v4850
      %v4852 = vsel %vm634, %v4847, 0.0
      %v4853 = vadd.f32 %v4851, %v4852
      %v4854 = vsel %vm634, %v4848, 0.0
      %v4855 = vadd.f32 %v4853, %v4854
      %v4856 = vrot.slane %v4855, 4
      %v4857 = vadd.f32 %v4855, %v4856
      %v4858 = vrot.slane %v4857, 2
      %v4859 = vadd.f32 %v4857, %v4858
      %v4860 = vrot.slane %v4859, 1
      %v4861 = vadd.f32 %v4859, %v4860
      %v4862 = vmul.f32 %v4861, 0.17677669
      %v4863 = vsel %vm454, %v4862, -1e+09
      %4864 = vmatpush.msra.mxu0 0.0
      %4865 = vmatpush.msra.mxu0 0.0
      %4866 = vmatpush.msra.mxu0 0.0
      %4867 = vmatpush.msra.mxu0 0.0
      %4868 = vmatpush.msra.mxu0 0.0
      %4869 = vmatpush.msra.mxu0 0.0
      %4870 = vmatpush.msra.mxu0 0.0
      %4871 = vmatpush.msra.mxu0 0.0
      %4872 = vmatpush.msra.mxu0 0.0
      %4873 = vmatpush.msra.mxu0 0.0
      %4874 = vmatpush.msra.mxu0 0.0
      %4875 = vmatpush.msra.mxu0 0.0
      %4876 = vmatpush.msra.mxu0 %v4503
      %4877 = vmatpush.msra.mxu0 %v4502
      %4878 = vmatpush.msra.mxu0 %v4501
      %4879 = vmatpush.msra.mxu0 %v4500
      %4880 = vmatmul.f32.gmra.mxu0 %v4613
      %v4881 = vpop.f32.mrf.mxu0
      %v4882 = vadd.f32 0.0, %v4881
      %4883 = vmatmul.f32.gmra.mxu0 %v4616
      %v4884 = vpop.f32.mrf.mxu0
      %v4885 = vadd.f32 0.0, %v4884
      %4886 = vmatmul.f32.gmra.mxu0 %v4619
      %v4887 = vpop.f32.mrf.mxu0
      %v4888 = vadd.f32 0.0, %v4887
      %4889 = vmatmul.f32.gmra.mxu0 %v4622
      %v4890 = vpop.f32.mrf.mxu0
      %v4891 = vadd.f32 0.0, %v4890
      %4892 = vdwg.mxu0
      %v4893 = vmul.f32 %v4593, %v4882
      %v4894 = vmul.f32 %v4596, %v4885
      %v4895 = vmul.f32 %v4599, %v4888
      %v4896 = vmul.f32 %v4602, %v4891
      %v4897 = vsel %vm634, %v4893, 0.0
      %v4898 = vsel %vm634, %v4894, 0.0
      %v4899 = vadd.f32 %v4897, %v4898
      %v4900 = vsel %vm634, %v4895, 0.0
      %v4901 = vadd.f32 %v4899, %v4900
      %v4902 = vsel %vm634, %v4896, 0.0
      %v4903 = vadd.f32 %v4901, %v4902
      %v4904 = vrot.slane %v4903, 4
      %v4905 = vadd.f32 %v4903, %v4904
      %v4906 = vrot.slane %v4905, 2
      %v4907 = vadd.f32 %v4905, %v4906
      %v4908 = vrot.slane %v4907, 1
      %v4909 = vadd.f32 %v4907, %v4908
      %v4910 = vmul.f32 %v4909, 0.17677669
      %v4911 = vsel %vm454, %v4910, -1e+09
      %4912 = vmatpush.msra.mxu0 0.0
      %4913 = vmatpush.msra.mxu0 0.0
      %4914 = vmatpush.msra.mxu0 0.0
      %4915 = vmatpush.msra.mxu0 0.0
      %4916 = vmatpush.msra.mxu0 0.0
      %4917 = vmatpush.msra.mxu0 0.0
      %4918 = vmatpush.msra.mxu0 0.0
      %4919 = vmatpush.msra.mxu0 0.0
      %4920 = vmatpush.msra.mxu0 0.0
      %4921 = vmatpush.msra.mxu0 0.0
      %4922 = vmatpush.msra.mxu0 0.0
      %4923 = vmatpush.msra.mxu0 0.0
      %4924 = vmatpush.msra.mxu0 %v4516
      %4925 = vmatpush.msra.mxu0 %v4515
      %4926 = vmatpush.msra.mxu0 %v4514
      %4927 = vmatpush.msra.mxu0 %v4513
      %4928 = vmatmul.f32.gmra.mxu0 %v4613
      %v4929 = vpop.f32.mrf.mxu0
      %v4930 = vadd.f32 0.0, %v4929
      %4931 = vmatmul.f32.gmra.mxu0 %v4616
      %v4932 = vpop.f32.mrf.mxu0
      %v4933 = vadd.f32 0.0, %v4932
      %4934 = vmatmul.f32.gmra.mxu0 %v4619
      %v4935 = vpop.f32.mrf.mxu0
      %v4936 = vadd.f32 0.0, %v4935
      %4937 = vmatmul.f32.gmra.mxu0 %v4622
      %v4938 = vpop.f32.mrf.mxu0
      %v4939 = vadd.f32 0.0, %v4938
      %4940 = vdwg.mxu0
      %v4941 = vmul.f32 %v4593, %v4930
      %v4942 = vmul.f32 %v4596, %v4933
      %v4943 = vmul.f32 %v4599, %v4936
      %v4944 = vmul.f32 %v4602, %v4939
      %v4945 = vsel %vm634, %v4941, 0.0
      %v4946 = vsel %vm634, %v4942, 0.0
      %v4947 = vadd.f32 %v4945, %v4946
      %v4948 = vsel %vm634, %v4943, 0.0
      %v4949 = vadd.f32 %v4947, %v4948
      %v4950 = vsel %vm634, %v4944, 0.0
      %v4951 = vadd.f32 %v4949, %v4950
      %v4952 = vrot.slane %v4951, 4
      %v4953 = vadd.f32 %v4951, %v4952
      %v4954 = vrot.slane %v4953, 2
      %v4955 = vadd.f32 %v4953, %v4954
      %v4956 = vrot.slane %v4955, 1
      %v4957 = vadd.f32 %v4955, %v4956
      %v4958 = vmul.f32 %v4957, 0.17677669
      %v4959 = vsel %vm454, %v4958, -1e+09
      %4960 = vmatpush.msra.mxu0 0.0
      %4961 = vmatpush.msra.mxu0 0.0
      %4962 = vmatpush.msra.mxu0 0.0
      %4963 = vmatpush.msra.mxu0 0.0
      %4964 = vmatpush.msra.mxu0 0.0
      %4965 = vmatpush.msra.mxu0 0.0
      %4966 = vmatpush.msra.mxu0 0.0
      %4967 = vmatpush.msra.mxu0 0.0
      %4968 = vmatpush.msra.mxu0 0.0
      %4969 = vmatpush.msra.mxu0 0.0
      %4970 = vmatpush.msra.mxu0 0.0
      %4971 = vmatpush.msra.mxu0 0.0
      %4972 = vmatpush.msra.mxu0 %v4529
      %4973 = vmatpush.msra.mxu0 %v4528
      %4974 = vmatpush.msra.mxu0 %v4527
      %4975 = vmatpush.msra.mxu0 %v4526
      %4976 = vmatmul.f32.gmra.mxu0 %v4613
      %v4977 = vpop.f32.mrf.mxu0
      %v4978 = vadd.f32 0.0, %v4977
      %4979 = vmatmul.f32.gmra.mxu0 %v4616
      %v4980 = vpop.f32.mrf.mxu0
      %v4981 = vadd.f32 0.0, %v4980
      %4982 = vmatmul.f32.gmra.mxu0 %v4619
      %v4983 = vpop.f32.mrf.mxu0
      %v4984 = vadd.f32 0.0, %v4983
      %4985 = vmatmul.f32.gmra.mxu0 %v4622
      %v4986 = vpop.f32.mrf.mxu0
      %v4987 = vadd.f32 0.0, %v4986
      %4988 = vdwg.mxu0
      %v4989 = vmul.f32 %v4593, %v4978
      %v4990 = vmul.f32 %v4596, %v4981
      %v4991 = vmul.f32 %v4599, %v4984
      %v4992 = vmul.f32 %v4602, %v4987
      %v4993 = vsel %vm634, %v4989, 0.0
      %v4994 = vsel %vm634, %v4990, 0.0
      %v4995 = vadd.f32 %v4993, %v4994
      %v4996 = vsel %vm634, %v4991, 0.0
      %v4997 = vadd.f32 %v4995, %v4996
      %v4998 = vsel %vm634, %v4992, 0.0
      %v4999 = vadd.f32 %v4997, %v4998
      %v5000 = vrot.slane %v4999, 4
      %v5001 = vadd.f32 %v4999, %v5000
      %v5002 = vrot.slane %v5001, 2
      %v5003 = vadd.f32 %v5001, %v5002
      %v5004 = vrot.slane %v5003, 1
      %v5005 = vadd.f32 %v5003, %v5004
      %v5006 = vmul.f32 %v5005, 0.17677669
      %v5007 = vsel %vm454, %v5006, -1e+09
      %v5009 = vrot.slane %v4719, 1
      %v5011 = vmax.f32 %v4671, %v5009
      %v5013 = vrot.slane %v4767, 2
      %v5015 = vmax.f32 %v5011, %v5013
      %v5017 = vrot.slane %v4815, 3
      %v5019 = vmax.f32 %v5015, %v5017
      %v5021 = vrot.slane %v4863, 4
      %v5023 = vmax.f32 %v5019, %v5021
      %v5025 = vrot.slane %v4911, 5
      %v5027 = vmax.f32 %v5023, %v5025
      %v5029 = vrot.slane %v4959, 6
      %v5031 = vmax.f32 %v5027, %v5029
      %v5033 = vrot.slane %v5007, 7
      %v5035 = vmax.f32 %v5031, %v5033
      %v5036 = vsub.f32 %v4671, %v5035
      %v5037 = vmul.f32 %v5036, 1.442695
      %v5038 = vpow.pop %v5037
      %v5040 = vrot.slane %v5035, 7
      %v5042 = vsub.f32 %v4719, %v5040
      %v5043 = vmul.f32 %v5042, 1.442695
      %v5044 = vpow.pop %v5043
      %v5045 = vrot.slane %v5035, 6
      %v5047 = vsub.f32 %v4767, %v5045
      %v5048 = vmul.f32 %v5047, 1.442695
      %v5049 = vpow.pop %v5048
      %v5050 = vrot.slane %v5035, 5
      %v5052 = vsub.f32 %v4815, %v5050
      %v5053 = vmul.f32 %v5052, 1.442695
      %v5054 = vpow.pop %v5053
      %v5055 = vrot.slane %v5035, 4
      %v5057 = vsub.f32 %v4863, %v5055
      %v5058 = vmul.f32 %v5057, 1.442695
      %v5059 = vpow.pop %v5058
      %v5060 = vrot.slane %v5035, 3
      %v5062 = vsub.f32 %v4911, %v5060
      %v5063 = vmul.f32 %v5062, 1.442695
      %v5064 = vpow.pop %v5063
      %v5065 = vrot.slane %v5035, 2
      %v5067 = vsub.f32 %v4959, %v5065
      %v5068 = vmul.f32 %v5067, 1.442695
      %v5069 = vpow.pop %v5068
      %v5070 = vrot.slane %v5035, 1
      %v5072 = vsub.f32 %v5007, %v5070
      %v5073 = vmul.f32 %v5072, 1.442695
      %v5074 = vpow.pop %v5073
      %v5076 = vrot.slane %v5044, 1
      %v5078 = vadd.f32 %v5038, %v5076
      %v5080 = vrot.slane %v5049, 2
      %v5082 = vadd.f32 %v5078, %v5080
      %v5084 = vrot.slane %v5054, 3
      %v5086 = vadd.f32 %v5082, %v5084
      %v5088 = vrot.slane %v5059, 4
      %v5090 = vadd.f32 %v5086, %v5088
      %v5092 = vrot.slane %v5064, 5
      %v5094 = vadd.f32 %v5090, %v5092
      %v5096 = vrot.slane %v5069, 6
      %v5098 = vadd.f32 %v5094, %v5096
      %v5100 = vrot.slane %v5074, 7
      %v5102 = vadd.f32 %v5098, %v5100
      %v5103 = vrcp.pop %v5102
      %v5104 = vmul.f32 %v5102, %v5103
      %v5105 = vsub.f32 1.0, %v5104
      %v5106 = vmul.f32 %v5103, %v5105
      %v5107 = vadd.f32 %v5103, %v5106
      %vm5108 = vweird.f32 %v5102
      %vm5109 = vweird.f32 %v5103
      %vm5110 = vmor %vm5108, %vm5109
      %v5111 = vsel %vm5110, %v5103, %v5107
      %v5112 = vand.u32 2147483647, %v5102
      %vm5113 = vcmp.eq.f32.partialorder %v5112, 8.507059e+37
      %v5114 = vand.u32 %v5102, 2147483648
      %v5115 = vor.u32 1.1754944e-38, %v5114
      %v5116 = vsel %vm5113, %v5115, %v5111
      %v5117 = vmul.f32 1.0, %v5116
      %v5119 = vsel %vm4562, %v4608, 0
      %v5122 = vsel %vm4562, %v4609, 0
      %v5125 = vsel %vm4562, %v4610, 0
      %v5128 = vsel %vm4562, %v4611, 0
      %5130 = vmatpush.msra.mxu0 0.0
      %5131 = vmatpush.msra.mxu0 0.0
      %5132 = vmatpush.msra.mxu0 0.0
      %5133 = vmatpush.msra.mxu0 0.0
      %5134 = vmatpush.msra.mxu0 0.0
      %5135 = vmatpush.msra.mxu0 0.0
      %5136 = vmatpush.msra.mxu0 0.0
      %5137 = vmatpush.msra.mxu0 0.0
      %5138 = vmatpush.msra.mxu0 0.0
      %5139 = vmatpush.msra.mxu0 0.0
      %5140 = vmatpush.msra.mxu0 0.0
      %5141 = vmatpush.msra.mxu0 0.0
      %5142 = vmatpush.msra.mxu0 %v4438
      %5143 = vmatpush.msra.mxu0 %v4437
      %5144 = vmatpush.msra.mxu0 %v4436
      %5145 = vmatpush.msra.mxu0 %v4435
      %5146 = vmatmul.f32.gmra.mxu0 %v5119
      %v5147 = vpop.f32.mrf.mxu0
      %v5148 = vadd.f32 0.0, %v5147
      %5149 = vmatmul.f32.gmra.mxu0 %v5122
      %v5150 = vpop.f32.mrf.mxu0
      %v5151 = vadd.f32 0.0, %v5150
      %5152 = vmatmul.f32.gmra.mxu0 %v5125
      %v5153 = vpop.f32.mrf.mxu0
      %v5154 = vadd.f32 0.0, %v5153
      %5155 = vmatmul.f32.gmra.mxu0 %v5128
      %v5156 = vpop.f32.mrf.mxu0
      %v5157 = vadd.f32 0.0, %v5156
      %5158 = vdwg.mxu0
      %v5159 = vmul.f32 %v5038, %v5117
      %v5160 = vperm.slane %v5159, 0
      %v5161 = vmul.f32 %v5160, %v5148
      %v5162 = vmul.f32 %v5160, %v5151
      %v5163 = vmul.f32 %v5160, %v5154
      %v5164 = vmul.f32 %v5160, %v5157
      %v5165 = vadd.f32 %v5161, 0.0
      %v5166 = vadd.f32 %v5162, 0.0
      %v5167 = vadd.f32 %v5163, 0.0
      %v5168 = vadd.f32 %v5164, 0.0
      %5169 = vmatpush.msra.mxu0 0.0
      %5170 = vmatpush.msra.mxu0 0.0
      %5171 = vmatpush.msra.mxu0 0.0
      %5172 = vmatpush.msra.mxu0 0.0
      %5173 = vmatpush.msra.mxu0 0.0
      %5174 = vmatpush.msra.mxu0 0.0
      %5175 = vmatpush.msra.mxu0 0.0
      %5176 = vmatpush.msra.mxu0 0.0
      %5177 = vmatpush.msra.mxu0 0.0
      %5178 = vmatpush.msra.mxu0 0.0
      %5179 = vmatpush.msra.mxu0 0.0
      %5180 = vmatpush.msra.mxu0 0.0
      %5181 = vmatpush.msra.mxu0 %v4451
      %5182 = vmatpush.msra.mxu0 %v4450
      %5183 = vmatpush.msra.mxu0 %v4449
      %5184 = vmatpush.msra.mxu0 %v4448
      %5185 = vmatmul.f32.gmra.mxu0 %v5119
      %v5186 = vpop.f32.mrf.mxu0
      %v5187 = vadd.f32 0.0, %v5186
      %5188 = vmatmul.f32.gmra.mxu0 %v5122
      %v5189 = vpop.f32.mrf.mxu0
      %v5190 = vadd.f32 0.0, %v5189
      %5191 = vmatmul.f32.gmra.mxu0 %v5125
      %v5192 = vpop.f32.mrf.mxu0
      %v5193 = vadd.f32 0.0, %v5192
      %5194 = vmatmul.f32.gmra.mxu0 %v5128
      %v5195 = vpop.f32.mrf.mxu0
      %v5196 = vadd.f32 0.0, %v5195
      %5197 = vdwg.mxu0
      %v5199 = vrot.slane %v5117, 7
      %v5201 = vmul.f32 %v5044, %v5199
      %v5202 = vperm.slane %v5201, 1
      %v5203 = vmul.f32 %v5202, %v5187
      %v5204 = vmul.f32 %v5202, %v5190
      %v5205 = vmul.f32 %v5202, %v5193
      %v5206 = vmul.f32 %v5202, %v5196
      %v5207 = vadd.f32 %v5165, %v5203
      %v5208 = vadd.f32 %v5166, %v5204
      %v5209 = vadd.f32 %v5167, %v5205
      %v5210 = vadd.f32 %v5168, %v5206
      %5211 = vmatpush.msra.mxu0 0.0
      %5212 = vmatpush.msra.mxu0 0.0
      %5213 = vmatpush.msra.mxu0 0.0
      %5214 = vmatpush.msra.mxu0 0.0
      %5215 = vmatpush.msra.mxu0 0.0
      %5216 = vmatpush.msra.mxu0 0.0
      %5217 = vmatpush.msra.mxu0 0.0
      %5218 = vmatpush.msra.mxu0 0.0
      %5219 = vmatpush.msra.mxu0 0.0
      %5220 = vmatpush.msra.mxu0 0.0
      %5221 = vmatpush.msra.mxu0 0.0
      %5222 = vmatpush.msra.mxu0 0.0
      %5223 = vmatpush.msra.mxu0 %v4464
      %5224 = vmatpush.msra.mxu0 %v4463
      %5225 = vmatpush.msra.mxu0 %v4462
      %5226 = vmatpush.msra.mxu0 %v4461
      %5227 = vmatmul.f32.gmra.mxu0 %v5119
      %v5228 = vpop.f32.mrf.mxu0
      %v5229 = vadd.f32 0.0, %v5228
      %5230 = vmatmul.f32.gmra.mxu0 %v5122
      %v5231 = vpop.f32.mrf.mxu0
      %v5232 = vadd.f32 0.0, %v5231
      %5233 = vmatmul.f32.gmra.mxu0 %v5125
      %v5234 = vpop.f32.mrf.mxu0
      %v5235 = vadd.f32 0.0, %v5234
      %5236 = vmatmul.f32.gmra.mxu0 %v5128
      %v5237 = vpop.f32.mrf.mxu0
      %v5238 = vadd.f32 0.0, %v5237
      %5239 = vdwg.mxu0
      %v5240 = vrot.slane %v5117, 6
      %v5242 = vmul.f32 %v5049, %v5240
      %v5243 = vperm.slane %v5242, 2
      %v5244 = vmul.f32 %v5243, %v5229
      %v5245 = vmul.f32 %v5243, %v5232
      %v5246 = vmul.f32 %v5243, %v5235
      %v5247 = vmul.f32 %v5243, %v5238
      %v5248 = vadd.f32 %v5207, %v5244
      %v5249 = vadd.f32 %v5208, %v5245
      %v5250 = vadd.f32 %v5209, %v5246
      %v5251 = vadd.f32 %v5210, %v5247
      %5252 = vmatpush.msra.mxu0 0.0
      %5253 = vmatpush.msra.mxu0 0.0
      %5254 = vmatpush.msra.mxu0 0.0
      %5255 = vmatpush.msra.mxu0 0.0
      %5256 = vmatpush.msra.mxu0 0.0
      %5257 = vmatpush.msra.mxu0 0.0
      %5258 = vmatpush.msra.mxu0 0.0
      %5259 = vmatpush.msra.mxu0 0.0
      %5260 = vmatpush.msra.mxu0 0.0
      %5261 = vmatpush.msra.mxu0 0.0
      %5262 = vmatpush.msra.mxu0 0.0
      %5263 = vmatpush.msra.mxu0 0.0
      %5264 = vmatpush.msra.mxu0 %v4477
      %5265 = vmatpush.msra.mxu0 %v4476
      %5266 = vmatpush.msra.mxu0 %v4475
      %5267 = vmatpush.msra.mxu0 %v4474
      %5268 = vmatmul.f32.gmra.mxu0 %v5119
      %v5269 = vpop.f32.mrf.mxu0
      %v5270 = vadd.f32 0.0, %v5269
      %5271 = vmatmul.f32.gmra.mxu0 %v5122
      %v5272 = vpop.f32.mrf.mxu0
      %v5273 = vadd.f32 0.0, %v5272
      %5274 = vmatmul.f32.gmra.mxu0 %v5125
      %v5275 = vpop.f32.mrf.mxu0
      %v5276 = vadd.f32 0.0, %v5275
      %5277 = vmatmul.f32.gmra.mxu0 %v5128
      %v5278 = vpop.f32.mrf.mxu0
      %v5279 = vadd.f32 0.0, %v5278
      %5280 = vdwg.mxu0
      %v5281 = vrot.slane %v5117, 5
      %v5283 = vmul.f32 %v5054, %v5281
      %v5284 = vperm.slane %v5283, 3
      %v5285 = vmul.f32 %v5284, %v5270
      %v5286 = vmul.f32 %v5284, %v5273
      %v5287 = vmul.f32 %v5284, %v5276
      %v5288 = vmul.f32 %v5284, %v5279
      %v5289 = vadd.f32 %v5248, %v5285
      %v5290 = vadd.f32 %v5249, %v5286
      %v5291 = vadd.f32 %v5250, %v5287
      %v5292 = vadd.f32 %v5251, %v5288
      %5293 = vmatpush.msra.mxu0 0.0
      %5294 = vmatpush.msra.mxu0 0.0
      %5295 = vmatpush.msra.mxu0 0.0
      %5296 = vmatpush.msra.mxu0 0.0
      %5297 = vmatpush.msra.mxu0 0.0
      %5298 = vmatpush.msra.mxu0 0.0
      %5299 = vmatpush.msra.mxu0 0.0
      %5300 = vmatpush.msra.mxu0 0.0
      %5301 = vmatpush.msra.mxu0 0.0
      %5302 = vmatpush.msra.mxu0 0.0
      %5303 = vmatpush.msra.mxu0 0.0
      %5304 = vmatpush.msra.mxu0 0.0
      %5305 = vmatpush.msra.mxu0 %v4490
      %5306 = vmatpush.msra.mxu0 %v4489
      %5307 = vmatpush.msra.mxu0 %v4488
      %5308 = vmatpush.msra.mxu0 %v4487
      %5309 = vmatmul.f32.gmra.mxu0 %v5119
      %v5310 = vpop.f32.mrf.mxu0
      %v5311 = vadd.f32 0.0, %v5310
      %5312 = vmatmul.f32.gmra.mxu0 %v5122
      %v5313 = vpop.f32.mrf.mxu0
      %v5314 = vadd.f32 0.0, %v5313
      %5315 = vmatmul.f32.gmra.mxu0 %v5125
      %v5316 = vpop.f32.mrf.mxu0
      %v5317 = vadd.f32 0.0, %v5316
      %5318 = vmatmul.f32.gmra.mxu0 %v5128
      %v5319 = vpop.f32.mrf.mxu0
      %v5320 = vadd.f32 0.0, %v5319
      %5321 = vdwg.mxu0
      %v5322 = vrot.slane %v5117, 4
      %v5324 = vmul.f32 %v5059, %v5322
      %v5325 = vperm.slane %v5324, 4
      %v5326 = vmul.f32 %v5325, %v5311
      %v5327 = vmul.f32 %v5325, %v5314
      %v5328 = vmul.f32 %v5325, %v5317
      %v5329 = vmul.f32 %v5325, %v5320
      %v5330 = vadd.f32 %v5289, %v5326
      %v5331 = vadd.f32 %v5290, %v5327
      %v5332 = vadd.f32 %v5291, %v5328
      %v5333 = vadd.f32 %v5292, %v5329
      %5334 = vmatpush.msra.mxu0 0.0
      %5335 = vmatpush.msra.mxu0 0.0
      %5336 = vmatpush.msra.mxu0 0.0
      %5337 = vmatpush.msra.mxu0 0.0
      %5338 = vmatpush.msra.mxu0 0.0
      %5339 = vmatpush.msra.mxu0 0.0
      %5340 = vmatpush.msra.mxu0 0.0
      %5341 = vmatpush.msra.mxu0 0.0
      %5342 = vmatpush.msra.mxu0 0.0
      %5343 = vmatpush.msra.mxu0 0.0
      %5344 = vmatpush.msra.mxu0 0.0
      %5345 = vmatpush.msra.mxu0 0.0
      %5346 = vmatpush.msra.mxu0 %v4503
      %5347 = vmatpush.msra.mxu0 %v4502
      %5348 = vmatpush.msra.mxu0 %v4501
      %5349 = vmatpush.msra.mxu0 %v4500
      %5350 = vmatmul.f32.gmra.mxu0 %v5119
      %v5351 = vpop.f32.mrf.mxu0
      %v5352 = vadd.f32 0.0, %v5351
      %5353 = vmatmul.f32.gmra.mxu0 %v5122
      %v5354 = vpop.f32.mrf.mxu0
      %v5355 = vadd.f32 0.0, %v5354
      %5356 = vmatmul.f32.gmra.mxu0 %v5125
      %v5357 = vpop.f32.mrf.mxu0
      %v5358 = vadd.f32 0.0, %v5357
      %5359 = vmatmul.f32.gmra.mxu0 %v5128
      %v5360 = vpop.f32.mrf.mxu0
      %v5361 = vadd.f32 0.0, %v5360
      %5362 = vdwg.mxu0
      %v5363 = vrot.slane %v5117, 3
      %v5365 = vmul.f32 %v5064, %v5363
      %v5366 = vperm.slane %v5365, 5
      %v5367 = vmul.f32 %v5366, %v5352
      %v5368 = vmul.f32 %v5366, %v5355
      %v5369 = vmul.f32 %v5366, %v5358
      %v5370 = vmul.f32 %v5366, %v5361
      %v5371 = vadd.f32 %v5330, %v5367
      %v5372 = vadd.f32 %v5331, %v5368
      %v5373 = vadd.f32 %v5332, %v5369
      %v5374 = vadd.f32 %v5333, %v5370
      %5375 = vmatpush.msra.mxu0 0.0
      %5376 = vmatpush.msra.mxu0 0.0
      %5377 = vmatpush.msra.mxu0 0.0
      %5378 = vmatpush.msra.mxu0 0.0
      %5379 = vmatpush.msra.mxu0 0.0
      %5380 = vmatpush.msra.mxu0 0.0
      %5381 = vmatpush.msra.mxu0 0.0
      %5382 = vmatpush.msra.mxu0 0.0
      %5383 = vmatpush.msra.mxu0 0.0
      %5384 = vmatpush.msra.mxu0 0.0
      %5385 = vmatpush.msra.mxu0 0.0
      %5386 = vmatpush.msra.mxu0 0.0
      %5387 = vmatpush.msra.mxu0 %v4516
      %5388 = vmatpush.msra.mxu0 %v4515
      %5389 = vmatpush.msra.mxu0 %v4514
      %5390 = vmatpush.msra.mxu0 %v4513
      %5391 = vmatmul.f32.gmra.mxu0 %v5119
      %v5392 = vpop.f32.mrf.mxu0
      %v5393 = vadd.f32 0.0, %v5392
      %5394 = vmatmul.f32.gmra.mxu0 %v5122
      %v5395 = vpop.f32.mrf.mxu0
      %v5396 = vadd.f32 0.0, %v5395
      %5397 = vmatmul.f32.gmra.mxu0 %v5125
      %v5398 = vpop.f32.mrf.mxu0
      %v5399 = vadd.f32 0.0, %v5398
      %5400 = vmatmul.f32.gmra.mxu0 %v5128
      %v5401 = vpop.f32.mrf.mxu0
      %v5402 = vadd.f32 0.0, %v5401
      %5403 = vdwg.mxu0
      %v5404 = vrot.slane %v5117, 2
      %v5406 = vmul.f32 %v5069, %v5404
      %v5407 = vperm.slane %v5406, 6
      %v5408 = vmul.f32 %v5407, %v5393
      %v5409 = vmul.f32 %v5407, %v5396
      %v5410 = vmul.f32 %v5407, %v5399
      %v5411 = vmul.f32 %v5407, %v5402
      %v5412 = vadd.f32 %v5371, %v5408
      %v5413 = vadd.f32 %v5372, %v5409
      %v5414 = vadd.f32 %v5373, %v5410
      %v5415 = vadd.f32 %v5374, %v5411
      %5416 = vmatpush.msra.mxu0 0.0
      %5417 = vmatpush.msra.mxu0 0.0
      %5418 = vmatpush.msra.mxu0 0.0
      %5419 = vmatpush.msra.mxu0 0.0
      %5420 = vmatpush.msra.mxu0 0.0
      %5421 = vmatpush.msra.mxu0 0.0
      %5422 = vmatpush.msra.mxu0 0.0
      %5423 = vmatpush.msra.mxu0 0.0
      %5424 = vmatpush.msra.mxu0 0.0
      %5425 = vmatpush.msra.mxu0 0.0
      %5426 = vmatpush.msra.mxu0 0.0
      %5427 = vmatpush.msra.mxu0 0.0
      %5428 = vmatpush.msra.mxu0 %v4529
      %5429 = vmatpush.msra.mxu0 %v4528
      %5430 = vmatpush.msra.mxu0 %v4527
      %5431 = vmatpush.msra.mxu0 %v4526
      %5432 = vmatmul.f32.gmra.mxu0 %v5119
      %v5433 = vpop.f32.mrf.mxu0
      %v5434 = vadd.f32 0.0, %v5433
      %5435 = vmatmul.f32.gmra.mxu0 %v5122
      %v5436 = vpop.f32.mrf.mxu0
      %v5437 = vadd.f32 0.0, %v5436
      %5438 = vmatmul.f32.gmra.mxu0 %v5125
      %v5439 = vpop.f32.mrf.mxu0
      %v5440 = vadd.f32 0.0, %v5439
      %5441 = vmatmul.f32.gmra.mxu0 %v5128
      %v5442 = vpop.f32.mrf.mxu0
      %v5443 = vadd.f32 0.0, %v5442
      %5444 = vdwg.mxu0
      %v5445 = vrot.slane %v5117, 1
      %v5447 = vmul.f32 %v5074, %v5445
      %v5448 = vperm.slane %v5447, 7
      %v5449 = vmul.f32 %v5448, %v5434
      %v5450 = vmul.f32 %v5448, %v5437
      %v5451 = vmul.f32 %v5448, %v5440
      %v5452 = vmul.f32 %v5448, %v5443
      %v5453 = vadd.f32 %v5412, %v5449
      %v5454 = vadd.f32 %v5413, %v5450
      %v5455 = vadd.f32 %v5414, %v5451
      %v5456 = vadd.f32 %v5415, %v5452
      %s5457 = smul.u32 %s27, 32
      %s5458 = scalar_lea.vmem [#allocation3], %s5457
      %v5459 = vld [vmem:[%s5458] sm:$0xff]
      %v5460 = vld [vmem:[%s5458 + $0x8] sm:$0xff]
      %v5461 = vld [vmem:[%s5458 + $0x10] sm:$0xff]
      %v5462 = vld [vmem:[%s5458 + $0x18] sm:$0xff]
      %v5463 = vld [vmem:[%s8] sm:$0xff]
      %v5464 = vld [vmem:[%s8 + $0x8] sm:$0xff]
      %v5465 = vld [vmem:[%s8 + $0x10] sm:$0xff]
      %v5466 = vld [vmem:[%s8 + $0x18] sm:$0xff]
      %v5468 = vsel %vm4562, %v5463, 0
      %v5471 = vsel %vm4562, %v5464, 0
      %v5474 = vsel %vm4562, %v5465, 0
      %v5477 = vsel %vm4562, %v5466, 0
      %5479 = vmatpush.msra.mxu0 0.0
      %5480 = vmatpush.msra.mxu0 0.0
      %5481 = vmatpush.msra.mxu0 0.0
      %5482 = vmatpush.msra.mxu0 0.0
      %5483 = vmatpush.msra.mxu0 0.0
      %5484 = vmatpush.msra.mxu0 0.0
      %5485 = vmatpush.msra.mxu0 0.0
      %5486 = vmatpush.msra.mxu0 0.0
      %5487 = vmatpush.msra.mxu0 0.0
      %5488 = vmatpush.msra.mxu0 0.0
      %5489 = vmatpush.msra.mxu0 0.0
      %5490 = vmatpush.msra.mxu0 0.0
      %5491 = vmatpush.msra.mxu0 %v5456
      %5492 = vmatpush.msra.mxu0 %v5455
      %5493 = vmatpush.msra.mxu0 %v5454
      %5494 = vmatpush.msra.mxu0 %v5453
      %5495 = vmatmul.f32.gmra.mxu0 %v5468
      %v5496 = vpop.f32.mrf.mxu0
      %v5497 = vadd.f32 0.0, %v5496
      %5498 = vmatmul.f32.gmra.mxu0 %v5471
      %v5499 = vpop.f32.mrf.mxu0
      %v5500 = vadd.f32 0.0, %v5499
      %5501 = vmatmul.f32.gmra.mxu0 %v5474
      %v5502 = vpop.f32.mrf.mxu0
      %v5503 = vadd.f32 0.0, %v5502
      %5504 = vmatmul.f32.gmra.mxu0 %v5477
      %v5505 = vpop.f32.mrf.mxu0
      %v5506 = vadd.f32 0.0, %v5505
      %5507 = vdwg.mxu0
      %v5508 = vmul.f32 %v5497, %v5459
      %v5509 = vmul.f32 %v5500, %v5460
      %v5510 = vmul.f32 %v5503, %v5461
      %v5511 = vmul.f32 %v5506, %v5462
      %v5512 = vsel %vm634, %v5508, 0.0
      %v5513 = vsel %vm634, %v5509, 0.0
      %v5514 = vadd.f32 %v5512, %v5513
      %v5515 = vsel %vm634, %v5510, 0.0
      %v5516 = vadd.f32 %v5514, %v5515
      %v5517 = vsel %vm634, %v5511, 0.0
      %v5518 = vadd.f32 %v5516, %v5517
      %v5519 = vrot.slane %v5518, 4
      %v5520 = vadd.f32 %v5518, %v5519
      %v5521 = vrot.slane %v5520, 2
      %v5522 = vadd.f32 %v5520, %v5521
      %v5523 = vrot.slane %v5522, 1
      %v5524 = vadd.f32 %v5522, %v5523
      %v5525 = vmul.f32 %v5524, 0.17677669
      %v5526 = vtanh.pop %v5525
      %v5527 = vmul.f32 %v5526, 10.0
      %v5528 = vsel %vm454, %v5527, -1e+09
      %v5529 = vsel %vm458, 1, 0
      %v5530 = vperm.slane %v5529, 0
      %vm5531 = vcmp.eq.s32.totalorder %v5530, 1
      %v5532 = vsel %vm5531, %v5528, -1e+09
      %5533 = vst.msk [vmem:[%s448] sm:$0xff] %vm634, %v5532
      %v5534 = vsel %vm5531, %v4554, 0.0
      %v5535 = vsel %vm5531, %v4555, 0.0
      %v5536 = vsel %vm5531, %v4556, 0.0
      %v5537 = vsel %vm5531, %v4557, 0.0
      %p5538 = scmp.eq.s32.totalorder %s27, 0
      // Predicated region
      $region57: #{tpu_custom_call.1} parent=55 // pred_check
        %p5539 = pneg %p5538
      $region58: #{tpu_custom_call.1} parent=55 // pred_check_branch
        %5541 = sbr.rel (%p5539) target = $region60
      $region59: #{tpu_custom_call.1} parent=55 // pred_region
        %5542 = vst.msk [vmem:[%s452] sm:$0xff] %vm634, 0.0
        %5543 = vst.msk [vmem:[%s452 + $0x8] sm:$0xff] %vm634, 0.0
        %5544 = vst.msk [vmem:[%s452 + $0x10] sm:$0xff] %vm634, 0.0
        %5545 = vst.msk [vmem:[%s452 + $0x18] sm:$0xff] %vm634, 0.0
      $region60: #{tpu_custom_call.1} parent=55 // pred_fallthru
        _
      %v5546 = vld [vmem:[%s452] sm:$0xff]
      %v5547 = vld [vmem:[%s452 + $0x8] sm:$0xff]
      %v5548 = vld [vmem:[%s452 + $0x10] sm:$0xff]
      %v5549 = vld [vmem:[%s452 + $0x18] sm:$0xff]
      %v5550 = vadd.f32 %v5546, %v5534
      %v5551 = vadd.f32 %v5547, %v5535
      %v5552 = vadd.f32 %v5548, %v5536
      %v5553 = vadd.f32 %v5549, %v5537
      %5554 = vst.msk [vmem:[%s452] sm:$0xff] %vm634, %v5550
      %5555 = vst.msk [vmem:[%s452 + $0x8] sm:$0xff] %vm634, %v5551
      %5556 = vst.msk [vmem:[%s452 + $0x10] sm:$0xff] %vm634, %v5552
      %5557 = vst.msk [vmem:[%s452 + $0x18] sm:$0xff] %vm634, %v5553
      %p5558 = scmp.lt.s32.totalorder %s27, 7
      %s5559 = scalar_select %p5558, %s27, 7
      %p5560 = scmp.lt.s32.totalorder %s26, 0
      %s5561 = scalar_select %p5560, %s26, 0
      %s5562 = sadd.s32 %s5561, %s5559
      %s5563 = smul.addr %s5562, 8
      %s5564 = scalar_lea.vmem %s9, %s5563
      %p5565 = scmp.lt.s32.totalorder %s26, 0
      %s5566 = scalar_select %p5565, %s26, 0
      %s5567 = smul.addr %s5566, 8
      %s5568 = scalar_lea.vmem %s10, %s5567
      // Predicated region
      $region61: #{tpu_custom_call.1} parent=55 // pred_check
        %p5569 = pneg %p264
      $region62: #{tpu_custom_call.1} parent=55 // pred_check_branch
        %5571 = sbr.rel (%p5569) target = $region64
      $region63: #{tpu_custom_call.1} parent=55 // pred_region
        _
      $region64: #{tpu_custom_call.1} parent=55 // pred_fallthru
        _
      // Predicated region
      $region65: #{tpu_custom_call.1} parent=55 // pred_check
        %p5572 = pneg %p290
      $region66: #{tpu_custom_call.1} parent=55 // pred_check_branch
        %5574 = sbr.rel (%p5572) target = $region68
      $region67: #{tpu_custom_call.1} parent=55 // pred_region
        _
      $region68: #{tpu_custom_call.1} parent=55 // pred_fallthru
        _
      // Predicated region
      $region69: #{tpu_custom_call.1} parent=55 // pred_check
        %p5575 = pneg %p290
      $region70: #{tpu_custom_call.1} parent=55 // pred_check_branch
        %5577 = sbr.rel (%p5575) target = $region72
      $region71: #{tpu_custom_call.1} parent=55 // pred_region
        %p5578 = scmp.lt.s32.totalorder %s26, 0
        %s5579 = scalar_select %p5578, %s26, 0
        %s5580 = smul.addr %s5579, 8
        %s5581 = scalar_lea.vmem %s10, %s5580
      $region72: #{tpu_custom_call.1} parent=55 // pred_fallthru
        _
    $region56: #{tpu_custom_call.1} parent=5 // pred_fallthru
      _
    %p5582 = scmp.le.s32.totalorder 2, %s17
    // Predicated region
    $region73: #{tpu_custom_call.1} parent=5 // pred_check
      %p5583 = pneg %p5582
    $region74: #{tpu_custom_call.1} parent=5 // pred_check_branch
      %5585 = sbr.rel (%p5583) target = $region76
    $region75: #{tpu_custom_call.1} parent=5 // pred_region
      %s5586 = ssub.s32 %s17, 2
      // Predicated region
      $region77: #{tpu_custom_call.1} parent=75 // pred_check
        %p5587 = pneg %p270
      $region78: #{tpu_custom_call.1} parent=75 // pred_check_branch
        %5589 = sbr.rel (%p5587) target = $region80
      $region79: #{tpu_custom_call.1} parent=75 // pred_region
        %p5590 = scmp.lt.s32.totalorder %s29, 7
        %s5591 = scalar_select %p5590, %s29, 7
        %p5592 = scmp.lt.s32.totalorder %s28, 0
        %s5593 = scalar_select %p5592, %s28, 0
        %s5594 = sadd.s32 %s5593, %s5591
        %s5595 = smul.addr %s5594, 8
        %s5596 = scalar_lea.vmem %s9, %s5595
      $region80: #{tpu_custom_call.1} parent=75 // pred_fallthru
        _
    $region76: #{tpu_custom_call.1} parent=5 // pred_fallthru
      _
  $region6: #{tpu_custom_call.1} parent=0 // loop_footer
    %s21 = sadd.s32 1, %s17
  $region7: #{tpu_custom_call.1} parent=0 // loop_footer_branch
    %16 = sbr.rel target = $region3
  $region8: #{tpu_custom_call.1} parent=0 // loop_exit
    _

</llo_original>
